<compile_context>
chip_gen: v6e
topology: v6e:2x2x1
jax: 0.10.0
libtpu: 0.0.40
codegen_flags: <defaults>
</compile_context>

<pallas_src>
import jax
import jax.numpy as jnp
from jax.experimental import pallas as pl
from jax.experimental.pallas import tpu as pltpu


# ---------------------------------------------------------------------------
# Pallas kernels
# ---------------------------------------------------------------------------

def _conv1_pool_relu_kernel(p_ref, w_ref, b_ref, o_ref):
    """Fused conv1 (patch matmul) + 2x2 maxpool + bias + ReLU, transposed layout.

    p_ref: (4, 25, TM)  pool-group im2col patches; columns = pooled output pixels
    w_ref: (6, 25)      conv1 weight (cout, ky*5+kx)           [VMEM-resident]
    b_ref: (6, 1)
    o_ref: (6, TM)      lane-dense output (channels x pixels)
    """
    w = w_ref[...]
    z = jnp.dot(w, p_ref[0], preferred_element_type=jnp.float32)
    for g in range(1, 4):
        z = jnp.maximum(z, jnp.dot(w, p_ref[g], preferred_element_type=jnp.float32))
    o_ref[...] = jnp.maximum(z + b_ref[...], 0.0)


def _conv2_mlp_kernel(p_ref, w2_ref, b2_ref, fc1_ref, fb1_ref,
                      fc2_ref, fb2_ref, fc3_ref, fb3_ref, o_ref):
    """Fused conv2 + 2x2 maxpool + ReLU + flatten + 3-layer MLP, transposed layout.

    p_ref:  (16, 4, 150, BT) conv2 pool-group patches: (spatial pos s, pool group g,
                             feature ci*25+ky*5+kx, batch)
    w2_ref: (16, 150)        conv2 weight
    b2_ref: (16, 1)
    fc1_ref:(16, 120, 16)    fc1 weight re-blocked per spatial position s so the
                             torch NCHW flatten is folded in:
                             fc1_ref[s, o, c] == fc1_w[o, c*16 + s]
    fb1_ref:(120, 1)  fc2_ref:(84, 120)  fb2_ref:(84, 1)  fc3_ref:(10, 84)  fb3_ref:(10, 1)
    o_ref:  (10, BT)         transposed logits (lane-dense over batch)
    """
    bt = o_ref.shape[1]
    w2 = w2_ref[...]
    b2 = b2_ref[...]
    h = jnp.zeros((120, bt), jnp.float32)
    for s in range(16):                      # 16 pooled spatial positions (4x4)
        z = jnp.dot(w2, p_ref[s, 0], preferred_element_type=jnp.float32)
        for g in range(1, 4):
            z = jnp.maximum(z, jnp.dot(w2, p_ref[s, g],
                                       preferred_element_type=jnp.float32))
        z = jnp.maximum(z + b2, 0.0)         # (16, BT) pooled+relu conv2 at position s
        h = h + jnp.dot(fc1_ref[s], z, preferred_element_type=jnp.float32)
    h = jnp.maximum(h + fb1_ref[...], 0.0)
    h = jnp.maximum(jnp.dot(fc2_ref[...], h, preferred_element_type=jnp.float32)
                    + fb2_ref[...], 0.0)
    o_ref[...] = (jnp.dot(fc3_ref[...], h, preferred_element_type=jnp.float32)
                  + fb3_ref[...])


# ---------------------------------------------------------------------------
# pallas_call wrappers
# ---------------------------------------------------------------------------

def _pick_tile(m, max_tile):
    """Largest tile <= max_tile that divides m and is a multiple of 128 (else m)."""
    if m <= max_tile or m % 128 != 0:
        return m
    t = max_tile - (max_tile % 128)
    while t >= 128:
        if m % t == 0:
            return t
        t -= 128
    return m


def conv1_pool_relu(p1, w, b):
    cout, f = w.shape
    m = p1.shape[-1]
    tm = _pick_tile(m, 4608)                 # ~4.6 MiB of patches per step, double-buffered
    return pl.pallas_call(
        _conv1_pool_relu_kernel,
        out_shape=jax.ShapeDtypeStruct((cout, m), jnp.float32),
        grid_spec=pltpu.PrefetchScalarGridSpec(
            num_scalar_prefetch=0,
            grid=(m // tm,),
            in_specs=[
                pl.BlockSpec((4, f, tm), lambda i: (0, 0, i)),
                pl.BlockSpec((cout, f), lambda i: (0, 0)),   # constant -> stays resident
                pl.BlockSpec((cout, 1), lambda i: (0, 0)),
            ],
            out_specs=pl.BlockSpec((cout, tm), lambda i: (0, i)),
        ),
        compiler_params=pltpu.CompilerParams(dimension_semantics=("parallel",)),
    )(p1, w, b)


def conv2_mlp(p2, w2, b2, fc1, fb1, fc2, fb2, fc3, fb3):
    n = p2.shape[-1]
    bt = _pick_tile(n, 128)                  # ~5 MiB of patches per step, double-buffered

    def full(shape):
        return pl.BlockSpec(shape, lambda i, _s=shape: (0,) * len(_s))

    return pl.pallas_call(
        _conv2_mlp_kernel,
        out_shape=jax.ShapeDtypeStruct((10, n), jnp.float32),
        grid_spec=pltpu.PrefetchScalarGridSpec(
            num_scalar_prefetch=0,
            grid=(n // bt,),
            in_specs=[
                pl.BlockSpec((16, 4, 150, bt), lambda i: (0, 0, 0, i)),
                full((16, 150)), full((16, 1)),
                full((16, 120, 16)), full((120, 1)),
                full((84, 120)), full((84, 1)),
                full((10, 84)), full((10, 1)),
            ],
            out_specs=pl.BlockSpec((10, bt), lambda i: (0, i)),
        ),
        compiler_params=pltpu.CompilerParams(dimension_semantics=("parallel",)),
    )(p2, w2, b2, fc1, fb1, fc2, fb2, fc3, fb3)


# ---------------------------------------------------------------------------
# Parameters (deterministic synthetic init: xavier-uniform weights, zero biases)
# ---------------------------------------------------------------------------

def _xavier(key, shape, fan_in, fan_out):
    bound = (6.0 / (fan_in + fan_out)) ** 0.5
    return jax.random.uniform(key, shape, jnp.float32, -bound, bound)


def init_params(key):
    ks = jax.random.split(key, 5)
    return {
        "conv1_w": _xavier(ks[0], (6, 1, 5, 5), 1 * 25, 6 * 25),
        "conv1_b": jnp.zeros((6,), jnp.float32),
        "conv2_w": _xavier(ks[1], (16, 6, 5, 5), 6 * 25, 16 * 25),
        "conv2_b": jnp.zeros((16,), jnp.float32),
        "fc1_w": _xavier(ks[2], (120, 256), 256, 120),
        "fc1_b": jnp.zeros((120,), jnp.float32),
        "fc2_w": _xavier(ks[3], (84, 120), 120, 84),
        "fc2_b": jnp.zeros((84,), jnp.float32),
        "fc3_w": _xavier(ks[4], (10, 84), 84, 10),
        "fc3_b": jnp.zeros((10,), jnp.float32),
    }


def prep_params(p):
    """One-time rearrangement of PyTorch-layout params into kernel-friendly layouts."""
    return {
        "w1": p["conv1_w"].reshape(6, 25),            # (cout, ky*5+kx); cin == 1
        "b1": p["conv1_b"].reshape(6, 1),
        "w2": p["conv2_w"].reshape(16, 150),          # (cout, ci*25 + ky*5 + kx)
        "b2": p["conv2_b"].reshape(16, 1),
        # torch flatten order is f = c*16 + (ph*4 + pw); re-block fc1 per spatial pos s
        # so the flatten permutation lives in the weights, not the activations.
        "fc1": p["fc1_w"].reshape(120, 16, 16).transpose(2, 0, 1),   # (s, 120, 16)
        "fb1": p["fc1_b"].reshape(120, 1),
        "fc2": p["fc2_w"],                            # (84, 120)
        "fb2": p["fc2_b"].reshape(84, 1),
        "fc3": p["fc3_w"],                            # (10, 84)
        "fb3": p["fc3_b"].reshape(10, 1),
    }


# ---------------------------------------------------------------------------
# Forward pass (matches Net.forward): x (B, 2, 1, 28, 28) -> (2*B, 10)
# ---------------------------------------------------------------------------

@jax.jit
def net_forward(x, kp):
    x = x.reshape(-1, 28, 28).astype(jnp.float32)     # (N, 28, 28), N = 2*B
    n = x.shape[0]

    # --- stage-1 glue (pure layout): transposed im2col + stride-2 pool-group split ---
    # p1[g=2a+b, k=5ky+kx, col=n*144+ph*12+pw] = x[n, 2ph+a+ky, 2pw+b+kx]
    pat = jnp.stack([x[:, ky:ky + 24, kx:kx + 24]
                     for ky in range(5) for kx in range(5)], axis=0)       # (25,N,24,24)
    p1 = jnp.stack([pat[:, :, a::2, b::2] for a in (0, 1) for b in (0, 1)],
                   axis=0).reshape(4, 25, n * 144)

    h1 = conv1_pool_relu(p1, kp["w1"], kp["b1"])                           # (6, N*144)

    # --- stage-2 glue: conv2 transposed im2col on the (6, N, 12, 12) activation ---
    h1 = h1.reshape(6, n, 12, 12)
    pat2 = jnp.stack([h1[:, :, ky:ky + 8, kx:kx + 8]
                      for ky in range(5) for kx in range(5)], axis=1)      # (6,25,N,8,8)
    p2 = jnp.stack([pat2[:, :, :, a::2, b::2] for a in (0, 1) for b in (0, 1)],
                   axis=0)                                                 # (4,6,25,N,4,4)
    p2 = p2.transpose(4, 5, 0, 1, 2, 3).reshape(16, 4, 150, n)             # (s,g,ci*25+k,n)

    logits_t = conv2_mlp(p2, kp["w2"], kp["b2"], kp["fc1"], kp["fb1"],
                         kp["fc2"], kp["fb2"], kp["fc3"], kp["fb3"])       # (10, N)
    return logits_t.T                                                      # (N, 10)


# ---------------------------------------------------------------------------
# Pure-JAX reference (for correctness check)
# ---------------------------------------------------------------------------

def ref_forward(x, params):
    x = x.reshape(-1, 1, 28, 28).astype(jnp.float32)

    def conv(y, w, b):
        y = jax.lax.conv_general_dilated(
            y, w, (1, 1), "VALID", dimension_numbers=("NCHW", "OIHW", "NCHW"))
        return y + b.reshape(1, -1, 1, 1)

    def maxpool(y):
        return jax.lax.reduce_window(
            y, -jnp.inf, jax.lax.max, (1, 1, 2, 2), (1, 1, 2, 2), "VALID")

    h = jax.nn.relu(maxpool(conv(x, params["conv1_w"], params["conv1_b"])))
    h = jax.nn.relu(maxpool(conv(h, params["conv2_w"], params["conv2_b"])))
    h = h.reshape(h.shape[0], -1)
    h = jax.nn.relu(h @ params["fc1_w"].T + params["fc1_b"])
    h = jax.nn.relu(h @ params["fc2_w"].T + params["fc2_b"])
    return h @ params["fc3_w"].T + params["fc3_b"]


if __name__ == "__main__":
    key = jax.random.PRNGKey(0)
    k_x, k_p = jax.random.split(key)

    # forward() expects (batch_size, 2, 1, 28, 28); 28x28 is required by the 16*4*4 flatten.
    x = jax.random.normal(k_x, (2, 2, 1, 28, 28), jnp.float32)
    params = init_params(k_p)
    kparams = prep_params(params)

    out = net_forward(x, kparams)
    out = jax.block_until_ready(out)
    assert out.shape == (4, 10), out.shape

    ref = ref_forward(x, params)
    max_err = float(jnp.max(jnp.abs(out - ref)))
    assert jnp.allclose(out, ref, rtol=1e-2, atol=1e-2), (
        "mismatch vs reference: max abs err = %g" % max_err)

    print("KERNEL_OK")
</pallas_src>

<mosaic_0001>
module attributes {stable_mosaic.version = 11 : i64} {
  func.func @_conv1_pool_relu_kernel(%arg0: i32, %arg1: memref<4x25x576xf32, #tpu.memory_space<vmem>>, %arg2: memref<6x25xf32, #tpu.memory_space<vmem>>, %arg3: memref<6x1xf32, #tpu.memory_space<vmem>>, %arg4: memref<6x576xf32, #tpu.memory_space<vmem>>) attributes {dimension_semantics = [#tpu.dimension_semantics<parallel>], iteration_bounds = array<i64: 1>, scalar_prefetch = 0 : i64, scratch_operands = 0 : i64, tpu.core_type = #tpu.core_type<tc>, window_params = [{transform_indices = @transform_0, window_bounds = array<i64: 4, 25, 576>}, {pipeline_mode = #tpu.pipeline_mode<synchronous>, transform_indices = @transform_1, window_bounds = array<i64: 6, 25>}, {pipeline_mode = #tpu.pipeline_mode<synchronous>, transform_indices = @transform_2, window_bounds = array<i64: 6, 1>}, {transform_indices = @transform_3, window_bounds = array<i64: 6, 576>}]} {
    %c0 = arith.constant 0 : index
    %c0_0 = arith.constant 0 : index
    %0 = vector.load %arg2[%c0, %c0_0] : memref<6x25xf32, #tpu.memory_space<vmem>>, vector<6x25xf32>
    %c0_1 = arith.constant 0 : index
    %c0_2 = arith.constant 0 : index
    %c0_3 = arith.constant 0 : index
    %1 = vector.load %arg1[%c0_1, %c0_2, %c0_3] : memref<4x25x576xf32, #tpu.memory_space<vmem>>, vector<1x25x576xf32>
    %2 = vector.shape_cast %1 : vector<1x25x576xf32> to vector<25x576xf32>
    %cst = arith.constant dense<0.000000e+00> : vector<6x576xf32>
    %3 = tpu.matmul %0, %2, %cst {dimension_numbers = #tpu.dot_dimension_numbers<[1], [0], [0], [1], [0, 0, 1, 1], [], []>} : vector<6x25xf32>, vector<25x576xf32>, vector<6x576xf32> -> vector<6x576xf32>
    %c1 = arith.constant 1 : index
    %c0_4 = arith.constant 0 : index
    %c0_5 = arith.constant 0 : index
    %4 = vector.load %arg1[%c1, %c0_4, %c0_5] : memref<4x25x576xf32, #tpu.memory_space<vmem>>, vector<1x25x576xf32>
    %5 = vector.shape_cast %4 : vector<1x25x576xf32> to vector<25x576xf32>
    %cst_6 = arith.constant dense<0.000000e+00> : vector<6x576xf32>
    %6 = tpu.matmul %0, %5, %cst_6 {dimension_numbers = #tpu.dot_dimension_numbers<[1], [0], [0], [1], [0, 0, 1, 1], [], []>} : vector<6x25xf32>, vector<25x576xf32>, vector<6x576xf32> -> vector<6x576xf32>
    %7 = arith.maximumf %3, %6 : vector<6x576xf32>
    %c2 = arith.constant 2 : index
    %c0_7 = arith.constant 0 : index
    %c0_8 = arith.constant 0 : index
    %8 = vector.load %arg1[%c2, %c0_7, %c0_8] : memref<4x25x576xf32, #tpu.memory_space<vmem>>, vector<1x25x576xf32>
    %9 = vector.shape_cast %8 : vector<1x25x576xf32> to vector<25x576xf32>
    %cst_9 = arith.constant dense<0.000000e+00> : vector<6x576xf32>
    %10 = tpu.matmul %0, %9, %cst_9 {dimension_numbers = #tpu.dot_dimension_numbers<[1], [0], [0], [1], [0, 0, 1, 1], [], []>} : vector<6x25xf32>, vector<25x576xf32>, vector<6x576xf32> -> vector<6x576xf32>
    %11 = arith.maximumf %7, %10 : vector<6x576xf32>
    %c3 = arith.constant 3 : index
    %c0_10 = arith.constant 0 : index
    %c0_11 = arith.constant 0 : index
    %12 = vector.load %arg1[%c3, %c0_10, %c0_11] : memref<4x25x576xf32, #tpu.memory_space<vmem>>, vector<1x25x576xf32>
    %13 = vector.shape_cast %12 : vector<1x25x576xf32> to vector<25x576xf32>
    %cst_12 = arith.constant dense<0.000000e+00> : vector<6x576xf32>
    %14 = tpu.matmul %0, %13, %cst_12 {dimension_numbers = #tpu.dot_dimension_numbers<[1], [0], [0], [1], [0, 0, 1, 1], [], []>} : vector<6x25xf32>, vector<25x576xf32>, vector<6x576xf32> -> vector<6x576xf32>
    %15 = arith.maximumf %11, %14 : vector<6x576xf32>
    %c0_13 = arith.constant 0 : index
    %c0_14 = arith.constant 0 : index
    %16 = vector.load %arg3[%c0_13, %c0_14] : memref<6x1xf32, #tpu.memory_space<vmem>>, vector<6x1xf32>
    %17 = vector.broadcast %16 : vector<6x1xf32> to vector<6x576xf32>
    %18 = arith.addf %15, %17 : vector<6x576xf32>
    %cst_15 = arith.constant 0.000000e+00 : f32
    %19 = vector.broadcast %cst_15 : f32 to vector<6x576xf32>
    %20 = arith.maximumf %18, %19 : vector<6x576xf32>
    %c0_16 = arith.constant 0 : index
    %c0_17 = arith.constant 0 : index
    %21 = vector.load %arg4[%c0_16, %c0_17] : memref<6x576xf32, #tpu.memory_space<vmem>>, vector<6x576xf32>
    tpu.vector_store %arg4[%c0_16, %c0_17], %20 {strides = array<i32>} : memref<6x576xf32, #tpu.memory_space<vmem>>, vector<6x576xf32>,
    return
  }
  func.func @transform_0(%arg0: i32) -> (i32, i32, i32) {
    %c0_i32 = arith.constant 0 : i32
    %c0_i32_0 = arith.constant 0 : i32
    %c0_i32_1 = arith.constant 0 : i32
    return %c0_i32, %c0_i32_0, %arg0 : i32, i32, i32
  }
  func.func @transform_1(%arg0: i32) -> (i32, i32) {
    %c0_i32 = arith.constant 0 : i32
    %c0_i32_0 = arith.constant 0 : i32
    %c0_i32_1 = arith.constant 0 : i32
    return %c0_i32, %c0_i32_0 : i32, i32
  }
  func.func @transform_2(%arg0: i32) -> (i32, i32) {
    %c0_i32 = arith.constant 0 : i32
    %c0_i32_0 = arith.constant 0 : i32
    %c0_i32_1 = arith.constant 0 : i32
    return %c0_i32, %c0_i32_0 : i32, i32
  }
  func.func @transform_3(%arg0: i32) -> (i32, i32) {
    %c0_i32 = arith.constant 0 : i32
    %c0_i32_0 = arith.constant 0 : i32
    return %c0_i32, %arg0 : i32, i32
  }
}

module attributes {stable_mosaic.version = 11 : i64} {
  func.func @_conv2_mlp_kernel(%arg0: i32, %arg1: memref<16x4x150x4xf32, #tpu.memory_space<vmem>>, %arg2: memref<16x150xf32, #tpu.memory_space<vmem>>, %arg3: memref<16x1xf32, #tpu.memory_space<vmem>>, %arg4: memref<16x120x16xf32, #tpu.memory_space<vmem>>, %arg5: memref<120x1xf32, #tpu.memory_space<vmem>>, %arg6: memref<84x120xf32, #tpu.memory_space<vmem>>, %arg7: memref<84x1xf32, #tpu.memory_space<vmem>>, %arg8: memref<10x84xf32, #tpu.memory_space<vmem>>, %arg9: memref<10x1xf32, #tpu.memory_space<vmem>>, %arg10: memref<10x4xf32, #tpu.memory_space<vmem>>) attributes {dimension_semantics = [#tpu.dimension_semantics<parallel>], iteration_bounds = array<i64: 1>, scalar_prefetch = 0 : i64, scratch_operands = 0 : i64, tpu.core_type = #tpu.core_type<tc>, window_params = [{transform_indices = @transform_0, window_bounds = array<i64: 16, 4, 150, 4>}, {pipeline_mode = #tpu.pipeline_mode<synchronous>, transform_indices = @transform_1, window_bounds = array<i64: 16, 150>}, {pipeline_mode = #tpu.pipeline_mode<synchronous>, transform_indices = @transform_2, window_bounds = array<i64: 16, 1>}, {pipeline_mode = #tpu.pipeline_mode<synchronous>, transform_indices = @transform_3, window_bounds = array<i64: 16, 120, 16>}, {pipeline_mode = #tpu.pipeline_mode<synchronous>, transform_indices = @transform_4, window_bounds = array<i64: 120, 1>}, {pipeline_mode = #tpu.pipeline_mode<synchronous>, transform_indices = @transform_5, window_bounds = array<i64: 84, 120>}, {pipeline_mode = #tpu.pipeline_mode<synchronous>, transform_indices = @transform_6, window_bounds = array<i64: 84, 1>}, {pipeline_mode = #tpu.pipeline_mode<synchronous>, transform_indices = @transform_7, window_bounds = array<i64: 10, 84>}, {pipeline_mode = #tpu.pipeline_mode<synchronous>, transform_indices = @transform_8, window_bounds = array<i64: 10, 1>}, {transform_indices = @transform_9, window_bounds = array<i64: 10, 4>}]} {
    %c0 = arith.constant 0 : index
    %c0_0 = arith.constant 0 : index
    %0 = vector.load %arg2[%c0, %c0_0] : memref<16x150xf32, #tpu.memory_space<vmem>>, vector<16x150xf32>
    %c0_1 = arith.constant 0 : index
    %c0_2 = arith.constant 0 : index
    %1 = vector.load %arg3[%c0_1, %c0_2] : memref<16x1xf32, #tpu.memory_space<vmem>>, vector<16x1xf32>
    %cst = arith.constant 0.000000e+00 : f32
    %2 = vector.broadcast %cst : f32 to vector<120x4xf32>
    %c0_3 = arith.constant 0 : index
    %c0_4 = arith.constant 0 : index
    %c0_5 = arith.constant 0 : index
    %c0_6 = arith.constant 0 : index
    %3 = vector.load %arg1[%c0_3, %c0_4, %c0_5, %c0_6] : memref<16x4x150x4xf32, #tpu.memory_space<vmem>>, vector<1x1x150x4xf32>
    %4 = vector.shape_cast %3 : vector<1x1x150x4xf32> to vector<150x4xf32>
    %cst_7 = arith.constant dense<0.000000e+00> : vector<16x4xf32>
    %5 = tpu.matmul %0, %4, %cst_7 {dimension_numbers = #tpu.dot_dimension_numbers<[1], [0], [0], [1], [0, 0, 1, 1], [], []>} : vector<16x150xf32>, vector<150x4xf32>, vector<16x4xf32> -> vector<16x4xf32>
    %c0_8 = arith.constant 0 : index
    %c1 = arith.constant 1 : index
    %c0_9 = arith.constant 0 : index
    %c0_10 = arith.constant 0 : index
    %6 = vector.load %arg1[%c0_8, %c1, %c0_9, %c0_10] : memref<16x4x150x4xf32, #tpu.memory_space<vmem>>, vector<1x1x150x4xf32>
    %7 = vector.shape_cast %6 : vector<1x1x150x4xf32> to vector<150x4xf32>
    %cst_11 = arith.constant dense<0.000000e+00> : vector<16x4xf32>
    %8 = tpu.matmul %0, %7, %cst_11 {dimension_numbers = #tpu.dot_dimension_numbers<[1], [0], [0], [1], [0, 0, 1, 1], [], []>} : vector<16x150xf32>, vector<150x4xf32>, vector<16x4xf32> -> vector<16x4xf32>
    %9 = arith.maximumf %5, %8 : vector<16x4xf32>
    %c0_12 = arith.constant 0 : index
    %c2 = arith.constant 2 : index
    %c0_13 = arith.constant 0 : index
    %c0_14 = arith.constant 0 : index
    %10 = vector.load %arg1[%c0_12, %c2, %c0_13, %c0_14] : memref<16x4x150x4xf32, #tpu.memory_space<vmem>>, vector<1x1x150x4xf32>
    %11 = vector.shape_cast %10 : vector<1x1x150x4xf32> to vector<150x4xf32>
    %cst_15 = arith.constant dense<0.000000e+00> : vector<16x4xf32>
    %12 = tpu.matmul %0, %11, %cst_15 {dimension_numbers = #tpu.dot_dimension_numbers<[1], [0], [0], [1], [0, 0, 1, 1], [], []>} : vector<16x150xf32>, vector<150x4xf32>, vector<16x4xf32> -> vector<16x4xf32>
    %13 = arith.maximumf %9, %12 : vector<16x4xf32>
    %c0_16 = arith.constant 0 : index
    %c3 = arith.constant 3 : index
    %c0_17 = arith.constant 0 : index
    %c0_18 = arith.constant 0 : index
    %14 = vector.load %arg1[%c0_16, %c3, %c0_17, %c0_18] : memref<16x4x150x4xf32, #tpu.memory_space<vmem>>, vector<1x1x150x4xf32>
    %15 = vector.shape_cast %14 : vector<1x1x150x4xf32> to vector<150x4xf32>
    %cst_19 = arith.constant dense<0.000000e+00> : vector<16x4xf32>
    %16 = tpu.matmul %0, %15, %cst_19 {dimension_numbers = #tpu.dot_dimension_numbers<[1], [0], [0], [1], [0, 0, 1, 1], [], []>} : vector<16x150xf32>, vector<150x4xf32>, vector<16x4xf32> -> vector<16x4xf32>
    %17 = arith.maximumf %13, %16 : vector<16x4xf32>
    %18 = vector.broadcast %1 : vector<16x1xf32> to vector<16x4xf32>
    %19 = arith.addf %17, %18 : vector<16x4xf32>
    %cst_20 = arith.constant 0.000000e+00 : f32
    %20 = vector.broadcast %cst_20 : f32 to vector<16x4xf32>
    %21 = arith.maximumf %19, %20 : vector<16x4xf32>
    %c0_21 = arith.constant 0 : index
    %c0_22 = arith.constant 0 : index
    %c0_23 = arith.constant 0 : index
    %22 = vector.load %arg4[%c0_21, %c0_22, %c0_23] : memref<16x120x16xf32, #tpu.memory_space<vmem>>, vector<1x120x16xf32>
    %23 = vector.shape_cast %22 : vector<1x120x16xf32> to vector<120x16xf32>
    %cst_24 = arith.constant dense<0.000000e+00> : vector<120x4xf32>
    %24 = tpu.matmul %23, %21, %cst_24 {dimension_numbers = #tpu.dot_dimension_numbers<[1], [0], [0], [1], [0, 0, 1, 1], [], []>} : vector<120x16xf32>, vector<16x4xf32>, vector<120x4xf32> -> vector<120x4xf32>
    %25 = arith.addf %2, %24 : vector<120x4xf32>
    %c1_25 = arith.constant 1 : index
    %c0_26 = arith.constant 0 : index
    %c0_27 = arith.constant 0 : index
    %c0_28 = arith.constant 0 : index
    %26 = vector.load %arg1[%c1_25, %c0_26, %c0_27, %c0_28] : memref<16x4x150x4xf32, #tpu.memory_space<vmem>>, vector<1x1x150x4xf32>
    %27 = vector.shape_cast %26 : vector<1x1x150x4xf32> to vector<150x4xf32>
    %cst_29 = arith.constant dense<0.000000e+00> : vector<16x4xf32>
    %28 = tpu.matmul %0, %27, %cst_29 {dimension_numbers = #tpu.dot_dimension_numbers<[1], [0], [0], [1], [0, 0, 1, 1], [], []>} : vector<16x150xf32>, vector<150x4xf32>, vector<16x4xf32> -> vector<16x4xf32>
    %c1_30 = arith.constant 1 : index
    %c1_31 = arith.constant 1 : index
    %c0_32 = arith.constant 0 : index
    %c0_33 = arith.constant 0 : index
    %29 = vector.load %arg1[%c1_30, %c1_31, %c0_32, %c0_33] : memref<16x4x150x4xf32, #tpu.memory_space<vmem>>, vector<1x1x150x4xf32>
    %30 = vector.shape_cast %29 : vector<1x1x150x4xf32> to vector<150x4xf32>
    %cst_34 = arith.constant dense<0.000000e+00> : vector<16x4xf32>
    %31 = tpu.matmul %0, %30, %cst_34 {dimension_numbers = #tpu.dot_dimension_numbers<[1], [0], [0], [1], [0, 0, 1, 1], [], []>} : vector<16x150xf32>, vector<150x4xf32>, vector<16x4xf32> -> vector<16x4xf32>
    %32 = arith.maximumf %28, %31 : vector<16x4xf32>
    %c1_35 = arith.constant 1 : index
    %c2_36 = arith.constant 2 : index
    %c0_37 = arith.constant 0 : index
    %c0_38 = arith.constant 0 : index
    %33 = vector.load %arg1[%c1_35, %c2_36, %c0_37, %c0_38] : memref<16x4x150x4xf32, #tpu.memory_space<vmem>>, vector<1x1x150x4xf32>
    %34 = vector.shape_cast %33 : vector<1x1x150x4xf32> to vector<150x4xf32>
    %cst_39 = arith.constant dense<0.000000e+00> : vector<16x4xf32>
    %35 = tpu.matmul %0, %34, %cst_39 {dimension_numbers = #tpu.dot_dimension_numbers<[1], [0], [0], [1], [0, 0, 1, 1], [], []>} : vector<16x150xf32>, vector<150x4xf32>, vector<16x4xf32> -> vector<16x4xf32>
    %36 = arith.maximumf %32, %35 : vector<16x4xf32>
    %c1_40 = arith.constant 1 : index
    %c3_41 = arith.constant 3 : index
    %c0_42 = arith.constant 0 : index
    %c0_43 = arith.constant 0 : index
    %37 = vector.load %arg1[%c1_40, %c3_41, %c0_42, %c0_43] : memref<16x4x150x4xf32, #tpu.memory_space<vmem>>, vector<1x1x150x4xf32>
    %38 = vector.shape_cast %37 : vector<1x1x150x4xf32> to vector<150x4xf32>
    %cst_44 = arith.constant dense<0.000000e+00> : vector<16x4xf32>
    %39 = tpu.matmul %0, %38, %cst_44 {dimension_numbers = #tpu.dot_dimension_numbers<[1], [0], [0], [1], [0, 0, 1, 1], [], []>} : vector<16x150xf32>, vector<150x4xf32>, vector<16x4xf32> -> vector<16x4xf32>
    %40 = arith.maximumf %36, %39 : vector<16x4xf32>
    %41 = vector.broadcast %1 : vector<16x1xf32> to vector<16x4xf32>
    %42 = arith.addf %40, %41 : vector<16x4xf32>
    %cst_45 = arith.constant 0.000000e+00 : f32
    %43 = vector.broadcast %cst_45 : f32 to vector<16x4xf32>
    %44 = arith.maximumf %42, %43 : vector<16x4xf32>
    %c1_46 = arith.constant 1 : index
    %c0_47 = arith.constant 0 : index
    %c0_48 = arith.constant 0 : index
    %45 = vector.load %arg4[%c1_46, %c0_47, %c0_48] : memref<16x120x16xf32, #tpu.memory_space<vmem>>, vector<1x120x16xf32>
    %46 = vector.shape_cast %45 : vector<1x120x16xf32> to vector<120x16xf32>
    %cst_49 = arith.constant dense<0.000000e+00> : vector<120x4xf32>
    %47 = tpu.matmul %46, %44, %cst_49 {dimension_numbers = #tpu.dot_dimension_numbers<[1], [0], [0], [1], [0, 0, 1, 1], [], []>} : vector<120x16xf32>, vector<16x4xf32>, vector<120x4xf32> -> vector<120x4xf32>
    %48 = arith.addf %25, %47 : vector<120x4xf32>
    %c2_50 = arith.constant 2 : index
    %c0_51 = arith.constant 0 : index
    %c0_52 = arith.constant 0 : index
    %c0_53 = arith.constant 0 : index
    %49 = vector.load %arg1[%c2_50, %c0_51, %c0_52, %c0_53] : memref<16x4x150x4xf32, #tpu.memory_space<vmem>>, vector<1x1x150x4xf32>
    %50 = vector.shape_cast %49 : vector<1x1x150x4xf32> to vector<150x4xf32>
    %cst_54 = arith.constant dense<0.000000e+00> : vector<16x4xf32>
    %51 = tpu.matmul %0, %50, %cst_54 {dimension_numbers = #tpu.dot_dimension_numbers<[1], [0], [0], [1], [0, 0, 1, 1], [], []>} : vector<16x150xf32>, vector<150x4xf32>, vector<16x4xf32> -> vector<16x4xf32>
    %c2_55 = arith.constant 2 : index
    %c1_56 = arith.constant 1 : index
    %c0_57 = arith.constant 0 : index
    %c0_58 = arith.constant 0 : index
    %52 = vector.load %arg1[%c2_55, %c1_56, %c0_57, %c0_58] : memref<16x4x150x4xf32, #tpu.memory_space<vmem>>, vector<1x1x150x4xf32>
    %53 = vector.shape_cast %52 : vector<1x1x150x4xf32> to vector<150x4xf32>
    %cst_59 = arith.constant dense<0.000000e+00> : vector<16x4xf32>
    %54 = tpu.matmul %0, %53, %cst_59 {dimension_numbers = #tpu.dot_dimension_numbers<[1], [0], [0], [1], [0, 0, 1, 1], [], []>} : vector<16x150xf32>, vector<150x4xf32>, vector<16x4xf32> -> vector<16x4xf32>
    %55 = arith.maximumf %51, %54 : vector<16x4xf32>
    %c2_60 = arith.constant 2 : index
    %c2_61 = arith.constant 2 : index
    %c0_62 = arith.constant 0 : index
    %c0_63 = arith.constant 0 : index
    %56 = vector.load %arg1[%c2_60, %c2_61, %c0_62, %c0_63] : memref<16x4x150x4xf32, #tpu.memory_space<vmem>>, vector<1x1x150x4xf32>
    %57 = vector.shape_cast %56 : vector<1x1x150x4xf32> to vector<150x4xf32>
    %cst_64 = arith.constant dense<0.000000e+00> : vector<16x4xf32>
    %58 = tpu.matmul %0, %57, %cst_64 {dimension_numbers = #tpu.dot_dimension_numbers<[1], [0], [0], [1], [0, 0, 1, 1], [], []>} : vector<16x150xf32>, vector<150x4xf32>, vector<16x4xf32> -> vector<16x4xf32>
    %59 = arith.maximumf %55, %58 : vector<16x4xf32>
    %c2_65 = arith.constant 2 : index
    %c3_66 = arith.constant 3 : index
    %c0_67 = arith.constant 0 : index
    %c0_68 = arith.constant 0 : index
    %60 = vector.load %arg1[%c2_65, %c3_66, %c0_67, %c0_68] : memref<16x4x150x4xf32, #tpu.memory_space<vmem>>, vector<1x1x150x4xf32>
    %61 = vector.shape_cast %60 : vector<1x1x150x4xf32> to vector<150x4xf32>
    %cst_69 = arith.constant dense<0.000000e+00> : vector<16x4xf32>
    %62 = tpu.matmul %0, %61, %cst_69 {dimension_numbers = #tpu.dot_dimension_numbers<[1], [0], [0], [1], [0, 0, 1, 1], [], []>} : vector<16x150xf32>, vector<150x4xf32>, vector<16x4xf32> -> vector<16x4xf32>
    %63 = arith.maximumf %59, %62 : vector<16x4xf32>
    %64 = vector.broadcast %1 : vector<16x1xf32> to vector<16x4xf32>
    %65 = arith.addf %63, %64 : vector<16x4xf32>
    %cst_70 = arith.constant 0.000000e+00 : f32
    %66 = vector.broadcast %cst_70 : f32 to vector<16x4xf32>
    %67 = arith.maximumf %65, %66 : vector<16x4xf32>
    %c2_71 = arith.constant 2 : index
    %c0_72 = arith.constant 0 : index
    %c0_73 = arith.constant 0 : index
    %68 = vector.load %arg4[%c2_71, %c0_72, %c0_73] : memref<16x120x16xf32, #tpu.memory_space<vmem>>, vector<1x120x16xf32>
    %69 = vector.shape_cast %68 : vector<1x120x16xf32> to vector<120x16xf32>
    %cst_74 = arith.constant dense<0.000000e+00> : vector<120x4xf32>
    %70 = tpu.matmul %69, %67, %cst_74 {dimension_numbers = #tpu.dot_dimension_numbers<[1], [0], [0], [1], [0, 0, 1, 1], [], []>} : vector<120x16xf32>, vector<16x4xf32>, vector<120x4xf32> -> vector<120x4xf32>
    %71 = arith.addf %48, %70 : vector<120x4xf32>
    %c3_75 = arith.constant 3 : index
    %c0_76 = arith.constant 0 : index
    %c0_77 = arith.constant 0 : index
    %c0_78 = arith.constant 0 : index
    %72 = vector.load %arg1[%c3_75, %c0_76, %c0_77, %c0_78] : memref<16x4x150x4xf32, #tpu.memory_space<vmem>>, vector<1x1x150x4xf32>
    %73 = vector.shape_cast %72 : vector<1x1x150x4xf32> to vector<150x4xf32>
    %cst_79 = arith.constant dense<0.000000e+00> : vector<16x4xf32>
    %74 = tpu.matmul %0, %73, %cst_79 {dimension_numbers = #tpu.dot_dimension_numbers<[1], [0], [0], [1], [0, 0, 1, 1], [], []>} : vector<16x150xf32>, vector<150x4xf32>, vector<16x4xf32> -> vector<16x4xf32>
    %c3_80 = arith.constant 3 : index
    %c1_81 = arith.constant 1 : index
    %c0_82 = arith.constant 0 : index
    %c0_83 = arith.constant 0 : index
    %75 = vector.load %arg1[%c3_80, %c1_81, %c0_82, %c0_83] : memref<16x4x150x4xf32, #tpu.memory_space<vmem>>, vector<1x1x150x4xf32>
    %76 = vector.shape_cast %75 : vector<1x1x150x4xf32> to vector<150x4xf32>
    %cst_84 = arith.constant dense<0.000000e+00> : vector<16x4xf32>
    %77 = tpu.matmul %0, %76, %cst_84 {dimension_numbers = #tpu.dot_dimension_numbers<[1], [0], [0], [1], [0, 0, 1, 1], [], []>} : vector<16x150xf32>, vector<150x4xf32>, vector<16x4xf32> -> vector<16x4xf32>
    %78 = arith.maximumf %74, %77 : vector<16x4xf32>
    %c3_85 = arith.constant 3 : index
    %c2_86 = arith.constant 2 : index
    %c0_87 = arith.constant 0 : index
    %c0_88 = arith.constant 0 : index
    %79 = vector.load %arg1[%c3_85, %c2_86, %c0_87, %c0_88] : memref<16x4x150x4xf32, #tpu.memory_space<vmem>>, vector<1x1x150x4xf32>
    %80 = vector.shape_cast %79 : vector<1x1x150x4xf32> to vector<150x4xf32>
    %cst_89 = arith.constant dense<0.000000e+00> : vector<16x4xf32>
    %81 = tpu.matmul %0, %80, %cst_89 {dimension_numbers = #tpu.dot_dimension_numbers<[1], [0], [0], [1], [0, 0, 1, 1], [], []>} : vector<16x150xf32>, vector<150x4xf32>, vector<16x4xf32> -> vector<16x4xf32>
    %82 = arith.maximumf %78, %81 : vector<16x4xf32>
    %c3_90 = arith.constant 3 : index
    %c3_91 = arith.constant 3 : index
    %c0_92 = arith.constant 0 : index
    %c0_93 = arith.constant 0 : index
    %83 = vector.load %arg1[%c3_90, %c3_91, %c0_92, %c0_93] : memref<16x4x150x4xf32, #tpu.memory_space<vmem>>, vector<1x1x150x4xf32>
    %84 = vector.shape_cast %83 : vector<1x1x150x4xf32> to vector<150x4xf32>
    %cst_94 = arith.constant dense<0.000000e+00> : vector<16x4xf32>
    %85 = tpu.matmul %0, %84, %cst_94 {dimension_numbers = #tpu.dot_dimension_numbers<[1], [0], [0], [1], [0, 0, 1, 1], [], []>} : vector<16x150xf32>, vector<150x4xf32>, vector<16x4xf32> -> vector<16x4xf32>
    %86 = arith.maximumf %82, %85 : vector<16x4xf32>
    %87 = vector.broadcast %1 : vector<16x1xf32> to vector<16x4xf32>
    %88 = arith.addf %86, %87 : vector<16x4xf32>
    %cst_95 = arith.constant 0.000000e+00 : f32
    %89 = vector.broadcast %cst_95 : f32 to vector<16x4xf32>
    %90 = arith.maximumf %88, %89 : vector<16x4xf32>
    %c3_96 = arith.constant 3 : index
    %c0_97 = arith.constant 0 : index
    %c0_98 = arith.constant 0 : index
    %91 = vector.load %arg4[%c3_96, %c0_97, %c0_98] : memref<16x120x16xf32, #tpu.memory_space<vmem>>, vector<1x120x16xf32>
    %92 = vector.shape_cast %91 : vector<1x120x16xf32> to vector<120x16xf32>
    %cst_99 = arith.constant dense<0.000000e+00> : vector<120x4xf32>
    %93 = tpu.matmul %92, %90, %cst_99 {dimension_numbers = #tpu.dot_dimension_numbers<[1], [0], [0], [1], [0, 0, 1, 1], [], []>} : vector<120x16xf32>, vector<16x4xf32>, vector<120x4xf32> -> vector<120x4xf32>
    %94 = arith.addf %71, %93 : vector<120x4xf32>
    %c4 = arith.constant 4 : index
    %c0_100 = arith.constant 0 : index
    %c0_101 = arith.constant 0 : index
    %c0_102 = arith.constant 0 : index
    %95 = vector.load %arg1[%c4, %c0_100, %c0_101, %c0_102] : memref<16x4x150x4xf32, #tpu.memory_space<vmem>>, vector<1x1x150x4xf32>
    %96 = vector.shape_cast %95 : vector<1x1x150x4xf32> to vector<150x4xf32>
    %cst_103 = arith.constant dense<0.000000e+00> : vector<16x4xf32>
    %97 = tpu.matmul %0, %96, %cst_103 {dimension_numbers = #tpu.dot_dimension_numbers<[1], [0], [0], [1], [0, 0, 1, 1], [], []>} : vector<16x150xf32>, vector<150x4xf32>, vector<16x4xf32> -> vector<16x4xf32>
    %c4_104 = arith.constant 4 : index
    %c1_105 = arith.constant 1 : index
    %c0_106 = arith.constant 0 : index
    %c0_107 = arith.constant 0 : index
    %98 = vector.load %arg1[%c4_104, %c1_105, %c0_106, %c0_107] : memref<16x4x150x4xf32, #tpu.memory_space<vmem>>, vector<1x1x150x4xf32>
    %99 = vector.shape_cast %98 : vector<1x1x150x4xf32> to vector<150x4xf32>
    %cst_108 = arith.constant dense<0.000000e+00> : vector<16x4xf32>
    %100 = tpu.matmul %0, %99, %cst_108 {dimension_numbers = #tpu.dot_dimension_numbers<[1], [0], [0], [1], [0, 0, 1, 1], [], []>} : vector<16x150xf32>, vector<150x4xf32>, vector<16x4xf32> -> vector<16x4xf32>
    %101 = arith.maximumf %97, %100 : vector<16x4xf32>
    %c4_109 = arith.constant 4 : index
    %c2_110 = arith.constant 2 : index
    %c0_111 = arith.constant 0 : index
    %c0_112 = arith.constant 0 : index
    %102 = vector.load %arg1[%c4_109, %c2_110, %c0_111, %c0_112] : memref<16x4x150x4xf32, #tpu.memory_space<vmem>>, vector<1x1x150x4xf32>
    %103 = vector.shape_cast %102 : vector<1x1x150x4xf32> to vector<150x4xf32>
    %cst_113 = arith.constant dense<0.000000e+00> : vector<16x4xf32>
    %104 = tpu.matmul %0, %103, %cst_113 {dimension_numbers = #tpu.dot_dimension_numbers<[1], [0], [0], [1], [0, 0, 1, 1], [], []>} : vector<16x150xf32>, vector<150x4xf32>, vector<16x4xf32> -> vector<16x4xf32>
    %105 = arith.maximumf %101, %104 : vector<16x4xf32>
    %c4_114 = arith.constant 4 : index
    %c3_115 = arith.constant 3 : index
    %c0_116 = arith.constant 0 : index
    %c0_117 = arith.constant 0 : index
    %106 = vector.load %arg1[%c4_114, %c3_115, %c0_116, %c0_117] : memref<16x4x150x4xf32, #tpu.memory_space<vmem>>, vector<1x1x150x4xf32>
    %107 = vector.shape_cast %106 : vector<1x1x150x4xf32> to vector<150x4xf32>
    %cst_118 = arith.constant dense<0.000000e+00> : vector<16x4xf32>
    %108 = tpu.matmul %0, %107, %cst_118 {dimension_numbers = #tpu.dot_dimension_numbers<[1], [0], [0], [1], [0, 0, 1, 1], [], []>} : vector<16x150xf32>, vector<150x4xf32>, vector<16x4xf32> -> vector<16x4xf32>
    %109 = arith.maximumf %105, %108 : vector<16x4xf32>
    %110 = vector.broadcast %1 : vector<16x1xf32> to vector<16x4xf32>
    %111 = arith.addf %109, %110 : vector<16x4xf32>
    %cst_119 = arith.constant 0.000000e+00 : f32
    %112 = vector.broadcast %cst_119 : f32 to vector<16x4xf32>
    %113 = arith.maximumf %111, %112 : vector<16x4xf32>
    %c4_120 = arith.constant 4 : index
    %c0_121 = arith.constant 0 : index
    %c0_122 = arith.constant 0 : index
    %114 = vector.load %arg4[%c4_120, %c0_121, %c0_122] : memref<16x120x16xf32, #tpu.memory_space<vmem>>, vector<1x120x16xf32>
    %115 = vector.shape_cast %114 : vector<1x120x16xf32> to vector<120x16xf32>
    %cst_123 = arith.constant dense<0.000000e+00> : vector<120x4xf32>
    %116 = tpu.matmul %115, %113, %cst_123 {dimension_numbers = #tpu.dot_dimension_numbers<[1], [0], [0], [1], [0, 0, 1, 1], [], []>} : vector<120x16xf32>, vector<16x4xf32>, vector<120x4xf32> -> vector<120x4xf32>
    %117 = arith.addf %94, %116 : vector<120x4xf32>
    %c5 = arith.constant 5 : index
    %c0_124 = arith.constant 0 : index
    %c0_125 = arith.constant 0 : index
    %c0_126 = arith.constant 0 : index
    %118 = vector.load %arg1[%c5, %c0_124, %c0_125, %c0_126] : memref<16x4x150x4xf32, #tpu.memory_space<vmem>>, vector<1x1x150x4xf32>
    %119 = vector.shape_cast %118 : vector<1x1x150x4xf32> to vector<150x4xf32>
    %cst_127 = arith.constant dense<0.000000e+00> : vector<16x4xf32>
    %120 = tpu.matmul %0, %119, %cst_127 {dimension_numbers = #tpu.dot_dimension_numbers<[1], [0], [0], [1], [0, 0, 1, 1], [], []>} : vector<16x150xf32>, vector<150x4xf32>, vector<16x4xf32> -> vector<16x4xf32>
    %c5_128 = arith.constant 5 : index
    %c1_129 = arith.constant 1 : index
    %c0_130 = arith.constant 0 : index
    %c0_131 = arith.constant 0 : index
    %121 = vector.load %arg1[%c5_128, %c1_129, %c0_130, %c0_131] : memref<16x4x150x4xf32, #tpu.memory_space<vmem>>, vector<1x1x150x4xf32>
    %122 = vector.shape_cast %121 : vector<1x1x150x4xf32> to vector<150x4xf32>
    %cst_132 = arith.constant dense<0.000000e+00> : vector<16x4xf32>
    %123 = tpu.matmul %0, %122, %cst_132 {dimension_numbers = #tpu.dot_dimension_numbers<[1], [0], [0], [1], [0, 0, 1, 1], [], []>} : vector<16x150xf32>, vector<150x4xf32>, vector<16x4xf32> -> vector<16x4xf32>
    %124 = arith.maximumf %120, %123 : vector<16x4xf32>
    %c5_133 = arith.constant 5 : index
    %c2_134 = arith.constant 2 : index
    %c0_135 = arith.constant 0 : index
    %c0_136 = arith.constant 0 : index
    %125 = vector.load %arg1[%c5_133, %c2_134, %c0_135, %c0_136] : memref<16x4x150x4xf32, #tpu.memory_space<vmem>>, vector<1x1x150x4xf32>
    %126 = vector.shape_cast %125 : vector<1x1x150x4xf32> to vector<150x4xf32>
    %cst_137 = arith.constant dense<0.000000e+00> : vector<16x4xf32>
    %127 = tpu.matmul %0, %126, %cst_137 {dimension_numbers = #tpu.dot_dimension_numbers<[1], [0], [0], [1], [0, 0, 1, 1], [], []>} : vector<16x150xf32>, vector<150x4xf32>, vector<16x4xf32> -> vector<16x4xf32>
    %128 = arith.maximumf %124, %127 : vector<16x4xf32>
    %c5_138 = arith.constant 5 : index
    %c3_139 = arith.constant 3 : index
    %c0_140 = arith.constant 0 : index
    %c0_141 = arith.constant 0 : index
    %129 = vector.load %arg1[%c5_138, %c3_139, %c0_140, %c0_141] : memref<16x4x150x4xf32, #tpu.memory_space<vmem>>, vector<1x1x150x4xf32>
    %130 = vector.shape_cast %129 : vector<1x1x150x4xf32> to vector<150x4xf32>
    %cst_142 = arith.constant dense<0.000000e+00> : vector<16x4xf32>
    %131 = tpu.matmul %0, %130, %cst_142 {dimension_numbers = #tpu.dot_dimension_numbers<[1], [0], [0], [1], [0, 0, 1, 1], [], []>} : vector<16x150xf32>, vector<150x4xf32>, vector<16x4xf32> -> vector<16x4xf32>
    %132 = arith.maximumf %128, %131 : vector<16x4xf32>
    %133 = vector.broadcast %1 : vector<16x1xf32> to vector<16x4xf32>
    %134 = arith.addf %132, %133 : vector<16x4xf32>
    %cst_143 = arith.constant 0.000000e+00 : f32
    %135 = vector.broadcast %cst_143 : f32 to vector<16x4xf32>
    %136 = arith.maximumf %134, %135 : vector<16x4xf32>
    %c5_144 = arith.constant 5 : index
    %c0_145 = arith.constant 0 : index
    %c0_146 = arith.constant 0 : index
    %137 = vector.load %arg4[%c5_144, %c0_145, %c0_146] : memref<16x120x16xf32, #tpu.memory_space<vmem>>, vector<1x120x16xf32>
    %138 = vector.shape_cast %137 : vector<1x120x16xf32> to vector<120x16xf32>
    %cst_147 = arith.constant dense<0.000000e+00> : vector<120x4xf32>
    %139 = tpu.matmul %138, %136, %cst_147 {dimension_numbers = #tpu.dot_dimension_numbers<[1], [0], [0], [1], [0, 0, 1, 1], [], []>} : vector<120x16xf32>, vector<16x4xf32>, vector<120x4xf32> -> vector<120x4xf32>
    %140 = arith.addf %117, %139 : vector<120x4xf32>
    %c6 = arith.constant 6 : index
    %c0_148 = arith.constant 0 : index
    %c0_149 = arith.constant 0 : index
    %c0_150 = arith.constant 0 : index
    %141 = vector.load %arg1[%c6, %c0_148, %c0_149, %c0_150] : memref<16x4x150x4xf32, #tpu.memory_space<vmem>>, vector<1x1x150x4xf32>
    %142 = vector.shape_cast %141 : vector<1x1x150x4xf32> to vector<150x4xf32>
    %cst_151 = arith.constant dense<0.000000e+00> : vector<16x4xf32>
    %143 = tpu.matmul %0, %142, %cst_151 {dimension_numbers = #tpu.dot_dimension_numbers<[1], [0], [0], [1], [0, 0, 1, 1], [], []>} : vector<16x150xf32>, vector<150x4xf32>, vector<16x4xf32> -> vector<16x4xf32>
    %c6_152 = arith.constant 6 : index
    %c1_153 = arith.constant 1 : index
    %c0_154 = arith.constant 0 : index
    %c0_155 = arith.constant 0 : index
    %144 = vector.load %arg1[%c6_152, %c1_153, %c0_154, %c0_155] : memref<16x4x150x4xf32, #tpu.memory_space<vmem>>, vector<1x1x150x4xf32>
    %145 = vector.shape_cast %144 : vector<1x1x150x4xf32> to vector<150x4xf32>
    %cst_156 = arith.constant dense<0.000000e+00> : vector<16x4xf32>
    %146 = tpu.matmul %0, %145, %cst_156 {dimension_numbers = #tpu.dot_dimension_numbers<[1], [0], [0], [1], [0, 0, 1, 1], [], []>} : vector<16x150xf32>, vector<150x4xf32>, vector<16x4xf32> -> vector<16x4xf32>
    %147 = arith.maximumf %143, %146 : vector<16x4xf32>
    %c6_157 = arith.constant 6 : index
    %c2_158 = arith.constant 2 : index
    %c0_159 = arith.constant 0 : index
    %c0_160 = arith.constant 0 : index
    %148 = vector.load %arg1[%c6_157, %c2_158, %c0_159, %c0_160] : memref<16x4x150x4xf32, #tpu.memory_space<vmem>>, vector<1x1x150x4xf32>
    %149 = vector.shape_cast %148 : vector<1x1x150x4xf32> to vector<150x4xf32>
    %cst_161 = arith.constant dense<0.000000e+00> : vector<16x4xf32>
    %150 = tpu.matmul %0, %149, %cst_161 {dimension_numbers = #tpu.dot_dimension_numbers<[1], [0], [0], [1], [0, 0, 1, 1], [], []>} : vector<16x150xf32>, vector<150x4xf32>, vector<16x4xf32> -> vector<16x4xf32>
    %151 = arith.maximumf %147, %150 : vector<16x4xf32>
    %c6_162 = arith.constant 6 : index
    %c3_163 = arith.constant 3 : index
    %c0_164 = arith.constant 0 : index
    %c0_165 = arith.constant 0 : index
    %152 = vector.load %arg1[%c6_162, %c3_163, %c0_164, %c0_165] : memref<16x4x150x4xf32, #tpu.memory_space<vmem>>, vector<1x1x150x4xf32>
    %153 = vector.shape_cast %152 : vector<1x1x150x4xf32> to vector<150x4xf32>
    %cst_166 = arith.constant dense<0.000000e+00> : vector<16x4xf32>
    %154 = tpu.matmul %0, %153, %cst_166 {dimension_numbers = #tpu.dot_dimension_numbers<[1], [0], [0], [1], [0, 0, 1, 1], [], []>} : vector<16x150xf32>, vector<150x4xf32>, vector<16x4xf32> -> vector<16x4xf32>
    %155 = arith.maximumf %151, %154 : vector<16x4xf32>
    %156 = vector.broadcast %1 : vector<16x1xf32> to vector<16x4xf32>
    %157 = arith.addf %155, %156 : vector<16x4xf32>
    %cst_167 = arith.constant 0.000000e+00 : f32
    %158 = vector.broadcast %cst_167 : f32 to vector<16x4xf32>
    %159 = arith.maximumf %157, %158 : vector<16x4xf32>
    %c6_168 = arith.constant 6 : index
    %c0_169 = arith.constant 0 : index
    %c0_170 = arith.constant 0 : index
    %160 = vector.load %arg4[%c6_168, %c0_169, %c0_170] : memref<16x120x16xf32, #tpu.memory_space<vmem>>, vector<1x120x16xf32>
    %161 = vector.shape_cast %160 : vector<1x120x16xf32> to vector<120x16xf32>
    %cst_171 = arith.constant dense<0.000000e+00> : vector<120x4xf32>
    %162 = tpu.matmul %161, %159, %cst_171 {dimension_numbers = #tpu.dot_dimension_numbers<[1], [0], [0], [1], [0, 0, 1, 1], [], []>} : vector<120x16xf32>, vector<16x4xf32>, vector<120x4xf32> -> vector<120x4xf32>
    %163 = arith.addf %140, %162 : vector<120x4xf32>
    %c7 = arith.constant 7 : index
    %c0_172 = arith.constant 0 : index
    %c0_173 = arith.constant 0 : index
    %c0_174 = arith.constant 0 : index
    %164 = vector.load %arg1[%c7, %c0_172, %c0_173, %c0_174] : memref<16x4x150x4xf32, #tpu.memory_space<vmem>>, vector<1x1x150x4xf32>
    %165 = vector.shape_cast %164 : vector<1x1x150x4xf32> to vector<150x4xf32>
    %cst_175 = arith.constant dense<0.000000e+00> : vector<16x4xf32>
    %166 = tpu.matmul %0, %165, %cst_175 {dimension_numbers = #tpu.dot_dimension_numbers<[1], [0], [0], [1], [0, 0, 1, 1], [], []>} : vector<16x150xf32>, vector<150x4xf32>, vector<16x4xf32> -> vector<16x4xf32>
    %c7_176 = arith.constant 7 : index
    %c1_177 = arith.constant 1 : index
    %c0_178 = arith.constant 0 : index
    %c0_179 = arith.constant 0 : index
    %167 = vector.load %arg1[%c7_176, %c1_177, %c0_178, %c0_179] : memref<16x4x150x4xf32, #tpu.memory_space<vmem>>, vector<1x1x150x4xf32>
    %168 = vector.shape_cast %167 : vector<1x1x150x4xf32> to vector<150x4xf32>
    %cst_180 = arith.constant dense<0.000000e+00> : vector<16x4xf32>
    %169 = tpu.matmul %0, %168, %cst_180 {dimension_numbers = #tpu.dot_dimension_numbers<[1], [0], [0], [1], [0, 0, 1, 1], [], []>} : vector<16x150xf32>, vector<150x4xf32>, vector<16x4xf32> -> vector<16x4xf32>
    %170 = arith.maximumf %166, %169 : vector<16x4xf32>
    %c7_181 = arith.constant 7 : index
    %c2_182 = arith.constant 2 : index
    %c0_183 = arith.constant 0 : index
    %c0_184 = arith.constant 0 : index
    %171 = vector.load %arg1[%c7_181, %c2_182, %c0_183, %c0_184] : memref<16x4x150x4xf32, #tpu.memory_space<vmem>>, vector<1x1x150x4xf32>
    %172 = vector.shape_cast %171 : vector<1x1x150x4xf32> to vector<150x4xf32>
    %cst_185 = arith.constant dense<0.000000e+00> : vector<16x4xf32>
    %173 = tpu.matmul %0, %172, %cst_185 {dimension_numbers = #tpu.dot_dimension_numbers<[1], [0], [0], [1], [0, 0, 1, 1], [], []>} : vector<16x150xf32>, vector<150x4xf32>, vector<16x4xf32> -> vector<16x4xf32>
    %174 = arith.maximumf %170, %173 : vector<16x4xf32>
    %c7_186 = arith.constant 7 : index
    %c3_187 = arith.constant 3 : index
    %c0_188 = arith.constant 0 : index
    %c0_189 = arith.constant 0 : index
    %175 = vector.load %arg1[%c7_186, %c3_187, %c0_188, %c0_189] : memref<16x4x150x4xf32, #tpu.memory_space<vmem>>, vector<1x1x150x4xf32>
    %176 = vector.shape_cast %175 : vector<1x1x150x4xf32> to vector<150x4xf32>
    %cst_190 = arith.constant dense<0.000000e+00> : vector<16x4xf32>
    %177 = tpu.matmul %0, %176, %cst_190 {dimension_numbers = #tpu.dot_dimension_numbers<[1], [0], [0], [1], [0, 0, 1, 1], [], []>} : vector<16x150xf32>, vector<150x4xf32>, vector<16x4xf32> -> vector<16x4xf32>
    %178 = arith.maximumf %174, %177 : vector<16x4xf32>
    %179 = vector.broadcast %1 : vector<16x1xf32> to vector<16x4xf32>
    %180 = arith.addf %178, %179 : vector<16x4xf32>
    %cst_191 = arith.constant 0.000000e+00 : f32
    %181 = vector.broadcast %cst_191 : f32 to vector<16x4xf32>
    %182 = arith.maximumf %180, %181 : vector<16x4xf32>
    %c7_192 = arith.constant 7 : index
    %c0_193 = arith.constant 0 : index
    %c0_194 = arith.constant 0 : index
    %183 = vector.load %arg4[%c7_192, %c0_193, %c0_194] : memref<16x120x16xf32, #tpu.memory_space<vmem>>, vector<1x120x16xf32>
    %184 = vector.shape_cast %183 : vector<1x120x16xf32> to vector<120x16xf32>
    %cst_195 = arith.constant dense<0.000000e+00> : vector<120x4xf32>
    %185 = tpu.matmul %184, %182, %cst_195 {dimension_numbers = #tpu.dot_dimension_numbers<[1], [0], [0], [1], [0, 0, 1, 1], [], []>} : vector<120x16xf32>, vector<16x4xf32>, vector<120x4xf32> -> vector<120x4xf32>
    %186 = arith.addf %163, %185 : vector<120x4xf32>
    %c8 = arith.constant 8 : index
    %c0_196 = arith.constant 0 : index
    %c0_197 = arith.constant 0 : index
    %c0_198 = arith.constant 0 : index
    %187 = vector.load %arg1[%c8, %c0_196, %c0_197, %c0_198] : memref<16x4x150x4xf32, #tpu.memory_space<vmem>>, vector<1x1x150x4xf32>
    %188 = vector.shape_cast %187 : vector<1x1x150x4xf32> to vector<150x4xf32>
    %cst_199 = arith.constant dense<0.000000e+00> : vector<16x4xf32>
    %189 = tpu.matmul %0, %188, %cst_199 {dimension_numbers = #tpu.dot_dimension_numbers<[1], [0], [0], [1], [0, 0, 1, 1], [], []>} : vector<16x150xf32>, vector<150x4xf32>, vector<16x4xf32> -> vector<16x4xf32>
    %c8_200 = arith.constant 8 : index
    %c1_201 = arith.constant 1 : index
    %c0_202 = arith.constant 0 : index
    %c0_203 = arith.constant 0 : index
    %190 = vector.load %arg1[%c8_200, %c1_201, %c0_202, %c0_203] : memref<16x4x150x4xf32, #tpu.memory_space<vmem>>, vector<1x1x150x4xf32>
    %191 = vector.shape_cast %190 : vector<1x1x150x4xf32> to vector<150x4xf32>
    %cst_204 = arith.constant dense<0.000000e+00> : vector<16x4xf32>
    %192 = tpu.matmul %0, %191, %cst_204 {dimension_numbers = #tpu.dot_dimension_numbers<[1], [0], [0], [1], [0, 0, 1, 1], [], []>} : vector<16x150xf32>, vector<150x4xf32>, vector<16x4xf32> -> vector<16x4xf32>
    %193 = arith.maximumf %189, %192 : vector<16x4xf32>
    %c8_205 = arith.constant 8 : index
    %c2_206 = arith.constant 2 : index
    %c0_207 = arith.constant 0 : index
    %c0_208 = arith.constant 0 : index
    %194 = vector.load %arg1[%c8_205, %c2_206, %c0_207, %c0_208] : memref<16x4x150x4xf32, #tpu.memory_space<vmem>>, vector<1x1x150x4xf32>
    %195 = vector.shape_cast %194 : vector<1x1x150x4xf32> to vector<150x4xf32>
    %cst_209 = arith.constant dense<0.000000e+00> : vector<16x4xf32>
    %196 = tpu.matmul %0, %195, %cst_209 {dimension_numbers = #tpu.dot_dimension_numbers<[1], [0], [0], [1], [0, 0, 1, 1], [], []>} : vector<16x150xf32>, vector<150x4xf32>, vector<16x4xf32> -> vector<16x4xf32>
    %197 = arith.maximumf %193, %196 : vector<16x4xf32>
    %c8_210 = arith.constant 8 : index
    %c3_211 = arith.constant 3 : index
    %c0_212 = arith.constant 0 : index
    %c0_213 = arith.constant 0 : index
    %198 = vector.load %arg1[%c8_210, %c3_211, %c0_212, %c0_213] : memref<16x4x150x4xf32, #tpu.memory_space<vmem>>, vector<1x1x150x4xf32>
    %199 = vector.shape_cast %198 : vector<1x1x150x4xf32> to vector<150x4xf32>
    %cst_214 = arith.constant dense<0.000000e+00> : vector<16x4xf32>
    %200 = tpu.matmul %0, %199, %cst_214 {dimension_numbers = #tpu.dot_dimension_numbers<[1], [0], [0], [1], [0, 0, 1, 1], [], []>} : vector<16x150xf32>, vector<150x4xf32>, vector<16x4xf32> -> vector<16x4xf32>
    %201 = arith.maximumf %197, %200 : vector<16x4xf32>
    %202 = vector.broadcast %1 : vector<16x1xf32> to vector<16x4xf32>
    %203 = arith.addf %201, %202 : vector<16x4xf32>
    %cst_215 = arith.constant 0.000000e+00 : f32
    %204 = vector.broadcast %cst_215 : f32 to vector<16x4xf32>
    %205 = arith.maximumf %203, %204 : vector<16x4xf32>
    %c8_216 = arith.constant 8 : index
    %c0_217 = arith.constant 0 : index
    %c0_218 = arith.constant 0 : index
    %206 = vector.load %arg4[%c8_216, %c0_217, %c0_218] : memref<16x120x16xf32, #tpu.memory_space<vmem>>, vector<1x120x16xf32>
    %207 = vector.shape_cast %206 : vector<1x120x16xf32> to vector<120x16xf32>
    %cst_219 = arith.constant dense<0.000000e+00> : vector<120x4xf32>
    %208 = tpu.matmul %207, %205, %cst_219 {dimension_numbers = #tpu.dot_dimension_numbers<[1], [0], [0], [1], [0, 0, 1, 1], [], []>} : vector<120x16xf32>, vector<16x4xf32>, vector<120x4xf32> -> vector<120x4xf32>
    %209 = arith.addf %186, %208 : vector<120x4xf32>
    %c9 = arith.constant 9 : index
    %c0_220 = arith.constant 0 : index
    %c0_221 = arith.constant 0 : index
    %c0_222 = arith.constant 0 : index
    %210 = vector.load %arg1[%c9, %c0_220, %c0_221, %c0_222] : memref<16x4x150x4xf32, #tpu.memory_space<vmem>>, vector<1x1x150x4xf32>
    %211 = vector.shape_cast %210 : vector<1x1x150x4xf32> to vector<150x4xf32>
    %cst_223 = arith.constant dense<0.000000e+00> : vector<16x4xf32>
    %212 = tpu.matmul %0, %211, %cst_223 {dimension_numbers = #tpu.dot_dimension_numbers<[1], [0], [0], [1], [0, 0, 1, 1], [], []>} : vector<16x150xf32>, vector<150x4xf32>, vector<16x4xf32> -> vector<16x4xf32>
    %c9_224 = arith.constant 9 : index
    %c1_225 = arith.constant 1 : index
    %c0_226 = arith.constant 0 : index
    %c0_227 = arith.constant 0 : index
    %213 = vector.load %arg1[%c9_224, %c1_225, %c0_226, %c0_227] : memref<16x4x150x4xf32, #tpu.memory_space<vmem>>, vector<1x1x150x4xf32>
    %214 = vector.shape_cast %213 : vector<1x1x150x4xf32> to vector<150x4xf32>
    %cst_228 = arith.constant dense<0.000000e+00> : vector<16x4xf32>
    %215 = tpu.matmul %0, %214, %cst_228 {dimension_numbers = #tpu.dot_dimension_numbers<[1], [0], [0], [1], [0, 0, 1, 1], [], []>} : vector<16x150xf32>, vector<150x4xf32>, vector<16x4xf32> -> vector<16x4xf32>
    %216 = arith.maximumf %212, %215 : vector<16x4xf32>
    %c9_229 = arith.constant 9 : index
    %c2_230 = arith.constant 2 : index
    %c0_231 = arith.constant 0 : index
    %c0_232 = arith.constant 0 : index
    %217 = vector.load %arg1[%c9_229, %c2_230, %c0_231, %c0_232] : memref<16x4x150x4xf32, #tpu.memory_space<vmem>>, vector<1x1x150x4xf32>
    %218 = vector.shape_cast %217 : vector<1x1x150x4xf32> to vector<150x4xf32>
    %cst_233 = arith.constant dense<0.000000e+00> : vector<16x4xf32>
    %219 = tpu.matmul %0, %218, %cst_233 {dimension_numbers = #tpu.dot_dimension_numbers<[1], [0], [0], [1], [0, 0, 1, 1], [], []>} : vector<16x150xf32>, vector<150x4xf32>, vector<16x4xf32> -> vector<16x4xf32>
    %220 = arith.maximumf %216, %219 : vector<16x4xf32>
    %c9_234 = arith.constant 9 : index
    %c3_235 = arith.constant 3 : index
    %c0_236 = arith.constant 0 : index
    %c0_237 = arith.constant 0 : index
    %221 = vector.load %arg1[%c9_234, %c3_235, %c0_236, %c0_237] : memref<16x4x150x4xf32, #tpu.memory_space<vmem>>, vector<1x1x150x4xf32>
    %222 = vector.shape_cast %221 : vector<1x1x150x4xf32> to vector<150x4xf32>
    %cst_238 = arith.constant dense<0.000000e+00> : vector<16x4xf32>
    %223 = tpu.matmul %0, %222, %cst_238 {dimension_numbers = #tpu.dot_dimension_numbers<[1], [0], [0], [1], [0, 0, 1, 1], [], []>} : vector<16x150xf32>, vector<150x4xf32>, vector<16x4xf32> -> vector<16x4xf32>
    %224 = arith.maximumf %220, %223 : vector<16x4xf32>
    %225 = vector.broadcast %1 : vector<16x1xf32> to vector<16x4xf32>
    %226 = arith.addf %224, %225 : vector<16x4xf32>
    %cst_239 = arith.constant 0.000000e+00 : f32
    %227 = vector.broadcast %cst_239 : f32 to vector<16x4xf32>
    %228 = arith.maximumf %226, %227 : vector<16x4xf32>
    %c9_240 = arith.constant 9 : index
    %c0_241 = arith.constant 0 : index
    %c0_242 = arith.constant 0 : index
    %229 = vector.load %arg4[%c9_240, %c0_241, %c0_242] : memref<16x120x16xf32, #tpu.memory_space<vmem>>, vector<1x120x16xf32>
    %230 = vector.shape_cast %229 : vector<1x120x16xf32> to vector<120x16xf32>
    %cst_243 = arith.constant dense<0.000000e+00> : vector<120x4xf32>
    %231 = tpu.matmul %230, %228, %cst_243 {dimension_numbers = #tpu.dot_dimension_numbers<[1], [0], [0], [1], [0, 0, 1, 1], [], []>} : vector<120x16xf32>, vector<16x4xf32>, vector<120x4xf32> -> vector<120x4xf32>
    %232 = arith.addf %209, %231 : vector<120x4xf32>
    %c10 = arith.constant 10 : index
    %c0_244 = arith.constant 0 : index
    %c0_245 = arith.constant 0 : index
    %c0_246 = arith.constant 0 : index
    %233 = vector.load %arg1[%c10, %c0_244, %c0_245, %c0_246] : memref<16x4x150x4xf32, #tpu.memory_space<vmem>>, vector<1x1x150x4xf32>
    %234 = vector.shape_cast %233 : vector<1x1x150x4xf32> to vector<150x4xf32>
    %cst_247 = arith.constant dense<0.000000e+00> : vector<16x4xf32>
    %235 = tpu.matmul %0, %234, %cst_247 {dimension_numbers = #tpu.dot_dimension_numbers<[1], [0], [0], [1], [0, 0, 1, 1], [], []>} : vector<16x150xf32>, vector<150x4xf32>, vector<16x4xf32> -> vector<16x4xf32>
    %c10_248 = arith.constant 10 : index
    %c1_249 = arith.constant 1 : index
    %c0_250 = arith.constant 0 : index
    %c0_251 = arith.constant 0 : index
    %236 = vector.load %arg1[%c10_248, %c1_249, %c0_250, %c0_251] : memref<16x4x150x4xf32, #tpu.memory_space<vmem>>, vector<1x1x150x4xf32>
    %237 = vector.shape_cast %236 : vector<1x1x150x4xf32> to vector<150x4xf32>
    %cst_252 = arith.constant dense<0.000000e+00> : vector<16x4xf32>
    %238 = tpu.matmul %0, %237, %cst_252 {dimension_numbers = #tpu.dot_dimension_numbers<[1], [0], [0], [1], [0, 0, 1, 1], [], []>} : vector<16x150xf32>, vector<150x4xf32>, vector<16x4xf32> -> vector<16x4xf32>
    %239 = arith.maximumf %235, %238 : vector<16x4xf32>
    %c10_253 = arith.constant 10 : index
    %c2_254 = arith.constant 2 : index
    %c0_255 = arith.constant 0 : index
    %c0_256 = arith.constant 0 : index
    %240 = vector.load %arg1[%c10_253, %c2_254, %c0_255, %c0_256] : memref<16x4x150x4xf32, #tpu.memory_space<vmem>>, vector<1x1x150x4xf32>
    %241 = vector.shape_cast %240 : vector<1x1x150x4xf32> to vector<150x4xf32>
    %cst_257 = arith.constant dense<0.000000e+00> : vector<16x4xf32>
    %242 = tpu.matmul %0, %241, %cst_257 {dimension_numbers = #tpu.dot_dimension_numbers<[1], [0], [0], [1], [0, 0, 1, 1], [], []>} : vector<16x150xf32>, vector<150x4xf32>, vector<16x4xf32> -> vector<16x4xf32>
    %243 = arith.maximumf %239, %242 : vector<16x4xf32>
    %c10_258 = arith.constant 10 : index
    %c3_259 = arith.constant 3 : index
    %c0_260 = arith.constant 0 : index
    %c0_261 = arith.constant 0 : index
    %244 = vector.load %arg1[%c10_258, %c3_259, %c0_260, %c0_261] : memref<16x4x150x4xf32, #tpu.memory_space<vmem>>, vector<1x1x150x4xf32>
    %245 = vector.shape_cast %244 : vector<1x1x150x4xf32> to vector<150x4xf32>
    %cst_262 = arith.constant dense<0.000000e+00> : vector<16x4xf32>
    %246 = tpu.matmul %0, %245, %cst_262 {dimension_numbers = #tpu.dot_dimension_numbers<[1], [0], [0], [1], [0, 0, 1, 1], [], []>} : vector<16x150xf32>, vector<150x4xf32>, vector<16x4xf32> -> vector<16x4xf32>
    %247 = arith.maximumf %243, %246 : vector<16x4xf32>
    %248 = vector.broadcast %1 : vector<16x1xf32> to vector<16x4xf32>
    %249 = arith.addf %247, %248 : vector<16x4xf32>
    %cst_263 = arith.constant 0.000000e+00 : f32
    %250 = vector.broadcast %cst_263 : f32 to vector<16x4xf32>
    %251 = arith.maximumf %249, %250 : vector<16x4xf32>
    %c10_264 = arith.constant 10 : index
    %c0_265 = arith.constant 0 : index
    %c0_266 = arith.constant 0 : index
    %252 = vector.load %arg4[%c10_264, %c0_265, %c0_266] : memref<16x120x16xf32, #tpu.memory_space<vmem>>, vector<1x120x16xf32>
    %253 = vector.shape_cast %252 : vector<1x120x16xf32> to vector<120x16xf32>
    %cst_267 = arith.constant dense<0.000000e+00> : vector<120x4xf32>
    %254 = tpu.matmul %253, %251, %cst_267 {dimension_numbers = #tpu.dot_dimension_numbers<[1], [0], [0], [1], [0, 0, 1, 1], [], []>} : vector<120x16xf32>, vector<16x4xf32>, vector<120x4xf32> -> vector<120x4xf32>
    %255 = arith.addf %232, %254 : vector<120x4xf32>
    %c11 = arith.constant 11 : index
    %c0_268 = arith.constant 0 : index
    %c0_269 = arith.constant 0 : index
    %c0_270 = arith.constant 0 : index
    %256 = vector.load %arg1[%c11, %c0_268, %c0_269, %c0_270] : memref<16x4x150x4xf32, #tpu.memory_space<vmem>>, vector<1x1x150x4xf32>
    %257 = vector.shape_cast %256 : vector<1x1x150x4xf32> to vector<150x4xf32>
    %cst_271 = arith.constant dense<0.000000e+00> : vector<16x4xf32>
    %258 = tpu.matmul %0, %257, %cst_271 {dimension_numbers = #tpu.dot_dimension_numbers<[1], [0], [0], [1], [0, 0, 1, 1], [], []>} : vector<16x150xf32>, vector<150x4xf32>, vector<16x4xf32> -> vector<16x4xf32>
    %c11_272 = arith.constant 11 : index
    %c1_273 = arith.constant 1 : index
    %c0_274 = arith.constant 0 : index
    %c0_275 = arith.constant 0 : index
    %259 = vector.load %arg1[%c11_272, %c1_273, %c0_274, %c0_275] : memref<16x4x150x4xf32, #tpu.memory_space<vmem>>, vector<1x1x150x4xf32>
    %260 = vector.shape_cast %259 : vector<1x1x150x4xf32> to vector<150x4xf32>
    %cst_276 = arith.constant dense<0.000000e+00> : vector<16x4xf32>
    %261 = tpu.matmul %0, %260, %cst_276 {dimension_numbers = #tpu.dot_dimension_numbers<[1], [0], [0], [1], [0, 0, 1, 1], [], []>} : vector<16x150xf32>, vector<150x4xf32>, vector<16x4xf32> -> vector<16x4xf32>
    %262 = arith.maximumf %258, %261 : vector<16x4xf32>
    %c11_277 = arith.constant 11 : index
    %c2_278 = arith.constant 2 : index
    %c0_279 = arith.constant 0 : index
    %c0_280 = arith.constant 0 : index
    %263 = vector.load %arg1[%c11_277, %c2_278, %c0_279, %c0_280] : memref<16x4x150x4xf32, #tpu.memory_space<vmem>>, vector<1x1x150x4xf32>
    %264 = vector.shape_cast %263 : vector<1x1x150x4xf32> to vector<150x4xf32>
    %cst_281 = arith.constant dense<0.000000e+00> : vector<16x4xf32>
    %265 = tpu.matmul %0, %264, %cst_281 {dimension_numbers = #tpu.dot_dimension_numbers<[1], [0], [0], [1], [0, 0, 1, 1], [], []>} : vector<16x150xf32>, vector<150x4xf32>, vector<16x4xf32> -> vector<16x4xf32>
    %266 = arith.maximumf %262, %265 : vector<16x4xf32>
    %c11_282 = arith.constant 11 : index
    %c3_283 = arith.constant 3 : index
    %c0_284 = arith.constant 0 : index
    %c0_285 = arith.constant 0 : index
    %267 = vector.load %arg1[%c11_282, %c3_283, %c0_284, %c0_285] : memref<16x4x150x4xf32, #tpu.memory_space<vmem>>, vector<1x1x150x4xf32>
    %268 = vector.shape_cast %267 : vector<1x1x150x4xf32> to vector<150x4xf32>
    %cst_286 = arith.constant dense<0.000000e+00> : vector<16x4xf32>
    %269 = tpu.matmul %0, %268, %cst_286 {dimension_numbers = #tpu.dot_dimension_numbers<[1], [0], [0], [1], [0, 0, 1, 1], [], []>} : vector<16x150xf32>, vector<150x4xf32>, vector<16x4xf32> -> vector<16x4xf32>
    %270 = arith.maximumf %266, %269 : vector<16x4xf32>
    %271 = vector.broadcast %1 : vector<16x1xf32> to vector<16x4xf32>
    %272 = arith.addf %270, %271 : vector<16x4xf32>
    %cst_287 = arith.constant 0.000000e+00 : f32
    %273 = vector.broadcast %cst_287 : f32 to vector<16x4xf32>
    %274 = arith.maximumf %272, %273 : vector<16x4xf32>
    %c11_288 = arith.constant 11 : index
    %c0_289 = arith.constant 0 : index
    %c0_290 = arith.constant 0 : index
    %275 = vector.load %arg4[%c11_288, %c0_289, %c0_290] : memref<16x120x16xf32, #tpu.memory_space<vmem>>, vector<1x120x16xf32>
    %276 = vector.shape_cast %275 : vector<1x120x16xf32> to vector<120x16xf32>
    %cst_291 = arith.constant dense<0.000000e+00> : vector<120x4xf32>
    %277 = tpu.matmul %276, %274, %cst_291 {dimension_numbers = #tpu.dot_dimension_numbers<[1], [0], [0], [1], [0, 0, 1, 1], [], []>} : vector<120x16xf32>, vector<16x4xf32>, vector<120x4xf32> -> vector<120x4xf32>
    %278 = arith.addf %255, %277 : vector<120x4xf32>
    %c12 = arith.constant 12 : index
    %c0_292 = arith.constant 0 : index
    %c0_293 = arith.constant 0 : index
    %c0_294 = arith.constant 0 : index
    %279 = vector.load %arg1[%c12, %c0_292, %c0_293, %c0_294] : memref<16x4x150x4xf32, #tpu.memory_space<vmem>>, vector<1x1x150x4xf32>
    %280 = vector.shape_cast %279 : vector<1x1x150x4xf32> to vector<150x4xf32>
    %cst_295 = arith.constant dense<0.000000e+00> : vector<16x4xf32>
    %281 = tpu.matmul %0, %280, %cst_295 {dimension_numbers = #tpu.dot_dimension_numbers<[1], [0], [0], [1], [0, 0, 1, 1], [], []>} : vector<16x150xf32>, vector<150x4xf32>, vector<16x4xf32> -> vector<16x4xf32>
    %c12_296 = arith.constant 12 : index
    %c1_297 = arith.constant 1 : index
    %c0_298 = arith.constant 0 : index
    %c0_299 = arith.constant 0 : index
    %282 = vector.load %arg1[%c12_296, %c1_297, %c0_298, %c0_299] : memref<16x4x150x4xf32, #tpu.memory_space<vmem>>, vector<1x1x150x4xf32>
    %283 = vector.shape_cast %282 : vector<1x1x150x4xf32> to vector<150x4xf32>
    %cst_300 = arith.constant dense<0.000000e+00> : vector<16x4xf32>
    %284 = tpu.matmul %0, %283, %cst_300 {dimension_numbers = #tpu.dot_dimension_numbers<[1], [0], [0], [1], [0, 0, 1, 1], [], []>} : vector<16x150xf32>, vector<150x4xf32>, vector<16x4xf32> -> vector<16x4xf32>
    %285 = arith.maximumf %281, %284 : vector<16x4xf32>
    %c12_301 = arith.constant 12 : index
    %c2_302 = arith.constant 2 : index
    %c0_303 = arith.constant 0 : index
    %c0_304 = arith.constant 0 : index
    %286 = vector.load %arg1[%c12_301, %c2_302, %c0_303, %c0_304] : memref<16x4x150x4xf32, #tpu.memory_space<vmem>>, vector<1x1x150x4xf32>
    %287 = vector.shape_cast %286 : vector<1x1x150x4xf32> to vector<150x4xf32>
    %cst_305 = arith.constant dense<0.000000e+00> : vector<16x4xf32>
    %288 = tpu.matmul %0, %287, %cst_305 {dimension_numbers = #tpu.dot_dimension_numbers<[1], [0], [0], [1], [0, 0, 1, 1], [], []>} : vector<16x150xf32>, vector<150x4xf32>, vector<16x4xf32> -> vector<16x4xf32>
    %289 = arith.maximumf %285, %288 : vector<16x4xf32>
    %c12_306 = arith.constant 12 : index
    %c3_307 = arith.constant 3 : index
    %c0_308 = arith.constant 0 : index
    %c0_309 = arith.constant 0 : index
    %290 = vector.load %arg1[%c12_306, %c3_307, %c0_308, %c0_309] : memref<16x4x150x4xf32, #tpu.memory_space<vmem>>, vector<1x1x150x4xf32>
    %291 = vector.shape_cast %290 : vector<1x1x150x4xf32> to vector<150x4xf32>
    %cst_310 = arith.constant dense<0.000000e+00> : vector<16x4xf32>
    %292 = tpu.matmul %0, %291, %cst_310 {dimension_numbers = #tpu.dot_dimension_numbers<[1], [0], [0], [1], [0, 0, 1, 1], [], []>} : vector<16x150xf32>, vector<150x4xf32>, vector<16x4xf32> -> vector<16x4xf32>
    %293 = arith.maximumf %289, %292 : vector<16x4xf32>
    %294 = vector.broadcast %1 : vector<16x1xf32> to vector<16x4xf32>
    %295 = arith.addf %293, %294 : vector<16x4xf32>
    %cst_311 = arith.constant 0.000000e+00 : f32
    %296 = vector.broadcast %cst_311 : f32 to vector<16x4xf32>
    %297 = arith.maximumf %295, %296 : vector<16x4xf32>
    %c12_312 = arith.constant 12 : index
    %c0_313 = arith.constant 0 : index
    %c0_314 = arith.constant 0 : index
    %298 = vector.load %arg4[%c12_312, %c0_313, %c0_314] : memref<16x120x16xf32, #tpu.memory_space<vmem>>, vector<1x120x16xf32>
    %299 = vector.shape_cast %298 : vector<1x120x16xf32> to vector<120x16xf32>
    %cst_315 = arith.constant dense<0.000000e+00> : vector<120x4xf32>
    %300 = tpu.matmul %299, %297, %cst_315 {dimension_numbers = #tpu.dot_dimension_numbers<[1], [0], [0], [1], [0, 0, 1, 1], [], []>} : vector<120x16xf32>, vector<16x4xf32>, vector<120x4xf32> -> vector<120x4xf32>
    %301 = arith.addf %278, %300 : vector<120x4xf32>
    %c13 = arith.constant 13 : index
    %c0_316 = arith.constant 0 : index
    %c0_317 = arith.constant 0 : index
    %c0_318 = arith.constant 0 : index
    %302 = vector.load %arg1[%c13, %c0_316, %c0_317, %c0_318] : memref<16x4x150x4xf32, #tpu.memory_space<vmem>>, vector<1x1x150x4xf32>
    %303 = vector.shape_cast %302 : vector<1x1x150x4xf32> to vector<150x4xf32>
    %cst_319 = arith.constant dense<0.000000e+00> : vector<16x4xf32>
    %304 = tpu.matmul %0, %303, %cst_319 {dimension_numbers = #tpu.dot_dimension_numbers<[1], [0], [0], [1], [0, 0, 1, 1], [], []>} : vector<16x150xf32>, vector<150x4xf32>, vector<16x4xf32> -> vector<16x4xf32>
    %c13_320 = arith.constant 13 : index
    %c1_321 = arith.constant 1 : index
    %c0_322 = arith.constant 0 : index
    %c0_323 = arith.constant 0 : index
    %305 = vector.load %arg1[%c13_320, %c1_321, %c0_322, %c0_323] : memref<16x4x150x4xf32, #tpu.memory_space<vmem>>, vector<1x1x150x4xf32>
    %306 = vector.shape_cast %305 : vector<1x1x150x4xf32> to vector<150x4xf32>
    %cst_324 = arith.constant dense<0.000000e+00> : vector<16x4xf32>
    %307 = tpu.matmul %0, %306, %cst_324 {dimension_numbers = #tpu.dot_dimension_numbers<[1], [0], [0], [1], [0, 0, 1, 1], [], []>} : vector<16x150xf32>, vector<150x4xf32>, vector<16x4xf32> -> vector<16x4xf32>
    %308 = arith.maximumf %304, %307 : vector<16x4xf32>
    %c13_325 = arith.constant 13 : index
    %c2_326 = arith.constant 2 : index
    %c0_327 = arith.constant 0 : index
    %c0_328 = arith.constant 0 : index
    %309 = vector.load %arg1[%c13_325, %c2_326, %c0_327, %c0_328] : memref<16x4x150x4xf32, #tpu.memory_space<vmem>>, vector<1x1x150x4xf32>
    %310 = vector.shape_cast %309 : vector<1x1x150x4xf32> to vector<150x4xf32>
    %cst_329 = arith.constant dense<0.000000e+00> : vector<16x4xf32>
    %311 = tpu.matmul %0, %310, %cst_329 {dimension_numbers = #tpu.dot_dimension_numbers<[1], [0], [0], [1], [0, 0, 1, 1], [], []>} : vector<16x150xf32>, vector<150x4xf32>, vector<16x4xf32> -> vector<16x4xf32>
    %312 = arith.maximumf %308, %311 : vector<16x4xf32>
    %c13_330 = arith.constant 13 : index
    %c3_331 = arith.constant 3 : index
    %c0_332 = arith.constant 0 : index
    %c0_333 = arith.constant 0 : index
    %313 = vector.load %arg1[%c13_330, %c3_331, %c0_332, %c0_333] : memref<16x4x150x4xf32, #tpu.memory_space<vmem>>, vector<1x1x150x4xf32>
    %314 = vector.shape_cast %313 : vector<1x1x150x4xf32> to vector<150x4xf32>
    %cst_334 = arith.constant dense<0.000000e+00> : vector<16x4xf32>
    %315 = tpu.matmul %0, %314, %cst_334 {dimension_numbers = #tpu.dot_dimension_numbers<[1], [0], [0], [1], [0, 0, 1, 1], [], []>} : vector<16x150xf32>, vector<150x4xf32>, vector<16x4xf32> -> vector<16x4xf32>
    %316 = arith.maximumf %312, %315 : vector<16x4xf32>
    %317 = vector.broadcast %1 : vector<16x1xf32> to vector<16x4xf32>
    %318 = arith.addf %316, %317 : vector<16x4xf32>
    %cst_335 = arith.constant 0.000000e+00 : f32
    %319 = vector.broadcast %cst_335 : f32 to vector<16x4xf32>
    %320 = arith.maximumf %318, %319 : vector<16x4xf32>
    %c13_336 = arith.constant 13 : index
    %c0_337 = arith.constant 0 : index
    %c0_338 = arith.constant 0 : index
    %321 = vector.load %arg4[%c13_336, %c0_337, %c0_338] : memref<16x120x16xf32, #tpu.memory_space<vmem>>, vector<1x120x16xf32>
    %322 = vector.shape_cast %321 : vector<1x120x16xf32> to vector<120x16xf32>
    %cst_339 = arith.constant dense<0.000000e+00> : vector<120x4xf32>
    %323 = tpu.matmul %322, %320, %cst_339 {dimension_numbers = #tpu.dot_dimension_numbers<[1], [0], [0], [1], [0, 0, 1, 1], [], []>} : vector<120x16xf32>, vector<16x4xf32>, vector<120x4xf32> -> vector<120x4xf32>
    %324 = arith.addf %301, %323 : vector<120x4xf32>
    %c14 = arith.constant 14 : index
    %c0_340 = arith.constant 0 : index
    %c0_341 = arith.constant 0 : index
    %c0_342 = arith.constant 0 : index
    %325 = vector.load %arg1[%c14, %c0_340, %c0_341, %c0_342] : memref<16x4x150x4xf32, #tpu.memory_space<vmem>>, vector<1x1x150x4xf32>
    %326 = vector.shape_cast %325 : vector<1x1x150x4xf32> to vector<150x4xf32>
    %cst_343 = arith.constant dense<0.000000e+00> : vector<16x4xf32>
    %327 = tpu.matmul %0, %326, %cst_343 {dimension_numbers = #tpu.dot_dimension_numbers<[1], [0], [0], [1], [0, 0, 1, 1], [], []>} : vector<16x150xf32>, vector<150x4xf32>, vector<16x4xf32> -> vector<16x4xf32>
    %c14_344 = arith.constant 14 : index
    %c1_345 = arith.constant 1 : index
    %c0_346 = arith.constant 0 : index
    %c0_347 = arith.constant 0 : index
    %328 = vector.load %arg1[%c14_344, %c1_345, %c0_346, %c0_347] : memref<16x4x150x4xf32, #tpu.memory_space<vmem>>, vector<1x1x150x4xf32>
    %329 = vector.shape_cast %328 : vector<1x1x150x4xf32> to vector<150x4xf32>
    %cst_348 = arith.constant dense<0.000000e+00> : vector<16x4xf32>
    %330 = tpu.matmul %0, %329, %cst_348 {dimension_numbers = #tpu.dot_dimension_numbers<[1], [0], [0], [1], [0, 0, 1, 1], [], []>} : vector<16x150xf32>, vector<150x4xf32>, vector<16x4xf32> -> vector<16x4xf32>
    %331 = arith.maximumf %327, %330 : vector<16x4xf32>
    %c14_349 = arith.constant 14 : index
    %c2_350 = arith.constant 2 : index
    %c0_351 = arith.constant 0 : index
    %c0_352 = arith.constant 0 : index
    %332 = vector.load %arg1[%c14_349, %c2_350, %c0_351, %c0_352] : memref<16x4x150x4xf32, #tpu.memory_space<vmem>>, vector<1x1x150x4xf32>
    %333 = vector.shape_cast %332 : vector<1x1x150x4xf32> to vector<150x4xf32>
    %cst_353 = arith.constant dense<0.000000e+00> : vector<16x4xf32>
    %334 = tpu.matmul %0, %333, %cst_353 {dimension_numbers = #tpu.dot_dimension_numbers<[1], [0], [0], [1], [0, 0, 1, 1], [], []>} : vector<16x150xf32>, vector<150x4xf32>, vector<16x4xf32> -> vector<16x4xf32>
    %335 = arith.maximumf %331, %334 : vector<16x4xf32>
    %c14_354 = arith.constant 14 : index
    %c3_355 = arith.constant 3 : index
    %c0_356 = arith.constant 0 : index
    %c0_357 = arith.constant 0 : index
    %336 = vector.load %arg1[%c14_354, %c3_355, %c0_356, %c0_357] : memref<16x4x150x4xf32, #tpu.memory_space<vmem>>, vector<1x1x150x4xf32>
    %337 = vector.shape_cast %336 : vector<1x1x150x4xf32> to vector<150x4xf32>
    %cst_358 = arith.constant dense<0.000000e+00> : vector<16x4xf32>
    %338 = tpu.matmul %0, %337, %cst_358 {dimension_numbers = #tpu.dot_dimension_numbers<[1], [0], [0], [1], [0, 0, 1, 1], [], []>} : vector<16x150xf32>, vector<150x4xf32>, vector<16x4xf32> -> vector<16x4xf32>
    %339 = arith.maximumf %335, %338 : vector<16x4xf32>
    %340 = vector.broadcast %1 : vector<16x1xf32> to vector<16x4xf32>
    %341 = arith.addf %339, %340 : vector<16x4xf32>
    %cst_359 = arith.constant 0.000000e+00 : f32
    %342 = vector.broadcast %cst_359 : f32 to vector<16x4xf32>
    %343 = arith.maximumf %341, %342 : vector<16x4xf32>
    %c14_360 = arith.constant 14 : index
    %c0_361 = arith.constant 0 : index
    %c0_362 = arith.constant 0 : index
    %344 = vector.load %arg4[%c14_360, %c0_361, %c0_362] : memref<16x120x16xf32, #tpu.memory_space<vmem>>, vector<1x120x16xf32>
    %345 = vector.shape_cast %344 : vector<1x120x16xf32> to vector<120x16xf32>
    %cst_363 = arith.constant dense<0.000000e+00> : vector<120x4xf32>
    %346 = tpu.matmul %345, %343, %cst_363 {dimension_numbers = #tpu.dot_dimension_numbers<[1], [0], [0], [1], [0, 0, 1, 1], [], []>} : vector<120x16xf32>, vector<16x4xf32>, vector<120x4xf32> -> vector<120x4xf32>
    %347 = arith.addf %324, %346 : vector<120x4xf32>
    %c15 = arith.constant 15 : index
    %c0_364 = arith.constant 0 : index
    %c0_365 = arith.constant 0 : index
    %c0_366 = arith.constant 0 : index
    %348 = vector.load %arg1[%c15, %c0_364, %c0_365, %c0_366] : memref<16x4x150x4xf32, #tpu.memory_space<vmem>>, vector<1x1x150x4xf32>
    %349 = vector.shape_cast %348 : vector<1x1x150x4xf32> to vector<150x4xf32>
    %cst_367 = arith.constant dense<0.000000e+00> : vector<16x4xf32>
    %350 = tpu.matmul %0, %349, %cst_367 {dimension_numbers = #tpu.dot_dimension_numbers<[1], [0], [0], [1], [0, 0, 1, 1], [], []>} : vector<16x150xf32>, vector<150x4xf32>, vector<16x4xf32> -> vector<16x4xf32>
    %c15_368 = arith.constant 15 : index
    %c1_369 = arith.constant 1 : index
    %c0_370 = arith.constant 0 : index
    %c0_371 = arith.constant 0 : index
    %351 = vector.load %arg1[%c15_368, %c1_369, %c0_370, %c0_371] : memref<16x4x150x4xf32, #tpu.memory_space<vmem>>, vector<1x1x150x4xf32>
    %352 = vector.shape_cast %351 : vector<1x1x150x4xf32> to vector<150x4xf32>
    %cst_372 = arith.constant dense<0.000000e+00> : vector<16x4xf32>
    %353 = tpu.matmul %0, %352, %cst_372 {dimension_numbers = #tpu.dot_dimension_numbers<[1], [0], [0], [1], [0, 0, 1, 1], [], []>} : vector<16x150xf32>, vector<150x4xf32>, vector<16x4xf32> -> vector<16x4xf32>
    %354 = arith.maximumf %350, %353 : vector<16x4xf32>
    %c15_373 = arith.constant 15 : index
    %c2_374 = arith.constant 2 : index
    %c0_375 = arith.constant 0 : index
    %c0_376 = arith.constant 0 : index
    %355 = vector.load %arg1[%c15_373, %c2_374, %c0_375, %c0_376] : memref<16x4x150x4xf32, #tpu.memory_space<vmem>>, vector<1x1x150x4xf32>
    %356 = vector.shape_cast %355 : vector<1x1x150x4xf32> to vector<150x4xf32>
    %cst_377 = arith.constant dense<0.000000e+00> : vector<16x4xf32>
    %357 = tpu.matmul %0, %356, %cst_377 {dimension_numbers = #tpu.dot_dimension_numbers<[1], [0], [0], [1], [0, 0, 1, 1], [], []>} : vector<16x150xf32>, vector<150x4xf32>, vector<16x4xf32> -> vector<16x4xf32>
    %358 = arith.maximumf %354, %357 : vector<16x4xf32>
    %c15_378 = arith.constant 15 : index
    %c3_379 = arith.constant 3 : index
    %c0_380 = arith.constant 0 : index
    %c0_381 = arith.constant 0 : index
    %359 = vector.load %arg1[%c15_378, %c3_379, %c0_380, %c0_381] : memref<16x4x150x4xf32, #tpu.memory_space<vmem>>, vector<1x1x150x4xf32>
    %360 = vector.shape_cast %359 : vector<1x1x150x4xf32> to vector<150x4xf32>
    %cst_382 = arith.constant dense<0.000000e+00> : vector<16x4xf32>
    %361 = tpu.matmul %0, %360, %cst_382 {dimension_numbers = #tpu.dot_dimension_numbers<[1], [0], [0], [1], [0, 0, 1, 1], [], []>} : vector<16x150xf32>, vector<150x4xf32>, vector<16x4xf32> -> vector<16x4xf32>
    %362 = arith.maximumf %358, %361 : vector<16x4xf32>
    %363 = vector.broadcast %1 : vector<16x1xf32> to vector<16x4xf32>
    %364 = arith.addf %362, %363 : vector<16x4xf32>
    %cst_383 = arith.constant 0.000000e+00 : f32
    %365 = vector.broadcast %cst_383 : f32 to vector<16x4xf32>
    %366 = arith.maximumf %364, %365 : vector<16x4xf32>
    %c15_384 = arith.constant 15 : index
    %c0_385 = arith.constant 0 : index
    %c0_386 = arith.constant 0 : index
    %367 = vector.load %arg4[%c15_384, %c0_385, %c0_386] : memref<16x120x16xf32, #tpu.memory_space<vmem>>, vector<1x120x16xf32>
    %368 = vector.shape_cast %367 : vector<1x120x16xf32> to vector<120x16xf32>
    %cst_387 = arith.constant dense<0.000000e+00> : vector<120x4xf32>
    %369 = tpu.matmul %368, %366, %cst_387 {dimension_numbers = #tpu.dot_dimension_numbers<[1], [0], [0], [1], [0, 0, 1, 1], [], []>} : vector<120x16xf32>, vector<16x4xf32>, vector<120x4xf32> -> vector<120x4xf32>
    %370 = arith.addf %347, %369 : vector<120x4xf32>
    %c0_388 = arith.constant 0 : index
    %c0_389 = arith.constant 0 : index
    %371 = vector.load %arg5[%c0_388, %c0_389] : memref<120x1xf32, #tpu.memory_space<vmem>>, vector<120x1xf32>
    %372 = vector.broadcast %371 : vector<120x1xf32> to vector<120x4xf32>
    %373 = arith.addf %370, %372 : vector<120x4xf32>
    %cst_390 = arith.constant 0.000000e+00 : f32
    %374 = vector.broadcast %cst_390 : f32 to vector<120x4xf32>
    %375 = arith.maximumf %373, %374 : vector<120x4xf32>
    %c0_391 = arith.constant 0 : index
    %c0_392 = arith.constant 0 : index
    %376 = vector.load %arg6[%c0_391, %c0_392] : memref<84x120xf32, #tpu.memory_space<vmem>>, vector<84x120xf32>
    %cst_393 = arith.constant dense<0.000000e+00> : vector<84x4xf32>
    %377 = tpu.matmul %376, %375, %cst_393 {dimension_numbers = #tpu.dot_dimension_numbers<[1], [0], [0], [1], [0, 0, 1, 1], [], []>} : vector<84x120xf32>, vector<120x4xf32>, vector<84x4xf32> -> vector<84x4xf32>
    %c0_394 = arith.constant 0 : index
    %c0_395 = arith.constant 0 : index
    %378 = vector.load %arg7[%c0_394, %c0_395] : memref<84x1xf32, #tpu.memory_space<vmem>>, vector<84x1xf32>
    %379 = vector.broadcast %378 : vector<84x1xf32> to vector<84x4xf32>
    %380 = arith.addf %377, %379 : vector<84x4xf32>
    %cst_396 = arith.constant 0.000000e+00 : f32
    %381 = vector.broadcast %cst_396 : f32 to vector<84x4xf32>
    %382 = arith.maximumf %380, %381 : vector<84x4xf32>
    %c0_397 = arith.constant 0 : index
    %c0_398 = arith.constant 0 : index
    %383 = vector.load %arg8[%c0_397, %c0_398] : memref<10x84xf32, #tpu.memory_space<vmem>>, vector<10x84xf32>
    %cst_399 = arith.constant dense<0.000000e+00> : vector<10x4xf32>
    %384 = tpu.matmul %383, %382, %cst_399 {dimension_numbers = #tpu.dot_dimension_numbers<[1], [0], [0], [1], [0, 0, 1, 1], [], []>} : vector<10x84xf32>, vector<84x4xf32>, vector<10x4xf32> -> vector<10x4xf32>
    %c0_400 = arith.constant 0 : index
    %c0_401 = arith.constant 0 : index
    %385 = vector.load %arg9[%c0_400, %c0_401] : memref<10x1xf32, #tpu.memory_space<vmem>>, vector<10x1xf32>
    %386 = vector.broadcast %385 : vector<10x1xf32> to vector<10x4xf32>
    %387 = arith.addf %384, %386 : vector<10x4xf32>
    %c0_402 = arith.constant 0 : index
    %c0_403 = arith.constant 0 : index
    %388 = vector.load %arg10[%c0_402, %c0_403] : memref<10x4xf32, #tpu.memory_space<vmem>>, vector<10x4xf32>
    tpu.vector_store %arg10[%c0_402, %c0_403], %387 {strides = array<i32>} : memref<10x4xf32, #tpu.memory_space<vmem>>, vector<10x4xf32>,
    return
  }
  func.func @transform_0(%arg0: i32) -> (i32, i32, i32, i32) {
    %c0_i32 = arith.constant 0 : i32
    %c0_i32_0 = arith.constant 0 : i32
    %c0_i32_1 = arith.constant 0 : i32
    %c0_i32_2 = arith.constant 0 : i32
    return %c0_i32, %c0_i32_0, %c0_i32_1, %arg0 : i32, i32, i32, i32
  }
  func.func @transform_1(%arg0: i32) -> (i32, i32) {
    %c0_i32 = arith.constant 0 : i32
    %c0_i32_0 = arith.constant 0 : i32
    %c0_i32_1 = arith.constant 0 : i32
    return %c0_i32, %c0_i32_0 : i32, i32
  }
  func.func @transform_2(%arg0: i32) -> (i32, i32) {
    %c0_i32 = arith.constant 0 : i32
    %c0_i32_0 = arith.constant 0 : i32
    %c0_i32_1 = arith.constant 0 : i32
    return %c0_i32, %c0_i32_0 : i32, i32
  }
  func.func @transform_3(%arg0: i32) -> (i32, i32, i32) {
    %c0_i32 = arith.constant 0 : i32
    %c0_i32_0 = arith.constant 0 : i32
    %c0_i32_1 = arith.constant 0 : i32
    %c0_i32_2 = arith.constant 0 : i32
    return %c0_i32, %c0_i32_0, %c0_i32_1 : i32, i32, i32
  }
  func.func @transform_4(%arg0: i32) -> (i32, i32) {
    %c0_i32 = arith.constant 0 : i32
    %c0_i32_0 = arith.constant 0 : i32
    %c0_i32_1 = arith.constant 0 : i32
    return %c0_i32, %c0_i32_0 : i32, i32
  }
  func.func @transform_5(%arg0: i32) -> (i32, i32) {
    %c0_i32 = arith.constant 0 : i32
    %c0_i32_0 = arith.constant 0 : i32
    %c0_i32_1 = arith.constant 0 : i32
    return %c0_i32, %c0_i32_0 : i32, i32
  }
  func.func @transform_6(%arg0: i32) -> (i32, i32) {
    %c0_i32 = arith.constant 0 : i32
    %c0_i32_0 = arith.constant 0 : i32
    %c0_i32_1 = arith.constant 0 : i32
    return %c0_i32, %c0_i32_0 : i32, i32
  }
  func.func @transform_7(%arg0: i32) -> (i32, i32) {
    %c0_i32 = arith.constant 0 : i32
    %c0_i32_0 = arith.constant 0 : i32
    %c0_i32_1 = arith.constant 0 : i32
    return %c0_i32, %c0_i32_0 : i32, i32
  }
  func.func @transform_8(%arg0: i32) -> (i32, i32) {
    %c0_i32 = arith.constant 0 : i32
    %c0_i32_0 = arith.constant 0 : i32
    %c0_i32_1 = arith.constant 0 : i32
    return %c0_i32, %c0_i32_0 : i32, i32
  }
  func.func @transform_9(%arg0: i32) -> (i32, i32) {
    %c0_i32 = arith.constant 0 : i32
    %c0_i32_0 = arith.constant 0 : i32
    return %c0_i32, %arg0 : i32, i32
  }
}

</mosaic_0001>

<llo_original>
// kernel: net_forward.2
$region0: #{net_forward.2}
  #allocation0 [shape = 'u32[]', space=smem, size = 0x4, offset = 0x4, fixed_abs, tag = 'smem constant byte address 0x4 - core index']
  #allocation1 [shape = 'u32[144,128]{1,0:T(1,128)}', space=vmem, size = 0x12000, scoped, tag = 'internal scratch']
  %s0 = inlined_call_operand.vmem [shape: f32[4,25,576], index: 0, kind: input, shape index: {}]
  %s1 = inlined_call_operand.vmem [shape: f32[6,25], index: 1, kind: input, shape index: {}]
  %s2 = inlined_call_operand.vmem [shape: f32[6,1], index: 2, kind: input, shape index: {}]
  %s3 = inlined_call_operand.vmem [shape: f32[6,576], index: 3, kind: output, shape index: {}]
  %s4 = sld [smem:[#allocation0]]
  $region22: #{net_forward.2} parent=0
    _
  %s6 = ssub.s32 1, %s4
  %s7 = scalar_select 0, %s6, %s4
  // Predicated region
  $region2: #{net_forward.2} parent=0 // pred_check
    _
  $region3: #{net_forward.2} parent=0 // pred_check_branch
    %9 = sbr.rel (0) target = $region5
  $region4: #{net_forward.2} parent=0 // pred_region
    _
  $region5: #{net_forward.2} parent=0 // pred_fallthru
    _
  // Predicated region
  $region6: #{net_forward.2} parent=0 // pred_check
    _
  $region7: #{net_forward.2} parent=0 // pred_check_branch
    %11 = sbr.rel (0) target = $region9
  $region8: #{net_forward.2} parent=0 // pred_region
    _
  $region9: #{net_forward.2} parent=0 // pred_fallthru
    _
  // Predicated region
  $region10: #{net_forward.2} parent=0 // pred_check
    _
  $region11: #{net_forward.2} parent=0 // pred_check_branch
    %13 = sbr.rel (0) target = $region13
  $region12: #{net_forward.2} parent=0 // pred_region
    _
  $region13: #{net_forward.2} parent=0 // pred_fallthru
    _
  %v14 = vld [vmem:[%s1] sm:$0x3f]
  %v15 = vld [vmem:[%s0] sm:$0xff]
  %v16 = vld [vmem:[%s0 + $0x8] sm:$0xff]
  %v17 = vld [vmem:[%s0 + $0x10] sm:$0xff]
  %v18 = vld [vmem:[%s0 + $0x18] sm:$0xff]
  %v19 = vld [vmem:[%s0 + $0x20] sm:$0xff]
  %v20 = vld [vmem:[%s0 + $0x28] sm:$0xff]
  %v21 = vld [vmem:[%s0 + $0x30] sm:$0xff]
  %v22 = vld [vmem:[%s0 + $0x38] sm:$0xff]
  %v23 = vld [vmem:[%s0 + $0x40] sm:$0xff]
  %v24 = vld [vmem:[%s0 + $0x48] sm:$0xff]
  %v25 = vld [vmem:[%s0 + $0x50] sm:$0xff]
  %v26 = vld [vmem:[%s0 + $0x58] sm:$0xff]
  %v27 = vld [vmem:[%s0 + $0x60] sm:$0xff]
  %v28 = vld [vmem:[%s0 + $0x68] sm:$0xff]
  %v29 = vld [vmem:[%s0 + $0x70] sm:$0xff]
  %v30 = vld [vmem:[%s0 + $0x78] sm:$0x1]
  %v31 = vld [vmem:[%s0 + $0x80] sm:$0x1]
  %v32 = vld [vmem:[%s0 + $0x88] sm:$0x1]
  %v33 = vld [vmem:[%s0 + $0x90] sm:$0x1]
  %v34 = vld [vmem:[%s0 + $0x98] sm:$0x1]
  %vm35 = vcmask 203776
  %v37 = vsel %vm35, %v14, 0
  %vm39 = vcmask 1040384
  %v41 = vsel %vm39, %v30, 0
  %v44 = vsel %vm39, %v31, 0
  %v47 = vsel %vm39, %v32, 0
  %v50 = vsel %vm39, %v33, 0
  %v53 = vsel %vm39, %v34, 0
  %55 = vmatprep.subr.mxu0 0.0
  %56 = vmatpush1.msra.mxu0 0.0
  %57 = vmatprep.subr.mxu0 0.0
  %58 = vmatpush1.msra.mxu0 0.0
  %59 = vmatprep.subr.mxu0 0.0
  %60 = vmatpush1.msra.mxu0 0.0
  %61 = vmatprep.subr.mxu0 0.0
  %62 = vmatpush1.msra.mxu0 0.0
  %63 = vmatprep.subr.mxu0 0.0
  %64 = vmatpush1.msra.mxu0 0.0
  %65 = vmatprep.subr.mxu0 0.0
  %66 = vmatpush1.msra.mxu0 0.0
  %67 = vmatprep.subr.mxu0 0.0
  %68 = vmatpush1.msra.mxu0 0.0
  %69 = vmatprep.subr.mxu0 0.0
  %70 = vmatpush1.msra.mxu0 0.0
  %71 = vmatprep.subr.mxu0 0.0
  %72 = vmatpush1.msra.mxu0 0.0
  %73 = vmatprep.subr.mxu0 0.0
  %74 = vmatpush1.msra.mxu0 0.0
  %75 = vmatprep.subr.mxu0 0.0
  %76 = vmatpush1.msra.mxu0 0.0
  %77 = vmatprep.subr.mxu0 0.0
  %78 = vmatpush1.msra.mxu0 0.0
  %79 = vmatprep.subr.mxu0 %v44
  %80 = vmatpush1.msra.mxu0 %v41
  %81 = vmatprep.subr.mxu0 %v26
  %82 = vmatpush1.msra.mxu0 %v25
  %83 = vmatprep.subr.mxu0 %v21
  %84 = vmatpush1.msra.mxu0 %v20
  %85 = vmatprep.subr.mxu0 %v16
  %86 = vmatpush1.msra.mxu0 %v15
  %87 = vmatprep.subr.mxu0 0.0
  %88 = vmatpush2.msra.mxu0 0.0
  %89 = vmatprep.subr.mxu0 0.0
  %90 = vmatpush2.msra.mxu0 0.0
  %91 = vmatprep.subr.mxu0 0.0
  %92 = vmatpush2.msra.mxu0 0.0
  %93 = vmatprep.subr.mxu0 0.0
  %94 = vmatpush2.msra.mxu0 0.0
  %95 = vmatprep.subr.mxu0 0.0
  %96 = vmatpush2.msra.mxu0 0.0
  %97 = vmatprep.subr.mxu0 0.0
  %98 = vmatpush2.msra.mxu0 0.0
  %99 = vmatprep.subr.mxu0 0.0
  %100 = vmatpush2.msra.mxu0 0.0
  %101 = vmatprep.subr.mxu0 0.0
  %102 = vmatpush2.msra.mxu0 0.0
  %103 = vmatprep.subr.mxu0 0.0
  %104 = vmatpush2.msra.mxu0 0.0
  %105 = vmatprep.subr.mxu0 0.0
  %106 = vmatpush2.msra.mxu0 0.0
  %107 = vmatprep.subr.mxu0 0.0
  %108 = vmatpush2.msra.mxu0 0.0
  %109 = vmatprep.subr.mxu0 0.0
  %110 = vmatpush2.msra.mxu0 0.0
  %111 = vmatprep.subr.mxu0 0.0
  %112 = vmatpush2.msra.mxu0 0.0
  %113 = vmatprep.subr.mxu0 0.0
  %114 = vmatpush2.msra.mxu0 0.0
  %115 = vmatprep.subr.mxu0 0.0
  %116 = vmatpush2.msra.mxu0 0.0
  %117 = vmatprep.subr.mxu0 0.0
  %118 = vmatpush2.msra.mxu0 0.0
  %119 = vmatprep.mubr.f32.mxu0 0.0
  %120 = vmatmul.mubr.f32.gmra.mxu0 %v37
  %v121 = vpop.f32.mrf.mxu0
  %v122 = vadd.f32 0.0, %v121
  %v123 = vpop.f32.mrf.mxu0
  %v124 = vadd.f32 0.0, %v123
  %125 = vdwg.mxu0
  %126 = vmatprep.subr.mxu0 0.0
  %127 = vmatpush1.msra.mxu0 0.0
  %128 = vmatprep.subr.mxu0 0.0
  %129 = vmatpush1.msra.mxu0 0.0
  %130 = vmatprep.subr.mxu0 0.0
  %131 = vmatpush1.msra.mxu0 0.0
  %132 = vmatprep.subr.mxu0 0.0
  %133 = vmatpush1.msra.mxu0 0.0
  %134 = vmatprep.subr.mxu0 0.0
  %135 = vmatpush1.msra.mxu0 0.0
  %136 = vmatprep.subr.mxu0 0.0
  %137 = vmatpush1.msra.mxu0 0.0
  %138 = vmatprep.subr.mxu0 0.0
  %139 = vmatpush1.msra.mxu0 0.0
  %140 = vmatprep.subr.mxu0 0.0
  %141 = vmatpush1.msra.mxu0 0.0
  %142 = vmatprep.subr.mxu0 0.0
  %143 = vmatpush1.msra.mxu0 0.0
  %144 = vmatprep.subr.mxu0 0.0
  %145 = vmatpush1.msra.mxu0 0.0
  %146 = vmatprep.subr.mxu0 0.0
  %147 = vmatpush1.msra.mxu0 0.0
  %148 = vmatprep.subr.mxu0 0.0
  %149 = vmatpush1.msra.mxu0 0.0
  %150 = vmatprep.subr.mxu0 %v50
  %151 = vmatpush1.msra.mxu0 %v47
  %152 = vmatprep.subr.mxu0 %v28
  %153 = vmatpush1.msra.mxu0 %v27
  %154 = vmatprep.subr.mxu0 %v23
  %155 = vmatpush1.msra.mxu0 %v22
  %156 = vmatprep.subr.mxu0 %v18
  %157 = vmatpush1.msra.mxu0 %v17
  %158 = vmatprep.subr.mxu0 0.0
  %159 = vmatpush2.msra.mxu0 0.0
  %160 = vmatprep.subr.mxu0 0.0
  %161 = vmatpush2.msra.mxu0 0.0
  %162 = vmatprep.subr.mxu0 0.0
  %163 = vmatpush2.msra.mxu0 0.0
  %164 = vmatprep.subr.mxu0 0.0
  %165 = vmatpush2.msra.mxu0 0.0
  %166 = vmatprep.subr.mxu0 0.0
  %167 = vmatpush2.msra.mxu0 0.0
  %168 = vmatprep.subr.mxu0 0.0
  %169 = vmatpush2.msra.mxu0 0.0
  %170 = vmatprep.subr.mxu0 0.0
  %171 = vmatpush2.msra.mxu0 0.0
  %172 = vmatprep.subr.mxu0 0.0
  %173 = vmatpush2.msra.mxu0 0.0
  %174 = vmatprep.subr.mxu0 0.0
  %175 = vmatpush2.msra.mxu0 0.0
  %176 = vmatprep.subr.mxu0 0.0
  %177 = vmatpush2.msra.mxu0 0.0
  %178 = vmatprep.subr.mxu0 0.0
  %179 = vmatpush2.msra.mxu0 0.0
  %180 = vmatprep.subr.mxu0 0.0
  %181 = vmatpush2.msra.mxu0 0.0
  %182 = vmatprep.subr.mxu0 0.0
  %183 = vmatpush2.msra.mxu0 0.0
  %184 = vmatprep.subr.mxu0 0.0
  %185 = vmatpush2.msra.mxu0 0.0
  %186 = vmatprep.subr.mxu0 0.0
  %187 = vmatpush2.msra.mxu0 0.0
  %188 = vmatprep.subr.mxu0 0.0
  %189 = vmatpush2.msra.mxu0 0.0
  %190 = vmatprep.mubr.f32.mxu0 0.0
  %191 = vmatmul.mubr.f32.gmra.mxu0 %v37
  %v192 = vpop.f32.mrf.mxu0
  %v193 = vadd.f32 0.0, %v192
  %v194 = vpop.f32.mrf.mxu0
  %v195 = vadd.f32 0.0, %v194
  %196 = vdwg.mxu0
  %197 = vmatprep.subr.mxu0 0.0
  %198 = vmatpush1.msra.mxu0 0.0
  %199 = vmatprep.subr.mxu0 0.0
  %200 = vmatpush1.msra.mxu0 0.0
  %201 = vmatprep.subr.mxu0 0.0
  %202 = vmatpush1.msra.mxu0 0.0
  %203 = vmatprep.subr.mxu0 0.0
  %204 = vmatpush1.msra.mxu0 0.0
  %205 = vmatprep.subr.mxu0 0.0
  %206 = vmatpush1.msra.mxu0 0.0
  %207 = vmatprep.subr.mxu0 0.0
  %208 = vmatpush1.msra.mxu0 0.0
  %209 = vmatprep.subr.mxu0 0.0
  %210 = vmatpush1.msra.mxu0 0.0
  %211 = vmatprep.subr.mxu0 0.0
  %212 = vmatpush1.msra.mxu0 0.0
  %213 = vmatprep.subr.mxu0 0.0
  %214 = vmatpush1.msra.mxu0 0.0
  %215 = vmatprep.subr.mxu0 0.0
  %216 = vmatpush1.msra.mxu0 0.0
  %217 = vmatprep.subr.mxu0 0.0
  %218 = vmatpush1.msra.mxu0 0.0
  %219 = vmatprep.subr.mxu0 0.0
  %220 = vmatpush1.msra.mxu0 0.0
  %221 = vmatprep.subr.mxu0 0.0
  %222 = vmatpush1.msra.mxu0 %v53
  %223 = vmatprep.subr.mxu0 0.0
  %224 = vmatpush1.msra.mxu0 %v29
  %225 = vmatprep.subr.mxu0 0.0
  %226 = vmatpush1.msra.mxu0 %v24
  %227 = vmatprep.subr.mxu0 0.0
  %228 = vmatpush1.msra.mxu0 %v19
  %229 = vmatprep.subr.mxu0 0.0
  %230 = vmatpush2.msra.mxu0 0.0
  %231 = vmatprep.subr.mxu0 0.0
  %232 = vmatpush2.msra.mxu0 0.0
  %233 = vmatprep.subr.mxu0 0.0
  %234 = vmatpush2.msra.mxu0 0.0
  %235 = vmatprep.subr.mxu0 0.0
  %236 = vmatpush2.msra.mxu0 0.0
  %237 = vmatprep.subr.mxu0 0.0
  %238 = vmatpush2.msra.mxu0 0.0
  %239 = vmatprep.subr.mxu0 0.0
  %240 = vmatpush2.msra.mxu0 0.0
  %241 = vmatprep.subr.mxu0 0.0
  %242 = vmatpush2.msra.mxu0 0.0
  %243 = vmatprep.subr.mxu0 0.0
  %244 = vmatpush2.msra.mxu0 0.0
  %245 = vmatprep.subr.mxu0 0.0
  %246 = vmatpush2.msra.mxu0 0.0
  %247 = vmatprep.subr.mxu0 0.0
  %248 = vmatpush2.msra.mxu0 0.0
  %249 = vmatprep.subr.mxu0 0.0
  %250 = vmatpush2.msra.mxu0 0.0
  %251 = vmatprep.subr.mxu0 0.0
  %252 = vmatpush2.msra.mxu0 0.0
  %253 = vmatprep.subr.mxu0 0.0
  %254 = vmatpush2.msra.mxu0 0.0
  %255 = vmatprep.subr.mxu0 0.0
  %256 = vmatpush2.msra.mxu0 0.0
  %257 = vmatprep.subr.mxu0 0.0
  %258 = vmatpush2.msra.mxu0 0.0
  %259 = vmatprep.subr.mxu0 0.0
  %260 = vmatpush2.msra.mxu0 0.0
  %261 = vmatprep.mubr.f32.mxu0 0.0
  %262 = vmatmul.mubr.f32.gmra.mxu0 %v37
  %v263 = vpop.f32.mrf.mxu0
  %v264 = vadd.f32 0.0, %v263
  %v265 = vpop.f32.mrf.mxu0
  %266 = vdwg.mxu0
  %s267 = scalar_lea.vmem %s0, 160
  %v268 = vld [vmem:[%s267] sm:$0xff]
  %v269 = vld [vmem:[%s267 + $0x8] sm:$0xff]
  %v270 = vld [vmem:[%s267 + $0x10] sm:$0xff]
  %v271 = vld [vmem:[%s267 + $0x18] sm:$0xff]
  %v272 = vld [vmem:[%s267 + $0x20] sm:$0xff]
  %v273 = vld [vmem:[%s267 + $0x28] sm:$0xff]
  %v274 = vld [vmem:[%s267 + $0x30] sm:$0xff]
  %v275 = vld [vmem:[%s267 + $0x38] sm:$0xff]
  %v276 = vld [vmem:[%s267 + $0x40] sm:$0xff]
  %v277 = vld [vmem:[%s267 + $0x48] sm:$0xff]
  %v278 = vld [vmem:[%s267 + $0x50] sm:$0xff]
  %v279 = vld [vmem:[%s267 + $0x58] sm:$0xff]
  %v280 = vld [vmem:[%s267 + $0x60] sm:$0xff]
  %v281 = vld [vmem:[%s267 + $0x68] sm:$0xff]
  %v282 = vld [vmem:[%s267 + $0x70] sm:$0xff]
  %v283 = vld [vmem:[%s267 + $0x78] sm:$0x1]
  %v284 = vld [vmem:[%s267 + $0x80] sm:$0x1]
  %v285 = vld [vmem:[%s267 + $0x88] sm:$0x1]
  %v286 = vld [vmem:[%s267 + $0x90] sm:$0x1]
  %v287 = vld [vmem:[%s267 + $0x98] sm:$0x1]
  %v289 = vsel %vm39, %v283, 0
  %v292 = vsel %vm39, %v284, 0
  %v295 = vsel %vm39, %v285, 0
  %v298 = vsel %vm39, %v286, 0
  %v301 = vsel %vm39, %v287, 0
  %303 = vmatprep.subr.mxu0 0.0
  %304 = vmatpush1.msra.mxu0 0.0
  %305 = vmatprep.subr.mxu0 0.0
  %306 = vmatpush1.msra.mxu0 0.0
  %307 = vmatprep.subr.mxu0 0.0
  %308 = vmatpush1.msra.mxu0 0.0
  %309 = vmatprep.subr.mxu0 0.0
  %310 = vmatpush1.msra.mxu0 0.0
  %311 = vmatprep.subr.mxu0 0.0
  %312 = vmatpush1.msra.mxu0 0.0
  %313 = vmatprep.subr.mxu0 0.0
  %314 = vmatpush1.msra.mxu0 0.0
  %315 = vmatprep.subr.mxu0 0.0
  %316 = vmatpush1.msra.mxu0 0.0
  %317 = vmatprep.subr.mxu0 0.0
  %318 = vmatpush1.msra.mxu0 0.0
  %319 = vmatprep.subr.mxu0 0.0
  %320 = vmatpush1.msra.mxu0 0.0
  %321 = vmatprep.subr.mxu0 0.0
  %322 = vmatpush1.msra.mxu0 0.0
  %323 = vmatprep.subr.mxu0 0.0
  %324 = vmatpush1.msra.mxu0 0.0
  %325 = vmatprep.subr.mxu0 0.0
  %326 = vmatpush1.msra.mxu0 0.0
  %327 = vmatprep.subr.mxu0 %v292
  %328 = vmatpush1.msra.mxu0 %v289
  %329 = vmatprep.subr.mxu0 %v279
  %330 = vmatpush1.msra.mxu0 %v278
  %331 = vmatprep.subr.mxu0 %v274
  %332 = vmatpush1.msra.mxu0 %v273
  %333 = vmatprep.subr.mxu0 %v269
  %334 = vmatpush1.msra.mxu0 %v268
  %335 = vmatprep.subr.mxu0 0.0
  %336 = vmatpush2.msra.mxu0 0.0
  %337 = vmatprep.subr.mxu0 0.0
  %338 = vmatpush2.msra.mxu0 0.0
  %339 = vmatprep.subr.mxu0 0.0
  %340 = vmatpush2.msra.mxu0 0.0
  %341 = vmatprep.subr.mxu0 0.0
  %342 = vmatpush2.msra.mxu0 0.0
  %343 = vmatprep.subr.mxu0 0.0
  %344 = vmatpush2.msra.mxu0 0.0
  %345 = vmatprep.subr.mxu0 0.0
  %346 = vmatpush2.msra.mxu0 0.0
  %347 = vmatprep.subr.mxu0 0.0
  %348 = vmatpush2.msra.mxu0 0.0
  %349 = vmatprep.subr.mxu0 0.0
  %350 = vmatpush2.msra.mxu0 0.0
  %351 = vmatprep.subr.mxu0 0.0
  %352 = vmatpush2.msra.mxu0 0.0
  %353 = vmatprep.subr.mxu0 0.0
  %354 = vmatpush2.msra.mxu0 0.0
  %355 = vmatprep.subr.mxu0 0.0
  %356 = vmatpush2.msra.mxu0 0.0
  %357 = vmatprep.subr.mxu0 0.0
  %358 = vmatpush2.msra.mxu0 0.0
  %359 = vmatprep.subr.mxu0 0.0
  %360 = vmatpush2.msra.mxu0 0.0
  %361 = vmatprep.subr.mxu0 0.0
  %362 = vmatpush2.msra.mxu0 0.0
  %363 = vmatprep.subr.mxu0 0.0
  %364 = vmatpush2.msra.mxu0 0.0
  %365 = vmatprep.subr.mxu0 0.0
  %366 = vmatpush2.msra.mxu0 0.0
  %367 = vmatprep.mubr.f32.mxu0 0.0
  %368 = vmatmul.mubr.f32.gmra.mxu0 %v37
  %v369 = vpop.f32.mrf.mxu0
  %v370 = vadd.f32 0.0, %v369
  %v371 = vpop.f32.mrf.mxu0
  %v372 = vadd.f32 0.0, %v371
  %373 = vdwg.mxu0
  %374 = vmatprep.subr.mxu0 0.0
  %375 = vmatpush1.msra.mxu0 0.0
  %376 = vmatprep.subr.mxu0 0.0
  %377 = vmatpush1.msra.mxu0 0.0
  %378 = vmatprep.subr.mxu0 0.0
  %379 = vmatpush1.msra.mxu0 0.0
  %380 = vmatprep.subr.mxu0 0.0
  %381 = vmatpush1.msra.mxu0 0.0
  %382 = vmatprep.subr.mxu0 0.0
  %383 = vmatpush1.msra.mxu0 0.0
  %384 = vmatprep.subr.mxu0 0.0
  %385 = vmatpush1.msra.mxu0 0.0
  %386 = vmatprep.subr.mxu0 0.0
  %387 = vmatpush1.msra.mxu0 0.0
  %388 = vmatprep.subr.mxu0 0.0
  %389 = vmatpush1.msra.mxu0 0.0
  %390 = vmatprep.subr.mxu0 0.0
  %391 = vmatpush1.msra.mxu0 0.0
  %392 = vmatprep.subr.mxu0 0.0
  %393 = vmatpush1.msra.mxu0 0.0
  %394 = vmatprep.subr.mxu0 0.0
  %395 = vmatpush1.msra.mxu0 0.0
  %396 = vmatprep.subr.mxu0 0.0
  %397 = vmatpush1.msra.mxu0 0.0
  %398 = vmatprep.subr.mxu0 %v298
  %399 = vmatpush1.msra.mxu0 %v295
  %400 = vmatprep.subr.mxu0 %v281
  %401 = vmatpush1.msra.mxu0 %v280
  %402 = vmatprep.subr.mxu0 %v276
  %403 = vmatpush1.msra.mxu0 %v275
  %404 = vmatprep.subr.mxu0 %v271
  %405 = vmatpush1.msra.mxu0 %v270
  %406 = vmatprep.subr.mxu0 0.0
  %407 = vmatpush2.msra.mxu0 0.0
  %408 = vmatprep.subr.mxu0 0.0
  %409 = vmatpush2.msra.mxu0 0.0
  %410 = vmatprep.subr.mxu0 0.0
  %411 = vmatpush2.msra.mxu0 0.0
  %412 = vmatprep.subr.mxu0 0.0
  %413 = vmatpush2.msra.mxu0 0.0
  %414 = vmatprep.subr.mxu0 0.0
  %415 = vmatpush2.msra.mxu0 0.0
  %416 = vmatprep.subr.mxu0 0.0
  %417 = vmatpush2.msra.mxu0 0.0
  %418 = vmatprep.subr.mxu0 0.0
  %419 = vmatpush2.msra.mxu0 0.0
  %420 = vmatprep.subr.mxu0 0.0
  %421 = vmatpush2.msra.mxu0 0.0
  %422 = vmatprep.subr.mxu0 0.0
  %423 = vmatpush2.msra.mxu0 0.0
  %424 = vmatprep.subr.mxu0 0.0
  %425 = vmatpush2.msra.mxu0 0.0
  %426 = vmatprep.subr.mxu0 0.0
  %427 = vmatpush2.msra.mxu0 0.0
  %428 = vmatprep.subr.mxu0 0.0
  %429 = vmatpush2.msra.mxu0 0.0
  %430 = vmatprep.subr.mxu0 0.0
  %431 = vmatpush2.msra.mxu0 0.0
  %432 = vmatprep.subr.mxu0 0.0
  %433 = vmatpush2.msra.mxu0 0.0
  %434 = vmatprep.subr.mxu0 0.0
  %435 = vmatpush2.msra.mxu0 0.0
  %436 = vmatprep.subr.mxu0 0.0
  %437 = vmatpush2.msra.mxu0 0.0
  %438 = vmatprep.mubr.f32.mxu0 0.0
  %439 = vmatmul.mubr.f32.gmra.mxu0 %v37
  %v440 = vpop.f32.mrf.mxu0
  %v441 = vadd.f32 0.0, %v440
  %v442 = vpop.f32.mrf.mxu0
  %v443 = vadd.f32 0.0, %v442
  %444 = vdwg.mxu0
  %445 = vmatprep.subr.mxu0 0.0
  %446 = vmatpush1.msra.mxu0 0.0
  %447 = vmatprep.subr.mxu0 0.0
  %448 = vmatpush1.msra.mxu0 0.0
  %449 = vmatprep.subr.mxu0 0.0
  %450 = vmatpush1.msra.mxu0 0.0
  %451 = vmatprep.subr.mxu0 0.0
  %452 = vmatpush1.msra.mxu0 0.0
  %453 = vmatprep.subr.mxu0 0.0
  %454 = vmatpush1.msra.mxu0 0.0
  %455 = vmatprep.subr.mxu0 0.0
  %456 = vmatpush1.msra.mxu0 0.0
  %457 = vmatprep.subr.mxu0 0.0
  %458 = vmatpush1.msra.mxu0 0.0
  %459 = vmatprep.subr.mxu0 0.0
  %460 = vmatpush1.msra.mxu0 0.0
  %461 = vmatprep.subr.mxu0 0.0
  %462 = vmatpush1.msra.mxu0 0.0
  %463 = vmatprep.subr.mxu0 0.0
  %464 = vmatpush1.msra.mxu0 0.0
  %465 = vmatprep.subr.mxu0 0.0
  %466 = vmatpush1.msra.mxu0 0.0
  %467 = vmatprep.subr.mxu0 0.0
  %468 = vmatpush1.msra.mxu0 0.0
  %469 = vmatprep.subr.mxu0 0.0
  %470 = vmatpush1.msra.mxu0 %v301
  %471 = vmatprep.subr.mxu0 0.0
  %472 = vmatpush1.msra.mxu0 %v282
  %473 = vmatprep.subr.mxu0 0.0
  %474 = vmatpush1.msra.mxu0 %v277
  %475 = vmatprep.subr.mxu0 0.0
  %476 = vmatpush1.msra.mxu0 %v272
  %477 = vmatprep.subr.mxu0 0.0
  %478 = vmatpush2.msra.mxu0 0.0
  %479 = vmatprep.subr.mxu0 0.0
  %480 = vmatpush2.msra.mxu0 0.0
  %481 = vmatprep.subr.mxu0 0.0
  %482 = vmatpush2.msra.mxu0 0.0
  %483 = vmatprep.subr.mxu0 0.0
  %484 = vmatpush2.msra.mxu0 0.0
  %485 = vmatprep.subr.mxu0 0.0
  %486 = vmatpush2.msra.mxu0 0.0
  %487 = vmatprep.subr.mxu0 0.0
  %488 = vmatpush2.msra.mxu0 0.0
  %489 = vmatprep.subr.mxu0 0.0
  %490 = vmatpush2.msra.mxu0 0.0
  %491 = vmatprep.subr.mxu0 0.0
  %492 = vmatpush2.msra.mxu0 0.0
  %493 = vmatprep.subr.mxu0 0.0
  %494 = vmatpush2.msra.mxu0 0.0
  %495 = vmatprep.subr.mxu0 0.0
  %496 = vmatpush2.msra.mxu0 0.0
  %497 = vmatprep.subr.mxu0 0.0
  %498 = vmatpush2.msra.mxu0 0.0
  %499 = vmatprep.subr.mxu0 0.0
  %500 = vmatpush2.msra.mxu0 0.0
  %501 = vmatprep.subr.mxu0 0.0
  %502 = vmatpush2.msra.mxu0 0.0
  %503 = vmatprep.subr.mxu0 0.0
  %504 = vmatpush2.msra.mxu0 0.0
  %505 = vmatprep.subr.mxu0 0.0
  %506 = vmatpush2.msra.mxu0 0.0
  %507 = vmatprep.subr.mxu0 0.0
  %508 = vmatpush2.msra.mxu0 0.0
  %509 = vmatprep.mubr.f32.mxu0 0.0
  %510 = vmatmul.mubr.f32.gmra.mxu0 %v37
  %v511 = vpop.f32.mrf.mxu0
  %v512 = vadd.f32 0.0, %v511
  %v513 = vpop.f32.mrf.mxu0
  %514 = vdwg.mxu0
  %v515 = vmax.f32 %v122, %v370
  %v516 = vmax.f32 %v124, %v372
  %v517 = vmax.f32 %v193, %v441
  %v518 = vmax.f32 %v195, %v443
  %v519 = vmax.f32 %v264, %v512
  %s520 = scalar_lea.vmem %s0, 320
  %v521 = vld [vmem:[%s520] sm:$0xff]
  %v522 = vld [vmem:[%s520 + $0x8] sm:$0xff]
  %v523 = vld [vmem:[%s520 + $0x10] sm:$0xff]
  %v524 = vld [vmem:[%s520 + $0x18] sm:$0xff]
  %v525 = vld [vmem:[%s520 + $0x20] sm:$0xff]
  %v526 = vld [vmem:[%s520 + $0x28] sm:$0xff]
  %v527 = vld [vmem:[%s520 + $0x30] sm:$0xff]
  %v528 = vld [vmem:[%s520 + $0x38] sm:$0xff]
  %v529 = vld [vmem:[%s520 + $0x40] sm:$0xff]
  %v530 = vld [vmem:[%s520 + $0x48] sm:$0xff]
  %v531 = vld [vmem:[%s520 + $0x50] sm:$0xff]
  %v532 = vld [vmem:[%s520 + $0x58] sm:$0xff]
  %v533 = vld [vmem:[%s520 + $0x60] sm:$0xff]
  %v534 = vld [vmem:[%s520 + $0x68] sm:$0xff]
  %v535 = vld [vmem:[%s520 + $0x70] sm:$0xff]
  %v536 = vld [vmem:[%s520 + $0x78] sm:$0x1]
  %v537 = vld [vmem:[%s520 + $0x80] sm:$0x1]
  %v538 = vld [vmem:[%s520 + $0x88] sm:$0x1]
  %v539 = vld [vmem:[%s520 + $0x90] sm:$0x1]
  %v540 = vld [vmem:[%s520 + $0x98] sm:$0x1]
  %v542 = vsel %vm39, %v536, 0
  %v545 = vsel %vm39, %v537, 0
  %v548 = vsel %vm39, %v538, 0
  %v551 = vsel %vm39, %v539, 0
  %v554 = vsel %vm39, %v540, 0
  %556 = vmatprep.subr.mxu0 0.0
  %557 = vmatpush1.msra.mxu0 0.0
  %558 = vmatprep.subr.mxu0 0.0
  %559 = vmatpush1.msra.mxu0 0.0
  %560 = vmatprep.subr.mxu0 0.0
  %561 = vmatpush1.msra.mxu0 0.0
  %562 = vmatprep.subr.mxu0 0.0
  %563 = vmatpush1.msra.mxu0 0.0
  %564 = vmatprep.subr.mxu0 0.0
  %565 = vmatpush1.msra.mxu0 0.0
  %566 = vmatprep.subr.mxu0 0.0
  %567 = vmatpush1.msra.mxu0 0.0
  %568 = vmatprep.subr.mxu0 0.0
  %569 = vmatpush1.msra.mxu0 0.0
  %570 = vmatprep.subr.mxu0 0.0
  %571 = vmatpush1.msra.mxu0 0.0
  %572 = vmatprep.subr.mxu0 0.0
  %573 = vmatpush1.msra.mxu0 0.0
  %574 = vmatprep.subr.mxu0 0.0
  %575 = vmatpush1.msra.mxu0 0.0
  %576 = vmatprep.subr.mxu0 0.0
  %577 = vmatpush1.msra.mxu0 0.0
  %578 = vmatprep.subr.mxu0 0.0
  %579 = vmatpush1.msra.mxu0 0.0
  %580 = vmatprep.subr.mxu0 %v545
  %581 = vmatpush1.msra.mxu0 %v542
  %582 = vmatprep.subr.mxu0 %v532
  %583 = vmatpush1.msra.mxu0 %v531
  %584 = vmatprep.subr.mxu0 %v527
  %585 = vmatpush1.msra.mxu0 %v526
  %586 = vmatprep.subr.mxu0 %v522
  %587 = vmatpush1.msra.mxu0 %v521
  %588 = vmatprep.subr.mxu0 0.0
  %589 = vmatpush2.msra.mxu0 0.0
  %590 = vmatprep.subr.mxu0 0.0
  %591 = vmatpush2.msra.mxu0 0.0
  %592 = vmatprep.subr.mxu0 0.0
  %593 = vmatpush2.msra.mxu0 0.0
  %594 = vmatprep.subr.mxu0 0.0
  %595 = vmatpush2.msra.mxu0 0.0
  %596 = vmatprep.subr.mxu0 0.0
  %597 = vmatpush2.msra.mxu0 0.0
  %598 = vmatprep.subr.mxu0 0.0
  %599 = vmatpush2.msra.mxu0 0.0
  %600 = vmatprep.subr.mxu0 0.0
  %601 = vmatpush2.msra.mxu0 0.0
  %602 = vmatprep.subr.mxu0 0.0
  %603 = vmatpush2.msra.mxu0 0.0
  %604 = vmatprep.subr.mxu0 0.0
  %605 = vmatpush2.msra.mxu0 0.0
  %606 = vmatprep.subr.mxu0 0.0
  %607 = vmatpush2.msra.mxu0 0.0
  %608 = vmatprep.subr.mxu0 0.0
  %609 = vmatpush2.msra.mxu0 0.0
  %610 = vmatprep.subr.mxu0 0.0
  %611 = vmatpush2.msra.mxu0 0.0
  %612 = vmatprep.subr.mxu0 0.0
  %613 = vmatpush2.msra.mxu0 0.0
  %614 = vmatprep.subr.mxu0 0.0
  %615 = vmatpush2.msra.mxu0 0.0
  %616 = vmatprep.subr.mxu0 0.0
  %617 = vmatpush2.msra.mxu0 0.0
  %618 = vmatprep.subr.mxu0 0.0
  %619 = vmatpush2.msra.mxu0 0.0
  %620 = vmatprep.mubr.f32.mxu0 0.0
  %621 = vmatmul.mubr.f32.gmra.mxu0 %v37
  %v622 = vpop.f32.mrf.mxu0
  %v623 = vadd.f32 0.0, %v622
  %v624 = vpop.f32.mrf.mxu0
  %v625 = vadd.f32 0.0, %v624
  %626 = vdwg.mxu0
  %627 = vmatprep.subr.mxu0 0.0
  %628 = vmatpush1.msra.mxu0 0.0
  %629 = vmatprep.subr.mxu0 0.0
  %630 = vmatpush1.msra.mxu0 0.0
  %631 = vmatprep.subr.mxu0 0.0
  %632 = vmatpush1.msra.mxu0 0.0
  %633 = vmatprep.subr.mxu0 0.0
  %634 = vmatpush1.msra.mxu0 0.0
  %635 = vmatprep.subr.mxu0 0.0
  %636 = vmatpush1.msra.mxu0 0.0
  %637 = vmatprep.subr.mxu0 0.0
  %638 = vmatpush1.msra.mxu0 0.0
  %639 = vmatprep.subr.mxu0 0.0
  %640 = vmatpush1.msra.mxu0 0.0
  %641 = vmatprep.subr.mxu0 0.0
  %642 = vmatpush1.msra.mxu0 0.0
  %643 = vmatprep.subr.mxu0 0.0
  %644 = vmatpush1.msra.mxu0 0.0
  %645 = vmatprep.subr.mxu0 0.0
  %646 = vmatpush1.msra.mxu0 0.0
  %647 = vmatprep.subr.mxu0 0.0
  %648 = vmatpush1.msra.mxu0 0.0
  %649 = vmatprep.subr.mxu0 0.0
  %650 = vmatpush1.msra.mxu0 0.0
  %651 = vmatprep.subr.mxu0 %v551
  %652 = vmatpush1.msra.mxu0 %v548
  %653 = vmatprep.subr.mxu0 %v534
  %654 = vmatpush1.msra.mxu0 %v533
  %655 = vmatprep.subr.mxu0 %v529
  %656 = vmatpush1.msra.mxu0 %v528
  %657 = vmatprep.subr.mxu0 %v524
  %658 = vmatpush1.msra.mxu0 %v523
  %659 = vmatprep.subr.mxu0 0.0
  %660 = vmatpush2.msra.mxu0 0.0
  %661 = vmatprep.subr.mxu0 0.0
  %662 = vmatpush2.msra.mxu0 0.0
  %663 = vmatprep.subr.mxu0 0.0
  %664 = vmatpush2.msra.mxu0 0.0
  %665 = vmatprep.subr.mxu0 0.0
  %666 = vmatpush2.msra.mxu0 0.0
  %667 = vmatprep.subr.mxu0 0.0
  %668 = vmatpush2.msra.mxu0 0.0
  %669 = vmatprep.subr.mxu0 0.0
  %670 = vmatpush2.msra.mxu0 0.0
  %671 = vmatprep.subr.mxu0 0.0
  %672 = vmatpush2.msra.mxu0 0.0
  %673 = vmatprep.subr.mxu0 0.0
  %674 = vmatpush2.msra.mxu0 0.0
  %675 = vmatprep.subr.mxu0 0.0
  %676 = vmatpush2.msra.mxu0 0.0
  %677 = vmatprep.subr.mxu0 0.0
  %678 = vmatpush2.msra.mxu0 0.0
  %679 = vmatprep.subr.mxu0 0.0
  %680 = vmatpush2.msra.mxu0 0.0
  %681 = vmatprep.subr.mxu0 0.0
  %682 = vmatpush2.msra.mxu0 0.0
  %683 = vmatprep.subr.mxu0 0.0
  %684 = vmatpush2.msra.mxu0 0.0
  %685 = vmatprep.subr.mxu0 0.0
  %686 = vmatpush2.msra.mxu0 0.0
  %687 = vmatprep.subr.mxu0 0.0
  %688 = vmatpush2.msra.mxu0 0.0
  %689 = vmatprep.subr.mxu0 0.0
  %690 = vmatpush2.msra.mxu0 0.0
  %691 = vmatprep.mubr.f32.mxu0 0.0
  %692 = vmatmul.mubr.f32.gmra.mxu0 %v37
  %v693 = vpop.f32.mrf.mxu0
  %v694 = vadd.f32 0.0, %v693
  %v695 = vpop.f32.mrf.mxu0
  %v696 = vadd.f32 0.0, %v695
  %697 = vdwg.mxu0
  %698 = vmatprep.subr.mxu0 0.0
  %699 = vmatpush1.msra.mxu0 0.0
  %700 = vmatprep.subr.mxu0 0.0
  %701 = vmatpush1.msra.mxu0 0.0
  %702 = vmatprep.subr.mxu0 0.0
  %703 = vmatpush1.msra.mxu0 0.0
  %704 = vmatprep.subr.mxu0 0.0
  %705 = vmatpush1.msra.mxu0 0.0
  %706 = vmatprep.subr.mxu0 0.0
  %707 = vmatpush1.msra.mxu0 0.0
  %708 = vmatprep.subr.mxu0 0.0
  %709 = vmatpush1.msra.mxu0 0.0
  %710 = vmatprep.subr.mxu0 0.0
  %711 = vmatpush1.msra.mxu0 0.0
  %712 = vmatprep.subr.mxu0 0.0
  %713 = vmatpush1.msra.mxu0 0.0
  %714 = vmatprep.subr.mxu0 0.0
  %715 = vmatpush1.msra.mxu0 0.0
  %716 = vmatprep.subr.mxu0 0.0
  %717 = vmatpush1.msra.mxu0 0.0
  %718 = vmatprep.subr.mxu0 0.0
  %719 = vmatpush1.msra.mxu0 0.0
  %720 = vmatprep.subr.mxu0 0.0
  %721 = vmatpush1.msra.mxu0 0.0
  %722 = vmatprep.subr.mxu0 0.0
  %723 = vmatpush1.msra.mxu0 %v554
  %724 = vmatprep.subr.mxu0 0.0
  %725 = vmatpush1.msra.mxu0 %v535
  %726 = vmatprep.subr.mxu0 0.0
  %727 = vmatpush1.msra.mxu0 %v530
  %728 = vmatprep.subr.mxu0 0.0
  %729 = vmatpush1.msra.mxu0 %v525
  %730 = vmatprep.subr.mxu0 0.0
  %731 = vmatpush2.msra.mxu0 0.0
  %732 = vmatprep.subr.mxu0 0.0
  %733 = vmatpush2.msra.mxu0 0.0
  %734 = vmatprep.subr.mxu0 0.0
  %735 = vmatpush2.msra.mxu0 0.0
  %736 = vmatprep.subr.mxu0 0.0
  %737 = vmatpush2.msra.mxu0 0.0
  %738 = vmatprep.subr.mxu0 0.0
  %739 = vmatpush2.msra.mxu0 0.0
  %740 = vmatprep.subr.mxu0 0.0
  %741 = vmatpush2.msra.mxu0 0.0
  %742 = vmatprep.subr.mxu0 0.0
  %743 = vmatpush2.msra.mxu0 0.0
  %744 = vmatprep.subr.mxu0 0.0
  %745 = vmatpush2.msra.mxu0 0.0
  %746 = vmatprep.subr.mxu0 0.0
  %747 = vmatpush2.msra.mxu0 0.0
  %748 = vmatprep.subr.mxu0 0.0
  %749 = vmatpush2.msra.mxu0 0.0
  %750 = vmatprep.subr.mxu0 0.0
  %751 = vmatpush2.msra.mxu0 0.0
  %752 = vmatprep.subr.mxu0 0.0
  %753 = vmatpush2.msra.mxu0 0.0
  %754 = vmatprep.subr.mxu0 0.0
  %755 = vmatpush2.msra.mxu0 0.0
  %756 = vmatprep.subr.mxu0 0.0
  %757 = vmatpush2.msra.mxu0 0.0
  %758 = vmatprep.subr.mxu0 0.0
  %759 = vmatpush2.msra.mxu0 0.0
  %760 = vmatprep.subr.mxu0 0.0
  %761 = vmatpush2.msra.mxu0 0.0
  %762 = vmatprep.mubr.f32.mxu0 0.0
  %763 = vmatmul.mubr.f32.gmra.mxu0 %v37
  %v764 = vpop.f32.mrf.mxu0
  %v765 = vadd.f32 0.0, %v764
  %v766 = vpop.f32.mrf.mxu0
  %767 = vdwg.mxu0
  %v768 = vmax.f32 %v515, %v623
  %v769 = vmax.f32 %v516, %v625
  %v770 = vmax.f32 %v517, %v694
  %v771 = vmax.f32 %v518, %v696
  %v772 = vmax.f32 %v519, %v765
  %s773 = scalar_lea.vmem %s0, 480
  %v774 = vld [vmem:[%s773] sm:$0xff]
  %v775 = vld [vmem:[%s773 + $0x8] sm:$0xff]
  %v776 = vld [vmem:[%s773 + $0x10] sm:$0xff]
  %v777 = vld [vmem:[%s773 + $0x18] sm:$0xff]
  %v778 = vld [vmem:[%s773 + $0x20] sm:$0xff]
  %v779 = vld [vmem:[%s773 + $0x28] sm:$0xff]
  %v780 = vld [vmem:[%s773 + $0x30] sm:$0xff]
  %v781 = vld [vmem:[%s773 + $0x38] sm:$0xff]
  %v782 = vld [vmem:[%s773 + $0x40] sm:$0xff]
  %v783 = vld [vmem:[%s773 + $0x48] sm:$0xff]
  %v784 = vld [vmem:[%s773 + $0x50] sm:$0xff]
  %v785 = vld [vmem:[%s773 + $0x58] sm:$0xff]
  %v786 = vld [vmem:[%s773 + $0x60] sm:$0xff]
  %v787 = vld [vmem:[%s773 + $0x68] sm:$0xff]
  %v788 = vld [vmem:[%s773 + $0x70] sm:$0xff]
  %v789 = vld [vmem:[%s773 + $0x78] sm:$0x1]
  %v790 = vld [vmem:[%s773 + $0x80] sm:$0x1]
  %v791 = vld [vmem:[%s773 + $0x88] sm:$0x1]
  %v792 = vld [vmem:[%s773 + $0x90] sm:$0x1]
  %v793 = vld [vmem:[%s773 + $0x98] sm:$0x1]
  %v795 = vsel %vm39, %v789, 0
  %v798 = vsel %vm39, %v790, 0
  %v801 = vsel %vm39, %v791, 0
  %v804 = vsel %vm39, %v792, 0
  %v807 = vsel %vm39, %v793, 0
  %809 = vmatprep.subr.mxu0 0.0
  %810 = vmatpush1.msra.mxu0 0.0
  %811 = vmatprep.subr.mxu0 0.0
  %812 = vmatpush1.msra.mxu0 0.0
  %813 = vmatprep.subr.mxu0 0.0
  %814 = vmatpush1.msra.mxu0 0.0
  %815 = vmatprep.subr.mxu0 0.0
  %816 = vmatpush1.msra.mxu0 0.0
  %817 = vmatprep.subr.mxu0 0.0
  %818 = vmatpush1.msra.mxu0 0.0
  %819 = vmatprep.subr.mxu0 0.0
  %820 = vmatpush1.msra.mxu0 0.0
  %821 = vmatprep.subr.mxu0 0.0
  %822 = vmatpush1.msra.mxu0 0.0
  %823 = vmatprep.subr.mxu0 0.0
  %824 = vmatpush1.msra.mxu0 0.0
  %825 = vmatprep.subr.mxu0 0.0
  %826 = vmatpush1.msra.mxu0 0.0
  %827 = vmatprep.subr.mxu0 0.0
  %828 = vmatpush1.msra.mxu0 0.0
  %829 = vmatprep.subr.mxu0 0.0
  %830 = vmatpush1.msra.mxu0 0.0
  %831 = vmatprep.subr.mxu0 0.0
  %832 = vmatpush1.msra.mxu0 0.0
  %833 = vmatprep.subr.mxu0 %v798
  %834 = vmatpush1.msra.mxu0 %v795
  %835 = vmatprep.subr.mxu0 %v785
  %836 = vmatpush1.msra.mxu0 %v784
  %837 = vmatprep.subr.mxu0 %v780
  %838 = vmatpush1.msra.mxu0 %v779
  %839 = vmatprep.subr.mxu0 %v775
  %840 = vmatpush1.msra.mxu0 %v774
  %841 = vmatprep.subr.mxu0 0.0
  %842 = vmatpush2.msra.mxu0 0.0
  %843 = vmatprep.subr.mxu0 0.0
  %844 = vmatpush2.msra.mxu0 0.0
  %845 = vmatprep.subr.mxu0 0.0
  %846 = vmatpush2.msra.mxu0 0.0
  %847 = vmatprep.subr.mxu0 0.0
  %848 = vmatpush2.msra.mxu0 0.0
  %849 = vmatprep.subr.mxu0 0.0
  %850 = vmatpush2.msra.mxu0 0.0
  %851 = vmatprep.subr.mxu0 0.0
  %852 = vmatpush2.msra.mxu0 0.0
  %853 = vmatprep.subr.mxu0 0.0
  %854 = vmatpush2.msra.mxu0 0.0
  %855 = vmatprep.subr.mxu0 0.0
  %856 = vmatpush2.msra.mxu0 0.0
  %857 = vmatprep.subr.mxu0 0.0
  %858 = vmatpush2.msra.mxu0 0.0
  %859 = vmatprep.subr.mxu0 0.0
  %860 = vmatpush2.msra.mxu0 0.0
  %861 = vmatprep.subr.mxu0 0.0
  %862 = vmatpush2.msra.mxu0 0.0
  %863 = vmatprep.subr.mxu0 0.0
  %864 = vmatpush2.msra.mxu0 0.0
  %865 = vmatprep.subr.mxu0 0.0
  %866 = vmatpush2.msra.mxu0 0.0
  %867 = vmatprep.subr.mxu0 0.0
  %868 = vmatpush2.msra.mxu0 0.0
  %869 = vmatprep.subr.mxu0 0.0
  %870 = vmatpush2.msra.mxu0 0.0
  %871 = vmatprep.subr.mxu0 0.0
  %872 = vmatpush2.msra.mxu0 0.0
  %873 = vmatprep.mubr.f32.mxu0 0.0
  %874 = vmatmul.mubr.f32.gmra.mxu0 %v37
  %v875 = vpop.f32.mrf.mxu0
  %v876 = vadd.f32 0.0, %v875
  %v877 = vpop.f32.mrf.mxu0
  %v878 = vadd.f32 0.0, %v877
  %879 = vdwg.mxu0
  %880 = vmatprep.subr.mxu0 0.0
  %881 = vmatpush1.msra.mxu0 0.0
  %882 = vmatprep.subr.mxu0 0.0
  %883 = vmatpush1.msra.mxu0 0.0
  %884 = vmatprep.subr.mxu0 0.0
  %885 = vmatpush1.msra.mxu0 0.0
  %886 = vmatprep.subr.mxu0 0.0
  %887 = vmatpush1.msra.mxu0 0.0
  %888 = vmatprep.subr.mxu0 0.0
  %889 = vmatpush1.msra.mxu0 0.0
  %890 = vmatprep.subr.mxu0 0.0
  %891 = vmatpush1.msra.mxu0 0.0
  %892 = vmatprep.subr.mxu0 0.0
  %893 = vmatpush1.msra.mxu0 0.0
  %894 = vmatprep.subr.mxu0 0.0
  %895 = vmatpush1.msra.mxu0 0.0
  %896 = vmatprep.subr.mxu0 0.0
  %897 = vmatpush1.msra.mxu0 0.0
  %898 = vmatprep.subr.mxu0 0.0
  %899 = vmatpush1.msra.mxu0 0.0
  %900 = vmatprep.subr.mxu0 0.0
  %901 = vmatpush1.msra.mxu0 0.0
  %902 = vmatprep.subr.mxu0 0.0
  %903 = vmatpush1.msra.mxu0 0.0
  %904 = vmatprep.subr.mxu0 %v804
  %905 = vmatpush1.msra.mxu0 %v801
  %906 = vmatprep.subr.mxu0 %v787
  %907 = vmatpush1.msra.mxu0 %v786
  %908 = vmatprep.subr.mxu0 %v782
  %909 = vmatpush1.msra.mxu0 %v781
  %910 = vmatprep.subr.mxu0 %v777
  %911 = vmatpush1.msra.mxu0 %v776
  %912 = vmatprep.subr.mxu0 0.0
  %913 = vmatpush2.msra.mxu0 0.0
  %914 = vmatprep.subr.mxu0 0.0
  %915 = vmatpush2.msra.mxu0 0.0
  %916 = vmatprep.subr.mxu0 0.0
  %917 = vmatpush2.msra.mxu0 0.0
  %918 = vmatprep.subr.mxu0 0.0
  %919 = vmatpush2.msra.mxu0 0.0
  %920 = vmatprep.subr.mxu0 0.0
  %921 = vmatpush2.msra.mxu0 0.0
  %922 = vmatprep.subr.mxu0 0.0
  %923 = vmatpush2.msra.mxu0 0.0
  %924 = vmatprep.subr.mxu0 0.0
  %925 = vmatpush2.msra.mxu0 0.0
  %926 = vmatprep.subr.mxu0 0.0
  %927 = vmatpush2.msra.mxu0 0.0
  %928 = vmatprep.subr.mxu0 0.0
  %929 = vmatpush2.msra.mxu0 0.0
  %930 = vmatprep.subr.mxu0 0.0
  %931 = vmatpush2.msra.mxu0 0.0
  %932 = vmatprep.subr.mxu0 0.0
  %933 = vmatpush2.msra.mxu0 0.0
  %934 = vmatprep.subr.mxu0 0.0
  %935 = vmatpush2.msra.mxu0 0.0
  %936 = vmatprep.subr.mxu0 0.0
  %937 = vmatpush2.msra.mxu0 0.0
  %938 = vmatprep.subr.mxu0 0.0
  %939 = vmatpush2.msra.mxu0 0.0
  %940 = vmatprep.subr.mxu0 0.0
  %941 = vmatpush2.msra.mxu0 0.0
  %942 = vmatprep.subr.mxu0 0.0
  %943 = vmatpush2.msra.mxu0 0.0
  %944 = vmatprep.mubr.f32.mxu0 0.0
  %945 = vmatmul.mubr.f32.gmra.mxu0 %v37
  %v946 = vpop.f32.mrf.mxu0
  %v947 = vadd.f32 0.0, %v946
  %v948 = vpop.f32.mrf.mxu0
  %v949 = vadd.f32 0.0, %v948
  %950 = vdwg.mxu0
  %951 = vmatprep.subr.mxu0 0.0
  %952 = vmatpush1.msra.mxu0 0.0
  %953 = vmatprep.subr.mxu0 0.0
  %954 = vmatpush1.msra.mxu0 0.0
  %955 = vmatprep.subr.mxu0 0.0
  %956 = vmatpush1.msra.mxu0 0.0
  %957 = vmatprep.subr.mxu0 0.0
  %958 = vmatpush1.msra.mxu0 0.0
  %959 = vmatprep.subr.mxu0 0.0
  %960 = vmatpush1.msra.mxu0 0.0
  %961 = vmatprep.subr.mxu0 0.0
  %962 = vmatpush1.msra.mxu0 0.0
  %963 = vmatprep.subr.mxu0 0.0
  %964 = vmatpush1.msra.mxu0 0.0
  %965 = vmatprep.subr.mxu0 0.0
  %966 = vmatpush1.msra.mxu0 0.0
  %967 = vmatprep.subr.mxu0 0.0
  %968 = vmatpush1.msra.mxu0 0.0
  %969 = vmatprep.subr.mxu0 0.0
  %970 = vmatpush1.msra.mxu0 0.0
  %971 = vmatprep.subr.mxu0 0.0
  %972 = vmatpush1.msra.mxu0 0.0
  %973 = vmatprep.subr.mxu0 0.0
  %974 = vmatpush1.msra.mxu0 0.0
  %975 = vmatprep.subr.mxu0 0.0
  %976 = vmatpush1.msra.mxu0 %v807
  %977 = vmatprep.subr.mxu0 0.0
  %978 = vmatpush1.msra.mxu0 %v788
  %979 = vmatprep.subr.mxu0 0.0
  %980 = vmatpush1.msra.mxu0 %v783
  %981 = vmatprep.subr.mxu0 0.0
  %982 = vmatpush1.msra.mxu0 %v778
  %983 = vmatprep.subr.mxu0 0.0
  %984 = vmatpush2.msra.mxu0 0.0
  %985 = vmatprep.subr.mxu0 0.0
  %986 = vmatpush2.msra.mxu0 0.0
  %987 = vmatprep.subr.mxu0 0.0
  %988 = vmatpush2.msra.mxu0 0.0
  %989 = vmatprep.subr.mxu0 0.0
  %990 = vmatpush2.msra.mxu0 0.0
  %991 = vmatprep.subr.mxu0 0.0
  %992 = vmatpush2.msra.mxu0 0.0
  %993 = vmatprep.subr.mxu0 0.0
  %994 = vmatpush2.msra.mxu0 0.0
  %995 = vmatprep.subr.mxu0 0.0
  %996 = vmatpush2.msra.mxu0 0.0
  %997 = vmatprep.subr.mxu0 0.0
  %998 = vmatpush2.msra.mxu0 0.0
  %999 = vmatprep.subr.mxu0 0.0
  %1000 = vmatpush2.msra.mxu0 0.0
  %1001 = vmatprep.subr.mxu0 0.0
  %1002 = vmatpush2.msra.mxu0 0.0
  %1003 = vmatprep.subr.mxu0 0.0
  %1004 = vmatpush2.msra.mxu0 0.0
  %1005 = vmatprep.subr.mxu0 0.0
  %1006 = vmatpush2.msra.mxu0 0.0
  %1007 = vmatprep.subr.mxu0 0.0
  %1008 = vmatpush2.msra.mxu0 0.0
  %1009 = vmatprep.subr.mxu0 0.0
  %1010 = vmatpush2.msra.mxu0 0.0
  %1011 = vmatprep.subr.mxu0 0.0
  %1012 = vmatpush2.msra.mxu0 0.0
  %1013 = vmatprep.subr.mxu0 0.0
  %1014 = vmatpush2.msra.mxu0 0.0
  %1015 = vmatprep.mubr.f32.mxu0 0.0
  %1016 = vmatmul.mubr.f32.gmra.mxu0 %v37
  %v1017 = vpop.f32.mrf.mxu0
  %v1018 = vadd.f32 0.0, %v1017
  %v1019 = vpop.f32.mrf.mxu0
  %1020 = vdwg.mxu0
  %v1021 = vmax.f32 %v768, %v876
  %v1022 = vmax.f32 %v769, %v878
  %v1023 = vmax.f32 %v770, %v947
  %v1024 = vmax.f32 %v771, %v949
  %v1025 = vmax.f32 %v772, %v1018
  %v1026 = vld [vmem:[%s2] sm:$0x3f]
  %1028 = vset.pattern.permute.xlu0 0
  %1029 = vperm.xlu0 %1028, %v1026
  %v1030 = vpop.permute.xlu0 %1029
  %v1032 = vadd.f32 %v1021, %v1030
  %v1033 = vadd.f32 %v1022, %v1030
  %v1034 = vadd.f32 %v1023, %v1030
  %v1035 = vadd.f32 %v1024, %v1030
  %v1036 = vadd.f32 %v1025, %v1030
  %v1037 = vmax.f32 %v1032, 0.0
  %v1038 = vmax.f32 %v1033, 0.0
  %v1039 = vmax.f32 %v1034, 0.0
  %v1040 = vmax.f32 %v1035, 0.0
  %v1041 = vmax.f32 %v1036, 0.0
  %1042 = vst [vmem:[%s3] sm:$0x3f] %v1037
  %1043 = vst [vmem:[%s3 + $0x8] sm:$0x3f] %v1038
  %1044 = vst [vmem:[%s3 + $0x10] sm:$0x3f] %v1039
  %1045 = vst [vmem:[%s3 + $0x18] sm:$0x3f] %v1040
  %vm1046 = vcmask 521216
  %1047 = vst.msk [vmem:[%s3 + $0x20] sm:$0x3f] %vm1046, %v1041
  // Predicated region
  $region14: #{net_forward.2} parent=0 // pred_check
    _
  $region15: #{net_forward.2} parent=0 // pred_check_branch
    %1049 = sbr.rel (0) target = $region17
  $region16: #{net_forward.2} parent=0 // pred_region
    _
  $region17: #{net_forward.2} parent=0 // pred_fallthru
    _
  // Predicated region
  $region18: #{net_forward.2} parent=0 // pred_check
    _
  $region19: #{net_forward.2} parent=0 // pred_check_branch
    %1051 = sbr.rel (0) target = $region21
  $region20: #{net_forward.2} parent=0 // pred_region
    _
  $region21: #{net_forward.2} parent=0 // pred_fallthru
    _

// kernel: net_forward.3
$region0: #{net_forward.3}
  #allocation0 [shape = 'u32[]', space=smem, size = 0x4, offset = 0x4, fixed_abs, tag = 'smem constant byte address 0x4 - core index']
  #allocation1 [shape = 'u32[144,128]{1,0:T(1,128)}', space=vmem, size = 0x12000, scoped, tag = 'internal scratch']
  %s0 = inlined_call_operand.vmem [shape: f32[16,4,150,4], index: 0, kind: input, shape index: {}]
  %s1 = inlined_call_operand.vmem [shape: f32[16,150], index: 1, kind: input, shape index: {}]
  %s2 = inlined_call_operand.vmem [shape: f32[16,1], index: 2, kind: input, shape index: {}]
  %s3 = inlined_call_operand.vmem [shape: f32[16,120,16], index: 3, kind: input, shape index: {}]
  %s4 = inlined_call_operand.vmem [shape: f32[120,1], index: 4, kind: input, shape index: {}]
  %s5 = inlined_call_operand.vmem [shape: f32[84,120], index: 5, kind: input, shape index: {}]
  %s6 = inlined_call_operand.vmem [shape: f32[84,1], index: 6, kind: input, shape index: {}]
  %s7 = inlined_call_operand.vmem [shape: f32[10,84], index: 7, kind: input, shape index: {}]
  %s8 = inlined_call_operand.vmem [shape: f32[10,1], index: 8, kind: input, shape index: {}]
  %s9 = inlined_call_operand.vmem [shape: f32[10,4], index: 9, kind: output, shape index: {}]
  %s10 = sld [smem:[#allocation0]]
  $region46: #{net_forward.3} parent=0
    _
  %s12 = ssub.s32 1, %s10
  %s13 = scalar_select 0, %s12, %s10
  // Predicated region
  $region2: #{net_forward.3} parent=0 // pred_check
    _
  $region3: #{net_forward.3} parent=0 // pred_check_branch
    %15 = sbr.rel (0) target = $region5
  $region4: #{net_forward.3} parent=0 // pred_region
    _
  $region5: #{net_forward.3} parent=0 // pred_fallthru
    _
  // Predicated region
  $region6: #{net_forward.3} parent=0 // pred_check
    _
  $region7: #{net_forward.3} parent=0 // pred_check_branch
    %17 = sbr.rel (0) target = $region9
  $region8: #{net_forward.3} parent=0 // pred_region
    _
  $region9: #{net_forward.3} parent=0 // pred_fallthru
    _
  // Predicated region
  $region10: #{net_forward.3} parent=0 // pred_check
    _
  $region11: #{net_forward.3} parent=0 // pred_check_branch
    %19 = sbr.rel (0) target = $region13
  $region12: #{net_forward.3} parent=0 // pred_region
    _
  $region13: #{net_forward.3} parent=0 // pred_fallthru
    _
  // Predicated region
  $region14: #{net_forward.3} parent=0 // pred_check
    _
  $region15: #{net_forward.3} parent=0 // pred_check_branch
    %21 = sbr.rel (0) target = $region17
  $region16: #{net_forward.3} parent=0 // pred_region
    _
  $region17: #{net_forward.3} parent=0 // pred_fallthru
    _
  // Predicated region
  $region18: #{net_forward.3} parent=0 // pred_check
    _
  $region19: #{net_forward.3} parent=0 // pred_check_branch
    %23 = sbr.rel (0) target = $region21
  $region20: #{net_forward.3} parent=0 // pred_region
    _
  $region21: #{net_forward.3} parent=0 // pred_fallthru
    _
  // Predicated region
  $region22: #{net_forward.3} parent=0 // pred_check
    _
  $region23: #{net_forward.3} parent=0 // pred_check_branch
    %25 = sbr.rel (0) target = $region25
  $region24: #{net_forward.3} parent=0 // pred_region
    _
  $region25: #{net_forward.3} parent=0 // pred_fallthru
    _
  // Predicated region
  $region26: #{net_forward.3} parent=0 // pred_check
    _
  $region27: #{net_forward.3} parent=0 // pred_check_branch
    %27 = sbr.rel (0) target = $region29
  $region28: #{net_forward.3} parent=0 // pred_region
    _
  $region29: #{net_forward.3} parent=0 // pred_fallthru
    _
  // Predicated region
  $region30: #{net_forward.3} parent=0 // pred_check
    _
  $region31: #{net_forward.3} parent=0 // pred_check_branch
    %29 = sbr.rel (0) target = $region33
  $region32: #{net_forward.3} parent=0 // pred_region
    _
  $region33: #{net_forward.3} parent=0 // pred_fallthru
    _
  // Predicated region
  $region34: #{net_forward.3} parent=0 // pred_check
    _
  $region35: #{net_forward.3} parent=0 // pred_check_branch
    %31 = sbr.rel (0) target = $region37
  $region36: #{net_forward.3} parent=0 // pred_region
    _
  $region37: #{net_forward.3} parent=0 // pred_fallthru
    _
  %v32 = vld [vmem:[%s1] sm:$0xff]
  %v33 = vld [vmem:[%s1 + $0x8] sm:$0xff]
  %v34 = vld [vmem:[%s1 + $0x10] sm:$0xff]
  %v35 = vld [vmem:[%s1 + $0x18] sm:$0xff]
  %v36 = vld [vmem:[%s2] sm:$0xff]
  %v37 = vld [vmem:[%s2 + $0x8] sm:$0xff]
  %v38 = vld [vmem:[%s0] sm:$0xff]
  %v39 = vld [vmem:[%s0 + $0x8] sm:$0xff]
  %v40 = vld [vmem:[%s0 + $0x10] sm:$0xff]
  %v41 = vld [vmem:[%s0 + $0x18] sm:$0xff]
  %v42 = vld [vmem:[%s0 + $0x20] sm:$0xff]
  %v43 = vld [vmem:[%s0 + $0x28] sm:$0xff]
  %v44 = vld [vmem:[%s0 + $0x30] sm:$0xff]
  %v45 = vld [vmem:[%s0 + $0x38] sm:$0xff]
  %v46 = vld [vmem:[%s0 + $0x40] sm:$0xff]
  %v47 = vld [vmem:[%s0 + $0x48] sm:$0xff]
  %v48 = vld [vmem:[%s0 + $0x50] sm:$0xff]
  %v49 = vld [vmem:[%s0 + $0x58] sm:$0xff]
  %v50 = vld [vmem:[%s0 + $0x60] sm:$0xff]
  %v51 = vld [vmem:[%s0 + $0x68] sm:$0xff]
  %v52 = vld [vmem:[%s0 + $0x70] sm:$0xff]
  %v53 = vld [vmem:[%s0 + $0x78] sm:$0xff]
  %v54 = vld [vmem:[%s0 + $0x80] sm:$0xff]
  %v55 = vld [vmem:[%s0 + $0x88] sm:$0xff]
  %v56 = vld [vmem:[%s0 + $0x90] sm:$0x3f]
  %vm57 = vcmask 179200
  %v59 = vsel %vm57, %v33, 0
  %v62 = vsel %vm57, %v35, 0
  %vm64 = vcmask 1045504
  %v66 = vsel %vm64, %v56, 0
  %68 = vmatprep.subr.mxu0 0.0
  %69 = vmatpush1.msra.mxu0 %v53
  %70 = vmatprep.subr.mxu0 0.0
  %71 = vmatpush1.msra.mxu0 %v52
  %72 = vmatprep.subr.mxu0 0.0
  %73 = vmatpush1.msra.mxu0 %v51
  %74 = vmatprep.subr.mxu0 0.0
  %75 = vmatpush1.msra.mxu0 %v50
  %76 = vmatprep.subr.mxu0 0.0
  %77 = vmatpush1.msra.mxu0 %v49
  %78 = vmatprep.subr.mxu0 0.0
  %79 = vmatpush1.msra.mxu0 %v48
  %80 = vmatprep.subr.mxu0 0.0
  %81 = vmatpush1.msra.mxu0 %v47
  %82 = vmatprep.subr.mxu0 0.0
  %83 = vmatpush1.msra.mxu0 %v46
  %84 = vmatprep.subr.mxu0 0.0
  %85 = vmatpush1.msra.mxu0 %v45
  %86 = vmatprep.subr.mxu0 0.0
  %87 = vmatpush1.msra.mxu0 %v44
  %88 = vmatprep.subr.mxu0 0.0
  %89 = vmatpush1.msra.mxu0 %v43
  %90 = vmatprep.subr.mxu0 0.0
  %91 = vmatpush1.msra.mxu0 %v42
  %92 = vmatprep.subr.mxu0 0.0
  %93 = vmatpush1.msra.mxu0 %v41
  %94 = vmatprep.subr.mxu0 0.0
  %95 = vmatpush1.msra.mxu0 %v40
  %96 = vmatprep.subr.mxu0 0.0
  %97 = vmatpush1.msra.mxu0 %v39
  %98 = vmatprep.subr.mxu0 0.0
  %99 = vmatpush1.msra.mxu0 %v38
  %100 = vmatprep.subr.mxu0 0.0
  %101 = vmatpush2.msra.mxu0 0.0
  %102 = vmatprep.subr.mxu0 0.0
  %103 = vmatpush2.msra.mxu0 0.0
  %104 = vmatprep.subr.mxu0 0.0
  %105 = vmatpush2.msra.mxu0 0.0
  %106 = vmatprep.subr.mxu0 0.0
  %107 = vmatpush2.msra.mxu0 0.0
  %108 = vmatprep.subr.mxu0 0.0
  %109 = vmatpush2.msra.mxu0 0.0
  %110 = vmatprep.subr.mxu0 0.0
  %111 = vmatpush2.msra.mxu0 0.0
  %112 = vmatprep.subr.mxu0 0.0
  %113 = vmatpush2.msra.mxu0 0.0
  %114 = vmatprep.subr.mxu0 0.0
  %115 = vmatpush2.msra.mxu0 0.0
  %116 = vmatprep.subr.mxu0 0.0
  %117 = vmatpush2.msra.mxu0 0.0
  %118 = vmatprep.subr.mxu0 0.0
  %119 = vmatpush2.msra.mxu0 0.0
  %120 = vmatprep.subr.mxu0 0.0
  %121 = vmatpush2.msra.mxu0 0.0
  %122 = vmatprep.subr.mxu0 0.0
  %123 = vmatpush2.msra.mxu0 0.0
  %124 = vmatprep.subr.mxu0 0.0
  %125 = vmatpush2.msra.mxu0 0.0
  %126 = vmatprep.subr.mxu0 0.0
  %127 = vmatpush2.msra.mxu0 %v66
  %128 = vmatprep.subr.mxu0 0.0
  %129 = vmatpush2.msra.mxu0 %v55
  %130 = vmatprep.subr.mxu0 0.0
  %131 = vmatpush2.msra.mxu0 %v54
  %132 = vmatprep.mubr.f32.mxu0 %v59
  %133 = vmatmul.mubr.f32.gmra.mxu0 %v32
  %v134 = vpop.f32.mrf.mxu0
  %v135 = vadd.f32 0.0, %v134
  %v136 = vpop.f32.mrf.mxu0
  %137 = vmatprep.mubr.f32.mxu0 %v62
  %138 = vmatmul.mubr.f32.gmra.mxu0 %v34
  %v139 = vpop.f32.mrf.mxu0
  %v140 = vadd.f32 0.0, %v139
  %v141 = vpop.f32.mrf.mxu0
  %142 = vdwg.mxu0
  %s143 = scalar_lea.vmem %s0, 152
  %v144 = vld [vmem:[%s143] sm:$0xff]
  %v145 = vld [vmem:[%s143 + $0x8] sm:$0xff]
  %v146 = vld [vmem:[%s143 + $0x10] sm:$0xff]
  %v147 = vld [vmem:[%s143 + $0x18] sm:$0xff]
  %v148 = vld [vmem:[%s143 + $0x20] sm:$0xff]
  %v149 = vld [vmem:[%s143 + $0x28] sm:$0xff]
  %v150 = vld [vmem:[%s143 + $0x30] sm:$0xff]
  %v151 = vld [vmem:[%s143 + $0x38] sm:$0xff]
  %v152 = vld [vmem:[%s143 + $0x40] sm:$0xff]
  %v153 = vld [vmem:[%s143 + $0x48] sm:$0xff]
  %v154 = vld [vmem:[%s143 + $0x50] sm:$0xff]
  %v155 = vld [vmem:[%s143 + $0x58] sm:$0xff]
  %v156 = vld [vmem:[%s143 + $0x60] sm:$0xff]
  %v157 = vld [vmem:[%s143 + $0x68] sm:$0xff]
  %v158 = vld [vmem:[%s143 + $0x70] sm:$0xff]
  %v159 = vld [vmem:[%s143 + $0x78] sm:$0xff]
  %v160 = vld [vmem:[%s143 + $0x80] sm:$0xff]
  %v161 = vld [vmem:[%s143 + $0x88] sm:$0xff]
  %v162 = vld [vmem:[%s143 + $0x90] sm:$0x3f]
  %v164 = vsel %vm64, %v162, 0
  %166 = vmatprep.subr.mxu0 0.0
  %167 = vmatpush1.msra.mxu0 %v159
  %168 = vmatprep.subr.mxu0 0.0
  %169 = vmatpush1.msra.mxu0 %v158
  %170 = vmatprep.subr.mxu0 0.0
  %171 = vmatpush1.msra.mxu0 %v157
  %172 = vmatprep.subr.mxu0 0.0
  %173 = vmatpush1.msra.mxu0 %v156
  %174 = vmatprep.subr.mxu0 0.0
  %175 = vmatpush1.msra.mxu0 %v155
  %176 = vmatprep.subr.mxu0 0.0
  %177 = vmatpush1.msra.mxu0 %v154
  %178 = vmatprep.subr.mxu0 0.0
  %179 = vmatpush1.msra.mxu0 %v153
  %180 = vmatprep.subr.mxu0 0.0
  %181 = vmatpush1.msra.mxu0 %v152
  %182 = vmatprep.subr.mxu0 0.0
  %183 = vmatpush1.msra.mxu0 %v151
  %184 = vmatprep.subr.mxu0 0.0
  %185 = vmatpush1.msra.mxu0 %v150
  %186 = vmatprep.subr.mxu0 0.0
  %187 = vmatpush1.msra.mxu0 %v149
  %188 = vmatprep.subr.mxu0 0.0
  %189 = vmatpush1.msra.mxu0 %v148
  %190 = vmatprep.subr.mxu0 0.0
  %191 = vmatpush1.msra.mxu0 %v147
  %192 = vmatprep.subr.mxu0 0.0
  %193 = vmatpush1.msra.mxu0 %v146
  %194 = vmatprep.subr.mxu0 0.0
  %195 = vmatpush1.msra.mxu0 %v145
  %196 = vmatprep.subr.mxu0 0.0
  %197 = vmatpush1.msra.mxu0 %v144
  %198 = vmatprep.subr.mxu0 0.0
  %199 = vmatpush2.msra.mxu0 0.0
  %200 = vmatprep.subr.mxu0 0.0
  %201 = vmatpush2.msra.mxu0 0.0
  %202 = vmatprep.subr.mxu0 0.0
  %203 = vmatpush2.msra.mxu0 0.0
  %204 = vmatprep.subr.mxu0 0.0
  %205 = vmatpush2.msra.mxu0 0.0
  %206 = vmatprep.subr.mxu0 0.0
  %207 = vmatpush2.msra.mxu0 0.0
  %208 = vmatprep.subr.mxu0 0.0
  %209 = vmatpush2.msra.mxu0 0.0
  %210 = vmatprep.subr.mxu0 0.0
  %211 = vmatpush2.msra.mxu0 0.0
  %212 = vmatprep.subr.mxu0 0.0
  %213 = vmatpush2.msra.mxu0 0.0
  %214 = vmatprep.subr.mxu0 0.0
  %215 = vmatpush2.msra.mxu0 0.0
  %216 = vmatprep.subr.mxu0 0.0
  %217 = vmatpush2.msra.mxu0 0.0
  %218 = vmatprep.subr.mxu0 0.0
  %219 = vmatpush2.msra.mxu0 0.0
  %220 = vmatprep.subr.mxu0 0.0
  %221 = vmatpush2.msra.mxu0 0.0
  %222 = vmatprep.subr.mxu0 0.0
  %223 = vmatpush2.msra.mxu0 0.0
  %224 = vmatprep.subr.mxu0 0.0
  %225 = vmatpush2.msra.mxu0 %v164
  %226 = vmatprep.subr.mxu0 0.0
  %227 = vmatpush2.msra.mxu0 %v161
  %228 = vmatprep.subr.mxu0 0.0
  %229 = vmatpush2.msra.mxu0 %v160
  %230 = vmatprep.mubr.f32.mxu0 %v59
  %231 = vmatmul.mubr.f32.gmra.mxu0 %v32
  %v232 = vpop.f32.mrf.mxu0
  %v233 = vadd.f32 0.0, %v232
  %v234 = vpop.f32.mrf.mxu0
  %235 = vmatprep.mubr.f32.mxu0 %v62
  %236 = vmatmul.mubr.f32.gmra.mxu0 %v34
  %v237 = vpop.f32.mrf.mxu0
  %v238 = vadd.f32 0.0, %v237
  %v239 = vpop.f32.mrf.mxu0
  %240 = vdwg.mxu0
  %v241 = vmax.f32 %v135, %v233
  %v242 = vmax.f32 %v140, %v238
  %s243 = scalar_lea.vmem %s0, 304
  %v244 = vld [vmem:[%s243] sm:$0xff]
  %v245 = vld [vmem:[%s243 + $0x8] sm:$0xff]
  %v246 = vld [vmem:[%s243 + $0x10] sm:$0xff]
  %v247 = vld [vmem:[%s243 + $0x18] sm:$0xff]
  %v248 = vld [vmem:[%s243 + $0x20] sm:$0xff]
  %v249 = vld [vmem:[%s243 + $0x28] sm:$0xff]
  %v250 = vld [vmem:[%s243 + $0x30] sm:$0xff]
  %v251 = vld [vmem:[%s243 + $0x38] sm:$0xff]
  %v252 = vld [vmem:[%s243 + $0x40] sm:$0xff]
  %v253 = vld [vmem:[%s243 + $0x48] sm:$0xff]
  %v254 = vld [vmem:[%s243 + $0x50] sm:$0xff]
  %v255 = vld [vmem:[%s243 + $0x58] sm:$0xff]
  %v256 = vld [vmem:[%s243 + $0x60] sm:$0xff]
  %v257 = vld [vmem:[%s243 + $0x68] sm:$0xff]
  %v258 = vld [vmem:[%s243 + $0x70] sm:$0xff]
  %v259 = vld [vmem:[%s243 + $0x78] sm:$0xff]
  %v260 = vld [vmem:[%s243 + $0x80] sm:$0xff]
  %v261 = vld [vmem:[%s243 + $0x88] sm:$0xff]
  %v262 = vld [vmem:[%s243 + $0x90] sm:$0x3f]
  %v264 = vsel %vm64, %v262, 0
  %266 = vmatprep.subr.mxu0 0.0
  %267 = vmatpush1.msra.mxu0 %v259
  %268 = vmatprep.subr.mxu0 0.0
  %269 = vmatpush1.msra.mxu0 %v258
  %270 = vmatprep.subr.mxu0 0.0
  %271 = vmatpush1.msra.mxu0 %v257
  %272 = vmatprep.subr.mxu0 0.0
  %273 = vmatpush1.msra.mxu0 %v256
  %274 = vmatprep.subr.mxu0 0.0
  %275 = vmatpush1.msra.mxu0 %v255
  %276 = vmatprep.subr.mxu0 0.0
  %277 = vmatpush1.msra.mxu0 %v254
  %278 = vmatprep.subr.mxu0 0.0
  %279 = vmatpush1.msra.mxu0 %v253
  %280 = vmatprep.subr.mxu0 0.0
  %281 = vmatpush1.msra.mxu0 %v252
  %282 = vmatprep.subr.mxu0 0.0
  %283 = vmatpush1.msra.mxu0 %v251
  %284 = vmatprep.subr.mxu0 0.0
  %285 = vmatpush1.msra.mxu0 %v250
  %286 = vmatprep.subr.mxu0 0.0
  %287 = vmatpush1.msra.mxu0 %v249
  %288 = vmatprep.subr.mxu0 0.0
  %289 = vmatpush1.msra.mxu0 %v248
  %290 = vmatprep.subr.mxu0 0.0
  %291 = vmatpush1.msra.mxu0 %v247
  %292 = vmatprep.subr.mxu0 0.0
  %293 = vmatpush1.msra.mxu0 %v246
  %294 = vmatprep.subr.mxu0 0.0
  %295 = vmatpush1.msra.mxu0 %v245
  %296 = vmatprep.subr.mxu0 0.0
  %297 = vmatpush1.msra.mxu0 %v244
  %298 = vmatprep.subr.mxu0 0.0
  %299 = vmatpush2.msra.mxu0 0.0
  %300 = vmatprep.subr.mxu0 0.0
  %301 = vmatpush2.msra.mxu0 0.0
  %302 = vmatprep.subr.mxu0 0.0
  %303 = vmatpush2.msra.mxu0 0.0
  %304 = vmatprep.subr.mxu0 0.0
  %305 = vmatpush2.msra.mxu0 0.0
  %306 = vmatprep.subr.mxu0 0.0
  %307 = vmatpush2.msra.mxu0 0.0
  %308 = vmatprep.subr.mxu0 0.0
  %309 = vmatpush2.msra.mxu0 0.0
  %310 = vmatprep.subr.mxu0 0.0
  %311 = vmatpush2.msra.mxu0 0.0
  %312 = vmatprep.subr.mxu0 0.0
  %313 = vmatpush2.msra.mxu0 0.0
  %314 = vmatprep.subr.mxu0 0.0
  %315 = vmatpush2.msra.mxu0 0.0
  %316 = vmatprep.subr.mxu0 0.0
  %317 = vmatpush2.msra.mxu0 0.0
  %318 = vmatprep.subr.mxu0 0.0
  %319 = vmatpush2.msra.mxu0 0.0
  %320 = vmatprep.subr.mxu0 0.0
  %321 = vmatpush2.msra.mxu0 0.0
  %322 = vmatprep.subr.mxu0 0.0
  %323 = vmatpush2.msra.mxu0 0.0
  %324 = vmatprep.subr.mxu0 0.0
  %325 = vmatpush2.msra.mxu0 %v264
  %326 = vmatprep.subr.mxu0 0.0
  %327 = vmatpush2.msra.mxu0 %v261
  %328 = vmatprep.subr.mxu0 0.0
  %329 = vmatpush2.msra.mxu0 %v260
  %330 = vmatprep.mubr.f32.mxu0 %v59
  %331 = vmatmul.mubr.f32.gmra.mxu0 %v32
  %v332 = vpop.f32.mrf.mxu0
  %v333 = vadd.f32 0.0, %v332
  %v334 = vpop.f32.mrf.mxu0
  %335 = vmatprep.mubr.f32.mxu0 %v62
  %336 = vmatmul.mubr.f32.gmra.mxu0 %v34
  %v337 = vpop.f32.mrf.mxu0
  %v338 = vadd.f32 0.0, %v337
  %v339 = vpop.f32.mrf.mxu0
  %340 = vdwg.mxu0
  %v341 = vmax.f32 %v241, %v333
  %v342 = vmax.f32 %v242, %v338
  %s343 = scalar_lea.vmem %s0, 456
  %v344 = vld [vmem:[%s343] sm:$0xff]
  %v345 = vld [vmem:[%s343 + $0x8] sm:$0xff]
  %v346 = vld [vmem:[%s343 + $0x10] sm:$0xff]
  %v347 = vld [vmem:[%s343 + $0x18] sm:$0xff]
  %v348 = vld [vmem:[%s343 + $0x20] sm:$0xff]
  %v349 = vld [vmem:[%s343 + $0x28] sm:$0xff]
  %v350 = vld [vmem:[%s343 + $0x30] sm:$0xff]
  %v351 = vld [vmem:[%s343 + $0x38] sm:$0xff]
  %v352 = vld [vmem:[%s343 + $0x40] sm:$0xff]
  %v353 = vld [vmem:[%s343 + $0x48] sm:$0xff]
  %v354 = vld [vmem:[%s343 + $0x50] sm:$0xff]
  %v355 = vld [vmem:[%s343 + $0x58] sm:$0xff]
  %v356 = vld [vmem:[%s343 + $0x60] sm:$0xff]
  %v357 = vld [vmem:[%s343 + $0x68] sm:$0xff]
  %v358 = vld [vmem:[%s343 + $0x70] sm:$0xff]
  %v359 = vld [vmem:[%s343 + $0x78] sm:$0xff]
  %v360 = vld [vmem:[%s343 + $0x80] sm:$0xff]
  %v361 = vld [vmem:[%s343 + $0x88] sm:$0xff]
  %v362 = vld [vmem:[%s343 + $0x90] sm:$0x3f]
  %v364 = vsel %vm64, %v362, 0
  %366 = vmatprep.subr.mxu0 0.0
  %367 = vmatpush1.msra.mxu0 %v359
  %368 = vmatprep.subr.mxu0 0.0
  %369 = vmatpush1.msra.mxu0 %v358
  %370 = vmatprep.subr.mxu0 0.0
  %371 = vmatpush1.msra.mxu0 %v357
  %372 = vmatprep.subr.mxu0 0.0
  %373 = vmatpush1.msra.mxu0 %v356
  %374 = vmatprep.subr.mxu0 0.0
  %375 = vmatpush1.msra.mxu0 %v355
  %376 = vmatprep.subr.mxu0 0.0
  %377 = vmatpush1.msra.mxu0 %v354
  %378 = vmatprep.subr.mxu0 0.0
  %379 = vmatpush1.msra.mxu0 %v353
  %380 = vmatprep.subr.mxu0 0.0
  %381 = vmatpush1.msra.mxu0 %v352
  %382 = vmatprep.subr.mxu0 0.0
  %383 = vmatpush1.msra.mxu0 %v351
  %384 = vmatprep.subr.mxu0 0.0
  %385 = vmatpush1.msra.mxu0 %v350
  %386 = vmatprep.subr.mxu0 0.0
  %387 = vmatpush1.msra.mxu0 %v349
  %388 = vmatprep.subr.mxu0 0.0
  %389 = vmatpush1.msra.mxu0 %v348
  %390 = vmatprep.subr.mxu0 0.0
  %391 = vmatpush1.msra.mxu0 %v347
  %392 = vmatprep.subr.mxu0 0.0
  %393 = vmatpush1.msra.mxu0 %v346
  %394 = vmatprep.subr.mxu0 0.0
  %395 = vmatpush1.msra.mxu0 %v345
  %396 = vmatprep.subr.mxu0 0.0
  %397 = vmatpush1.msra.mxu0 %v344
  %398 = vmatprep.subr.mxu0 0.0
  %399 = vmatpush2.msra.mxu0 0.0
  %400 = vmatprep.subr.mxu0 0.0
  %401 = vmatpush2.msra.mxu0 0.0
  %402 = vmatprep.subr.mxu0 0.0
  %403 = vmatpush2.msra.mxu0 0.0
  %404 = vmatprep.subr.mxu0 0.0
  %405 = vmatpush2.msra.mxu0 0.0
  %406 = vmatprep.subr.mxu0 0.0
  %407 = vmatpush2.msra.mxu0 0.0
  %408 = vmatprep.subr.mxu0 0.0
  %409 = vmatpush2.msra.mxu0 0.0
  %410 = vmatprep.subr.mxu0 0.0
  %411 = vmatpush2.msra.mxu0 0.0
  %412 = vmatprep.subr.mxu0 0.0
  %413 = vmatpush2.msra.mxu0 0.0
  %414 = vmatprep.subr.mxu0 0.0
  %415 = vmatpush2.msra.mxu0 0.0
  %416 = vmatprep.subr.mxu0 0.0
  %417 = vmatpush2.msra.mxu0 0.0
  %418 = vmatprep.subr.mxu0 0.0
  %419 = vmatpush2.msra.mxu0 0.0
  %420 = vmatprep.subr.mxu0 0.0
  %421 = vmatpush2.msra.mxu0 0.0
  %422 = vmatprep.subr.mxu0 0.0
  %423 = vmatpush2.msra.mxu0 0.0
  %424 = vmatprep.subr.mxu0 0.0
  %425 = vmatpush2.msra.mxu0 %v364
  %426 = vmatprep.subr.mxu0 0.0
  %427 = vmatpush2.msra.mxu0 %v361
  %428 = vmatprep.subr.mxu0 0.0
  %429 = vmatpush2.msra.mxu0 %v360
  %430 = vmatprep.mubr.f32.mxu0 %v59
  %431 = vmatmul.mubr.f32.gmra.mxu0 %v32
  %v432 = vpop.f32.mrf.mxu0
  %v433 = vadd.f32 0.0, %v432
  %v434 = vpop.f32.mrf.mxu0
  %435 = vmatprep.mubr.f32.mxu0 %v62
  %436 = vmatmul.mubr.f32.gmra.mxu0 %v34
  %v437 = vpop.f32.mrf.mxu0
  %v438 = vadd.f32 0.0, %v437
  %v439 = vpop.f32.mrf.mxu0
  %440 = vdwg.mxu0
  %v441 = vmax.f32 %v341, %v433
  %v442 = vmax.f32 %v342, %v438
  %444 = vset.pattern.permute.xlu0 0
  %445 = vperm.xlu0 %444, %v36
  %v446 = vpop.permute.xlu0 %445
  %449 = vset.pattern.permute.xlu0 0
  %450 = vperm.xlu0 %449, %v37
  %v451 = vpop.permute.xlu0 %450
  %v453 = vadd.f32 %v441, %v446
  %v454 = vadd.f32 %v442, %v451
  %v455 = vmax.f32 %v453, 0.0
  %v456 = vmax.f32 %v454, 0.0
  %v457 = vld [vmem:[%s3] sm:$0xff]
  %v458 = vld [vmem:[%s3 + $0x8] sm:$0xff]
  %v459 = vld [vmem:[%s3 + $0x10] sm:$0xff]
  %v460 = vld [vmem:[%s3 + $0x18] sm:$0xff]
  %v461 = vld [vmem:[%s3 + $0x20] sm:$0xff]
  %v462 = vld [vmem:[%s3 + $0x28] sm:$0xff]
  %v463 = vld [vmem:[%s3 + $0x30] sm:$0xff]
  %v464 = vld [vmem:[%s3 + $0x38] sm:$0xff]
  %v465 = vld [vmem:[%s3 + $0x40] sm:$0xff]
  %v466 = vld [vmem:[%s3 + $0x48] sm:$0xff]
  %v467 = vld [vmem:[%s3 + $0x50] sm:$0xff]
  %v468 = vld [vmem:[%s3 + $0x58] sm:$0xff]
  %v469 = vld [vmem:[%s3 + $0x60] sm:$0xff]
  %v470 = vld [vmem:[%s3 + $0x68] sm:$0xff]
  %v471 = vld [vmem:[%s3 + $0x70] sm:$0xff]
  %s472 = scalar_lea.vmem %s0, 608
  %v473 = vld [vmem:[%s472] sm:$0xff]
  %v474 = vld [vmem:[%s472 + $0x8] sm:$0xff]
  %v475 = vld [vmem:[%s472 + $0x10] sm:$0xff]
  %v476 = vld [vmem:[%s472 + $0x18] sm:$0xff]
  %v477 = vld [vmem:[%s472 + $0x20] sm:$0xff]
  %v478 = vld [vmem:[%s472 + $0x28] sm:$0xff]
  %v479 = vld [vmem:[%s472 + $0x30] sm:$0xff]
  %v480 = vld [vmem:[%s472 + $0x38] sm:$0xff]
  %v481 = vld [vmem:[%s472 + $0x40] sm:$0xff]
  %v482 = vld [vmem:[%s472 + $0x48] sm:$0xff]
  %v483 = vld [vmem:[%s472 + $0x50] sm:$0xff]
  %v484 = vld [vmem:[%s472 + $0x58] sm:$0xff]
  %v485 = vld [vmem:[%s472 + $0x60] sm:$0xff]
  %v486 = vld [vmem:[%s472 + $0x68] sm:$0xff]
  %v487 = vld [vmem:[%s472 + $0x70] sm:$0xff]
  %v488 = vld [vmem:[%s472 + $0x78] sm:$0xff]
  %v489 = vld [vmem:[%s472 + $0x80] sm:$0xff]
  %v490 = vld [vmem:[%s472 + $0x88] sm:$0xff]
  %v491 = vld [vmem:[%s472 + $0x90] sm:$0x3f]
  %v493 = vsel %vm64, %v491, 0
  %495 = vmatprep.subr.mxu0 0.0
  %496 = vmatpush1.msra.mxu0 %v488
  %497 = vmatprep.subr.mxu0 0.0
  %498 = vmatpush1.msra.mxu0 %v487
  %499 = vmatprep.subr.mxu0 0.0
  %500 = vmatpush1.msra.mxu0 %v486
  %501 = vmatprep.subr.mxu0 0.0
  %502 = vmatpush1.msra.mxu0 %v485
  %503 = vmatprep.subr.mxu0 0.0
  %504 = vmatpush1.msra.mxu0 %v484
  %505 = vmatprep.subr.mxu0 0.0
  %506 = vmatpush1.msra.mxu0 %v483
  %507 = vmatprep.subr.mxu0 0.0
  %508 = vmatpush1.msra.mxu0 %v482
  %509 = vmatprep.subr.mxu0 0.0
  %510 = vmatpush1.msra.mxu0 %v481
  %511 = vmatprep.subr.mxu0 0.0
  %512 = vmatpush1.msra.mxu0 %v480
  %513 = vmatprep.subr.mxu0 0.0
  %514 = vmatpush1.msra.mxu0 %v479
  %515 = vmatprep.subr.mxu0 0.0
  %516 = vmatpush1.msra.mxu0 %v478
  %517 = vmatprep.subr.mxu0 0.0
  %518 = vmatpush1.msra.mxu0 %v477
  %519 = vmatprep.subr.mxu0 0.0
  %520 = vmatpush1.msra.mxu0 %v476
  %521 = vmatprep.subr.mxu0 0.0
  %522 = vmatpush1.msra.mxu0 %v475
  %523 = vmatprep.subr.mxu0 0.0
  %524 = vmatpush1.msra.mxu0 %v474
  %525 = vmatprep.subr.mxu0 0.0
  %526 = vmatpush1.msra.mxu0 %v473
  %527 = vmatprep.subr.mxu0 0.0
  %528 = vmatpush2.msra.mxu0 0.0
  %529 = vmatprep.subr.mxu0 0.0
  %530 = vmatpush2.msra.mxu0 0.0
  %531 = vmatprep.subr.mxu0 0.0
  %532 = vmatpush2.msra.mxu0 0.0
  %533 = vmatprep.subr.mxu0 0.0
  %534 = vmatpush2.msra.mxu0 0.0
  %535 = vmatprep.subr.mxu0 0.0
  %536 = vmatpush2.msra.mxu0 0.0
  %537 = vmatprep.subr.mxu0 0.0
  %538 = vmatpush2.msra.mxu0 0.0
  %539 = vmatprep.subr.mxu0 0.0
  %540 = vmatpush2.msra.mxu0 0.0
  %541 = vmatprep.subr.mxu0 0.0
  %542 = vmatpush2.msra.mxu0 0.0
  %543 = vmatprep.subr.mxu0 0.0
  %544 = vmatpush2.msra.mxu0 0.0
  %545 = vmatprep.subr.mxu0 0.0
  %546 = vmatpush2.msra.mxu0 0.0
  %547 = vmatprep.subr.mxu0 0.0
  %548 = vmatpush2.msra.mxu0 0.0
  %549 = vmatprep.subr.mxu0 0.0
  %550 = vmatpush2.msra.mxu0 0.0
  %551 = vmatprep.subr.mxu0 0.0
  %552 = vmatpush2.msra.mxu0 0.0
  %553 = vmatprep.subr.mxu0 0.0
  %554 = vmatpush2.msra.mxu0 %v493
  %555 = vmatprep.subr.mxu0 0.0
  %556 = vmatpush2.msra.mxu0 %v490
  %557 = vmatprep.subr.mxu0 0.0
  %558 = vmatpush2.msra.mxu0 %v489
  %559 = vmatprep.mubr.f32.mxu0 %v59
  %560 = vmatmul.mubr.f32.gmra.mxu0 %v32
  %v561 = vpop.f32.mrf.mxu0
  %v562 = vadd.f32 0.0, %v561
  %v563 = vpop.f32.mrf.mxu0
  %564 = vmatprep.mubr.f32.mxu0 %v62
  %565 = vmatmul.mubr.f32.gmra.mxu0 %v34
  %v566 = vpop.f32.mrf.mxu0
  %v567 = vadd.f32 0.0, %v566
  %v568 = vpop.f32.mrf.mxu0
  %569 = vdwg.mxu0
  %s570 = scalar_lea.vmem %s0, 760
  %v571 = vld [vmem:[%s570] sm:$0xff]
  %v572 = vld [vmem:[%s570 + $0x8] sm:$0xff]
  %v573 = vld [vmem:[%s570 + $0x10] sm:$0xff]
  %v574 = vld [vmem:[%s570 + $0x18] sm:$0xff]
  %v575 = vld [vmem:[%s570 + $0x20] sm:$0xff]
  %v576 = vld [vmem:[%s570 + $0x28] sm:$0xff]
  %v577 = vld [vmem:[%s570 + $0x30] sm:$0xff]
  %v578 = vld [vmem:[%s570 + $0x38] sm:$0xff]
  %v579 = vld [vmem:[%s570 + $0x40] sm:$0xff]
  %v580 = vld [vmem:[%s570 + $0x48] sm:$0xff]
  %v581 = vld [vmem:[%s570 + $0x50] sm:$0xff]
  %v582 = vld [vmem:[%s570 + $0x58] sm:$0xff]
  %v583 = vld [vmem:[%s570 + $0x60] sm:$0xff]
  %v584 = vld [vmem:[%s570 + $0x68] sm:$0xff]
  %v585 = vld [vmem:[%s570 + $0x70] sm:$0xff]
  %v586 = vld [vmem:[%s570 + $0x78] sm:$0xff]
  %v587 = vld [vmem:[%s570 + $0x80] sm:$0xff]
  %v588 = vld [vmem:[%s570 + $0x88] sm:$0xff]
  %v589 = vld [vmem:[%s570 + $0x90] sm:$0x3f]
  %v591 = vsel %vm64, %v589, 0
  %593 = vmatprep.subr.mxu0 0.0
  %594 = vmatpush1.msra.mxu0 %v586
  %595 = vmatprep.subr.mxu0 0.0
  %596 = vmatpush1.msra.mxu0 %v585
  %597 = vmatprep.subr.mxu0 0.0
  %598 = vmatpush1.msra.mxu0 %v584
  %599 = vmatprep.subr.mxu0 0.0
  %600 = vmatpush1.msra.mxu0 %v583
  %601 = vmatprep.subr.mxu0 0.0
  %602 = vmatpush1.msra.mxu0 %v582
  %603 = vmatprep.subr.mxu0 0.0
  %604 = vmatpush1.msra.mxu0 %v581
  %605 = vmatprep.subr.mxu0 0.0
  %606 = vmatpush1.msra.mxu0 %v580
  %607 = vmatprep.subr.mxu0 0.0
  %608 = vmatpush1.msra.mxu0 %v579
  %609 = vmatprep.subr.mxu0 0.0
  %610 = vmatpush1.msra.mxu0 %v578
  %611 = vmatprep.subr.mxu0 0.0
  %612 = vmatpush1.msra.mxu0 %v577
  %613 = vmatprep.subr.mxu0 0.0
  %614 = vmatpush1.msra.mxu0 %v576
  %615 = vmatprep.subr.mxu0 0.0
  %616 = vmatpush1.msra.mxu0 %v575
  %617 = vmatprep.subr.mxu0 0.0
  %618 = vmatpush1.msra.mxu0 %v574
  %619 = vmatprep.subr.mxu0 0.0
  %620 = vmatpush1.msra.mxu0 %v573
  %621 = vmatprep.subr.mxu0 0.0
  %622 = vmatpush1.msra.mxu0 %v572
  %623 = vmatprep.subr.mxu0 0.0
  %624 = vmatpush1.msra.mxu0 %v571
  %625 = vmatprep.subr.mxu0 0.0
  %626 = vmatpush2.msra.mxu0 0.0
  %627 = vmatprep.subr.mxu0 0.0
  %628 = vmatpush2.msra.mxu0 0.0
  %629 = vmatprep.subr.mxu0 0.0
  %630 = vmatpush2.msra.mxu0 0.0
  %631 = vmatprep.subr.mxu0 0.0
  %632 = vmatpush2.msra.mxu0 0.0
  %633 = vmatprep.subr.mxu0 0.0
  %634 = vmatpush2.msra.mxu0 0.0
  %635 = vmatprep.subr.mxu0 0.0
  %636 = vmatpush2.msra.mxu0 0.0
  %637 = vmatprep.subr.mxu0 0.0
  %638 = vmatpush2.msra.mxu0 0.0
  %639 = vmatprep.subr.mxu0 0.0
  %640 = vmatpush2.msra.mxu0 0.0
  %641 = vmatprep.subr.mxu0 0.0
  %642 = vmatpush2.msra.mxu0 0.0
  %643 = vmatprep.subr.mxu0 0.0
  %644 = vmatpush2.msra.mxu0 0.0
  %645 = vmatprep.subr.mxu0 0.0
  %646 = vmatpush2.msra.mxu0 0.0
  %647 = vmatprep.subr.mxu0 0.0
  %648 = vmatpush2.msra.mxu0 0.0
  %649 = vmatprep.subr.mxu0 0.0
  %650 = vmatpush2.msra.mxu0 0.0
  %651 = vmatprep.subr.mxu0 0.0
  %652 = vmatpush2.msra.mxu0 %v591
  %653 = vmatprep.subr.mxu0 0.0
  %654 = vmatpush2.msra.mxu0 %v588
  %655 = vmatprep.subr.mxu0 0.0
  %656 = vmatpush2.msra.mxu0 %v587
  %657 = vmatprep.mubr.f32.mxu0 %v59
  %658 = vmatmul.mubr.f32.gmra.mxu0 %v32
  %v659 = vpop.f32.mrf.mxu0
  %v660 = vadd.f32 0.0, %v659
  %v661 = vpop.f32.mrf.mxu0
  %662 = vmatprep.mubr.f32.mxu0 %v62
  %663 = vmatmul.mubr.f32.gmra.mxu0 %v34
  %v664 = vpop.f32.mrf.mxu0
  %v665 = vadd.f32 0.0, %v664
  %v666 = vpop.f32.mrf.mxu0
  %667 = vdwg.mxu0
  %v668 = vmax.f32 %v562, %v660
  %v669 = vmax.f32 %v567, %v665
  %s670 = scalar_lea.vmem %s0, 912
  %v671 = vld [vmem:[%s670] sm:$0xff]
  %v672 = vld [vmem:[%s670 + $0x8] sm:$0xff]
  %v673 = vld [vmem:[%s670 + $0x10] sm:$0xff]
  %v674 = vld [vmem:[%s670 + $0x18] sm:$0xff]
  %v675 = vld [vmem:[%s670 + $0x20] sm:$0xff]
  %v676 = vld [vmem:[%s670 + $0x28] sm:$0xff]
  %v677 = vld [vmem:[%s670 + $0x30] sm:$0xff]
  %v678 = vld [vmem:[%s670 + $0x38] sm:$0xff]
  %v679 = vld [vmem:[%s670 + $0x40] sm:$0xff]
  %v680 = vld [vmem:[%s670 + $0x48] sm:$0xff]
  %v681 = vld [vmem:[%s670 + $0x50] sm:$0xff]
  %v682 = vld [vmem:[%s670 + $0x58] sm:$0xff]
  %v683 = vld [vmem:[%s670 + $0x60] sm:$0xff]
  %v684 = vld [vmem:[%s670 + $0x68] sm:$0xff]
  %v685 = vld [vmem:[%s670 + $0x70] sm:$0xff]
  %v686 = vld [vmem:[%s670 + $0x78] sm:$0xff]
  %v687 = vld [vmem:[%s670 + $0x80] sm:$0xff]
  %v688 = vld [vmem:[%s670 + $0x88] sm:$0xff]
  %v689 = vld [vmem:[%s670 + $0x90] sm:$0x3f]
  %v691 = vsel %vm64, %v689, 0
  %693 = vmatprep.subr.mxu0 0.0
  %694 = vmatpush1.msra.mxu0 %v686
  %695 = vmatprep.subr.mxu0 0.0
  %696 = vmatpush1.msra.mxu0 %v685
  %697 = vmatprep.subr.mxu0 0.0
  %698 = vmatpush1.msra.mxu0 %v684
  %699 = vmatprep.subr.mxu0 0.0
  %700 = vmatpush1.msra.mxu0 %v683
  %701 = vmatprep.subr.mxu0 0.0
  %702 = vmatpush1.msra.mxu0 %v682
  %703 = vmatprep.subr.mxu0 0.0
  %704 = vmatpush1.msra.mxu0 %v681
  %705 = vmatprep.subr.mxu0 0.0
  %706 = vmatpush1.msra.mxu0 %v680
  %707 = vmatprep.subr.mxu0 0.0
  %708 = vmatpush1.msra.mxu0 %v679
  %709 = vmatprep.subr.mxu0 0.0
  %710 = vmatpush1.msra.mxu0 %v678
  %711 = vmatprep.subr.mxu0 0.0
  %712 = vmatpush1.msra.mxu0 %v677
  %713 = vmatprep.subr.mxu0 0.0
  %714 = vmatpush1.msra.mxu0 %v676
  %715 = vmatprep.subr.mxu0 0.0
  %716 = vmatpush1.msra.mxu0 %v675
  %717 = vmatprep.subr.mxu0 0.0
  %718 = vmatpush1.msra.mxu0 %v674
  %719 = vmatprep.subr.mxu0 0.0
  %720 = vmatpush1.msra.mxu0 %v673
  %721 = vmatprep.subr.mxu0 0.0
  %722 = vmatpush1.msra.mxu0 %v672
  %723 = vmatprep.subr.mxu0 0.0
  %724 = vmatpush1.msra.mxu0 %v671
  %725 = vmatprep.subr.mxu0 0.0
  %726 = vmatpush2.msra.mxu0 0.0
  %727 = vmatprep.subr.mxu0 0.0
  %728 = vmatpush2.msra.mxu0 0.0
  %729 = vmatprep.subr.mxu0 0.0
  %730 = vmatpush2.msra.mxu0 0.0
  %731 = vmatprep.subr.mxu0 0.0
  %732 = vmatpush2.msra.mxu0 0.0
  %733 = vmatprep.subr.mxu0 0.0
  %734 = vmatpush2.msra.mxu0 0.0
  %735 = vmatprep.subr.mxu0 0.0
  %736 = vmatpush2.msra.mxu0 0.0
  %737 = vmatprep.subr.mxu0 0.0
  %738 = vmatpush2.msra.mxu0 0.0
  %739 = vmatprep.subr.mxu0 0.0
  %740 = vmatpush2.msra.mxu0 0.0
  %741 = vmatprep.subr.mxu0 0.0
  %742 = vmatpush2.msra.mxu0 0.0
  %743 = vmatprep.subr.mxu0 0.0
  %744 = vmatpush2.msra.mxu0 0.0
  %745 = vmatprep.subr.mxu0 0.0
  %746 = vmatpush2.msra.mxu0 0.0
  %747 = vmatprep.subr.mxu0 0.0
  %748 = vmatpush2.msra.mxu0 0.0
  %749 = vmatprep.subr.mxu0 0.0
  %750 = vmatpush2.msra.mxu0 0.0
  %751 = vmatprep.subr.mxu0 0.0
  %752 = vmatpush2.msra.mxu0 %v691
  %753 = vmatprep.subr.mxu0 0.0
  %754 = vmatpush2.msra.mxu0 %v688
  %755 = vmatprep.subr.mxu0 0.0
  %756 = vmatpush2.msra.mxu0 %v687
  %757 = vmatprep.mubr.f32.mxu0 %v59
  %758 = vmatmul.mubr.f32.gmra.mxu0 %v32
  %v759 = vpop.f32.mrf.mxu0
  %v760 = vadd.f32 0.0, %v759
  %v761 = vpop.f32.mrf.mxu0
  %762 = vmatprep.mubr.f32.mxu0 %v62
  %763 = vmatmul.mubr.f32.gmra.mxu0 %v34
  %v764 = vpop.f32.mrf.mxu0
  %v765 = vadd.f32 0.0, %v764
  %v766 = vpop.f32.mrf.mxu0
  %767 = vdwg.mxu0
  %v768 = vmax.f32 %v668, %v760
  %v769 = vmax.f32 %v669, %v765
  %s770 = scalar_lea.vmem %s0, 1064
  %v771 = vld [vmem:[%s770] sm:$0xff]
  %v772 = vld [vmem:[%s770 + $0x8] sm:$0xff]
  %v773 = vld [vmem:[%s770 + $0x10] sm:$0xff]
  %v774 = vld [vmem:[%s770 + $0x18] sm:$0xff]
  %v775 = vld [vmem:[%s770 + $0x20] sm:$0xff]
  %v776 = vld [vmem:[%s770 + $0x28] sm:$0xff]
  %v777 = vld [vmem:[%s770 + $0x30] sm:$0xff]
  %v778 = vld [vmem:[%s770 + $0x38] sm:$0xff]
  %v779 = vld [vmem:[%s770 + $0x40] sm:$0xff]
  %v780 = vld [vmem:[%s770 + $0x48] sm:$0xff]
  %v781 = vld [vmem:[%s770 + $0x50] sm:$0xff]
  %v782 = vld [vmem:[%s770 + $0x58] sm:$0xff]
  %v783 = vld [vmem:[%s770 + $0x60] sm:$0xff]
  %v784 = vld [vmem:[%s770 + $0x68] sm:$0xff]
  %v785 = vld [vmem:[%s770 + $0x70] sm:$0xff]
  %v786 = vld [vmem:[%s770 + $0x78] sm:$0xff]
  %v787 = vld [vmem:[%s770 + $0x80] sm:$0xff]
  %v788 = vld [vmem:[%s770 + $0x88] sm:$0xff]
  %v789 = vld [vmem:[%s770 + $0x90] sm:$0x3f]
  %v791 = vsel %vm64, %v789, 0
  %793 = vmatprep.subr.mxu0 0.0
  %794 = vmatpush1.msra.mxu0 %v786
  %795 = vmatprep.subr.mxu0 0.0
  %796 = vmatpush1.msra.mxu0 %v785
  %797 = vmatprep.subr.mxu0 0.0
  %798 = vmatpush1.msra.mxu0 %v784
  %799 = vmatprep.subr.mxu0 0.0
  %800 = vmatpush1.msra.mxu0 %v783
  %801 = vmatprep.subr.mxu0 0.0
  %802 = vmatpush1.msra.mxu0 %v782
  %803 = vmatprep.subr.mxu0 0.0
  %804 = vmatpush1.msra.mxu0 %v781
  %805 = vmatprep.subr.mxu0 0.0
  %806 = vmatpush1.msra.mxu0 %v780
  %807 = vmatprep.subr.mxu0 0.0
  %808 = vmatpush1.msra.mxu0 %v779
  %809 = vmatprep.subr.mxu0 0.0
  %810 = vmatpush1.msra.mxu0 %v778
  %811 = vmatprep.subr.mxu0 0.0
  %812 = vmatpush1.msra.mxu0 %v777
  %813 = vmatprep.subr.mxu0 0.0
  %814 = vmatpush1.msra.mxu0 %v776
  %815 = vmatprep.subr.mxu0 0.0
  %816 = vmatpush1.msra.mxu0 %v775
  %817 = vmatprep.subr.mxu0 0.0
  %818 = vmatpush1.msra.mxu0 %v774
  %819 = vmatprep.subr.mxu0 0.0
  %820 = vmatpush1.msra.mxu0 %v773
  %821 = vmatprep.subr.mxu0 0.0
  %822 = vmatpush1.msra.mxu0 %v772
  %823 = vmatprep.subr.mxu0 0.0
  %824 = vmatpush1.msra.mxu0 %v771
  %825 = vmatprep.subr.mxu0 0.0
  %826 = vmatpush2.msra.mxu0 0.0
  %827 = vmatprep.subr.mxu0 0.0
  %828 = vmatpush2.msra.mxu0 0.0
  %829 = vmatprep.subr.mxu0 0.0
  %830 = vmatpush2.msra.mxu0 0.0
  %831 = vmatprep.subr.mxu0 0.0
  %832 = vmatpush2.msra.mxu0 0.0
  %833 = vmatprep.subr.mxu0 0.0
  %834 = vmatpush2.msra.mxu0 0.0
  %835 = vmatprep.subr.mxu0 0.0
  %836 = vmatpush2.msra.mxu0 0.0
  %837 = vmatprep.subr.mxu0 0.0
  %838 = vmatpush2.msra.mxu0 0.0
  %839 = vmatprep.subr.mxu0 0.0
  %840 = vmatpush2.msra.mxu0 0.0
  %841 = vmatprep.subr.mxu0 0.0
  %842 = vmatpush2.msra.mxu0 0.0
  %843 = vmatprep.subr.mxu0 0.0
  %844 = vmatpush2.msra.mxu0 0.0
  %845 = vmatprep.subr.mxu0 0.0
  %846 = vmatpush2.msra.mxu0 0.0
  %847 = vmatprep.subr.mxu0 0.0
  %848 = vmatpush2.msra.mxu0 0.0
  %849 = vmatprep.subr.mxu0 0.0
  %850 = vmatpush2.msra.mxu0 0.0
  %851 = vmatprep.subr.mxu0 0.0
  %852 = vmatpush2.msra.mxu0 %v791
  %853 = vmatprep.subr.mxu0 0.0
  %854 = vmatpush2.msra.mxu0 %v788
  %855 = vmatprep.subr.mxu0 0.0
  %856 = vmatpush2.msra.mxu0 %v787
  %857 = vmatprep.mubr.f32.mxu0 %v59
  %858 = vmatmul.mubr.f32.gmra.mxu0 %v32
  %v859 = vpop.f32.mrf.mxu0
  %v860 = vadd.f32 0.0, %v859
  %v861 = vpop.f32.mrf.mxu0
  %862 = vmatprep.mubr.f32.mxu0 %v62
  %863 = vmatmul.mubr.f32.gmra.mxu0 %v34
  %v864 = vpop.f32.mrf.mxu0
  %v865 = vadd.f32 0.0, %v864
  %v866 = vpop.f32.mrf.mxu0
  %867 = vdwg.mxu0
  %v868 = vmax.f32 %v768, %v860
  %v869 = vmax.f32 %v769, %v865
  %v870 = vadd.f32 %v868, %v446
  %v871 = vadd.f32 %v869, %v451
  %v872 = vmax.f32 %v870, 0.0
  %v873 = vmax.f32 %v871, 0.0
  %s874 = scalar_lea.vmem %s3, 120
  %v875 = vld [vmem:[%s874] sm:$0xff]
  %v876 = vld [vmem:[%s874 + $0x8] sm:$0xff]
  %v877 = vld [vmem:[%s874 + $0x10] sm:$0xff]
  %v878 = vld [vmem:[%s874 + $0x18] sm:$0xff]
  %v879 = vld [vmem:[%s874 + $0x20] sm:$0xff]
  %v880 = vld [vmem:[%s874 + $0x28] sm:$0xff]
  %v881 = vld [vmem:[%s874 + $0x30] sm:$0xff]
  %v882 = vld [vmem:[%s874 + $0x38] sm:$0xff]
  %v883 = vld [vmem:[%s874 + $0x40] sm:$0xff]
  %v884 = vld [vmem:[%s874 + $0x48] sm:$0xff]
  %v885 = vld [vmem:[%s874 + $0x50] sm:$0xff]
  %v886 = vld [vmem:[%s874 + $0x58] sm:$0xff]
  %v887 = vld [vmem:[%s874 + $0x60] sm:$0xff]
  %v888 = vld [vmem:[%s874 + $0x68] sm:$0xff]
  %v889 = vld [vmem:[%s874 + $0x70] sm:$0xff]
  %vm890 = vcmask 130048
  %v892 = vsel %vm890, %v875, 0
  %v895 = vsel %vm890, %v876, 0
  %v898 = vsel %vm890, %v877, 0
  %v901 = vsel %vm890, %v878, 0
  %v904 = vsel %vm890, %v879, 0
  %v907 = vsel %vm890, %v880, 0
  %v910 = vsel %vm890, %v881, 0
  %v913 = vsel %vm890, %v882, 0
  %v916 = vsel %vm890, %v883, 0
  %v919 = vsel %vm890, %v884, 0
  %v922 = vsel %vm890, %v885, 0
  %v925 = vsel %vm890, %v886, 0
  %v928 = vsel %vm890, %v887, 0
  %v931 = vsel %vm890, %v888, 0
  %v934 = vsel %vm890, %v889, 0
  %936 = vmatprep.subr.mxu0 0.0
  %937 = vmatpush1.msra.mxu0 0.0
  %938 = vmatprep.subr.mxu0 0.0
  %939 = vmatpush1.msra.mxu0 0.0
  %940 = vmatprep.subr.mxu0 0.0
  %941 = vmatpush1.msra.mxu0 0.0
  %942 = vmatprep.subr.mxu0 0.0
  %943 = vmatpush1.msra.mxu0 0.0
  %944 = vmatprep.subr.mxu0 0.0
  %945 = vmatpush1.msra.mxu0 0.0
  %946 = vmatprep.subr.mxu0 0.0
  %947 = vmatpush1.msra.mxu0 0.0
  %948 = vmatprep.subr.mxu0 0.0
  %949 = vmatpush1.msra.mxu0 0.0
  %950 = vmatprep.subr.mxu0 0.0
  %951 = vmatpush1.msra.mxu0 0.0
  %952 = vmatprep.subr.mxu0 0.0
  %953 = vmatpush1.msra.mxu0 0.0
  %954 = vmatprep.subr.mxu0 0.0
  %955 = vmatpush1.msra.mxu0 0.0
  %956 = vmatprep.subr.mxu0 0.0
  %957 = vmatpush1.msra.mxu0 0.0
  %958 = vmatprep.subr.mxu0 0.0
  %959 = vmatpush1.msra.mxu0 0.0
  %960 = vmatprep.subr.mxu0 0.0
  %961 = vmatpush1.msra.mxu0 0.0
  %962 = vmatprep.subr.mxu0 0.0
  %963 = vmatpush1.msra.mxu0 0.0
  %964 = vmatprep.subr.mxu0 0.0
  %965 = vmatpush1.msra.mxu0 %v873
  %966 = vmatprep.subr.mxu0 0.0
  %967 = vmatpush1.msra.mxu0 %v872
  %968 = vmatprep.subr.mxu0 0.0
  %969 = vmatpush2.msra.mxu0 0.0
  %970 = vmatprep.subr.mxu0 0.0
  %971 = vmatpush2.msra.mxu0 0.0
  %972 = vmatprep.subr.mxu0 0.0
  %973 = vmatpush2.msra.mxu0 0.0
  %974 = vmatprep.subr.mxu0 0.0
  %975 = vmatpush2.msra.mxu0 0.0
  %976 = vmatprep.subr.mxu0 0.0
  %977 = vmatpush2.msra.mxu0 0.0
  %978 = vmatprep.subr.mxu0 0.0
  %979 = vmatpush2.msra.mxu0 0.0
  %980 = vmatprep.subr.mxu0 0.0
  %981 = vmatpush2.msra.mxu0 0.0
  %982 = vmatprep.subr.mxu0 0.0
  %983 = vmatpush2.msra.mxu0 0.0
  %984 = vmatprep.subr.mxu0 0.0
  %985 = vmatpush2.msra.mxu0 0.0
  %986 = vmatprep.subr.mxu0 0.0
  %987 = vmatpush2.msra.mxu0 0.0
  %988 = vmatprep.subr.mxu0 0.0
  %989 = vmatpush2.msra.mxu0 0.0
  %990 = vmatprep.subr.mxu0 0.0
  %991 = vmatpush2.msra.mxu0 0.0
  %992 = vmatprep.subr.mxu0 0.0
  %993 = vmatpush2.msra.mxu0 0.0
  %994 = vmatprep.subr.mxu0 0.0
  %995 = vmatpush2.msra.mxu0 0.0
  %996 = vmatprep.subr.mxu0 0.0
  %997 = vmatpush2.msra.mxu0 0.0
  %998 = vmatprep.subr.mxu0 0.0
  %999 = vmatpush2.msra.mxu0 0.0
  %1000 = vmatprep.mubr.f32.mxu0 0.0
  %1001 = vmatmul.mubr.f32.gmra.mxu0 %v892
  %v1002 = vpop.f32.mrf.mxu0
  %v1003 = vadd.f32 0.0, %v1002
  %v1004 = vpop.f32.mrf.mxu0
  %1005 = vmatprep.mubr.f32.mxu0 0.0
  %1006 = vmatmul.mubr.f32.gmra.mxu0 %v895
  %v1007 = vpop.f32.mrf.mxu0
  %v1008 = vadd.f32 0.0, %v1007
  %v1009 = vpop.f32.mrf.mxu0
  %1010 = vmatprep.mubr.f32.mxu0 0.0
  %1011 = vmatmul.mubr.f32.gmra.mxu0 %v898
  %v1012 = vpop.f32.mrf.mxu0
  %v1013 = vadd.f32 0.0, %v1012
  %v1014 = vpop.f32.mrf.mxu0
  %1015 = vmatprep.mubr.f32.mxu0 0.0
  %1016 = vmatmul.mubr.f32.gmra.mxu0 %v901
  %v1017 = vpop.f32.mrf.mxu0
  %v1018 = vadd.f32 0.0, %v1017
  %v1019 = vpop.f32.mrf.mxu0
  %1020 = vmatprep.mubr.f32.mxu0 0.0
  %1021 = vmatmul.mubr.f32.gmra.mxu0 %v904
  %v1022 = vpop.f32.mrf.mxu0
  %v1023 = vadd.f32 0.0, %v1022
  %v1024 = vpop.f32.mrf.mxu0
  %1025 = vmatprep.mubr.f32.mxu0 0.0
  %1026 = vmatmul.mubr.f32.gmra.mxu0 %v907
  %v1027 = vpop.f32.mrf.mxu0
  %v1028 = vadd.f32 0.0, %v1027
  %v1029 = vpop.f32.mrf.mxu0
  %1030 = vmatprep.mubr.f32.mxu0 0.0
  %1031 = vmatmul.mubr.f32.gmra.mxu0 %v910
  %v1032 = vpop.f32.mrf.mxu0
  %v1033 = vadd.f32 0.0, %v1032
  %v1034 = vpop.f32.mrf.mxu0
  %1035 = vmatprep.mubr.f32.mxu0 0.0
  %1036 = vmatmul.mubr.f32.gmra.mxu0 %v913
  %v1037 = vpop.f32.mrf.mxu0
  %v1038 = vadd.f32 0.0, %v1037
  %v1039 = vpop.f32.mrf.mxu0
  %1040 = vmatprep.mubr.f32.mxu0 0.0
  %1041 = vmatmul.mubr.f32.gmra.mxu0 %v916
  %v1042 = vpop.f32.mrf.mxu0
  %v1043 = vadd.f32 0.0, %v1042
  %v1044 = vpop.f32.mrf.mxu0
  %1045 = vmatprep.mubr.f32.mxu0 0.0
  %1046 = vmatmul.mubr.f32.gmra.mxu0 %v919
  %v1047 = vpop.f32.mrf.mxu0
  %v1048 = vadd.f32 0.0, %v1047
  %v1049 = vpop.f32.mrf.mxu0
  %1050 = vmatprep.mubr.f32.mxu0 0.0
  %1051 = vmatmul.mubr.f32.gmra.mxu0 %v922
  %v1052 = vpop.f32.mrf.mxu0
  %v1053 = vadd.f32 0.0, %v1052
  %v1054 = vpop.f32.mrf.mxu0
  %1055 = vmatprep.mubr.f32.mxu0 0.0
  %1056 = vmatmul.mubr.f32.gmra.mxu0 %v925
  %v1057 = vpop.f32.mrf.mxu0
  %v1058 = vadd.f32 0.0, %v1057
  %v1059 = vpop.f32.mrf.mxu0
  %1060 = vmatprep.mubr.f32.mxu0 0.0
  %1061 = vmatmul.mubr.f32.gmra.mxu0 %v928
  %v1062 = vpop.f32.mrf.mxu0
  %v1063 = vadd.f32 0.0, %v1062
  %v1064 = vpop.f32.mrf.mxu0
  %1065 = vmatprep.mubr.f32.mxu0 0.0
  %1066 = vmatmul.mubr.f32.gmra.mxu0 %v931
  %v1067 = vpop.f32.mrf.mxu0
  %v1068 = vadd.f32 0.0, %v1067
  %v1069 = vpop.f32.mrf.mxu0
  %1070 = vmatprep.mubr.f32.mxu0 0.0
  %1071 = vmatmul.mubr.f32.gmra.mxu0 %v934
  %v1072 = vpop.f32.mrf.mxu0
  %v1073 = vadd.f32 0.0, %v1072
  %v1074 = vpop.f32.mrf.mxu0
  %1075 = vdwg.mxu0
  %v1077 = vsel %vm890, %v457, 0
  %v1080 = vsel %vm890, %v458, 0
  %v1083 = vsel %vm890, %v459, 0
  %v1086 = vsel %vm890, %v460, 0
  %v1089 = vsel %vm890, %v461, 0
  %v1092 = vsel %vm890, %v462, 0
  %v1095 = vsel %vm890, %v463, 0
  %v1098 = vsel %vm890, %v464, 0
  %v1101 = vsel %vm890, %v465, 0
  %v1104 = vsel %vm890, %v466, 0
  %v1107 = vsel %vm890, %v467, 0
  %v1110 = vsel %vm890, %v468, 0
  %v1113 = vsel %vm890, %v469, 0
  %v1116 = vsel %vm890, %v470, 0
  %v1119 = vsel %vm890, %v471, 0
  %1121 = vmatprep.subr.mxu0 0.0
  %1122 = vmatpush1.msra.mxu0 0.0
  %1123 = vmatprep.subr.mxu0 0.0
  %1124 = vmatpush1.msra.mxu0 0.0
  %1125 = vmatprep.subr.mxu0 0.0
  %1126 = vmatpush1.msra.mxu0 0.0
  %1127 = vmatprep.subr.mxu0 0.0
  %1128 = vmatpush1.msra.mxu0 0.0
  %1129 = vmatprep.subr.mxu0 0.0
  %1130 = vmatpush1.msra.mxu0 0.0
  %1131 = vmatprep.subr.mxu0 0.0
  %1132 = vmatpush1.msra.mxu0 0.0
  %1133 = vmatprep.subr.mxu0 0.0
  %1134 = vmatpush1.msra.mxu0 0.0
  %1135 = vmatprep.subr.mxu0 0.0
  %1136 = vmatpush1.msra.mxu0 0.0
  %1137 = vmatprep.subr.mxu0 0.0
  %1138 = vmatpush1.msra.mxu0 0.0
  %1139 = vmatprep.subr.mxu0 0.0
  %1140 = vmatpush1.msra.mxu0 0.0
  %1141 = vmatprep.subr.mxu0 0.0
  %1142 = vmatpush1.msra.mxu0 0.0
  %1143 = vmatprep.subr.mxu0 0.0
  %1144 = vmatpush1.msra.mxu0 0.0
  %1145 = vmatprep.subr.mxu0 0.0
  %1146 = vmatpush1.msra.mxu0 0.0
  %1147 = vmatprep.subr.mxu0 0.0
  %1148 = vmatpush1.msra.mxu0 0.0
  %1149 = vmatprep.subr.mxu0 0.0
  %1150 = vmatpush1.msra.mxu0 %v456
  %1151 = vmatprep.subr.mxu0 0.0
  %1152 = vmatpush1.msra.mxu0 %v455
  %1153 = vmatprep.subr.mxu0 0.0
  %1154 = vmatpush2.msra.mxu0 0.0
  %1155 = vmatprep.subr.mxu0 0.0
  %1156 = vmatpush2.msra.mxu0 0.0
  %1157 = vmatprep.subr.mxu0 0.0
  %1158 = vmatpush2.msra.mxu0 0.0
  %1159 = vmatprep.subr.mxu0 0.0
  %1160 = vmatpush2.msra.mxu0 0.0
  %1161 = vmatprep.subr.mxu0 0.0
  %1162 = vmatpush2.msra.mxu0 0.0
  %1163 = vmatprep.subr.mxu0 0.0
  %1164 = vmatpush2.msra.mxu0 0.0
  %1165 = vmatprep.subr.mxu0 0.0
  %1166 = vmatpush2.msra.mxu0 0.0
  %1167 = vmatprep.subr.mxu0 0.0
  %1168 = vmatpush2.msra.mxu0 0.0
  %1169 = vmatprep.subr.mxu0 0.0
  %1170 = vmatpush2.msra.mxu0 0.0
  %1171 = vmatprep.subr.mxu0 0.0
  %1172 = vmatpush2.msra.mxu0 0.0
  %1173 = vmatprep.subr.mxu0 0.0
  %1174 = vmatpush2.msra.mxu0 0.0
  %1175 = vmatprep.subr.mxu0 0.0
  %1176 = vmatpush2.msra.mxu0 0.0
  %1177 = vmatprep.subr.mxu0 0.0
  %1178 = vmatpush2.msra.mxu0 0.0
  %1179 = vmatprep.subr.mxu0 0.0
  %1180 = vmatpush2.msra.mxu0 0.0
  %1181 = vmatprep.subr.mxu0 0.0
  %1182 = vmatpush2.msra.mxu0 0.0
  %1183 = vmatprep.subr.mxu0 0.0
  %1184 = vmatpush2.msra.mxu0 0.0
  %1185 = vmatprep.mubr.f32.mxu0 0.0
  %1186 = vmatmul.mubr.f32.gmra.mxu0 %v1077
  %v1187 = vpop.f32.mrf.mxu0
  %v1188 = vadd.f32 %v1003, %v1187
  %v1189 = vpop.f32.mrf.mxu0
  %1190 = vmatprep.mubr.f32.mxu0 0.0
  %1191 = vmatmul.mubr.f32.gmra.mxu0 %v1080
  %v1192 = vpop.f32.mrf.mxu0
  %v1193 = vadd.f32 %v1008, %v1192
  %v1194 = vpop.f32.mrf.mxu0
  %1195 = vmatprep.mubr.f32.mxu0 0.0
  %1196 = vmatmul.mubr.f32.gmra.mxu0 %v1083
  %v1197 = vpop.f32.mrf.mxu0
  %v1198 = vadd.f32 %v1013, %v1197
  %v1199 = vpop.f32.mrf.mxu0
  %1200 = vmatprep.mubr.f32.mxu0 0.0
  %1201 = vmatmul.mubr.f32.gmra.mxu0 %v1086
  %v1202 = vpop.f32.mrf.mxu0
  %v1203 = vadd.f32 %v1018, %v1202
  %v1204 = vpop.f32.mrf.mxu0
  %1205 = vmatprep.mubr.f32.mxu0 0.0
  %1206 = vmatmul.mubr.f32.gmra.mxu0 %v1089
  %v1207 = vpop.f32.mrf.mxu0
  %v1208 = vadd.f32 %v1023, %v1207
  %v1209 = vpop.f32.mrf.mxu0
  %1210 = vmatprep.mubr.f32.mxu0 0.0
  %1211 = vmatmul.mubr.f32.gmra.mxu0 %v1092
  %v1212 = vpop.f32.mrf.mxu0
  %v1213 = vadd.f32 %v1028, %v1212
  %v1214 = vpop.f32.mrf.mxu0
  %1215 = vmatprep.mubr.f32.mxu0 0.0
  %1216 = vmatmul.mubr.f32.gmra.mxu0 %v1095
  %v1217 = vpop.f32.mrf.mxu0
  %v1218 = vadd.f32 %v1033, %v1217
  %v1219 = vpop.f32.mrf.mxu0
  %1220 = vmatprep.mubr.f32.mxu0 0.0
  %1221 = vmatmul.mubr.f32.gmra.mxu0 %v1098
  %v1222 = vpop.f32.mrf.mxu0
  %v1223 = vadd.f32 %v1038, %v1222
  %v1224 = vpop.f32.mrf.mxu0
  %1225 = vmatprep.mubr.f32.mxu0 0.0
  %1226 = vmatmul.mubr.f32.gmra.mxu0 %v1101
  %v1227 = vpop.f32.mrf.mxu0
  %v1228 = vadd.f32 %v1043, %v1227
  %v1229 = vpop.f32.mrf.mxu0
  %1230 = vmatprep.mubr.f32.mxu0 0.0
  %1231 = vmatmul.mubr.f32.gmra.mxu0 %v1104
  %v1232 = vpop.f32.mrf.mxu0
  %v1233 = vadd.f32 %v1048, %v1232
  %v1234 = vpop.f32.mrf.mxu0
  %1235 = vmatprep.mubr.f32.mxu0 0.0
  %1236 = vmatmul.mubr.f32.gmra.mxu0 %v1107
  %v1237 = vpop.f32.mrf.mxu0
  %v1238 = vadd.f32 %v1053, %v1237
  %v1239 = vpop.f32.mrf.mxu0
  %1240 = vmatprep.mubr.f32.mxu0 0.0
  %1241 = vmatmul.mubr.f32.gmra.mxu0 %v1110
  %v1242 = vpop.f32.mrf.mxu0
  %v1243 = vadd.f32 %v1058, %v1242
  %v1244 = vpop.f32.mrf.mxu0
  %1245 = vmatprep.mubr.f32.mxu0 0.0
  %1246 = vmatmul.mubr.f32.gmra.mxu0 %v1113
  %v1247 = vpop.f32.mrf.mxu0
  %v1248 = vadd.f32 %v1063, %v1247
  %v1249 = vpop.f32.mrf.mxu0
  %1250 = vmatprep.mubr.f32.mxu0 0.0
  %1251 = vmatmul.mubr.f32.gmra.mxu0 %v1116
  %v1252 = vpop.f32.mrf.mxu0
  %v1253 = vadd.f32 %v1068, %v1252
  %v1254 = vpop.f32.mrf.mxu0
  %1255 = vmatprep.mubr.f32.mxu0 0.0
  %1256 = vmatmul.mubr.f32.gmra.mxu0 %v1119
  %v1257 = vpop.f32.mrf.mxu0
  %v1258 = vadd.f32 %v1073, %v1257
  %v1259 = vpop.f32.mrf.mxu0
  %1260 = vdwg.mxu0
  %s1261 = scalar_lea.vmem %s0, 1216
  %v1262 = vld [vmem:[%s1261] sm:$0xff]
  %v1263 = vld [vmem:[%s1261 + $0x8] sm:$0xff]
  %v1264 = vld [vmem:[%s1261 + $0x10] sm:$0xff]
  %v1265 = vld [vmem:[%s1261 + $0x18] sm:$0xff]
  %v1266 = vld [vmem:[%s1261 + $0x20] sm:$0xff]
  %v1267 = vld [vmem:[%s1261 + $0x28] sm:$0xff]
  %v1268 = vld [vmem:[%s1261 + $0x30] sm:$0xff]
  %v1269 = vld [vmem:[%s1261 + $0x38] sm:$0xff]
  %v1270 = vld [vmem:[%s1261 + $0x40] sm:$0xff]
  %v1271 = vld [vmem:[%s1261 + $0x48] sm:$0xff]
  %v1272 = vld [vmem:[%s1261 + $0x50] sm:$0xff]
  %v1273 = vld [vmem:[%s1261 + $0x58] sm:$0xff]
  %v1274 = vld [vmem:[%s1261 + $0x60] sm:$0xff]
  %v1275 = vld [vmem:[%s1261 + $0x68] sm:$0xff]
  %v1276 = vld [vmem:[%s1261 + $0x70] sm:$0xff]
  %v1277 = vld [vmem:[%s1261 + $0x78] sm:$0xff]
  %v1278 = vld [vmem:[%s1261 + $0x80] sm:$0xff]
  %v1279 = vld [vmem:[%s1261 + $0x88] sm:$0xff]
  %v1280 = vld [vmem:[%s1261 + $0x90] sm:$0x3f]
  %v1282 = vsel %vm64, %v1280, 0
  %1284 = vmatprep.subr.mxu0 0.0
  %1285 = vmatpush1.msra.mxu0 %v1277
  %1286 = vmatprep.subr.mxu0 0.0
  %1287 = vmatpush1.msra.mxu0 %v1276
  %1288 = vmatprep.subr.mxu0 0.0
  %1289 = vmatpush1.msra.mxu0 %v1275
  %1290 = vmatprep.subr.mxu0 0.0
  %1291 = vmatpush1.msra.mxu0 %v1274
  %1292 = vmatprep.subr.mxu0 0.0
  %1293 = vmatpush1.msra.mxu0 %v1273
  %1294 = vmatprep.subr.mxu0 0.0
  %1295 = vmatpush1.msra.mxu0 %v1272
  %1296 = vmatprep.subr.mxu0 0.0
  %1297 = vmatpush1.msra.mxu0 %v1271
  %1298 = vmatprep.subr.mxu0 0.0
  %1299 = vmatpush1.msra.mxu0 %v1270
  %1300 = vmatprep.subr.mxu0 0.0
  %1301 = vmatpush1.msra.mxu0 %v1269
  %1302 = vmatprep.subr.mxu0 0.0
  %1303 = vmatpush1.msra.mxu0 %v1268
  %1304 = vmatprep.subr.mxu0 0.0
  %1305 = vmatpush1.msra.mxu0 %v1267
  %1306 = vmatprep.subr.mxu0 0.0
  %1307 = vmatpush1.msra.mxu0 %v1266
  %1308 = vmatprep.subr.mxu0 0.0
  %1309 = vmatpush1.msra.mxu0 %v1265
  %1310 = vmatprep.subr.mxu0 0.0
  %1311 = vmatpush1.msra.mxu0 %v1264
  %1312 = vmatprep.subr.mxu0 0.0
  %1313 = vmatpush1.msra.mxu0 %v1263
  %1314 = vmatprep.subr.mxu0 0.0
  %1315 = vmatpush1.msra.mxu0 %v1262
  %1316 = vmatprep.subr.mxu0 0.0
  %1317 = vmatpush2.msra.mxu0 0.0
  %1318 = vmatprep.subr.mxu0 0.0
  %1319 = vmatpush2.msra.mxu0 0.0
  %1320 = vmatprep.subr.mxu0 0.0
  %1321 = vmatpush2.msra.mxu0 0.0
  %1322 = vmatprep.subr.mxu0 0.0
  %1323 = vmatpush2.msra.mxu0 0.0
  %1324 = vmatprep.subr.mxu0 0.0
  %1325 = vmatpush2.msra.mxu0 0.0
  %1326 = vmatprep.subr.mxu0 0.0
  %1327 = vmatpush2.msra.mxu0 0.0
  %1328 = vmatprep.subr.mxu0 0.0
  %1329 = vmatpush2.msra.mxu0 0.0
  %1330 = vmatprep.subr.mxu0 0.0
  %1331 = vmatpush2.msra.mxu0 0.0
  %1332 = vmatprep.subr.mxu0 0.0
  %1333 = vmatpush2.msra.mxu0 0.0
  %1334 = vmatprep.subr.mxu0 0.0
  %1335 = vmatpush2.msra.mxu0 0.0
  %1336 = vmatprep.subr.mxu0 0.0
  %1337 = vmatpush2.msra.mxu0 0.0
  %1338 = vmatprep.subr.mxu0 0.0
  %1339 = vmatpush2.msra.mxu0 0.0
  %1340 = vmatprep.subr.mxu0 0.0
  %1341 = vmatpush2.msra.mxu0 0.0
  %1342 = vmatprep.subr.mxu0 0.0
  %1343 = vmatpush2.msra.mxu0 %v1282
  %1344 = vmatprep.subr.mxu0 0.0
  %1345 = vmatpush2.msra.mxu0 %v1279
  %1346 = vmatprep.subr.mxu0 0.0
  %1347 = vmatpush2.msra.mxu0 %v1278
  %1348 = vmatprep.mubr.f32.mxu0 %v59
  %1349 = vmatmul.mubr.f32.gmra.mxu0 %v32
  %v1350 = vpop.f32.mrf.mxu0
  %v1351 = vadd.f32 0.0, %v1350
  %v1352 = vpop.f32.mrf.mxu0
  %1353 = vmatprep.mubr.f32.mxu0 %v62
  %1354 = vmatmul.mubr.f32.gmra.mxu0 %v34
  %v1355 = vpop.f32.mrf.mxu0
  %v1356 = vadd.f32 0.0, %v1355
  %v1357 = vpop.f32.mrf.mxu0
  %1358 = vdwg.mxu0
  %s1359 = scalar_lea.vmem %s0, 1368
  %v1360 = vld [vmem:[%s1359] sm:$0xff]
  %v1361 = vld [vmem:[%s1359 + $0x8] sm:$0xff]
  %v1362 = vld [vmem:[%s1359 + $0x10] sm:$0xff]
  %v1363 = vld [vmem:[%s1359 + $0x18] sm:$0xff]
  %v1364 = vld [vmem:[%s1359 + $0x20] sm:$0xff]
  %v1365 = vld [vmem:[%s1359 + $0x28] sm:$0xff]
  %v1366 = vld [vmem:[%s1359 + $0x30] sm:$0xff]
  %v1367 = vld [vmem:[%s1359 + $0x38] sm:$0xff]
  %v1368 = vld [vmem:[%s1359 + $0x40] sm:$0xff]
  %v1369 = vld [vmem:[%s1359 + $0x48] sm:$0xff]
  %v1370 = vld [vmem:[%s1359 + $0x50] sm:$0xff]
  %v1371 = vld [vmem:[%s1359 + $0x58] sm:$0xff]
  %v1372 = vld [vmem:[%s1359 + $0x60] sm:$0xff]
  %v1373 = vld [vmem:[%s1359 + $0x68] sm:$0xff]
  %v1374 = vld [vmem:[%s1359 + $0x70] sm:$0xff]
  %v1375 = vld [vmem:[%s1359 + $0x78] sm:$0xff]
  %v1376 = vld [vmem:[%s1359 + $0x80] sm:$0xff]
  %v1377 = vld [vmem:[%s1359 + $0x88] sm:$0xff]
  %v1378 = vld [vmem:[%s1359 + $0x90] sm:$0x3f]
  %v1380 = vsel %vm64, %v1378, 0
  %1382 = vmatprep.subr.mxu0 0.0
  %1383 = vmatpush1.msra.mxu0 %v1375
  %1384 = vmatprep.subr.mxu0 0.0
  %1385 = vmatpush1.msra.mxu0 %v1374
  %1386 = vmatprep.subr.mxu0 0.0
  %1387 = vmatpush1.msra.mxu0 %v1373
  %1388 = vmatprep.subr.mxu0 0.0
  %1389 = vmatpush1.msra.mxu0 %v1372
  %1390 = vmatprep.subr.mxu0 0.0
  %1391 = vmatpush1.msra.mxu0 %v1371
  %1392 = vmatprep.subr.mxu0 0.0
  %1393 = vmatpush1.msra.mxu0 %v1370
  %1394 = vmatprep.subr.mxu0 0.0
  %1395 = vmatpush1.msra.mxu0 %v1369
  %1396 = vmatprep.subr.mxu0 0.0
  %1397 = vmatpush1.msra.mxu0 %v1368
  %1398 = vmatprep.subr.mxu0 0.0
  %1399 = vmatpush1.msra.mxu0 %v1367
  %1400 = vmatprep.subr.mxu0 0.0
  %1401 = vmatpush1.msra.mxu0 %v1366
  %1402 = vmatprep.subr.mxu0 0.0
  %1403 = vmatpush1.msra.mxu0 %v1365
  %1404 = vmatprep.subr.mxu0 0.0
  %1405 = vmatpush1.msra.mxu0 %v1364
  %1406 = vmatprep.subr.mxu0 0.0
  %1407 = vmatpush1.msra.mxu0 %v1363
  %1408 = vmatprep.subr.mxu0 0.0
  %1409 = vmatpush1.msra.mxu0 %v1362
  %1410 = vmatprep.subr.mxu0 0.0
  %1411 = vmatpush1.msra.mxu0 %v1361
  %1412 = vmatprep.subr.mxu0 0.0
  %1413 = vmatpush1.msra.mxu0 %v1360
  %1414 = vmatprep.subr.mxu0 0.0
  %1415 = vmatpush2.msra.mxu0 0.0
  %1416 = vmatprep.subr.mxu0 0.0
  %1417 = vmatpush2.msra.mxu0 0.0
  %1418 = vmatprep.subr.mxu0 0.0
  %1419 = vmatpush2.msra.mxu0 0.0
  %1420 = vmatprep.subr.mxu0 0.0
  %1421 = vmatpush2.msra.mxu0 0.0
  %1422 = vmatprep.subr.mxu0 0.0
  %1423 = vmatpush2.msra.mxu0 0.0
  %1424 = vmatprep.subr.mxu0 0.0
  %1425 = vmatpush2.msra.mxu0 0.0
  %1426 = vmatprep.subr.mxu0 0.0
  %1427 = vmatpush2.msra.mxu0 0.0
  %1428 = vmatprep.subr.mxu0 0.0
  %1429 = vmatpush2.msra.mxu0 0.0
  %1430 = vmatprep.subr.mxu0 0.0
  %1431 = vmatpush2.msra.mxu0 0.0
  %1432 = vmatprep.subr.mxu0 0.0
  %1433 = vmatpush2.msra.mxu0 0.0
  %1434 = vmatprep.subr.mxu0 0.0
  %1435 = vmatpush2.msra.mxu0 0.0
  %1436 = vmatprep.subr.mxu0 0.0
  %1437 = vmatpush2.msra.mxu0 0.0
  %1438 = vmatprep.subr.mxu0 0.0
  %1439 = vmatpush2.msra.mxu0 0.0
  %1440 = vmatprep.subr.mxu0 0.0
  %1441 = vmatpush2.msra.mxu0 %v1380
  %1442 = vmatprep.subr.mxu0 0.0
  %1443 = vmatpush2.msra.mxu0 %v1377
  %1444 = vmatprep.subr.mxu0 0.0
  %1445 = vmatpush2.msra.mxu0 %v1376
  %1446 = vmatprep.mubr.f32.mxu0 %v59
  %1447 = vmatmul.mubr.f32.gmra.mxu0 %v32
  %v1448 = vpop.f32.mrf.mxu0
  %v1449 = vadd.f32 0.0, %v1448
  %v1450 = vpop.f32.mrf.mxu0
  %1451 = vmatprep.mubr.f32.mxu0 %v62
  %1452 = vmatmul.mubr.f32.gmra.mxu0 %v34
  %v1453 = vpop.f32.mrf.mxu0
  %v1454 = vadd.f32 0.0, %v1453
  %v1455 = vpop.f32.mrf.mxu0
  %1456 = vdwg.mxu0
  %v1457 = vmax.f32 %v1351, %v1449
  %v1458 = vmax.f32 %v1356, %v1454
  %s1459 = scalar_lea.vmem %s0, 1520
  %v1460 = vld [vmem:[%s1459] sm:$0xff]
  %v1461 = vld [vmem:[%s1459 + $0x8] sm:$0xff]
  %v1462 = vld [vmem:[%s1459 + $0x10] sm:$0xff]
  %v1463 = vld [vmem:[%s1459 + $0x18] sm:$0xff]
  %v1464 = vld [vmem:[%s1459 + $0x20] sm:$0xff]
  %v1465 = vld [vmem:[%s1459 + $0x28] sm:$0xff]
  %v1466 = vld [vmem:[%s1459 + $0x30] sm:$0xff]
  %v1467 = vld [vmem:[%s1459 + $0x38] sm:$0xff]
  %v1468 = vld [vmem:[%s1459 + $0x40] sm:$0xff]
  %v1469 = vld [vmem:[%s1459 + $0x48] sm:$0xff]
  %v1470 = vld [vmem:[%s1459 + $0x50] sm:$0xff]
  %v1471 = vld [vmem:[%s1459 + $0x58] sm:$0xff]
  %v1472 = vld [vmem:[%s1459 + $0x60] sm:$0xff]
  %v1473 = vld [vmem:[%s1459 + $0x68] sm:$0xff]
  %v1474 = vld [vmem:[%s1459 + $0x70] sm:$0xff]
  %v1475 = vld [vmem:[%s1459 + $0x78] sm:$0xff]
  %v1476 = vld [vmem:[%s1459 + $0x80] sm:$0xff]
  %v1477 = vld [vmem:[%s1459 + $0x88] sm:$0xff]
  %v1478 = vld [vmem:[%s1459 + $0x90] sm:$0x3f]
  %v1480 = vsel %vm64, %v1478, 0
  %1482 = vmatprep.subr.mxu0 0.0
  %1483 = vmatpush1.msra.mxu0 %v1475
  %1484 = vmatprep.subr.mxu0 0.0
  %1485 = vmatpush1.msra.mxu0 %v1474
  %1486 = vmatprep.subr.mxu0 0.0
  %1487 = vmatpush1.msra.mxu0 %v1473
  %1488 = vmatprep.subr.mxu0 0.0
  %1489 = vmatpush1.msra.mxu0 %v1472
  %1490 = vmatprep.subr.mxu0 0.0
  %1491 = vmatpush1.msra.mxu0 %v1471
  %1492 = vmatprep.subr.mxu0 0.0
  %1493 = vmatpush1.msra.mxu0 %v1470
  %1494 = vmatprep.subr.mxu0 0.0
  %1495 = vmatpush1.msra.mxu0 %v1469
  %1496 = vmatprep.subr.mxu0 0.0
  %1497 = vmatpush1.msra.mxu0 %v1468
  %1498 = vmatprep.subr.mxu0 0.0
  %1499 = vmatpush1.msra.mxu0 %v1467
  %1500 = vmatprep.subr.mxu0 0.0
  %1501 = vmatpush1.msra.mxu0 %v1466
  %1502 = vmatprep.subr.mxu0 0.0
  %1503 = vmatpush1.msra.mxu0 %v1465
  %1504 = vmatprep.subr.mxu0 0.0
  %1505 = vmatpush1.msra.mxu0 %v1464
  %1506 = vmatprep.subr.mxu0 0.0
  %1507 = vmatpush1.msra.mxu0 %v1463
  %1508 = vmatprep.subr.mxu0 0.0
  %1509 = vmatpush1.msra.mxu0 %v1462
  %1510 = vmatprep.subr.mxu0 0.0
  %1511 = vmatpush1.msra.mxu0 %v1461
  %1512 = vmatprep.subr.mxu0 0.0
  %1513 = vmatpush1.msra.mxu0 %v1460
  %1514 = vmatprep.subr.mxu0 0.0
  %1515 = vmatpush2.msra.mxu0 0.0
  %1516 = vmatprep.subr.mxu0 0.0
  %1517 = vmatpush2.msra.mxu0 0.0
  %1518 = vmatprep.subr.mxu0 0.0
  %1519 = vmatpush2.msra.mxu0 0.0
  %1520 = vmatprep.subr.mxu0 0.0
  %1521 = vmatpush2.msra.mxu0 0.0
  %1522 = vmatprep.subr.mxu0 0.0
  %1523 = vmatpush2.msra.mxu0 0.0
  %1524 = vmatprep.subr.mxu0 0.0
  %1525 = vmatpush2.msra.mxu0 0.0
  %1526 = vmatprep.subr.mxu0 0.0
  %1527 = vmatpush2.msra.mxu0 0.0
  %1528 = vmatprep.subr.mxu0 0.0
  %1529 = vmatpush2.msra.mxu0 0.0
  %1530 = vmatprep.subr.mxu0 0.0
  %1531 = vmatpush2.msra.mxu0 0.0
  %1532 = vmatprep.subr.mxu0 0.0
  %1533 = vmatpush2.msra.mxu0 0.0
  %1534 = vmatprep.subr.mxu0 0.0
  %1535 = vmatpush2.msra.mxu0 0.0
  %1536 = vmatprep.subr.mxu0 0.0
  %1537 = vmatpush2.msra.mxu0 0.0
  %1538 = vmatprep.subr.mxu0 0.0
  %1539 = vmatpush2.msra.mxu0 0.0
  %1540 = vmatprep.subr.mxu0 0.0
  %1541 = vmatpush2.msra.mxu0 %v1480
  %1542 = vmatprep.subr.mxu0 0.0
  %1543 = vmatpush2.msra.mxu0 %v1477
  %1544 = vmatprep.subr.mxu0 0.0
  %1545 = vmatpush2.msra.mxu0 %v1476
  %1546 = vmatprep.mubr.f32.mxu0 %v59
  %1547 = vmatmul.mubr.f32.gmra.mxu0 %v32
  %v1548 = vpop.f32.mrf.mxu0
  %v1549 = vadd.f32 0.0, %v1548
  %v1550 = vpop.f32.mrf.mxu0
  %1551 = vmatprep.mubr.f32.mxu0 %v62
  %1552 = vmatmul.mubr.f32.gmra.mxu0 %v34
  %v1553 = vpop.f32.mrf.mxu0
  %v1554 = vadd.f32 0.0, %v1553
  %v1555 = vpop.f32.mrf.mxu0
  %1556 = vdwg.mxu0
  %v1557 = vmax.f32 %v1457, %v1549
  %v1558 = vmax.f32 %v1458, %v1554
  %s1559 = scalar_lea.vmem %s0, 1672
  %v1560 = vld [vmem:[%s1559] sm:$0xff]
  %v1561 = vld [vmem:[%s1559 + $0x8] sm:$0xff]
  %v1562 = vld [vmem:[%s1559 + $0x10] sm:$0xff]
  %v1563 = vld [vmem:[%s1559 + $0x18] sm:$0xff]
  %v1564 = vld [vmem:[%s1559 + $0x20] sm:$0xff]
  %v1565 = vld [vmem:[%s1559 + $0x28] sm:$0xff]
  %v1566 = vld [vmem:[%s1559 + $0x30] sm:$0xff]
  %v1567 = vld [vmem:[%s1559 + $0x38] sm:$0xff]
  %v1568 = vld [vmem:[%s1559 + $0x40] sm:$0xff]
  %v1569 = vld [vmem:[%s1559 + $0x48] sm:$0xff]
  %v1570 = vld [vmem:[%s1559 + $0x50] sm:$0xff]
  %v1571 = vld [vmem:[%s1559 + $0x58] sm:$0xff]
  %v1572 = vld [vmem:[%s1559 + $0x60] sm:$0xff]
  %v1573 = vld [vmem:[%s1559 + $0x68] sm:$0xff]
  %v1574 = vld [vmem:[%s1559 + $0x70] sm:$0xff]
  %v1575 = vld [vmem:[%s1559 + $0x78] sm:$0xff]
  %v1576 = vld [vmem:[%s1559 + $0x80] sm:$0xff]
  %v1577 = vld [vmem:[%s1559 + $0x88] sm:$0xff]
  %v1578 = vld [vmem:[%s1559 + $0x90] sm:$0x3f]
  %v1580 = vsel %vm64, %v1578, 0
  %1582 = vmatprep.subr.mxu0 0.0
  %1583 = vmatpush1.msra.mxu0 %v1575
  %1584 = vmatprep.subr.mxu0 0.0
  %1585 = vmatpush1.msra.mxu0 %v1574
  %1586 = vmatprep.subr.mxu0 0.0
  %1587 = vmatpush1.msra.mxu0 %v1573
  %1588 = vmatprep.subr.mxu0 0.0
  %1589 = vmatpush1.msra.mxu0 %v1572
  %1590 = vmatprep.subr.mxu0 0.0
  %1591 = vmatpush1.msra.mxu0 %v1571
  %1592 = vmatprep.subr.mxu0 0.0
  %1593 = vmatpush1.msra.mxu0 %v1570
  %1594 = vmatprep.subr.mxu0 0.0
  %1595 = vmatpush1.msra.mxu0 %v1569
  %1596 = vmatprep.subr.mxu0 0.0
  %1597 = vmatpush1.msra.mxu0 %v1568
  %1598 = vmatprep.subr.mxu0 0.0
  %1599 = vmatpush1.msra.mxu0 %v1567
  %1600 = vmatprep.subr.mxu0 0.0
  %1601 = vmatpush1.msra.mxu0 %v1566
  %1602 = vmatprep.subr.mxu0 0.0
  %1603 = vmatpush1.msra.mxu0 %v1565
  %1604 = vmatprep.subr.mxu0 0.0
  %1605 = vmatpush1.msra.mxu0 %v1564
  %1606 = vmatprep.subr.mxu0 0.0
  %1607 = vmatpush1.msra.mxu0 %v1563
  %1608 = vmatprep.subr.mxu0 0.0
  %1609 = vmatpush1.msra.mxu0 %v1562
  %1610 = vmatprep.subr.mxu0 0.0
  %1611 = vmatpush1.msra.mxu0 %v1561
  %1612 = vmatprep.subr.mxu0 0.0
  %1613 = vmatpush1.msra.mxu0 %v1560
  %1614 = vmatprep.subr.mxu0 0.0
  %1615 = vmatpush2.msra.mxu0 0.0
  %1616 = vmatprep.subr.mxu0 0.0
  %1617 = vmatpush2.msra.mxu0 0.0
  %1618 = vmatprep.subr.mxu0 0.0
  %1619 = vmatpush2.msra.mxu0 0.0
  %1620 = vmatprep.subr.mxu0 0.0
  %1621 = vmatpush2.msra.mxu0 0.0
  %1622 = vmatprep.subr.mxu0 0.0
  %1623 = vmatpush2.msra.mxu0 0.0
  %1624 = vmatprep.subr.mxu0 0.0
  %1625 = vmatpush2.msra.mxu0 0.0
  %1626 = vmatprep.subr.mxu0 0.0
  %1627 = vmatpush2.msra.mxu0 0.0
  %1628 = vmatprep.subr.mxu0 0.0
  %1629 = vmatpush2.msra.mxu0 0.0
  %1630 = vmatprep.subr.mxu0 0.0
  %1631 = vmatpush2.msra.mxu0 0.0
  %1632 = vmatprep.subr.mxu0 0.0
  %1633 = vmatpush2.msra.mxu0 0.0
  %1634 = vmatprep.subr.mxu0 0.0
  %1635 = vmatpush2.msra.mxu0 0.0
  %1636 = vmatprep.subr.mxu0 0.0
  %1637 = vmatpush2.msra.mxu0 0.0
  %1638 = vmatprep.subr.mxu0 0.0
  %1639 = vmatpush2.msra.mxu0 0.0
  %1640 = vmatprep.subr.mxu0 0.0
  %1641 = vmatpush2.msra.mxu0 %v1580
  %1642 = vmatprep.subr.mxu0 0.0
  %1643 = vmatpush2.msra.mxu0 %v1577
  %1644 = vmatprep.subr.mxu0 0.0
  %1645 = vmatpush2.msra.mxu0 %v1576
  %1646 = vmatprep.mubr.f32.mxu0 %v59
  %1647 = vmatmul.mubr.f32.gmra.mxu0 %v32
  %v1648 = vpop.f32.mrf.mxu0
  %v1649 = vadd.f32 0.0, %v1648
  %v1650 = vpop.f32.mrf.mxu0
  %1651 = vmatprep.mubr.f32.mxu0 %v62
  %1652 = vmatmul.mubr.f32.gmra.mxu0 %v34
  %v1653 = vpop.f32.mrf.mxu0
  %v1654 = vadd.f32 0.0, %v1653
  %v1655 = vpop.f32.mrf.mxu0
  %1656 = vdwg.mxu0
  %v1657 = vmax.f32 %v1557, %v1649
  %v1658 = vmax.f32 %v1558, %v1654
  %v1659 = vadd.f32 %v1657, %v446
  %v1660 = vadd.f32 %v1658, %v451
  %v1661 = vmax.f32 %v1659, 0.0
  %v1662 = vmax.f32 %v1660, 0.0
  %s1663 = scalar_lea.vmem %s3, 240
  %v1664 = vld [vmem:[%s1663] sm:$0xff]
  %v1665 = vld [vmem:[%s1663 + $0x8] sm:$0xff]
  %v1666 = vld [vmem:[%s1663 + $0x10] sm:$0xff]
  %v1667 = vld [vmem:[%s1663 + $0x18] sm:$0xff]
  %v1668 = vld [vmem:[%s1663 + $0x20] sm:$0xff]
  %v1669 = vld [vmem:[%s1663 + $0x28] sm:$0xff]
  %v1670 = vld [vmem:[%s1663 + $0x30] sm:$0xff]
  %v1671 = vld [vmem:[%s1663 + $0x38] sm:$0xff]
  %v1672 = vld [vmem:[%s1663 + $0x40] sm:$0xff]
  %v1673 = vld [vmem:[%s1663 + $0x48] sm:$0xff]
  %v1674 = vld [vmem:[%s1663 + $0x50] sm:$0xff]
  %v1675 = vld [vmem:[%s1663 + $0x58] sm:$0xff]
  %v1676 = vld [vmem:[%s1663 + $0x60] sm:$0xff]
  %v1677 = vld [vmem:[%s1663 + $0x68] sm:$0xff]
  %v1678 = vld [vmem:[%s1663 + $0x70] sm:$0xff]
  %v1680 = vsel %vm890, %v1664, 0
  %v1683 = vsel %vm890, %v1665, 0
  %v1686 = vsel %vm890, %v1666, 0
  %v1689 = vsel %vm890, %v1667, 0
  %v1692 = vsel %vm890, %v1668, 0
  %v1695 = vsel %vm890, %v1669, 0
  %v1698 = vsel %vm890, %v1670, 0
  %v1701 = vsel %vm890, %v1671, 0
  %v1704 = vsel %vm890, %v1672, 0
  %v1707 = vsel %vm890, %v1673, 0
  %v1710 = vsel %vm890, %v1674, 0
  %v1713 = vsel %vm890, %v1675, 0
  %v1716 = vsel %vm890, %v1676, 0
  %v1719 = vsel %vm890, %v1677, 0
  %v1722 = vsel %vm890, %v1678, 0
  %1724 = vmatprep.subr.mxu0 0.0
  %1725 = vmatpush1.msra.mxu0 0.0
  %1726 = vmatprep.subr.mxu0 0.0
  %1727 = vmatpush1.msra.mxu0 0.0
  %1728 = vmatprep.subr.mxu0 0.0
  %1729 = vmatpush1.msra.mxu0 0.0
  %1730 = vmatprep.subr.mxu0 0.0
  %1731 = vmatpush1.msra.mxu0 0.0
  %1732 = vmatprep.subr.mxu0 0.0
  %1733 = vmatpush1.msra.mxu0 0.0
  %1734 = vmatprep.subr.mxu0 0.0
  %1735 = vmatpush1.msra.mxu0 0.0
  %1736 = vmatprep.subr.mxu0 0.0
  %1737 = vmatpush1.msra.mxu0 0.0
  %1738 = vmatprep.subr.mxu0 0.0
  %1739 = vmatpush1.msra.mxu0 0.0
  %1740 = vmatprep.subr.mxu0 0.0
  %1741 = vmatpush1.msra.mxu0 0.0
  %1742 = vmatprep.subr.mxu0 0.0
  %1743 = vmatpush1.msra.mxu0 0.0
  %1744 = vmatprep.subr.mxu0 0.0
  %1745 = vmatpush1.msra.mxu0 0.0
  %1746 = vmatprep.subr.mxu0 0.0
  %1747 = vmatpush1.msra.mxu0 0.0
  %1748 = vmatprep.subr.mxu0 0.0
  %1749 = vmatpush1.msra.mxu0 0.0
  %1750 = vmatprep.subr.mxu0 0.0
  %1751 = vmatpush1.msra.mxu0 0.0
  %1752 = vmatprep.subr.mxu0 0.0
  %1753 = vmatpush1.msra.mxu0 %v1662
  %1754 = vmatprep.subr.mxu0 0.0
  %1755 = vmatpush1.msra.mxu0 %v1661
  %1756 = vmatprep.subr.mxu0 0.0
  %1757 = vmatpush2.msra.mxu0 0.0
  %1758 = vmatprep.subr.mxu0 0.0
  %1759 = vmatpush2.msra.mxu0 0.0
  %1760 = vmatprep.subr.mxu0 0.0
  %1761 = vmatpush2.msra.mxu0 0.0
  %1762 = vmatprep.subr.mxu0 0.0
  %1763 = vmatpush2.msra.mxu0 0.0
  %1764 = vmatprep.subr.mxu0 0.0
  %1765 = vmatpush2.msra.mxu0 0.0
  %1766 = vmatprep.subr.mxu0 0.0
  %1767 = vmatpush2.msra.mxu0 0.0
  %1768 = vmatprep.subr.mxu0 0.0
  %1769 = vmatpush2.msra.mxu0 0.0
  %1770 = vmatprep.subr.mxu0 0.0
  %1771 = vmatpush2.msra.mxu0 0.0
  %1772 = vmatprep.subr.mxu0 0.0
  %1773 = vmatpush2.msra.mxu0 0.0
  %1774 = vmatprep.subr.mxu0 0.0
  %1775 = vmatpush2.msra.mxu0 0.0
  %1776 = vmatprep.subr.mxu0 0.0
  %1777 = vmatpush2.msra.mxu0 0.0
  %1778 = vmatprep.subr.mxu0 0.0
  %1779 = vmatpush2.msra.mxu0 0.0
  %1780 = vmatprep.subr.mxu0 0.0
  %1781 = vmatpush2.msra.mxu0 0.0
  %1782 = vmatprep.subr.mxu0 0.0
  %1783 = vmatpush2.msra.mxu0 0.0
  %1784 = vmatprep.subr.mxu0 0.0
  %1785 = vmatpush2.msra.mxu0 0.0
  %1786 = vmatprep.subr.mxu0 0.0
  %1787 = vmatpush2.msra.mxu0 0.0
  %1788 = vmatprep.mubr.f32.mxu0 0.0
  %1789 = vmatmul.mubr.f32.gmra.mxu0 %v1680
  %v1790 = vpop.f32.mrf.mxu0
  %v1791 = vadd.f32 0.0, %v1790
  %v1792 = vpop.f32.mrf.mxu0
  %1793 = vmatprep.mubr.f32.mxu0 0.0
  %1794 = vmatmul.mubr.f32.gmra.mxu0 %v1683
  %v1795 = vpop.f32.mrf.mxu0
  %v1796 = vadd.f32 0.0, %v1795
  %v1797 = vpop.f32.mrf.mxu0
  %1798 = vmatprep.mubr.f32.mxu0 0.0
  %1799 = vmatmul.mubr.f32.gmra.mxu0 %v1686
  %v1800 = vpop.f32.mrf.mxu0
  %v1801 = vadd.f32 0.0, %v1800
  %v1802 = vpop.f32.mrf.mxu0
  %1803 = vmatprep.mubr.f32.mxu0 0.0
  %1804 = vmatmul.mubr.f32.gmra.mxu0 %v1689
  %v1805 = vpop.f32.mrf.mxu0
  %v1806 = vadd.f32 0.0, %v1805
  %v1807 = vpop.f32.mrf.mxu0
  %1808 = vmatprep.mubr.f32.mxu0 0.0
  %1809 = vmatmul.mubr.f32.gmra.mxu0 %v1692
  %v1810 = vpop.f32.mrf.mxu0
  %v1811 = vadd.f32 0.0, %v1810
  %v1812 = vpop.f32.mrf.mxu0
  %1813 = vmatprep.mubr.f32.mxu0 0.0
  %1814 = vmatmul.mubr.f32.gmra.mxu0 %v1695
  %v1815 = vpop.f32.mrf.mxu0
  %v1816 = vadd.f32 0.0, %v1815
  %v1817 = vpop.f32.mrf.mxu0
  %1818 = vmatprep.mubr.f32.mxu0 0.0
  %1819 = vmatmul.mubr.f32.gmra.mxu0 %v1698
  %v1820 = vpop.f32.mrf.mxu0
  %v1821 = vadd.f32 0.0, %v1820
  %v1822 = vpop.f32.mrf.mxu0
  %1823 = vmatprep.mubr.f32.mxu0 0.0
  %1824 = vmatmul.mubr.f32.gmra.mxu0 %v1701
  %v1825 = vpop.f32.mrf.mxu0
  %v1826 = vadd.f32 0.0, %v1825
  %v1827 = vpop.f32.mrf.mxu0
  %1828 = vmatprep.mubr.f32.mxu0 0.0
  %1829 = vmatmul.mubr.f32.gmra.mxu0 %v1704
  %v1830 = vpop.f32.mrf.mxu0
  %v1831 = vadd.f32 0.0, %v1830
  %v1832 = vpop.f32.mrf.mxu0
  %1833 = vmatprep.mubr.f32.mxu0 0.0
  %1834 = vmatmul.mubr.f32.gmra.mxu0 %v1707
  %v1835 = vpop.f32.mrf.mxu0
  %v1836 = vadd.f32 0.0, %v1835
  %v1837 = vpop.f32.mrf.mxu0
  %1838 = vmatprep.mubr.f32.mxu0 0.0
  %1839 = vmatmul.mubr.f32.gmra.mxu0 %v1710
  %v1840 = vpop.f32.mrf.mxu0
  %v1841 = vadd.f32 0.0, %v1840
  %v1842 = vpop.f32.mrf.mxu0
  %1843 = vmatprep.mubr.f32.mxu0 0.0
  %1844 = vmatmul.mubr.f32.gmra.mxu0 %v1713
  %v1845 = vpop.f32.mrf.mxu0
  %v1846 = vadd.f32 0.0, %v1845
  %v1847 = vpop.f32.mrf.mxu0
  %1848 = vmatprep.mubr.f32.mxu0 0.0
  %1849 = vmatmul.mubr.f32.gmra.mxu0 %v1716
  %v1850 = vpop.f32.mrf.mxu0
  %v1851 = vadd.f32 0.0, %v1850
  %v1852 = vpop.f32.mrf.mxu0
  %1853 = vmatprep.mubr.f32.mxu0 0.0
  %1854 = vmatmul.mubr.f32.gmra.mxu0 %v1719
  %v1855 = vpop.f32.mrf.mxu0
  %v1856 = vadd.f32 0.0, %v1855
  %v1857 = vpop.f32.mrf.mxu0
  %1858 = vmatprep.mubr.f32.mxu0 0.0
  %1859 = vmatmul.mubr.f32.gmra.mxu0 %v1722
  %v1860 = vpop.f32.mrf.mxu0
  %v1861 = vadd.f32 0.0, %v1860
  %v1862 = vpop.f32.mrf.mxu0
  %1863 = vdwg.mxu0
  %v1864 = vadd.f32 %v1188, %v1791
  %v1865 = vadd.f32 %v1193, %v1796
  %v1866 = vadd.f32 %v1198, %v1801
  %v1867 = vadd.f32 %v1203, %v1806
  %v1868 = vadd.f32 %v1208, %v1811
  %v1869 = vadd.f32 %v1213, %v1816
  %v1870 = vadd.f32 %v1218, %v1821
  %v1871 = vadd.f32 %v1223, %v1826
  %v1872 = vadd.f32 %v1228, %v1831
  %v1873 = vadd.f32 %v1233, %v1836
  %v1874 = vadd.f32 %v1238, %v1841
  %v1875 = vadd.f32 %v1243, %v1846
  %v1876 = vadd.f32 %v1248, %v1851
  %v1877 = vadd.f32 %v1253, %v1856
  %v1878 = vadd.f32 %v1258, %v1861
  %s1879 = scalar_lea.vmem %s0, 1824
  %v1880 = vld [vmem:[%s1879] sm:$0xff]
  %v1881 = vld [vmem:[%s1879 + $0x8] sm:$0xff]
  %v1882 = vld [vmem:[%s1879 + $0x10] sm:$0xff]
  %v1883 = vld [vmem:[%s1879 + $0x18] sm:$0xff]
  %v1884 = vld [vmem:[%s1879 + $0x20] sm:$0xff]
  %v1885 = vld [vmem:[%s1879 + $0x28] sm:$0xff]
  %v1886 = vld [vmem:[%s1879 + $0x30] sm:$0xff]
  %v1887 = vld [vmem:[%s1879 + $0x38] sm:$0xff]
  %v1888 = vld [vmem:[%s1879 + $0x40] sm:$0xff]
  %v1889 = vld [vmem:[%s1879 + $0x48] sm:$0xff]
  %v1890 = vld [vmem:[%s1879 + $0x50] sm:$0xff]
  %v1891 = vld [vmem:[%s1879 + $0x58] sm:$0xff]
  %v1892 = vld [vmem:[%s1879 + $0x60] sm:$0xff]
  %v1893 = vld [vmem:[%s1879 + $0x68] sm:$0xff]
  %v1894 = vld [vmem:[%s1879 + $0x70] sm:$0xff]
  %v1895 = vld [vmem:[%s1879 + $0x78] sm:$0xff]
  %v1896 = vld [vmem:[%s1879 + $0x80] sm:$0xff]
  %v1897 = vld [vmem:[%s1879 + $0x88] sm:$0xff]
  %v1898 = vld [vmem:[%s1879 + $0x90] sm:$0x3f]
  %v1900 = vsel %vm64, %v1898, 0
  %1902 = vmatprep.subr.mxu0 0.0
  %1903 = vmatpush1.msra.mxu0 %v1895
  %1904 = vmatprep.subr.mxu0 0.0
  %1905 = vmatpush1.msra.mxu0 %v1894
  %1906 = vmatprep.subr.mxu0 0.0
  %1907 = vmatpush1.msra.mxu0 %v1893
  %1908 = vmatprep.subr.mxu0 0.0
  %1909 = vmatpush1.msra.mxu0 %v1892
  %1910 = vmatprep.subr.mxu0 0.0
  %1911 = vmatpush1.msra.mxu0 %v1891
  %1912 = vmatprep.subr.mxu0 0.0
  %1913 = vmatpush1.msra.mxu0 %v1890
  %1914 = vmatprep.subr.mxu0 0.0
  %1915 = vmatpush1.msra.mxu0 %v1889
  %1916 = vmatprep.subr.mxu0 0.0
  %1917 = vmatpush1.msra.mxu0 %v1888
  %1918 = vmatprep.subr.mxu0 0.0
  %1919 = vmatpush1.msra.mxu0 %v1887
  %1920 = vmatprep.subr.mxu0 0.0
  %1921 = vmatpush1.msra.mxu0 %v1886
  %1922 = vmatprep.subr.mxu0 0.0
  %1923 = vmatpush1.msra.mxu0 %v1885
  %1924 = vmatprep.subr.mxu0 0.0
  %1925 = vmatpush1.msra.mxu0 %v1884
  %1926 = vmatprep.subr.mxu0 0.0
  %1927 = vmatpush1.msra.mxu0 %v1883
  %1928 = vmatprep.subr.mxu0 0.0
  %1929 = vmatpush1.msra.mxu0 %v1882
  %1930 = vmatprep.subr.mxu0 0.0
  %1931 = vmatpush1.msra.mxu0 %v1881
  %1932 = vmatprep.subr.mxu0 0.0
  %1933 = vmatpush1.msra.mxu0 %v1880
  %1934 = vmatprep.subr.mxu0 0.0
  %1935 = vmatpush2.msra.mxu0 0.0
  %1936 = vmatprep.subr.mxu0 0.0
  %1937 = vmatpush2.msra.mxu0 0.0
  %1938 = vmatprep.subr.mxu0 0.0
  %1939 = vmatpush2.msra.mxu0 0.0
  %1940 = vmatprep.subr.mxu0 0.0
  %1941 = vmatpush2.msra.mxu0 0.0
  %1942 = vmatprep.subr.mxu0 0.0
  %1943 = vmatpush2.msra.mxu0 0.0
  %1944 = vmatprep.subr.mxu0 0.0
  %1945 = vmatpush2.msra.mxu0 0.0
  %1946 = vmatprep.subr.mxu0 0.0
  %1947 = vmatpush2.msra.mxu0 0.0
  %1948 = vmatprep.subr.mxu0 0.0
  %1949 = vmatpush2.msra.mxu0 0.0
  %1950 = vmatprep.subr.mxu0 0.0
  %1951 = vmatpush2.msra.mxu0 0.0
  %1952 = vmatprep.subr.mxu0 0.0
  %1953 = vmatpush2.msra.mxu0 0.0
  %1954 = vmatprep.subr.mxu0 0.0
  %1955 = vmatpush2.msra.mxu0 0.0
  %1956 = vmatprep.subr.mxu0 0.0
  %1957 = vmatpush2.msra.mxu0 0.0
  %1958 = vmatprep.subr.mxu0 0.0
  %1959 = vmatpush2.msra.mxu0 0.0
  %1960 = vmatprep.subr.mxu0 0.0
  %1961 = vmatpush2.msra.mxu0 %v1900
  %1962 = vmatprep.subr.mxu0 0.0
  %1963 = vmatpush2.msra.mxu0 %v1897
  %1964 = vmatprep.subr.mxu0 0.0
  %1965 = vmatpush2.msra.mxu0 %v1896
  %1966 = vmatprep.mubr.f32.mxu0 %v59
  %1967 = vmatmul.mubr.f32.gmra.mxu0 %v32
  %v1968 = vpop.f32.mrf.mxu0
  %v1969 = vadd.f32 0.0, %v1968
  %v1970 = vpop.f32.mrf.mxu0
  %1971 = vmatprep.mubr.f32.mxu0 %v62
  %1972 = vmatmul.mubr.f32.gmra.mxu0 %v34
  %v1973 = vpop.f32.mrf.mxu0
  %v1974 = vadd.f32 0.0, %v1973
  %v1975 = vpop.f32.mrf.mxu0
  %1976 = vdwg.mxu0
  %s1977 = scalar_lea.vmem %s0, 1976
  %v1978 = vld [vmem:[%s1977] sm:$0xff]
  %v1979 = vld [vmem:[%s1977 + $0x8] sm:$0xff]
  %v1980 = vld [vmem:[%s1977 + $0x10] sm:$0xff]
  %v1981 = vld [vmem:[%s1977 + $0x18] sm:$0xff]
  %v1982 = vld [vmem:[%s1977 + $0x20] sm:$0xff]
  %v1983 = vld [vmem:[%s1977 + $0x28] sm:$0xff]
  %v1984 = vld [vmem:[%s1977 + $0x30] sm:$0xff]
  %v1985 = vld [vmem:[%s1977 + $0x38] sm:$0xff]
  %v1986 = vld [vmem:[%s1977 + $0x40] sm:$0xff]
  %v1987 = vld [vmem:[%s1977 + $0x48] sm:$0xff]
  %v1988 = vld [vmem:[%s1977 + $0x50] sm:$0xff]
  %v1989 = vld [vmem:[%s1977 + $0x58] sm:$0xff]
  %v1990 = vld [vmem:[%s1977 + $0x60] sm:$0xff]
  %v1991 = vld [vmem:[%s1977 + $0x68] sm:$0xff]
  %v1992 = vld [vmem:[%s1977 + $0x70] sm:$0xff]
  %v1993 = vld [vmem:[%s1977 + $0x78] sm:$0xff]
  %v1994 = vld [vmem:[%s1977 + $0x80] sm:$0xff]
  %v1995 = vld [vmem:[%s1977 + $0x88] sm:$0xff]
  %v1996 = vld [vmem:[%s1977 + $0x90] sm:$0x3f]
  %v1998 = vsel %vm64, %v1996, 0
  %2000 = vmatprep.subr.mxu0 0.0
  %2001 = vmatpush1.msra.mxu0 %v1993
  %2002 = vmatprep.subr.mxu0 0.0
  %2003 = vmatpush1.msra.mxu0 %v1992
  %2004 = vmatprep.subr.mxu0 0.0
  %2005 = vmatpush1.msra.mxu0 %v1991
  %2006 = vmatprep.subr.mxu0 0.0
  %2007 = vmatpush1.msra.mxu0 %v1990
  %2008 = vmatprep.subr.mxu0 0.0
  %2009 = vmatpush1.msra.mxu0 %v1989
  %2010 = vmatprep.subr.mxu0 0.0
  %2011 = vmatpush1.msra.mxu0 %v1988
  %2012 = vmatprep.subr.mxu0 0.0
  %2013 = vmatpush1.msra.mxu0 %v1987
  %2014 = vmatprep.subr.mxu0 0.0
  %2015 = vmatpush1.msra.mxu0 %v1986
  %2016 = vmatprep.subr.mxu0 0.0
  %2017 = vmatpush1.msra.mxu0 %v1985
  %2018 = vmatprep.subr.mxu0 0.0
  %2019 = vmatpush1.msra.mxu0 %v1984
  %2020 = vmatprep.subr.mxu0 0.0
  %2021 = vmatpush1.msra.mxu0 %v1983
  %2022 = vmatprep.subr.mxu0 0.0
  %2023 = vmatpush1.msra.mxu0 %v1982
  %2024 = vmatprep.subr.mxu0 0.0
  %2025 = vmatpush1.msra.mxu0 %v1981
  %2026 = vmatprep.subr.mxu0 0.0
  %2027 = vmatpush1.msra.mxu0 %v1980
  %2028 = vmatprep.subr.mxu0 0.0
  %2029 = vmatpush1.msra.mxu0 %v1979
  %2030 = vmatprep.subr.mxu0 0.0
  %2031 = vmatpush1.msra.mxu0 %v1978
  %2032 = vmatprep.subr.mxu0 0.0
  %2033 = vmatpush2.msra.mxu0 0.0
  %2034 = vmatprep.subr.mxu0 0.0
  %2035 = vmatpush2.msra.mxu0 0.0
  %2036 = vmatprep.subr.mxu0 0.0
  %2037 = vmatpush2.msra.mxu0 0.0
  %2038 = vmatprep.subr.mxu0 0.0
  %2039 = vmatpush2.msra.mxu0 0.0
  %2040 = vmatprep.subr.mxu0 0.0
  %2041 = vmatpush2.msra.mxu0 0.0
  %2042 = vmatprep.subr.mxu0 0.0
  %2043 = vmatpush2.msra.mxu0 0.0
  %2044 = vmatprep.subr.mxu0 0.0
  %2045 = vmatpush2.msra.mxu0 0.0
  %2046 = vmatprep.subr.mxu0 0.0
  %2047 = vmatpush2.msra.mxu0 0.0
  %2048 = vmatprep.subr.mxu0 0.0
  %2049 = vmatpush2.msra.mxu0 0.0
  %2050 = vmatprep.subr.mxu0 0.0
  %2051 = vmatpush2.msra.mxu0 0.0
  %2052 = vmatprep.subr.mxu0 0.0
  %2053 = vmatpush2.msra.mxu0 0.0
  %2054 = vmatprep.subr.mxu0 0.0
  %2055 = vmatpush2.msra.mxu0 0.0
  %2056 = vmatprep.subr.mxu0 0.0
  %2057 = vmatpush2.msra.mxu0 0.0
  %2058 = vmatprep.subr.mxu0 0.0
  %2059 = vmatpush2.msra.mxu0 %v1998
  %2060 = vmatprep.subr.mxu0 0.0
  %2061 = vmatpush2.msra.mxu0 %v1995
  %2062 = vmatprep.subr.mxu0 0.0
  %2063 = vmatpush2.msra.mxu0 %v1994
  %2064 = vmatprep.mubr.f32.mxu0 %v59
  %2065 = vmatmul.mubr.f32.gmra.mxu0 %v32
  %v2066 = vpop.f32.mrf.mxu0
  %v2067 = vadd.f32 0.0, %v2066
  %v2068 = vpop.f32.mrf.mxu0
  %2069 = vmatprep.mubr.f32.mxu0 %v62
  %2070 = vmatmul.mubr.f32.gmra.mxu0 %v34
  %v2071 = vpop.f32.mrf.mxu0
  %v2072 = vadd.f32 0.0, %v2071
  %v2073 = vpop.f32.mrf.mxu0
  %2074 = vdwg.mxu0
  %v2075 = vmax.f32 %v1969, %v2067
  %v2076 = vmax.f32 %v1974, %v2072
  %s2077 = scalar_lea.vmem %s0, 2128
  %v2078 = vld [vmem:[%s2077] sm:$0xff]
  %v2079 = vld [vmem:[%s2077 + $0x8] sm:$0xff]
  %v2080 = vld [vmem:[%s2077 + $0x10] sm:$0xff]
  %v2081 = vld [vmem:[%s2077 + $0x18] sm:$0xff]
  %v2082 = vld [vmem:[%s2077 + $0x20] sm:$0xff]
  %v2083 = vld [vmem:[%s2077 + $0x28] sm:$0xff]
  %v2084 = vld [vmem:[%s2077 + $0x30] sm:$0xff]
  %v2085 = vld [vmem:[%s2077 + $0x38] sm:$0xff]
  %v2086 = vld [vmem:[%s2077 + $0x40] sm:$0xff]
  %v2087 = vld [vmem:[%s2077 + $0x48] sm:$0xff]
  %v2088 = vld [vmem:[%s2077 + $0x50] sm:$0xff]
  %v2089 = vld [vmem:[%s2077 + $0x58] sm:$0xff]
  %v2090 = vld [vmem:[%s2077 + $0x60] sm:$0xff]
  %v2091 = vld [vmem:[%s2077 + $0x68] sm:$0xff]
  %v2092 = vld [vmem:[%s2077 + $0x70] sm:$0xff]
  %v2093 = vld [vmem:[%s2077 + $0x78] sm:$0xff]
  %v2094 = vld [vmem:[%s2077 + $0x80] sm:$0xff]
  %v2095 = vld [vmem:[%s2077 + $0x88] sm:$0xff]
  %v2096 = vld [vmem:[%s2077 + $0x90] sm:$0x3f]
  %v2098 = vsel %vm64, %v2096, 0
  %2100 = vmatprep.subr.mxu0 0.0
  %2101 = vmatpush1.msra.mxu0 %v2093
  %2102 = vmatprep.subr.mxu0 0.0
  %2103 = vmatpush1.msra.mxu0 %v2092
  %2104 = vmatprep.subr.mxu0 0.0
  %2105 = vmatpush1.msra.mxu0 %v2091
  %2106 = vmatprep.subr.mxu0 0.0
  %2107 = vmatpush1.msra.mxu0 %v2090
  %2108 = vmatprep.subr.mxu0 0.0
  %2109 = vmatpush1.msra.mxu0 %v2089
  %2110 = vmatprep.subr.mxu0 0.0
  %2111 = vmatpush1.msra.mxu0 %v2088
  %2112 = vmatprep.subr.mxu0 0.0
  %2113 = vmatpush1.msra.mxu0 %v2087
  %2114 = vmatprep.subr.mxu0 0.0
  %2115 = vmatpush1.msra.mxu0 %v2086
  %2116 = vmatprep.subr.mxu0 0.0
  %2117 = vmatpush1.msra.mxu0 %v2085
  %2118 = vmatprep.subr.mxu0 0.0
  %2119 = vmatpush1.msra.mxu0 %v2084
  %2120 = vmatprep.subr.mxu0 0.0
  %2121 = vmatpush1.msra.mxu0 %v2083
  %2122 = vmatprep.subr.mxu0 0.0
  %2123 = vmatpush1.msra.mxu0 %v2082
  %2124 = vmatprep.subr.mxu0 0.0
  %2125 = vmatpush1.msra.mxu0 %v2081
  %2126 = vmatprep.subr.mxu0 0.0
  %2127 = vmatpush1.msra.mxu0 %v2080
  %2128 = vmatprep.subr.mxu0 0.0
  %2129 = vmatpush1.msra.mxu0 %v2079
  %2130 = vmatprep.subr.mxu0 0.0
  %2131 = vmatpush1.msra.mxu0 %v2078
  %2132 = vmatprep.subr.mxu0 0.0
  %2133 = vmatpush2.msra.mxu0 0.0
  %2134 = vmatprep.subr.mxu0 0.0
  %2135 = vmatpush2.msra.mxu0 0.0
  %2136 = vmatprep.subr.mxu0 0.0
  %2137 = vmatpush2.msra.mxu0 0.0
  %2138 = vmatprep.subr.mxu0 0.0
  %2139 = vmatpush2.msra.mxu0 0.0
  %2140 = vmatprep.subr.mxu0 0.0
  %2141 = vmatpush2.msra.mxu0 0.0
  %2142 = vmatprep.subr.mxu0 0.0
  %2143 = vmatpush2.msra.mxu0 0.0
  %2144 = vmatprep.subr.mxu0 0.0
  %2145 = vmatpush2.msra.mxu0 0.0
  %2146 = vmatprep.subr.mxu0 0.0
  %2147 = vmatpush2.msra.mxu0 0.0
  %2148 = vmatprep.subr.mxu0 0.0
  %2149 = vmatpush2.msra.mxu0 0.0
  %2150 = vmatprep.subr.mxu0 0.0
  %2151 = vmatpush2.msra.mxu0 0.0
  %2152 = vmatprep.subr.mxu0 0.0
  %2153 = vmatpush2.msra.mxu0 0.0
  %2154 = vmatprep.subr.mxu0 0.0
  %2155 = vmatpush2.msra.mxu0 0.0
  %2156 = vmatprep.subr.mxu0 0.0
  %2157 = vmatpush2.msra.mxu0 0.0
  %2158 = vmatprep.subr.mxu0 0.0
  %2159 = vmatpush2.msra.mxu0 %v2098
  %2160 = vmatprep.subr.mxu0 0.0
  %2161 = vmatpush2.msra.mxu0 %v2095
  %2162 = vmatprep.subr.mxu0 0.0
  %2163 = vmatpush2.msra.mxu0 %v2094
  %2164 = vmatprep.mubr.f32.mxu0 %v59
  %2165 = vmatmul.mubr.f32.gmra.mxu0 %v32
  %v2166 = vpop.f32.mrf.mxu0
  %v2167 = vadd.f32 0.0, %v2166
  %v2168 = vpop.f32.mrf.mxu0
  %2169 = vmatprep.mubr.f32.mxu0 %v62
  %2170 = vmatmul.mubr.f32.gmra.mxu0 %v34
  %v2171 = vpop.f32.mrf.mxu0
  %v2172 = vadd.f32 0.0, %v2171
  %v2173 = vpop.f32.mrf.mxu0
  %2174 = vdwg.mxu0
  %v2175 = vmax.f32 %v2075, %v2167
  %v2176 = vmax.f32 %v2076, %v2172
  %s2177 = scalar_lea.vmem %s0, 2280
  %v2178 = vld [vmem:[%s2177] sm:$0xff]
  %v2179 = vld [vmem:[%s2177 + $0x8] sm:$0xff]
  %v2180 = vld [vmem:[%s2177 + $0x10] sm:$0xff]
  %v2181 = vld [vmem:[%s2177 + $0x18] sm:$0xff]
  %v2182 = vld [vmem:[%s2177 + $0x20] sm:$0xff]
  %v2183 = vld [vmem:[%s2177 + $0x28] sm:$0xff]
  %v2184 = vld [vmem:[%s2177 + $0x30] sm:$0xff]
  %v2185 = vld [vmem:[%s2177 + $0x38] sm:$0xff]
  %v2186 = vld [vmem:[%s2177 + $0x40] sm:$0xff]
  %v2187 = vld [vmem:[%s2177 + $0x48] sm:$0xff]
  %v2188 = vld [vmem:[%s2177 + $0x50] sm:$0xff]
  %v2189 = vld [vmem:[%s2177 + $0x58] sm:$0xff]
  %v2190 = vld [vmem:[%s2177 + $0x60] sm:$0xff]
  %v2191 = vld [vmem:[%s2177 + $0x68] sm:$0xff]
  %v2192 = vld [vmem:[%s2177 + $0x70] sm:$0xff]
  %v2193 = vld [vmem:[%s2177 + $0x78] sm:$0xff]
  %v2194 = vld [vmem:[%s2177 + $0x80] sm:$0xff]
  %v2195 = vld [vmem:[%s2177 + $0x88] sm:$0xff]
  %v2196 = vld [vmem:[%s2177 + $0x90] sm:$0x3f]
  %v2198 = vsel %vm64, %v2196, 0
  %2200 = vmatprep.subr.mxu0 0.0
  %2201 = vmatpush1.msra.mxu0 %v2193
  %2202 = vmatprep.subr.mxu0 0.0
  %2203 = vmatpush1.msra.mxu0 %v2192
  %2204 = vmatprep.subr.mxu0 0.0
  %2205 = vmatpush1.msra.mxu0 %v2191
  %2206 = vmatprep.subr.mxu0 0.0
  %2207 = vmatpush1.msra.mxu0 %v2190
  %2208 = vmatprep.subr.mxu0 0.0
  %2209 = vmatpush1.msra.mxu0 %v2189
  %2210 = vmatprep.subr.mxu0 0.0
  %2211 = vmatpush1.msra.mxu0 %v2188
  %2212 = vmatprep.subr.mxu0 0.0
  %2213 = vmatpush1.msra.mxu0 %v2187
  %2214 = vmatprep.subr.mxu0 0.0
  %2215 = vmatpush1.msra.mxu0 %v2186
  %2216 = vmatprep.subr.mxu0 0.0
  %2217 = vmatpush1.msra.mxu0 %v2185
  %2218 = vmatprep.subr.mxu0 0.0
  %2219 = vmatpush1.msra.mxu0 %v2184
  %2220 = vmatprep.subr.mxu0 0.0
  %2221 = vmatpush1.msra.mxu0 %v2183
  %2222 = vmatprep.subr.mxu0 0.0
  %2223 = vmatpush1.msra.mxu0 %v2182
  %2224 = vmatprep.subr.mxu0 0.0
  %2225 = vmatpush1.msra.mxu0 %v2181
  %2226 = vmatprep.subr.mxu0 0.0
  %2227 = vmatpush1.msra.mxu0 %v2180
  %2228 = vmatprep.subr.mxu0 0.0
  %2229 = vmatpush1.msra.mxu0 %v2179
  %2230 = vmatprep.subr.mxu0 0.0
  %2231 = vmatpush1.msra.mxu0 %v2178
  %2232 = vmatprep.subr.mxu0 0.0
  %2233 = vmatpush2.msra.mxu0 0.0
  %2234 = vmatprep.subr.mxu0 0.0
  %2235 = vmatpush2.msra.mxu0 0.0
  %2236 = vmatprep.subr.mxu0 0.0
  %2237 = vmatpush2.msra.mxu0 0.0
  %2238 = vmatprep.subr.mxu0 0.0
  %2239 = vmatpush2.msra.mxu0 0.0
  %2240 = vmatprep.subr.mxu0 0.0
  %2241 = vmatpush2.msra.mxu0 0.0
  %2242 = vmatprep.subr.mxu0 0.0
  %2243 = vmatpush2.msra.mxu0 0.0
  %2244 = vmatprep.subr.mxu0 0.0
  %2245 = vmatpush2.msra.mxu0 0.0
  %2246 = vmatprep.subr.mxu0 0.0
  %2247 = vmatpush2.msra.mxu0 0.0
  %2248 = vmatprep.subr.mxu0 0.0
  %2249 = vmatpush2.msra.mxu0 0.0
  %2250 = vmatprep.subr.mxu0 0.0
  %2251 = vmatpush2.msra.mxu0 0.0
  %2252 = vmatprep.subr.mxu0 0.0
  %2253 = vmatpush2.msra.mxu0 0.0
  %2254 = vmatprep.subr.mxu0 0.0
  %2255 = vmatpush2.msra.mxu0 0.0
  %2256 = vmatprep.subr.mxu0 0.0
  %2257 = vmatpush2.msra.mxu0 0.0
  %2258 = vmatprep.subr.mxu0 0.0
  %2259 = vmatpush2.msra.mxu0 %v2198
  %2260 = vmatprep.subr.mxu0 0.0
  %2261 = vmatpush2.msra.mxu0 %v2195
  %2262 = vmatprep.subr.mxu0 0.0
  %2263 = vmatpush2.msra.mxu0 %v2194
  %2264 = vmatprep.mubr.f32.mxu0 %v59
  %2265 = vmatmul.mubr.f32.gmra.mxu0 %v32
  %v2266 = vpop.f32.mrf.mxu0
  %v2267 = vadd.f32 0.0, %v2266
  %v2268 = vpop.f32.mrf.mxu0
  %2269 = vmatprep.mubr.f32.mxu0 %v62
  %2270 = vmatmul.mubr.f32.gmra.mxu0 %v34
  %v2271 = vpop.f32.mrf.mxu0
  %v2272 = vadd.f32 0.0, %v2271
  %v2273 = vpop.f32.mrf.mxu0
  %2274 = vdwg.mxu0
  %v2275 = vmax.f32 %v2175, %v2267
  %v2276 = vmax.f32 %v2176, %v2272
  %v2277 = vadd.f32 %v2275, %v446
  %v2278 = vadd.f32 %v2276, %v451
  %v2279 = vmax.f32 %v2277, 0.0
  %v2280 = vmax.f32 %v2278, 0.0
  %s2281 = scalar_lea.vmem %s3, 360
  %v2282 = vld [vmem:[%s2281] sm:$0xff]
  %v2283 = vld [vmem:[%s2281 + $0x8] sm:$0xff]
  %v2284 = vld [vmem:[%s2281 + $0x10] sm:$0xff]
  %v2285 = vld [vmem:[%s2281 + $0x18] sm:$0xff]
  %v2286 = vld [vmem:[%s2281 + $0x20] sm:$0xff]
  %v2287 = vld [vmem:[%s2281 + $0x28] sm:$0xff]
  %v2288 = vld [vmem:[%s2281 + $0x30] sm:$0xff]
  %v2289 = vld [vmem:[%s2281 + $0x38] sm:$0xff]
  %v2290 = vld [vmem:[%s2281 + $0x40] sm:$0xff]
  %v2291 = vld [vmem:[%s2281 + $0x48] sm:$0xff]
  %v2292 = vld [vmem:[%s2281 + $0x50] sm:$0xff]
  %v2293 = vld [vmem:[%s2281 + $0x58] sm:$0xff]
  %v2294 = vld [vmem:[%s2281 + $0x60] sm:$0xff]
  %v2295 = vld [vmem:[%s2281 + $0x68] sm:$0xff]
  %v2296 = vld [vmem:[%s2281 + $0x70] sm:$0xff]
  %v2298 = vsel %vm890, %v2282, 0
  %v2301 = vsel %vm890, %v2283, 0
  %v2304 = vsel %vm890, %v2284, 0
  %v2307 = vsel %vm890, %v2285, 0
  %v2310 = vsel %vm890, %v2286, 0
  %v2313 = vsel %vm890, %v2287, 0
  %v2316 = vsel %vm890, %v2288, 0
  %v2319 = vsel %vm890, %v2289, 0
  %v2322 = vsel %vm890, %v2290, 0
  %v2325 = vsel %vm890, %v2291, 0
  %v2328 = vsel %vm890, %v2292, 0
  %v2331 = vsel %vm890, %v2293, 0
  %v2334 = vsel %vm890, %v2294, 0
  %v2337 = vsel %vm890, %v2295, 0
  %v2340 = vsel %vm890, %v2296, 0
  %2342 = vmatprep.subr.mxu0 0.0
  %2343 = vmatpush1.msra.mxu0 0.0
  %2344 = vmatprep.subr.mxu0 0.0
  %2345 = vmatpush1.msra.mxu0 0.0
  %2346 = vmatprep.subr.mxu0 0.0
  %2347 = vmatpush1.msra.mxu0 0.0
  %2348 = vmatprep.subr.mxu0 0.0
  %2349 = vmatpush1.msra.mxu0 0.0
  %2350 = vmatprep.subr.mxu0 0.0
  %2351 = vmatpush1.msra.mxu0 0.0
  %2352 = vmatprep.subr.mxu0 0.0
  %2353 = vmatpush1.msra.mxu0 0.0
  %2354 = vmatprep.subr.mxu0 0.0
  %2355 = vmatpush1.msra.mxu0 0.0
  %2356 = vmatprep.subr.mxu0 0.0
  %2357 = vmatpush1.msra.mxu0 0.0
  %2358 = vmatprep.subr.mxu0 0.0
  %2359 = vmatpush1.msra.mxu0 0.0
  %2360 = vmatprep.subr.mxu0 0.0
  %2361 = vmatpush1.msra.mxu0 0.0
  %2362 = vmatprep.subr.mxu0 0.0
  %2363 = vmatpush1.msra.mxu0 0.0
  %2364 = vmatprep.subr.mxu0 0.0
  %2365 = vmatpush1.msra.mxu0 0.0
  %2366 = vmatprep.subr.mxu0 0.0
  %2367 = vmatpush1.msra.mxu0 0.0
  %2368 = vmatprep.subr.mxu0 0.0
  %2369 = vmatpush1.msra.mxu0 0.0
  %2370 = vmatprep.subr.mxu0 0.0
  %2371 = vmatpush1.msra.mxu0 %v2280
  %2372 = vmatprep.subr.mxu0 0.0
  %2373 = vmatpush1.msra.mxu0 %v2279
  %2374 = vmatprep.subr.mxu0 0.0
  %2375 = vmatpush2.msra.mxu0 0.0
  %2376 = vmatprep.subr.mxu0 0.0
  %2377 = vmatpush2.msra.mxu0 0.0
  %2378 = vmatprep.subr.mxu0 0.0
  %2379 = vmatpush2.msra.mxu0 0.0
  %2380 = vmatprep.subr.mxu0 0.0
  %2381 = vmatpush2.msra.mxu0 0.0
  %2382 = vmatprep.subr.mxu0 0.0
  %2383 = vmatpush2.msra.mxu0 0.0
  %2384 = vmatprep.subr.mxu0 0.0
  %2385 = vmatpush2.msra.mxu0 0.0
  %2386 = vmatprep.subr.mxu0 0.0
  %2387 = vmatpush2.msra.mxu0 0.0
  %2388 = vmatprep.subr.mxu0 0.0
  %2389 = vmatpush2.msra.mxu0 0.0
  %2390 = vmatprep.subr.mxu0 0.0
  %2391 = vmatpush2.msra.mxu0 0.0
  %2392 = vmatprep.subr.mxu0 0.0
  %2393 = vmatpush2.msra.mxu0 0.0
  %2394 = vmatprep.subr.mxu0 0.0
  %2395 = vmatpush2.msra.mxu0 0.0
  %2396 = vmatprep.subr.mxu0 0.0
  %2397 = vmatpush2.msra.mxu0 0.0
  %2398 = vmatprep.subr.mxu0 0.0
  %2399 = vmatpush2.msra.mxu0 0.0
  %2400 = vmatprep.subr.mxu0 0.0
  %2401 = vmatpush2.msra.mxu0 0.0
  %2402 = vmatprep.subr.mxu0 0.0
  %2403 = vmatpush2.msra.mxu0 0.0
  %2404 = vmatprep.subr.mxu0 0.0
  %2405 = vmatpush2.msra.mxu0 0.0
  %2406 = vmatprep.mubr.f32.mxu0 0.0
  %2407 = vmatmul.mubr.f32.gmra.mxu0 %v2298
  %v2408 = vpop.f32.mrf.mxu0
  %v2409 = vadd.f32 0.0, %v2408
  %v2410 = vpop.f32.mrf.mxu0
  %2411 = vmatprep.mubr.f32.mxu0 0.0
  %2412 = vmatmul.mubr.f32.gmra.mxu0 %v2301
  %v2413 = vpop.f32.mrf.mxu0
  %v2414 = vadd.f32 0.0, %v2413
  %v2415 = vpop.f32.mrf.mxu0
  %2416 = vmatprep.mubr.f32.mxu0 0.0
  %2417 = vmatmul.mubr.f32.gmra.mxu0 %v2304
  %v2418 = vpop.f32.mrf.mxu0
  %v2419 = vadd.f32 0.0, %v2418
  %v2420 = vpop.f32.mrf.mxu0
  %2421 = vmatprep.mubr.f32.mxu0 0.0
  %2422 = vmatmul.mubr.f32.gmra.mxu0 %v2307
  %v2423 = vpop.f32.mrf.mxu0
  %v2424 = vadd.f32 0.0, %v2423
  %v2425 = vpop.f32.mrf.mxu0
  %2426 = vmatprep.mubr.f32.mxu0 0.0
  %2427 = vmatmul.mubr.f32.gmra.mxu0 %v2310
  %v2428 = vpop.f32.mrf.mxu0
  %v2429 = vadd.f32 0.0, %v2428
  %v2430 = vpop.f32.mrf.mxu0
  %2431 = vmatprep.mubr.f32.mxu0 0.0
  %2432 = vmatmul.mubr.f32.gmra.mxu0 %v2313
  %v2433 = vpop.f32.mrf.mxu0
  %v2434 = vadd.f32 0.0, %v2433
  %v2435 = vpop.f32.mrf.mxu0
  %2436 = vmatprep.mubr.f32.mxu0 0.0
  %2437 = vmatmul.mubr.f32.gmra.mxu0 %v2316
  %v2438 = vpop.f32.mrf.mxu0
  %v2439 = vadd.f32 0.0, %v2438
  %v2440 = vpop.f32.mrf.mxu0
  %2441 = vmatprep.mubr.f32.mxu0 0.0
  %2442 = vmatmul.mubr.f32.gmra.mxu0 %v2319
  %v2443 = vpop.f32.mrf.mxu0
  %v2444 = vadd.f32 0.0, %v2443
  %v2445 = vpop.f32.mrf.mxu0
  %2446 = vmatprep.mubr.f32.mxu0 0.0
  %2447 = vmatmul.mubr.f32.gmra.mxu0 %v2322
  %v2448 = vpop.f32.mrf.mxu0
  %v2449 = vadd.f32 0.0, %v2448
  %v2450 = vpop.f32.mrf.mxu0
  %2451 = vmatprep.mubr.f32.mxu0 0.0
  %2452 = vmatmul.mubr.f32.gmra.mxu0 %v2325
  %v2453 = vpop.f32.mrf.mxu0
  %v2454 = vadd.f32 0.0, %v2453
  %v2455 = vpop.f32.mrf.mxu0
  %2456 = vmatprep.mubr.f32.mxu0 0.0
  %2457 = vmatmul.mubr.f32.gmra.mxu0 %v2328
  %v2458 = vpop.f32.mrf.mxu0
  %v2459 = vadd.f32 0.0, %v2458
  %v2460 = vpop.f32.mrf.mxu0
  %2461 = vmatprep.mubr.f32.mxu0 0.0
  %2462 = vmatmul.mubr.f32.gmra.mxu0 %v2331
  %v2463 = vpop.f32.mrf.mxu0
  %v2464 = vadd.f32 0.0, %v2463
  %v2465 = vpop.f32.mrf.mxu0
  %2466 = vmatprep.mubr.f32.mxu0 0.0
  %2467 = vmatmul.mubr.f32.gmra.mxu0 %v2334
  %v2468 = vpop.f32.mrf.mxu0
  %v2469 = vadd.f32 0.0, %v2468
  %v2470 = vpop.f32.mrf.mxu0
  %2471 = vmatprep.mubr.f32.mxu0 0.0
  %2472 = vmatmul.mubr.f32.gmra.mxu0 %v2337
  %v2473 = vpop.f32.mrf.mxu0
  %v2474 = vadd.f32 0.0, %v2473
  %v2475 = vpop.f32.mrf.mxu0
  %2476 = vmatprep.mubr.f32.mxu0 0.0
  %2477 = vmatmul.mubr.f32.gmra.mxu0 %v2340
  %v2478 = vpop.f32.mrf.mxu0
  %v2479 = vadd.f32 0.0, %v2478
  %v2480 = vpop.f32.mrf.mxu0
  %2481 = vdwg.mxu0
  %v2482 = vadd.f32 %v1864, %v2409
  %v2483 = vadd.f32 %v1865, %v2414
  %v2484 = vadd.f32 %v1866, %v2419
  %v2485 = vadd.f32 %v1867, %v2424
  %v2486 = vadd.f32 %v1868, %v2429
  %v2487 = vadd.f32 %v1869, %v2434
  %v2488 = vadd.f32 %v1870, %v2439
  %v2489 = vadd.f32 %v1871, %v2444
  %v2490 = vadd.f32 %v1872, %v2449
  %v2491 = vadd.f32 %v1873, %v2454
  %v2492 = vadd.f32 %v1874, %v2459
  %v2493 = vadd.f32 %v1875, %v2464
  %v2494 = vadd.f32 %v1876, %v2469
  %v2495 = vadd.f32 %v1877, %v2474
  %v2496 = vadd.f32 %v1878, %v2479
  %s2497 = scalar_lea.vmem %s0, 2432
  %v2498 = vld [vmem:[%s2497] sm:$0xff]
  %v2499 = vld [vmem:[%s2497 + $0x8] sm:$0xff]
  %v2500 = vld [vmem:[%s2497 + $0x10] sm:$0xff]
  %v2501 = vld [vmem:[%s2497 + $0x18] sm:$0xff]
  %v2502 = vld [vmem:[%s2497 + $0x20] sm:$0xff]
  %v2503 = vld [vmem:[%s2497 + $0x28] sm:$0xff]
  %v2504 = vld [vmem:[%s2497 + $0x30] sm:$0xff]
  %v2505 = vld [vmem:[%s2497 + $0x38] sm:$0xff]
  %v2506 = vld [vmem:[%s2497 + $0x40] sm:$0xff]
  %v2507 = vld [vmem:[%s2497 + $0x48] sm:$0xff]
  %v2508 = vld [vmem:[%s2497 + $0x50] sm:$0xff]
  %v2509 = vld [vmem:[%s2497 + $0x58] sm:$0xff]
  %v2510 = vld [vmem:[%s2497 + $0x60] sm:$0xff]
  %v2511 = vld [vmem:[%s2497 + $0x68] sm:$0xff]
  %v2512 = vld [vmem:[%s2497 + $0x70] sm:$0xff]
  %v2513 = vld [vmem:[%s2497 + $0x78] sm:$0xff]
  %v2514 = vld [vmem:[%s2497 + $0x80] sm:$0xff]
  %v2515 = vld [vmem:[%s2497 + $0x88] sm:$0xff]
  %v2516 = vld [vmem:[%s2497 + $0x90] sm:$0x3f]
  %v2518 = vsel %vm64, %v2516, 0
  %2520 = vmatprep.subr.mxu0 0.0
  %2521 = vmatpush1.msra.mxu0 %v2513
  %2522 = vmatprep.subr.mxu0 0.0
  %2523 = vmatpush1.msra.mxu0 %v2512
  %2524 = vmatprep.subr.mxu0 0.0
  %2525 = vmatpush1.msra.mxu0 %v2511
  %2526 = vmatprep.subr.mxu0 0.0
  %2527 = vmatpush1.msra.mxu0 %v2510
  %2528 = vmatprep.subr.mxu0 0.0
  %2529 = vmatpush1.msra.mxu0 %v2509
  %2530 = vmatprep.subr.mxu0 0.0
  %2531 = vmatpush1.msra.mxu0 %v2508
  %2532 = vmatprep.subr.mxu0 0.0
  %2533 = vmatpush1.msra.mxu0 %v2507
  %2534 = vmatprep.subr.mxu0 0.0
  %2535 = vmatpush1.msra.mxu0 %v2506
  %2536 = vmatprep.subr.mxu0 0.0
  %2537 = vmatpush1.msra.mxu0 %v2505
  %2538 = vmatprep.subr.mxu0 0.0
  %2539 = vmatpush1.msra.mxu0 %v2504
  %2540 = vmatprep.subr.mxu0 0.0
  %2541 = vmatpush1.msra.mxu0 %v2503
  %2542 = vmatprep.subr.mxu0 0.0
  %2543 = vmatpush1.msra.mxu0 %v2502
  %2544 = vmatprep.subr.mxu0 0.0
  %2545 = vmatpush1.msra.mxu0 %v2501
  %2546 = vmatprep.subr.mxu0 0.0
  %2547 = vmatpush1.msra.mxu0 %v2500
  %2548 = vmatprep.subr.mxu0 0.0
  %2549 = vmatpush1.msra.mxu0 %v2499
  %2550 = vmatprep.subr.mxu0 0.0
  %2551 = vmatpush1.msra.mxu0 %v2498
  %2552 = vmatprep.subr.mxu0 0.0
  %2553 = vmatpush2.msra.mxu0 0.0
  %2554 = vmatprep.subr.mxu0 0.0
  %2555 = vmatpush2.msra.mxu0 0.0
  %2556 = vmatprep.subr.mxu0 0.0
  %2557 = vmatpush2.msra.mxu0 0.0
  %2558 = vmatprep.subr.mxu0 0.0
  %2559 = vmatpush2.msra.mxu0 0.0
  %2560 = vmatprep.subr.mxu0 0.0
  %2561 = vmatpush2.msra.mxu0 0.0
  %2562 = vmatprep.subr.mxu0 0.0
  %2563 = vmatpush2.msra.mxu0 0.0
  %2564 = vmatprep.subr.mxu0 0.0
  %2565 = vmatpush2.msra.mxu0 0.0
  %2566 = vmatprep.subr.mxu0 0.0
  %2567 = vmatpush2.msra.mxu0 0.0
  %2568 = vmatprep.subr.mxu0 0.0
  %2569 = vmatpush2.msra.mxu0 0.0
  %2570 = vmatprep.subr.mxu0 0.0
  %2571 = vmatpush2.msra.mxu0 0.0
  %2572 = vmatprep.subr.mxu0 0.0
  %2573 = vmatpush2.msra.mxu0 0.0
  %2574 = vmatprep.subr.mxu0 0.0
  %2575 = vmatpush2.msra.mxu0 0.0
  %2576 = vmatprep.subr.mxu0 0.0
  %2577 = vmatpush2.msra.mxu0 0.0
  %2578 = vmatprep.subr.mxu0 0.0
  %2579 = vmatpush2.msra.mxu0 %v2518
  %2580 = vmatprep.subr.mxu0 0.0
  %2581 = vmatpush2.msra.mxu0 %v2515
  %2582 = vmatprep.subr.mxu0 0.0
  %2583 = vmatpush2.msra.mxu0 %v2514
  %2584 = vmatprep.mubr.f32.mxu0 %v59
  %2585 = vmatmul.mubr.f32.gmra.mxu0 %v32
  %v2586 = vpop.f32.mrf.mxu0
  %v2587 = vadd.f32 0.0, %v2586
  %v2588 = vpop.f32.mrf.mxu0
  %2589 = vmatprep.mubr.f32.mxu0 %v62
  %2590 = vmatmul.mubr.f32.gmra.mxu0 %v34
  %v2591 = vpop.f32.mrf.mxu0
  %v2592 = vadd.f32 0.0, %v2591
  %v2593 = vpop.f32.mrf.mxu0
  %2594 = vdwg.mxu0
  %s2595 = scalar_lea.vmem %s0, 2584
  %v2596 = vld [vmem:[%s2595] sm:$0xff]
  %v2597 = vld [vmem:[%s2595 + $0x8] sm:$0xff]
  %v2598 = vld [vmem:[%s2595 + $0x10] sm:$0xff]
  %v2599 = vld [vmem:[%s2595 + $0x18] sm:$0xff]
  %v2600 = vld [vmem:[%s2595 + $0x20] sm:$0xff]
  %v2601 = vld [vmem:[%s2595 + $0x28] sm:$0xff]
  %v2602 = vld [vmem:[%s2595 + $0x30] sm:$0xff]
  %v2603 = vld [vmem:[%s2595 + $0x38] sm:$0xff]
  %v2604 = vld [vmem:[%s2595 + $0x40] sm:$0xff]
  %v2605 = vld [vmem:[%s2595 + $0x48] sm:$0xff]
  %v2606 = vld [vmem:[%s2595 + $0x50] sm:$0xff]
  %v2607 = vld [vmem:[%s2595 + $0x58] sm:$0xff]
  %v2608 = vld [vmem:[%s2595 + $0x60] sm:$0xff]
  %v2609 = vld [vmem:[%s2595 + $0x68] sm:$0xff]
  %v2610 = vld [vmem:[%s2595 + $0x70] sm:$0xff]
  %v2611 = vld [vmem:[%s2595 + $0x78] sm:$0xff]
  %v2612 = vld [vmem:[%s2595 + $0x80] sm:$0xff]
  %v2613 = vld [vmem:[%s2595 + $0x88] sm:$0xff]
  %v2614 = vld [vmem:[%s2595 + $0x90] sm:$0x3f]
  %v2616 = vsel %vm64, %v2614, 0
  %2618 = vmatprep.subr.mxu0 0.0
  %2619 = vmatpush1.msra.mxu0 %v2611
  %2620 = vmatprep.subr.mxu0 0.0
  %2621 = vmatpush1.msra.mxu0 %v2610
  %2622 = vmatprep.subr.mxu0 0.0
  %2623 = vmatpush1.msra.mxu0 %v2609
  %2624 = vmatprep.subr.mxu0 0.0
  %2625 = vmatpush1.msra.mxu0 %v2608
  %2626 = vmatprep.subr.mxu0 0.0
  %2627 = vmatpush1.msra.mxu0 %v2607
  %2628 = vmatprep.subr.mxu0 0.0
  %2629 = vmatpush1.msra.mxu0 %v2606
  %2630 = vmatprep.subr.mxu0 0.0
  %2631 = vmatpush1.msra.mxu0 %v2605
  %2632 = vmatprep.subr.mxu0 0.0
  %2633 = vmatpush1.msra.mxu0 %v2604
  %2634 = vmatprep.subr.mxu0 0.0
  %2635 = vmatpush1.msra.mxu0 %v2603
  %2636 = vmatprep.subr.mxu0 0.0
  %2637 = vmatpush1.msra.mxu0 %v2602
  %2638 = vmatprep.subr.mxu0 0.0
  %2639 = vmatpush1.msra.mxu0 %v2601
  %2640 = vmatprep.subr.mxu0 0.0
  %2641 = vmatpush1.msra.mxu0 %v2600
  %2642 = vmatprep.subr.mxu0 0.0
  %2643 = vmatpush1.msra.mxu0 %v2599
  %2644 = vmatprep.subr.mxu0 0.0
  %2645 = vmatpush1.msra.mxu0 %v2598
  %2646 = vmatprep.subr.mxu0 0.0
  %2647 = vmatpush1.msra.mxu0 %v2597
  %2648 = vmatprep.subr.mxu0 0.0
  %2649 = vmatpush1.msra.mxu0 %v2596
  %2650 = vmatprep.subr.mxu0 0.0
  %2651 = vmatpush2.msra.mxu0 0.0
  %2652 = vmatprep.subr.mxu0 0.0
  %2653 = vmatpush2.msra.mxu0 0.0
  %2654 = vmatprep.subr.mxu0 0.0
  %2655 = vmatpush2.msra.mxu0 0.0
  %2656 = vmatprep.subr.mxu0 0.0
  %2657 = vmatpush2.msra.mxu0 0.0
  %2658 = vmatprep.subr.mxu0 0.0
  %2659 = vmatpush2.msra.mxu0 0.0
  %2660 = vmatprep.subr.mxu0 0.0
  %2661 = vmatpush2.msra.mxu0 0.0
  %2662 = vmatprep.subr.mxu0 0.0
  %2663 = vmatpush2.msra.mxu0 0.0
  %2664 = vmatprep.subr.mxu0 0.0
  %2665 = vmatpush2.msra.mxu0 0.0
  %2666 = vmatprep.subr.mxu0 0.0
  %2667 = vmatpush2.msra.mxu0 0.0
  %2668 = vmatprep.subr.mxu0 0.0
  %2669 = vmatpush2.msra.mxu0 0.0
  %2670 = vmatprep.subr.mxu0 0.0
  %2671 = vmatpush2.msra.mxu0 0.0
  %2672 = vmatprep.subr.mxu0 0.0
  %2673 = vmatpush2.msra.mxu0 0.0
  %2674 = vmatprep.subr.mxu0 0.0
  %2675 = vmatpush2.msra.mxu0 0.0
  %2676 = vmatprep.subr.mxu0 0.0
  %2677 = vmatpush2.msra.mxu0 %v2616
  %2678 = vmatprep.subr.mxu0 0.0
  %2679 = vmatpush2.msra.mxu0 %v2613
  %2680 = vmatprep.subr.mxu0 0.0
  %2681 = vmatpush2.msra.mxu0 %v2612
  %2682 = vmatprep.mubr.f32.mxu0 %v59
  %2683 = vmatmul.mubr.f32.gmra.mxu0 %v32
  %v2684 = vpop.f32.mrf.mxu0
  %v2685 = vadd.f32 0.0, %v2684
  %v2686 = vpop.f32.mrf.mxu0
  %2687 = vmatprep.mubr.f32.mxu0 %v62
  %2688 = vmatmul.mubr.f32.gmra.mxu0 %v34
  %v2689 = vpop.f32.mrf.mxu0
  %v2690 = vadd.f32 0.0, %v2689
  %v2691 = vpop.f32.mrf.mxu0
  %2692 = vdwg.mxu0
  %v2693 = vmax.f32 %v2587, %v2685
  %v2694 = vmax.f32 %v2592, %v2690
  %s2695 = scalar_lea.vmem %s0, 2736
  %v2696 = vld [vmem:[%s2695] sm:$0xff]
  %v2697 = vld [vmem:[%s2695 + $0x8] sm:$0xff]
  %v2698 = vld [vmem:[%s2695 + $0x10] sm:$0xff]
  %v2699 = vld [vmem:[%s2695 + $0x18] sm:$0xff]
  %v2700 = vld [vmem:[%s2695 + $0x20] sm:$0xff]
  %v2701 = vld [vmem:[%s2695 + $0x28] sm:$0xff]
  %v2702 = vld [vmem:[%s2695 + $0x30] sm:$0xff]
  %v2703 = vld [vmem:[%s2695 + $0x38] sm:$0xff]
  %v2704 = vld [vmem:[%s2695 + $0x40] sm:$0xff]
  %v2705 = vld [vmem:[%s2695 + $0x48] sm:$0xff]
  %v2706 = vld [vmem:[%s2695 + $0x50] sm:$0xff]
  %v2707 = vld [vmem:[%s2695 + $0x58] sm:$0xff]
  %v2708 = vld [vmem:[%s2695 + $0x60] sm:$0xff]
  %v2709 = vld [vmem:[%s2695 + $0x68] sm:$0xff]
  %v2710 = vld [vmem:[%s2695 + $0x70] sm:$0xff]
  %v2711 = vld [vmem:[%s2695 + $0x78] sm:$0xff]
  %v2712 = vld [vmem:[%s2695 + $0x80] sm:$0xff]
  %v2713 = vld [vmem:[%s2695 + $0x88] sm:$0xff]
  %v2714 = vld [vmem:[%s2695 + $0x90] sm:$0x3f]
  %v2716 = vsel %vm64, %v2714, 0
  %2718 = vmatprep.subr.mxu0 0.0
  %2719 = vmatpush1.msra.mxu0 %v2711
  %2720 = vmatprep.subr.mxu0 0.0
  %2721 = vmatpush1.msra.mxu0 %v2710
  %2722 = vmatprep.subr.mxu0 0.0
  %2723 = vmatpush1.msra.mxu0 %v2709
  %2724 = vmatprep.subr.mxu0 0.0
  %2725 = vmatpush1.msra.mxu0 %v2708
  %2726 = vmatprep.subr.mxu0 0.0
  %2727 = vmatpush1.msra.mxu0 %v2707
  %2728 = vmatprep.subr.mxu0 0.0
  %2729 = vmatpush1.msra.mxu0 %v2706
  %2730 = vmatprep.subr.mxu0 0.0
  %2731 = vmatpush1.msra.mxu0 %v2705
  %2732 = vmatprep.subr.mxu0 0.0
  %2733 = vmatpush1.msra.mxu0 %v2704
  %2734 = vmatprep.subr.mxu0 0.0
  %2735 = vmatpush1.msra.mxu0 %v2703
  %2736 = vmatprep.subr.mxu0 0.0
  %2737 = vmatpush1.msra.mxu0 %v2702
  %2738 = vmatprep.subr.mxu0 0.0
  %2739 = vmatpush1.msra.mxu0 %v2701
  %2740 = vmatprep.subr.mxu0 0.0
  %2741 = vmatpush1.msra.mxu0 %v2700
  %2742 = vmatprep.subr.mxu0 0.0
  %2743 = vmatpush1.msra.mxu0 %v2699
  %2744 = vmatprep.subr.mxu0 0.0
  %2745 = vmatpush1.msra.mxu0 %v2698
  %2746 = vmatprep.subr.mxu0 0.0
  %2747 = vmatpush1.msra.mxu0 %v2697
  %2748 = vmatprep.subr.mxu0 0.0
  %2749 = vmatpush1.msra.mxu0 %v2696
  %2750 = vmatprep.subr.mxu0 0.0
  %2751 = vmatpush2.msra.mxu0 0.0
  %2752 = vmatprep.subr.mxu0 0.0
  %2753 = vmatpush2.msra.mxu0 0.0
  %2754 = vmatprep.subr.mxu0 0.0
  %2755 = vmatpush2.msra.mxu0 0.0
  %2756 = vmatprep.subr.mxu0 0.0
  %2757 = vmatpush2.msra.mxu0 0.0
  %2758 = vmatprep.subr.mxu0 0.0
  %2759 = vmatpush2.msra.mxu0 0.0
  %2760 = vmatprep.subr.mxu0 0.0
  %2761 = vmatpush2.msra.mxu0 0.0
  %2762 = vmatprep.subr.mxu0 0.0
  %2763 = vmatpush2.msra.mxu0 0.0
  %2764 = vmatprep.subr.mxu0 0.0
  %2765 = vmatpush2.msra.mxu0 0.0
  %2766 = vmatprep.subr.mxu0 0.0
  %2767 = vmatpush2.msra.mxu0 0.0
  %2768 = vmatprep.subr.mxu0 0.0
  %2769 = vmatpush2.msra.mxu0 0.0
  %2770 = vmatprep.subr.mxu0 0.0
  %2771 = vmatpush2.msra.mxu0 0.0
  %2772 = vmatprep.subr.mxu0 0.0
  %2773 = vmatpush2.msra.mxu0 0.0
  %2774 = vmatprep.subr.mxu0 0.0
  %2775 = vmatpush2.msra.mxu0 0.0
  %2776 = vmatprep.subr.mxu0 0.0
  %2777 = vmatpush2.msra.mxu0 %v2716
  %2778 = vmatprep.subr.mxu0 0.0
  %2779 = vmatpush2.msra.mxu0 %v2713
  %2780 = vmatprep.subr.mxu0 0.0
  %2781 = vmatpush2.msra.mxu0 %v2712
  %2782 = vmatprep.mubr.f32.mxu0 %v59
  %2783 = vmatmul.mubr.f32.gmra.mxu0 %v32
  %v2784 = vpop.f32.mrf.mxu0
  %v2785 = vadd.f32 0.0, %v2784
  %v2786 = vpop.f32.mrf.mxu0
  %2787 = vmatprep.mubr.f32.mxu0 %v62
  %2788 = vmatmul.mubr.f32.gmra.mxu0 %v34
  %v2789 = vpop.f32.mrf.mxu0
  %v2790 = vadd.f32 0.0, %v2789
  %v2791 = vpop.f32.mrf.mxu0
  %2792 = vdwg.mxu0
  %v2793 = vmax.f32 %v2693, %v2785
  %v2794 = vmax.f32 %v2694, %v2790
  %s2795 = scalar_lea.vmem %s0, 2888
  %v2796 = vld [vmem:[%s2795] sm:$0xff]
  %v2797 = vld [vmem:[%s2795 + $0x8] sm:$0xff]
  %v2798 = vld [vmem:[%s2795 + $0x10] sm:$0xff]
  %v2799 = vld [vmem:[%s2795 + $0x18] sm:$0xff]
  %v2800 = vld [vmem:[%s2795 + $0x20] sm:$0xff]
  %v2801 = vld [vmem:[%s2795 + $0x28] sm:$0xff]
  %v2802 = vld [vmem:[%s2795 + $0x30] sm:$0xff]
  %v2803 = vld [vmem:[%s2795 + $0x38] sm:$0xff]
  %v2804 = vld [vmem:[%s2795 + $0x40] sm:$0xff]
  %v2805 = vld [vmem:[%s2795 + $0x48] sm:$0xff]
  %v2806 = vld [vmem:[%s2795 + $0x50] sm:$0xff]
  %v2807 = vld [vmem:[%s2795 + $0x58] sm:$0xff]
  %v2808 = vld [vmem:[%s2795 + $0x60] sm:$0xff]
  %v2809 = vld [vmem:[%s2795 + $0x68] sm:$0xff]
  %v2810 = vld [vmem:[%s2795 + $0x70] sm:$0xff]
  %v2811 = vld [vmem:[%s2795 + $0x78] sm:$0xff]
  %v2812 = vld [vmem:[%s2795 + $0x80] sm:$0xff]
  %v2813 = vld [vmem:[%s2795 + $0x88] sm:$0xff]
  %v2814 = vld [vmem:[%s2795 + $0x90] sm:$0x3f]
  %v2816 = vsel %vm64, %v2814, 0
  %2818 = vmatprep.subr.mxu0 0.0
  %2819 = vmatpush1.msra.mxu0 %v2811
  %2820 = vmatprep.subr.mxu0 0.0
  %2821 = vmatpush1.msra.mxu0 %v2810
  %2822 = vmatprep.subr.mxu0 0.0
  %2823 = vmatpush1.msra.mxu0 %v2809
  %2824 = vmatprep.subr.mxu0 0.0
  %2825 = vmatpush1.msra.mxu0 %v2808
  %2826 = vmatprep.subr.mxu0 0.0
  %2827 = vmatpush1.msra.mxu0 %v2807
  %2828 = vmatprep.subr.mxu0 0.0
  %2829 = vmatpush1.msra.mxu0 %v2806
  %2830 = vmatprep.subr.mxu0 0.0
  %2831 = vmatpush1.msra.mxu0 %v2805
  %2832 = vmatprep.subr.mxu0 0.0
  %2833 = vmatpush1.msra.mxu0 %v2804
  %2834 = vmatprep.subr.mxu0 0.0
  %2835 = vmatpush1.msra.mxu0 %v2803
  %2836 = vmatprep.subr.mxu0 0.0
  %2837 = vmatpush1.msra.mxu0 %v2802
  %2838 = vmatprep.subr.mxu0 0.0
  %2839 = vmatpush1.msra.mxu0 %v2801
  %2840 = vmatprep.subr.mxu0 0.0
  %2841 = vmatpush1.msra.mxu0 %v2800
  %2842 = vmatprep.subr.mxu0 0.0
  %2843 = vmatpush1.msra.mxu0 %v2799
  %2844 = vmatprep.subr.mxu0 0.0
  %2845 = vmatpush1.msra.mxu0 %v2798
  %2846 = vmatprep.subr.mxu0 0.0
  %2847 = vmatpush1.msra.mxu0 %v2797
  %2848 = vmatprep.subr.mxu0 0.0
  %2849 = vmatpush1.msra.mxu0 %v2796
  %2850 = vmatprep.subr.mxu0 0.0
  %2851 = vmatpush2.msra.mxu0 0.0
  %2852 = vmatprep.subr.mxu0 0.0
  %2853 = vmatpush2.msra.mxu0 0.0
  %2854 = vmatprep.subr.mxu0 0.0
  %2855 = vmatpush2.msra.mxu0 0.0
  %2856 = vmatprep.subr.mxu0 0.0
  %2857 = vmatpush2.msra.mxu0 0.0
  %2858 = vmatprep.subr.mxu0 0.0
  %2859 = vmatpush2.msra.mxu0 0.0
  %2860 = vmatprep.subr.mxu0 0.0
  %2861 = vmatpush2.msra.mxu0 0.0
  %2862 = vmatprep.subr.mxu0 0.0
  %2863 = vmatpush2.msra.mxu0 0.0
  %2864 = vmatprep.subr.mxu0 0.0
  %2865 = vmatpush2.msra.mxu0 0.0
  %2866 = vmatprep.subr.mxu0 0.0
  %2867 = vmatpush2.msra.mxu0 0.0
  %2868 = vmatprep.subr.mxu0 0.0
  %2869 = vmatpush2.msra.mxu0 0.0
  %2870 = vmatprep.subr.mxu0 0.0
  %2871 = vmatpush2.msra.mxu0 0.0
  %2872 = vmatprep.subr.mxu0 0.0
  %2873 = vmatpush2.msra.mxu0 0.0
  %2874 = vmatprep.subr.mxu0 0.0
  %2875 = vmatpush2.msra.mxu0 0.0
  %2876 = vmatprep.subr.mxu0 0.0
  %2877 = vmatpush2.msra.mxu0 %v2816
  %2878 = vmatprep.subr.mxu0 0.0
  %2879 = vmatpush2.msra.mxu0 %v2813
  %2880 = vmatprep.subr.mxu0 0.0
  %2881 = vmatpush2.msra.mxu0 %v2812
  %2882 = vmatprep.mubr.f32.mxu0 %v59
  %2883 = vmatmul.mubr.f32.gmra.mxu0 %v32
  %v2884 = vpop.f32.mrf.mxu0
  %v2885 = vadd.f32 0.0, %v2884
  %v2886 = vpop.f32.mrf.mxu0
  %2887 = vmatprep.mubr.f32.mxu0 %v62
  %2888 = vmatmul.mubr.f32.gmra.mxu0 %v34
  %v2889 = vpop.f32.mrf.mxu0
  %v2890 = vadd.f32 0.0, %v2889
  %v2891 = vpop.f32.mrf.mxu0
  %2892 = vdwg.mxu0
  %v2893 = vmax.f32 %v2793, %v2885
  %v2894 = vmax.f32 %v2794, %v2890
  %v2895 = vadd.f32 %v2893, %v446
  %v2896 = vadd.f32 %v2894, %v451
  %v2897 = vmax.f32 %v2895, 0.0
  %v2898 = vmax.f32 %v2896, 0.0
  %s2899 = scalar_lea.vmem %s3, 480
  %v2900 = vld [vmem:[%s2899] sm:$0xff]
  %v2901 = vld [vmem:[%s2899 + $0x8] sm:$0xff]
  %v2902 = vld [vmem:[%s2899 + $0x10] sm:$0xff]
  %v2903 = vld [vmem:[%s2899 + $0x18] sm:$0xff]
  %v2904 = vld [vmem:[%s2899 + $0x20] sm:$0xff]
  %v2905 = vld [vmem:[%s2899 + $0x28] sm:$0xff]
  %v2906 = vld [vmem:[%s2899 + $0x30] sm:$0xff]
  %v2907 = vld [vmem:[%s2899 + $0x38] sm:$0xff]
  %v2908 = vld [vmem:[%s2899 + $0x40] sm:$0xff]
  %v2909 = vld [vmem:[%s2899 + $0x48] sm:$0xff]
  %v2910 = vld [vmem:[%s2899 + $0x50] sm:$0xff]
  %v2911 = vld [vmem:[%s2899 + $0x58] sm:$0xff]
  %v2912 = vld [vmem:[%s2899 + $0x60] sm:$0xff]
  %v2913 = vld [vmem:[%s2899 + $0x68] sm:$0xff]
  %v2914 = vld [vmem:[%s2899 + $0x70] sm:$0xff]
  %v2916 = vsel %vm890, %v2900, 0
  %v2919 = vsel %vm890, %v2901, 0
  %v2922 = vsel %vm890, %v2902, 0
  %v2925 = vsel %vm890, %v2903, 0
  %v2928 = vsel %vm890, %v2904, 0
  %v2931 = vsel %vm890, %v2905, 0
  %v2934 = vsel %vm890, %v2906, 0
  %v2937 = vsel %vm890, %v2907, 0
  %v2940 = vsel %vm890, %v2908, 0
  %v2943 = vsel %vm890, %v2909, 0
  %v2946 = vsel %vm890, %v2910, 0
  %v2949 = vsel %vm890, %v2911, 0
  %v2952 = vsel %vm890, %v2912, 0
  %v2955 = vsel %vm890, %v2913, 0
  %v2958 = vsel %vm890, %v2914, 0
  %2960 = vmatprep.subr.mxu0 0.0
  %2961 = vmatpush1.msra.mxu0 0.0
  %2962 = vmatprep.subr.mxu0 0.0
  %2963 = vmatpush1.msra.mxu0 0.0
  %2964 = vmatprep.subr.mxu0 0.0
  %2965 = vmatpush1.msra.mxu0 0.0
  %2966 = vmatprep.subr.mxu0 0.0
  %2967 = vmatpush1.msra.mxu0 0.0
  %2968 = vmatprep.subr.mxu0 0.0
  %2969 = vmatpush1.msra.mxu0 0.0
  %2970 = vmatprep.subr.mxu0 0.0
  %2971 = vmatpush1.msra.mxu0 0.0
  %2972 = vmatprep.subr.mxu0 0.0
  %2973 = vmatpush1.msra.mxu0 0.0
  %2974 = vmatprep.subr.mxu0 0.0
  %2975 = vmatpush1.msra.mxu0 0.0
  %2976 = vmatprep.subr.mxu0 0.0
  %2977 = vmatpush1.msra.mxu0 0.0
  %2978 = vmatprep.subr.mxu0 0.0
  %2979 = vmatpush1.msra.mxu0 0.0
  %2980 = vmatprep.subr.mxu0 0.0
  %2981 = vmatpush1.msra.mxu0 0.0
  %2982 = vmatprep.subr.mxu0 0.0
  %2983 = vmatpush1.msra.mxu0 0.0
  %2984 = vmatprep.subr.mxu0 0.0
  %2985 = vmatpush1.msra.mxu0 0.0
  %2986 = vmatprep.subr.mxu0 0.0
  %2987 = vmatpush1.msra.mxu0 0.0
  %2988 = vmatprep.subr.mxu0 0.0
  %2989 = vmatpush1.msra.mxu0 %v2898
  %2990 = vmatprep.subr.mxu0 0.0
  %2991 = vmatpush1.msra.mxu0 %v2897
  %2992 = vmatprep.subr.mxu0 0.0
  %2993 = vmatpush2.msra.mxu0 0.0
  %2994 = vmatprep.subr.mxu0 0.0
  %2995 = vmatpush2.msra.mxu0 0.0
  %2996 = vmatprep.subr.mxu0 0.0
  %2997 = vmatpush2.msra.mxu0 0.0
  %2998 = vmatprep.subr.mxu0 0.0
  %2999 = vmatpush2.msra.mxu0 0.0
  %3000 = vmatprep.subr.mxu0 0.0
  %3001 = vmatpush2.msra.mxu0 0.0
  %3002 = vmatprep.subr.mxu0 0.0
  %3003 = vmatpush2.msra.mxu0 0.0
  %3004 = vmatprep.subr.mxu0 0.0
  %3005 = vmatpush2.msra.mxu0 0.0
  %3006 = vmatprep.subr.mxu0 0.0
  %3007 = vmatpush2.msra.mxu0 0.0
  %3008 = vmatprep.subr.mxu0 0.0
  %3009 = vmatpush2.msra.mxu0 0.0
  %3010 = vmatprep.subr.mxu0 0.0
  %3011 = vmatpush2.msra.mxu0 0.0
  %3012 = vmatprep.subr.mxu0 0.0
  %3013 = vmatpush2.msra.mxu0 0.0
  %3014 = vmatprep.subr.mxu0 0.0
  %3015 = vmatpush2.msra.mxu0 0.0
  %3016 = vmatprep.subr.mxu0 0.0
  %3017 = vmatpush2.msra.mxu0 0.0
  %3018 = vmatprep.subr.mxu0 0.0
  %3019 = vmatpush2.msra.mxu0 0.0
  %3020 = vmatprep.subr.mxu0 0.0
  %3021 = vmatpush2.msra.mxu0 0.0
  %3022 = vmatprep.subr.mxu0 0.0
  %3023 = vmatpush2.msra.mxu0 0.0
  %3024 = vmatprep.mubr.f32.mxu0 0.0
  %3025 = vmatmul.mubr.f32.gmra.mxu0 %v2916
  %v3026 = vpop.f32.mrf.mxu0
  %v3027 = vadd.f32 0.0, %v3026
  %v3028 = vpop.f32.mrf.mxu0
  %3029 = vmatprep.mubr.f32.mxu0 0.0
  %3030 = vmatmul.mubr.f32.gmra.mxu0 %v2919
  %v3031 = vpop.f32.mrf.mxu0
  %v3032 = vadd.f32 0.0, %v3031
  %v3033 = vpop.f32.mrf.mxu0
  %3034 = vmatprep.mubr.f32.mxu0 0.0
  %3035 = vmatmul.mubr.f32.gmra.mxu0 %v2922
  %v3036 = vpop.f32.mrf.mxu0
  %v3037 = vadd.f32 0.0, %v3036
  %v3038 = vpop.f32.mrf.mxu0
  %3039 = vmatprep.mubr.f32.mxu0 0.0
  %3040 = vmatmul.mubr.f32.gmra.mxu0 %v2925
  %v3041 = vpop.f32.mrf.mxu0
  %v3042 = vadd.f32 0.0, %v3041
  %v3043 = vpop.f32.mrf.mxu0
  %3044 = vmatprep.mubr.f32.mxu0 0.0
  %3045 = vmatmul.mubr.f32.gmra.mxu0 %v2928
  %v3046 = vpop.f32.mrf.mxu0
  %v3047 = vadd.f32 0.0, %v3046
  %v3048 = vpop.f32.mrf.mxu0
  %3049 = vmatprep.mubr.f32.mxu0 0.0
  %3050 = vmatmul.mubr.f32.gmra.mxu0 %v2931
  %v3051 = vpop.f32.mrf.mxu0
  %v3052 = vadd.f32 0.0, %v3051
  %v3053 = vpop.f32.mrf.mxu0
  %3054 = vmatprep.mubr.f32.mxu0 0.0
  %3055 = vmatmul.mubr.f32.gmra.mxu0 %v2934
  %v3056 = vpop.f32.mrf.mxu0
  %v3057 = vadd.f32 0.0, %v3056
  %v3058 = vpop.f32.mrf.mxu0
  %3059 = vmatprep.mubr.f32.mxu0 0.0
  %3060 = vmatmul.mubr.f32.gmra.mxu0 %v2937
  %v3061 = vpop.f32.mrf.mxu0
  %v3062 = vadd.f32 0.0, %v3061
  %v3063 = vpop.f32.mrf.mxu0
  %3064 = vmatprep.mubr.f32.mxu0 0.0
  %3065 = vmatmul.mubr.f32.gmra.mxu0 %v2940
  %v3066 = vpop.f32.mrf.mxu0
  %v3067 = vadd.f32 0.0, %v3066
  %v3068 = vpop.f32.mrf.mxu0
  %3069 = vmatprep.mubr.f32.mxu0 0.0
  %3070 = vmatmul.mubr.f32.gmra.mxu0 %v2943
  %v3071 = vpop.f32.mrf.mxu0
  %v3072 = vadd.f32 0.0, %v3071
  %v3073 = vpop.f32.mrf.mxu0
  %3074 = vmatprep.mubr.f32.mxu0 0.0
  %3075 = vmatmul.mubr.f32.gmra.mxu0 %v2946
  %v3076 = vpop.f32.mrf.mxu0
  %v3077 = vadd.f32 0.0, %v3076
  %v3078 = vpop.f32.mrf.mxu0
  %3079 = vmatprep.mubr.f32.mxu0 0.0
  %3080 = vmatmul.mubr.f32.gmra.mxu0 %v2949
  %v3081 = vpop.f32.mrf.mxu0
  %v3082 = vadd.f32 0.0, %v3081
  %v3083 = vpop.f32.mrf.mxu0
  %3084 = vmatprep.mubr.f32.mxu0 0.0
  %3085 = vmatmul.mubr.f32.gmra.mxu0 %v2952
  %v3086 = vpop.f32.mrf.mxu0
  %v3087 = vadd.f32 0.0, %v3086
  %v3088 = vpop.f32.mrf.mxu0
  %3089 = vmatprep.mubr.f32.mxu0 0.0
  %3090 = vmatmul.mubr.f32.gmra.mxu0 %v2955
  %v3091 = vpop.f32.mrf.mxu0
  %v3092 = vadd.f32 0.0, %v3091
  %v3093 = vpop.f32.mrf.mxu0
  %3094 = vmatprep.mubr.f32.mxu0 0.0
  %3095 = vmatmul.mubr.f32.gmra.mxu0 %v2958
  %v3096 = vpop.f32.mrf.mxu0
  %v3097 = vadd.f32 0.0, %v3096
  %v3098 = vpop.f32.mrf.mxu0
  %3099 = vdwg.mxu0
  %v3100 = vadd.f32 %v2482, %v3027
  %v3101 = vadd.f32 %v2483, %v3032
  %v3102 = vadd.f32 %v2484, %v3037
  %v3103 = vadd.f32 %v2485, %v3042
  %v3104 = vadd.f32 %v2486, %v3047
  %v3105 = vadd.f32 %v2487, %v3052
  %v3106 = vadd.f32 %v2488, %v3057
  %v3107 = vadd.f32 %v2489, %v3062
  %v3108 = vadd.f32 %v2490, %v3067
  %v3109 = vadd.f32 %v2491, %v3072
  %v3110 = vadd.f32 %v2492, %v3077
  %v3111 = vadd.f32 %v2493, %v3082
  %v3112 = vadd.f32 %v2494, %v3087
  %v3113 = vadd.f32 %v2495, %v3092
  %v3114 = vadd.f32 %v2496, %v3097
  %s3115 = scalar_lea.vmem %s0, 3040
  %v3116 = vld [vmem:[%s3115] sm:$0xff]
  %v3117 = vld [vmem:[%s3115 + $0x8] sm:$0xff]
  %v3118 = vld [vmem:[%s3115 + $0x10] sm:$0xff]
  %v3119 = vld [vmem:[%s3115 + $0x18] sm:$0xff]
  %v3120 = vld [vmem:[%s3115 + $0x20] sm:$0xff]
  %v3121 = vld [vmem:[%s3115 + $0x28] sm:$0xff]
  %v3122 = vld [vmem:[%s3115 + $0x30] sm:$0xff]
  %v3123 = vld [vmem:[%s3115 + $0x38] sm:$0xff]
  %v3124 = vld [vmem:[%s3115 + $0x40] sm:$0xff]
  %v3125 = vld [vmem:[%s3115 + $0x48] sm:$0xff]
  %v3126 = vld [vmem:[%s3115 + $0x50] sm:$0xff]
  %v3127 = vld [vmem:[%s3115 + $0x58] sm:$0xff]
  %v3128 = vld [vmem:[%s3115 + $0x60] sm:$0xff]
  %v3129 = vld [vmem:[%s3115 + $0x68] sm:$0xff]
  %v3130 = vld [vmem:[%s3115 + $0x70] sm:$0xff]
  %v3131 = vld [vmem:[%s3115 + $0x78] sm:$0xff]
  %v3132 = vld [vmem:[%s3115 + $0x80] sm:$0xff]
  %v3133 = vld [vmem:[%s3115 + $0x88] sm:$0xff]
  %v3134 = vld [vmem:[%s3115 + $0x90] sm:$0x3f]
  %v3136 = vsel %vm64, %v3134, 0
  %3138 = vmatprep.subr.mxu0 0.0
  %3139 = vmatpush1.msra.mxu0 %v3131
  %3140 = vmatprep.subr.mxu0 0.0
  %3141 = vmatpush1.msra.mxu0 %v3130
  %3142 = vmatprep.subr.mxu0 0.0
  %3143 = vmatpush1.msra.mxu0 %v3129
  %3144 = vmatprep.subr.mxu0 0.0
  %3145 = vmatpush1.msra.mxu0 %v3128
  %3146 = vmatprep.subr.mxu0 0.0
  %3147 = vmatpush1.msra.mxu0 %v3127
  %3148 = vmatprep.subr.mxu0 0.0
  %3149 = vmatpush1.msra.mxu0 %v3126
  %3150 = vmatprep.subr.mxu0 0.0
  %3151 = vmatpush1.msra.mxu0 %v3125
  %3152 = vmatprep.subr.mxu0 0.0
  %3153 = vmatpush1.msra.mxu0 %v3124
  %3154 = vmatprep.subr.mxu0 0.0
  %3155 = vmatpush1.msra.mxu0 %v3123
  %3156 = vmatprep.subr.mxu0 0.0
  %3157 = vmatpush1.msra.mxu0 %v3122
  %3158 = vmatprep.subr.mxu0 0.0
  %3159 = vmatpush1.msra.mxu0 %v3121
  %3160 = vmatprep.subr.mxu0 0.0
  %3161 = vmatpush1.msra.mxu0 %v3120
  %3162 = vmatprep.subr.mxu0 0.0
  %3163 = vmatpush1.msra.mxu0 %v3119
  %3164 = vmatprep.subr.mxu0 0.0
  %3165 = vmatpush1.msra.mxu0 %v3118
  %3166 = vmatprep.subr.mxu0 0.0
  %3167 = vmatpush1.msra.mxu0 %v3117
  %3168 = vmatprep.subr.mxu0 0.0
  %3169 = vmatpush1.msra.mxu0 %v3116
  %3170 = vmatprep.subr.mxu0 0.0
  %3171 = vmatpush2.msra.mxu0 0.0
  %3172 = vmatprep.subr.mxu0 0.0
  %3173 = vmatpush2.msra.mxu0 0.0
  %3174 = vmatprep.subr.mxu0 0.0
  %3175 = vmatpush2.msra.mxu0 0.0
  %3176 = vmatprep.subr.mxu0 0.0
  %3177 = vmatpush2.msra.mxu0 0.0
  %3178 = vmatprep.subr.mxu0 0.0
  %3179 = vmatpush2.msra.mxu0 0.0
  %3180 = vmatprep.subr.mxu0 0.0
  %3181 = vmatpush2.msra.mxu0 0.0
  %3182 = vmatprep.subr.mxu0 0.0
  %3183 = vmatpush2.msra.mxu0 0.0
  %3184 = vmatprep.subr.mxu0 0.0
  %3185 = vmatpush2.msra.mxu0 0.0
  %3186 = vmatprep.subr.mxu0 0.0
  %3187 = vmatpush2.msra.mxu0 0.0
  %3188 = vmatprep.subr.mxu0 0.0
  %3189 = vmatpush2.msra.mxu0 0.0
  %3190 = vmatprep.subr.mxu0 0.0
  %3191 = vmatpush2.msra.mxu0 0.0
  %3192 = vmatprep.subr.mxu0 0.0
  %3193 = vmatpush2.msra.mxu0 0.0
  %3194 = vmatprep.subr.mxu0 0.0
  %3195 = vmatpush2.msra.mxu0 0.0
  %3196 = vmatprep.subr.mxu0 0.0
  %3197 = vmatpush2.msra.mxu0 %v3136
  %3198 = vmatprep.subr.mxu0 0.0
  %3199 = vmatpush2.msra.mxu0 %v3133
  %3200 = vmatprep.subr.mxu0 0.0
  %3201 = vmatpush2.msra.mxu0 %v3132
  %3202 = vmatprep.mubr.f32.mxu0 %v59
  %3203 = vmatmul.mubr.f32.gmra.mxu0 %v32
  %v3204 = vpop.f32.mrf.mxu0
  %v3205 = vadd.f32 0.0, %v3204
  %v3206 = vpop.f32.mrf.mxu0
  %3207 = vmatprep.mubr.f32.mxu0 %v62
  %3208 = vmatmul.mubr.f32.gmra.mxu0 %v34
  %v3209 = vpop.f32.mrf.mxu0
  %v3210 = vadd.f32 0.0, %v3209
  %v3211 = vpop.f32.mrf.mxu0
  %3212 = vdwg.mxu0
  %s3213 = scalar_lea.vmem %s0, 3192
  %v3214 = vld [vmem:[%s3213] sm:$0xff]
  %v3215 = vld [vmem:[%s3213 + $0x8] sm:$0xff]
  %v3216 = vld [vmem:[%s3213 + $0x10] sm:$0xff]
  %v3217 = vld [vmem:[%s3213 + $0x18] sm:$0xff]
  %v3218 = vld [vmem:[%s3213 + $0x20] sm:$0xff]
  %v3219 = vld [vmem:[%s3213 + $0x28] sm:$0xff]
  %v3220 = vld [vmem:[%s3213 + $0x30] sm:$0xff]
  %v3221 = vld [vmem:[%s3213 + $0x38] sm:$0xff]
  %v3222 = vld [vmem:[%s3213 + $0x40] sm:$0xff]
  %v3223 = vld [vmem:[%s3213 + $0x48] sm:$0xff]
  %v3224 = vld [vmem:[%s3213 + $0x50] sm:$0xff]
  %v3225 = vld [vmem:[%s3213 + $0x58] sm:$0xff]
  %v3226 = vld [vmem:[%s3213 + $0x60] sm:$0xff]
  %v3227 = vld [vmem:[%s3213 + $0x68] sm:$0xff]
  %v3228 = vld [vmem:[%s3213 + $0x70] sm:$0xff]
  %v3229 = vld [vmem:[%s3213 + $0x78] sm:$0xff]
  %v3230 = vld [vmem:[%s3213 + $0x80] sm:$0xff]
  %v3231 = vld [vmem:[%s3213 + $0x88] sm:$0xff]
  %v3232 = vld [vmem:[%s3213 + $0x90] sm:$0x3f]
  %v3234 = vsel %vm64, %v3232, 0
  %3236 = vmatprep.subr.mxu0 0.0
  %3237 = vmatpush1.msra.mxu0 %v3229
  %3238 = vmatprep.subr.mxu0 0.0
  %3239 = vmatpush1.msra.mxu0 %v3228
  %3240 = vmatprep.subr.mxu0 0.0
  %3241 = vmatpush1.msra.mxu0 %v3227
  %3242 = vmatprep.subr.mxu0 0.0
  %3243 = vmatpush1.msra.mxu0 %v3226
  %3244 = vmatprep.subr.mxu0 0.0
  %3245 = vmatpush1.msra.mxu0 %v3225
  %3246 = vmatprep.subr.mxu0 0.0
  %3247 = vmatpush1.msra.mxu0 %v3224
  %3248 = vmatprep.subr.mxu0 0.0
  %3249 = vmatpush1.msra.mxu0 %v3223
  %3250 = vmatprep.subr.mxu0 0.0
  %3251 = vmatpush1.msra.mxu0 %v3222
  %3252 = vmatprep.subr.mxu0 0.0
  %3253 = vmatpush1.msra.mxu0 %v3221
  %3254 = vmatprep.subr.mxu0 0.0
  %3255 = vmatpush1.msra.mxu0 %v3220
  %3256 = vmatprep.subr.mxu0 0.0
  %3257 = vmatpush1.msra.mxu0 %v3219
  %3258 = vmatprep.subr.mxu0 0.0
  %3259 = vmatpush1.msra.mxu0 %v3218
  %3260 = vmatprep.subr.mxu0 0.0
  %3261 = vmatpush1.msra.mxu0 %v3217
  %3262 = vmatprep.subr.mxu0 0.0
  %3263 = vmatpush1.msra.mxu0 %v3216
  %3264 = vmatprep.subr.mxu0 0.0
  %3265 = vmatpush1.msra.mxu0 %v3215
  %3266 = vmatprep.subr.mxu0 0.0
  %3267 = vmatpush1.msra.mxu0 %v3214
  %3268 = vmatprep.subr.mxu0 0.0
  %3269 = vmatpush2.msra.mxu0 0.0
  %3270 = vmatprep.subr.mxu0 0.0
  %3271 = vmatpush2.msra.mxu0 0.0
  %3272 = vmatprep.subr.mxu0 0.0
  %3273 = vmatpush2.msra.mxu0 0.0
  %3274 = vmatprep.subr.mxu0 0.0
  %3275 = vmatpush2.msra.mxu0 0.0
  %3276 = vmatprep.subr.mxu0 0.0
  %3277 = vmatpush2.msra.mxu0 0.0
  %3278 = vmatprep.subr.mxu0 0.0
  %3279 = vmatpush2.msra.mxu0 0.0
  %3280 = vmatprep.subr.mxu0 0.0
  %3281 = vmatpush2.msra.mxu0 0.0
  %3282 = vmatprep.subr.mxu0 0.0
  %3283 = vmatpush2.msra.mxu0 0.0
  %3284 = vmatprep.subr.mxu0 0.0
  %3285 = vmatpush2.msra.mxu0 0.0
  %3286 = vmatprep.subr.mxu0 0.0
  %3287 = vmatpush2.msra.mxu0 0.0
  %3288 = vmatprep.subr.mxu0 0.0
  %3289 = vmatpush2.msra.mxu0 0.0
  %3290 = vmatprep.subr.mxu0 0.0
  %3291 = vmatpush2.msra.mxu0 0.0
  %3292 = vmatprep.subr.mxu0 0.0
  %3293 = vmatpush2.msra.mxu0 0.0
  %3294 = vmatprep.subr.mxu0 0.0
  %3295 = vmatpush2.msra.mxu0 %v3234
  %3296 = vmatprep.subr.mxu0 0.0
  %3297 = vmatpush2.msra.mxu0 %v3231
  %3298 = vmatprep.subr.mxu0 0.0
  %3299 = vmatpush2.msra.mxu0 %v3230
  %3300 = vmatprep.mubr.f32.mxu0 %v59
  %3301 = vmatmul.mubr.f32.gmra.mxu0 %v32
  %v3302 = vpop.f32.mrf.mxu0
  %v3303 = vadd.f32 0.0, %v3302
  %v3304 = vpop.f32.mrf.mxu0
  %3305 = vmatprep.mubr.f32.mxu0 %v62
  %3306 = vmatmul.mubr.f32.gmra.mxu0 %v34
  %v3307 = vpop.f32.mrf.mxu0
  %v3308 = vadd.f32 0.0, %v3307
  %v3309 = vpop.f32.mrf.mxu0
  %3310 = vdwg.mxu0
  %v3311 = vmax.f32 %v3205, %v3303
  %v3312 = vmax.f32 %v3210, %v3308
  %s3313 = scalar_lea.vmem %s0, 3344
  %v3314 = vld [vmem:[%s3313] sm:$0xff]
  %v3315 = vld [vmem:[%s3313 + $0x8] sm:$0xff]
  %v3316 = vld [vmem:[%s3313 + $0x10] sm:$0xff]
  %v3317 = vld [vmem:[%s3313 + $0x18] sm:$0xff]
  %v3318 = vld [vmem:[%s3313 + $0x20] sm:$0xff]
  %v3319 = vld [vmem:[%s3313 + $0x28] sm:$0xff]
  %v3320 = vld [vmem:[%s3313 + $0x30] sm:$0xff]
  %v3321 = vld [vmem:[%s3313 + $0x38] sm:$0xff]
  %v3322 = vld [vmem:[%s3313 + $0x40] sm:$0xff]
  %v3323 = vld [vmem:[%s3313 + $0x48] sm:$0xff]
  %v3324 = vld [vmem:[%s3313 + $0x50] sm:$0xff]
  %v3325 = vld [vmem:[%s3313 + $0x58] sm:$0xff]
  %v3326 = vld [vmem:[%s3313 + $0x60] sm:$0xff]
  %v3327 = vld [vmem:[%s3313 + $0x68] sm:$0xff]
  %v3328 = vld [vmem:[%s3313 + $0x70] sm:$0xff]
  %v3329 = vld [vmem:[%s3313 + $0x78] sm:$0xff]
  %v3330 = vld [vmem:[%s3313 + $0x80] sm:$0xff]
  %v3331 = vld [vmem:[%s3313 + $0x88] sm:$0xff]
  %v3332 = vld [vmem:[%s3313 + $0x90] sm:$0x3f]
  %v3334 = vsel %vm64, %v3332, 0
  %3336 = vmatprep.subr.mxu0 0.0
  %3337 = vmatpush1.msra.mxu0 %v3329
  %3338 = vmatprep.subr.mxu0 0.0
  %3339 = vmatpush1.msra.mxu0 %v3328
  %3340 = vmatprep.subr.mxu0 0.0
  %3341 = vmatpush1.msra.mxu0 %v3327
  %3342 = vmatprep.subr.mxu0 0.0
  %3343 = vmatpush1.msra.mxu0 %v3326
  %3344 = vmatprep.subr.mxu0 0.0
  %3345 = vmatpush1.msra.mxu0 %v3325
  %3346 = vmatprep.subr.mxu0 0.0
  %3347 = vmatpush1.msra.mxu0 %v3324
  %3348 = vmatprep.subr.mxu0 0.0
  %3349 = vmatpush1.msra.mxu0 %v3323
  %3350 = vmatprep.subr.mxu0 0.0
  %3351 = vmatpush1.msra.mxu0 %v3322
  %3352 = vmatprep.subr.mxu0 0.0
  %3353 = vmatpush1.msra.mxu0 %v3321
  %3354 = vmatprep.subr.mxu0 0.0
  %3355 = vmatpush1.msra.mxu0 %v3320
  %3356 = vmatprep.subr.mxu0 0.0
  %3357 = vmatpush1.msra.mxu0 %v3319
  %3358 = vmatprep.subr.mxu0 0.0
  %3359 = vmatpush1.msra.mxu0 %v3318
  %3360 = vmatprep.subr.mxu0 0.0
  %3361 = vmatpush1.msra.mxu0 %v3317
  %3362 = vmatprep.subr.mxu0 0.0
  %3363 = vmatpush1.msra.mxu0 %v3316
  %3364 = vmatprep.subr.mxu0 0.0
  %3365 = vmatpush1.msra.mxu0 %v3315
  %3366 = vmatprep.subr.mxu0 0.0
  %3367 = vmatpush1.msra.mxu0 %v3314
  %3368 = vmatprep.subr.mxu0 0.0
  %3369 = vmatpush2.msra.mxu0 0.0
  %3370 = vmatprep.subr.mxu0 0.0
  %3371 = vmatpush2.msra.mxu0 0.0
  %3372 = vmatprep.subr.mxu0 0.0
  %3373 = vmatpush2.msra.mxu0 0.0
  %3374 = vmatprep.subr.mxu0 0.0
  %3375 = vmatpush2.msra.mxu0 0.0
  %3376 = vmatprep.subr.mxu0 0.0
  %3377 = vmatpush2.msra.mxu0 0.0
  %3378 = vmatprep.subr.mxu0 0.0
  %3379 = vmatpush2.msra.mxu0 0.0
  %3380 = vmatprep.subr.mxu0 0.0
  %3381 = vmatpush2.msra.mxu0 0.0
  %3382 = vmatprep.subr.mxu0 0.0
  %3383 = vmatpush2.msra.mxu0 0.0
  %3384 = vmatprep.subr.mxu0 0.0
  %3385 = vmatpush2.msra.mxu0 0.0
  %3386 = vmatprep.subr.mxu0 0.0
  %3387 = vmatpush2.msra.mxu0 0.0
  %3388 = vmatprep.subr.mxu0 0.0
  %3389 = vmatpush2.msra.mxu0 0.0
  %3390 = vmatprep.subr.mxu0 0.0
  %3391 = vmatpush2.msra.mxu0 0.0
  %3392 = vmatprep.subr.mxu0 0.0
  %3393 = vmatpush2.msra.mxu0 0.0
  %3394 = vmatprep.subr.mxu0 0.0
  %3395 = vmatpush2.msra.mxu0 %v3334
  %3396 = vmatprep.subr.mxu0 0.0
  %3397 = vmatpush2.msra.mxu0 %v3331
  %3398 = vmatprep.subr.mxu0 0.0
  %3399 = vmatpush2.msra.mxu0 %v3330
  %3400 = vmatprep.mubr.f32.mxu0 %v59
  %3401 = vmatmul.mubr.f32.gmra.mxu0 %v32
  %v3402 = vpop.f32.mrf.mxu0
  %v3403 = vadd.f32 0.0, %v3402
  %v3404 = vpop.f32.mrf.mxu0
  %3405 = vmatprep.mubr.f32.mxu0 %v62
  %3406 = vmatmul.mubr.f32.gmra.mxu0 %v34
  %v3407 = vpop.f32.mrf.mxu0
  %v3408 = vadd.f32 0.0, %v3407
  %v3409 = vpop.f32.mrf.mxu0
  %3410 = vdwg.mxu0
  %v3411 = vmax.f32 %v3311, %v3403
  %v3412 = vmax.f32 %v3312, %v3408
  %s3413 = scalar_lea.vmem %s0, 3496
  %v3414 = vld [vmem:[%s3413] sm:$0xff]
  %v3415 = vld [vmem:[%s3413 + $0x8] sm:$0xff]
  %v3416 = vld [vmem:[%s3413 + $0x10] sm:$0xff]
  %v3417 = vld [vmem:[%s3413 + $0x18] sm:$0xff]
  %v3418 = vld [vmem:[%s3413 + $0x20] sm:$0xff]
  %v3419 = vld [vmem:[%s3413 + $0x28] sm:$0xff]
  %v3420 = vld [vmem:[%s3413 + $0x30] sm:$0xff]
  %v3421 = vld [vmem:[%s3413 + $0x38] sm:$0xff]
  %v3422 = vld [vmem:[%s3413 + $0x40] sm:$0xff]
  %v3423 = vld [vmem:[%s3413 + $0x48] sm:$0xff]
  %v3424 = vld [vmem:[%s3413 + $0x50] sm:$0xff]
  %v3425 = vld [vmem:[%s3413 + $0x58] sm:$0xff]
  %v3426 = vld [vmem:[%s3413 + $0x60] sm:$0xff]
  %v3427 = vld [vmem:[%s3413 + $0x68] sm:$0xff]
  %v3428 = vld [vmem:[%s3413 + $0x70] sm:$0xff]
  %v3429 = vld [vmem:[%s3413 + $0x78] sm:$0xff]
  %v3430 = vld [vmem:[%s3413 + $0x80] sm:$0xff]
  %v3431 = vld [vmem:[%s3413 + $0x88] sm:$0xff]
  %v3432 = vld [vmem:[%s3413 + $0x90] sm:$0x3f]
  %v3434 = vsel %vm64, %v3432, 0
  %3436 = vmatprep.subr.mxu0 0.0
  %3437 = vmatpush1.msra.mxu0 %v3429
  %3438 = vmatprep.subr.mxu0 0.0
  %3439 = vmatpush1.msra.mxu0 %v3428
  %3440 = vmatprep.subr.mxu0 0.0
  %3441 = vmatpush1.msra.mxu0 %v3427
  %3442 = vmatprep.subr.mxu0 0.0
  %3443 = vmatpush1.msra.mxu0 %v3426
  %3444 = vmatprep.subr.mxu0 0.0
  %3445 = vmatpush1.msra.mxu0 %v3425
  %3446 = vmatprep.subr.mxu0 0.0
  %3447 = vmatpush1.msra.mxu0 %v3424
  %3448 = vmatprep.subr.mxu0 0.0
  %3449 = vmatpush1.msra.mxu0 %v3423
  %3450 = vmatprep.subr.mxu0 0.0
  %3451 = vmatpush1.msra.mxu0 %v3422
  %3452 = vmatprep.subr.mxu0 0.0
  %3453 = vmatpush1.msra.mxu0 %v3421
  %3454 = vmatprep.subr.mxu0 0.0
  %3455 = vmatpush1.msra.mxu0 %v3420
  %3456 = vmatprep.subr.mxu0 0.0
  %3457 = vmatpush1.msra.mxu0 %v3419
  %3458 = vmatprep.subr.mxu0 0.0
  %3459 = vmatpush1.msra.mxu0 %v3418
  %3460 = vmatprep.subr.mxu0 0.0
  %3461 = vmatpush1.msra.mxu0 %v3417
  %3462 = vmatprep.subr.mxu0 0.0
  %3463 = vmatpush1.msra.mxu0 %v3416
  %3464 = vmatprep.subr.mxu0 0.0
  %3465 = vmatpush1.msra.mxu0 %v3415
  %3466 = vmatprep.subr.mxu0 0.0
  %3467 = vmatpush1.msra.mxu0 %v3414
  %3468 = vmatprep.subr.mxu0 0.0
  %3469 = vmatpush2.msra.mxu0 0.0
  %3470 = vmatprep.subr.mxu0 0.0
  %3471 = vmatpush2.msra.mxu0 0.0
  %3472 = vmatprep.subr.mxu0 0.0
  %3473 = vmatpush2.msra.mxu0 0.0
  %3474 = vmatprep.subr.mxu0 0.0
  %3475 = vmatpush2.msra.mxu0 0.0
  %3476 = vmatprep.subr.mxu0 0.0
  %3477 = vmatpush2.msra.mxu0 0.0
  %3478 = vmatprep.subr.mxu0 0.0
  %3479 = vmatpush2.msra.mxu0 0.0
  %3480 = vmatprep.subr.mxu0 0.0
  %3481 = vmatpush2.msra.mxu0 0.0
  %3482 = vmatprep.subr.mxu0 0.0
  %3483 = vmatpush2.msra.mxu0 0.0
  %3484 = vmatprep.subr.mxu0 0.0
  %3485 = vmatpush2.msra.mxu0 0.0
  %3486 = vmatprep.subr.mxu0 0.0
  %3487 = vmatpush2.msra.mxu0 0.0
  %3488 = vmatprep.subr.mxu0 0.0
  %3489 = vmatpush2.msra.mxu0 0.0
  %3490 = vmatprep.subr.mxu0 0.0
  %3491 = vmatpush2.msra.mxu0 0.0
  %3492 = vmatprep.subr.mxu0 0.0
  %3493 = vmatpush2.msra.mxu0 0.0
  %3494 = vmatprep.subr.mxu0 0.0
  %3495 = vmatpush2.msra.mxu0 %v3434
  %3496 = vmatprep.subr.mxu0 0.0
  %3497 = vmatpush2.msra.mxu0 %v3431
  %3498 = vmatprep.subr.mxu0 0.0
  %3499 = vmatpush2.msra.mxu0 %v3430
  %3500 = vmatprep.mubr.f32.mxu0 %v59
  %3501 = vmatmul.mubr.f32.gmra.mxu0 %v32
  %v3502 = vpop.f32.mrf.mxu0
  %v3503 = vadd.f32 0.0, %v3502
  %v3504 = vpop.f32.mrf.mxu0
  %3505 = vmatprep.mubr.f32.mxu0 %v62
  %3506 = vmatmul.mubr.f32.gmra.mxu0 %v34
  %v3507 = vpop.f32.mrf.mxu0
  %v3508 = vadd.f32 0.0, %v3507
  %v3509 = vpop.f32.mrf.mxu0
  %3510 = vdwg.mxu0
  %v3511 = vmax.f32 %v3411, %v3503
  %v3512 = vmax.f32 %v3412, %v3508
  %v3513 = vadd.f32 %v3511, %v446
  %v3514 = vadd.f32 %v3512, %v451
  %v3515 = vmax.f32 %v3513, 0.0
  %v3516 = vmax.f32 %v3514, 0.0
  %s3517 = scalar_lea.vmem %s3, 600
  %v3518 = vld [vmem:[%s3517] sm:$0xff]
  %v3519 = vld [vmem:[%s3517 + $0x8] sm:$0xff]
  %v3520 = vld [vmem:[%s3517 + $0x10] sm:$0xff]
  %v3521 = vld [vmem:[%s3517 + $0x18] sm:$0xff]
  %v3522 = vld [vmem:[%s3517 + $0x20] sm:$0xff]
  %v3523 = vld [vmem:[%s3517 + $0x28] sm:$0xff]
  %v3524 = vld [vmem:[%s3517 + $0x30] sm:$0xff]
  %v3525 = vld [vmem:[%s3517 + $0x38] sm:$0xff]
  %v3526 = vld [vmem:[%s3517 + $0x40] sm:$0xff]
  %v3527 = vld [vmem:[%s3517 + $0x48] sm:$0xff]
  %v3528 = vld [vmem:[%s3517 + $0x50] sm:$0xff]
  %v3529 = vld [vmem:[%s3517 + $0x58] sm:$0xff]
  %v3530 = vld [vmem:[%s3517 + $0x60] sm:$0xff]
  %v3531 = vld [vmem:[%s3517 + $0x68] sm:$0xff]
  %v3532 = vld [vmem:[%s3517 + $0x70] sm:$0xff]
  %v3534 = vsel %vm890, %v3518, 0
  %v3537 = vsel %vm890, %v3519, 0
  %v3540 = vsel %vm890, %v3520, 0
  %v3543 = vsel %vm890, %v3521, 0
  %v3546 = vsel %vm890, %v3522, 0
  %v3549 = vsel %vm890, %v3523, 0
  %v3552 = vsel %vm890, %v3524, 0
  %v3555 = vsel %vm890, %v3525, 0
  %v3558 = vsel %vm890, %v3526, 0
  %v3561 = vsel %vm890, %v3527, 0
  %v3564 = vsel %vm890, %v3528, 0
  %v3567 = vsel %vm890, %v3529, 0
  %v3570 = vsel %vm890, %v3530, 0
  %v3573 = vsel %vm890, %v3531, 0
  %v3576 = vsel %vm890, %v3532, 0
  %3578 = vmatprep.subr.mxu0 0.0
  %3579 = vmatpush1.msra.mxu0 0.0
  %3580 = vmatprep.subr.mxu0 0.0
  %3581 = vmatpush1.msra.mxu0 0.0
  %3582 = vmatprep.subr.mxu0 0.0
  %3583 = vmatpush1.msra.mxu0 0.0
  %3584 = vmatprep.subr.mxu0 0.0
  %3585 = vmatpush1.msra.mxu0 0.0
  %3586 = vmatprep.subr.mxu0 0.0
  %3587 = vmatpush1.msra.mxu0 0.0
  %3588 = vmatprep.subr.mxu0 0.0
  %3589 = vmatpush1.msra.mxu0 0.0
  %3590 = vmatprep.subr.mxu0 0.0
  %3591 = vmatpush1.msra.mxu0 0.0
  %3592 = vmatprep.subr.mxu0 0.0
  %3593 = vmatpush1.msra.mxu0 0.0
  %3594 = vmatprep.subr.mxu0 0.0
  %3595 = vmatpush1.msra.mxu0 0.0
  %3596 = vmatprep.subr.mxu0 0.0
  %3597 = vmatpush1.msra.mxu0 0.0
  %3598 = vmatprep.subr.mxu0 0.0
  %3599 = vmatpush1.msra.mxu0 0.0
  %3600 = vmatprep.subr.mxu0 0.0
  %3601 = vmatpush1.msra.mxu0 0.0
  %3602 = vmatprep.subr.mxu0 0.0
  %3603 = vmatpush1.msra.mxu0 0.0
  %3604 = vmatprep.subr.mxu0 0.0
  %3605 = vmatpush1.msra.mxu0 0.0
  %3606 = vmatprep.subr.mxu0 0.0
  %3607 = vmatpush1.msra.mxu0 %v3516
  %3608 = vmatprep.subr.mxu0 0.0
  %3609 = vmatpush1.msra.mxu0 %v3515
  %3610 = vmatprep.subr.mxu0 0.0
  %3611 = vmatpush2.msra.mxu0 0.0
  %3612 = vmatprep.subr.mxu0 0.0
  %3613 = vmatpush2.msra.mxu0 0.0
  %3614 = vmatprep.subr.mxu0 0.0
  %3615 = vmatpush2.msra.mxu0 0.0
  %3616 = vmatprep.subr.mxu0 0.0
  %3617 = vmatpush2.msra.mxu0 0.0
  %3618 = vmatprep.subr.mxu0 0.0
  %3619 = vmatpush2.msra.mxu0 0.0
  %3620 = vmatprep.subr.mxu0 0.0
  %3621 = vmatpush2.msra.mxu0 0.0
  %3622 = vmatprep.subr.mxu0 0.0
  %3623 = vmatpush2.msra.mxu0 0.0
  %3624 = vmatprep.subr.mxu0 0.0
  %3625 = vmatpush2.msra.mxu0 0.0
  %3626 = vmatprep.subr.mxu0 0.0
  %3627 = vmatpush2.msra.mxu0 0.0
  %3628 = vmatprep.subr.mxu0 0.0
  %3629 = vmatpush2.msra.mxu0 0.0
  %3630 = vmatprep.subr.mxu0 0.0
  %3631 = vmatpush2.msra.mxu0 0.0
  %3632 = vmatprep.subr.mxu0 0.0
  %3633 = vmatpush2.msra.mxu0 0.0
  %3634 = vmatprep.subr.mxu0 0.0
  %3635 = vmatpush2.msra.mxu0 0.0
  %3636 = vmatprep.subr.mxu0 0.0
  %3637 = vmatpush2.msra.mxu0 0.0
  %3638 = vmatprep.subr.mxu0 0.0
  %3639 = vmatpush2.msra.mxu0 0.0
  %3640 = vmatprep.subr.mxu0 0.0
  %3641 = vmatpush2.msra.mxu0 0.0
  %3642 = vmatprep.mubr.f32.mxu0 0.0
  %3643 = vmatmul.mubr.f32.gmra.mxu0 %v3534
  %v3644 = vpop.f32.mrf.mxu0
  %v3645 = vadd.f32 0.0, %v3644
  %v3646 = vpop.f32.mrf.mxu0
  %3647 = vmatprep.mubr.f32.mxu0 0.0
  %3648 = vmatmul.mubr.f32.gmra.mxu0 %v3537
  %v3649 = vpop.f32.mrf.mxu0
  %v3650 = vadd.f32 0.0, %v3649
  %v3651 = vpop.f32.mrf.mxu0
  %3652 = vmatprep.mubr.f32.mxu0 0.0
  %3653 = vmatmul.mubr.f32.gmra.mxu0 %v3540
  %v3654 = vpop.f32.mrf.mxu0
  %v3655 = vadd.f32 0.0, %v3654
  %v3656 = vpop.f32.mrf.mxu0
  %3657 = vmatprep.mubr.f32.mxu0 0.0
  %3658 = vmatmul.mubr.f32.gmra.mxu0 %v3543
  %v3659 = vpop.f32.mrf.mxu0
  %v3660 = vadd.f32 0.0, %v3659
  %v3661 = vpop.f32.mrf.mxu0
  %3662 = vmatprep.mubr.f32.mxu0 0.0
  %3663 = vmatmul.mubr.f32.gmra.mxu0 %v3546
  %v3664 = vpop.f32.mrf.mxu0
  %v3665 = vadd.f32 0.0, %v3664
  %v3666 = vpop.f32.mrf.mxu0
  %3667 = vmatprep.mubr.f32.mxu0 0.0
  %3668 = vmatmul.mubr.f32.gmra.mxu0 %v3549
  %v3669 = vpop.f32.mrf.mxu0
  %v3670 = vadd.f32 0.0, %v3669
  %v3671 = vpop.f32.mrf.mxu0
  %3672 = vmatprep.mubr.f32.mxu0 0.0
  %3673 = vmatmul.mubr.f32.gmra.mxu0 %v3552
  %v3674 = vpop.f32.mrf.mxu0
  %v3675 = vadd.f32 0.0, %v3674
  %v3676 = vpop.f32.mrf.mxu0
  %3677 = vmatprep.mubr.f32.mxu0 0.0
  %3678 = vmatmul.mubr.f32.gmra.mxu0 %v3555
  %v3679 = vpop.f32.mrf.mxu0
  %v3680 = vadd.f32 0.0, %v3679
  %v3681 = vpop.f32.mrf.mxu0
  %3682 = vmatprep.mubr.f32.mxu0 0.0
  %3683 = vmatmul.mubr.f32.gmra.mxu0 %v3558
  %v3684 = vpop.f32.mrf.mxu0
  %v3685 = vadd.f32 0.0, %v3684
  %v3686 = vpop.f32.mrf.mxu0
  %3687 = vmatprep.mubr.f32.mxu0 0.0
  %3688 = vmatmul.mubr.f32.gmra.mxu0 %v3561
  %v3689 = vpop.f32.mrf.mxu0
  %v3690 = vadd.f32 0.0, %v3689
  %v3691 = vpop.f32.mrf.mxu0
  %3692 = vmatprep.mubr.f32.mxu0 0.0
  %3693 = vmatmul.mubr.f32.gmra.mxu0 %v3564
  %v3694 = vpop.f32.mrf.mxu0
  %v3695 = vadd.f32 0.0, %v3694
  %v3696 = vpop.f32.mrf.mxu0
  %3697 = vmatprep.mubr.f32.mxu0 0.0
  %3698 = vmatmul.mubr.f32.gmra.mxu0 %v3567
  %v3699 = vpop.f32.mrf.mxu0
  %v3700 = vadd.f32 0.0, %v3699
  %v3701 = vpop.f32.mrf.mxu0
  %3702 = vmatprep.mubr.f32.mxu0 0.0
  %3703 = vmatmul.mubr.f32.gmra.mxu0 %v3570
  %v3704 = vpop.f32.mrf.mxu0
  %v3705 = vadd.f32 0.0, %v3704
  %v3706 = vpop.f32.mrf.mxu0
  %3707 = vmatprep.mubr.f32.mxu0 0.0
  %3708 = vmatmul.mubr.f32.gmra.mxu0 %v3573
  %v3709 = vpop.f32.mrf.mxu0
  %v3710 = vadd.f32 0.0, %v3709
  %v3711 = vpop.f32.mrf.mxu0
  %3712 = vmatprep.mubr.f32.mxu0 0.0
  %3713 = vmatmul.mubr.f32.gmra.mxu0 %v3576
  %v3714 = vpop.f32.mrf.mxu0
  %v3715 = vadd.f32 0.0, %v3714
  %v3716 = vpop.f32.mrf.mxu0
  %3717 = vdwg.mxu0
  %v3718 = vadd.f32 %v3100, %v3645
  %v3719 = vadd.f32 %v3101, %v3650
  %v3720 = vadd.f32 %v3102, %v3655
  %v3721 = vadd.f32 %v3103, %v3660
  %v3722 = vadd.f32 %v3104, %v3665
  %v3723 = vadd.f32 %v3105, %v3670
  %v3724 = vadd.f32 %v3106, %v3675
  %v3725 = vadd.f32 %v3107, %v3680
  %v3726 = vadd.f32 %v3108, %v3685
  %v3727 = vadd.f32 %v3109, %v3690
  %v3728 = vadd.f32 %v3110, %v3695
  %v3729 = vadd.f32 %v3111, %v3700
  %v3730 = vadd.f32 %v3112, %v3705
  %v3731 = vadd.f32 %v3113, %v3710
  %v3732 = vadd.f32 %v3114, %v3715
  %s3733 = scalar_lea.vmem %s0, 3648
  %v3734 = vld [vmem:[%s3733] sm:$0xff]
  %v3735 = vld [vmem:[%s3733 + $0x8] sm:$0xff]
  %v3736 = vld [vmem:[%s3733 + $0x10] sm:$0xff]
  %v3737 = vld [vmem:[%s3733 + $0x18] sm:$0xff]
  %v3738 = vld [vmem:[%s3733 + $0x20] sm:$0xff]
  %v3739 = vld [vmem:[%s3733 + $0x28] sm:$0xff]
  %v3740 = vld [vmem:[%s3733 + $0x30] sm:$0xff]
  %v3741 = vld [vmem:[%s3733 + $0x38] sm:$0xff]
  %v3742 = vld [vmem:[%s3733 + $0x40] sm:$0xff]
  %v3743 = vld [vmem:[%s3733 + $0x48] sm:$0xff]
  %v3744 = vld [vmem:[%s3733 + $0x50] sm:$0xff]
  %v3745 = vld [vmem:[%s3733 + $0x58] sm:$0xff]
  %v3746 = vld [vmem:[%s3733 + $0x60] sm:$0xff]
  %v3747 = vld [vmem:[%s3733 + $0x68] sm:$0xff]
  %v3748 = vld [vmem:[%s3733 + $0x70] sm:$0xff]
  %v3749 = vld [vmem:[%s3733 + $0x78] sm:$0xff]
  %v3750 = vld [vmem:[%s3733 + $0x80] sm:$0xff]
  %v3751 = vld [vmem:[%s3733 + $0x88] sm:$0xff]
  %v3752 = vld [vmem:[%s3733 + $0x90] sm:$0x3f]
  %v3754 = vsel %vm64, %v3752, 0
  %3756 = vmatprep.subr.mxu0 0.0
  %3757 = vmatpush1.msra.mxu0 %v3749
  %3758 = vmatprep.subr.mxu0 0.0
  %3759 = vmatpush1.msra.mxu0 %v3748
  %3760 = vmatprep.subr.mxu0 0.0
  %3761 = vmatpush1.msra.mxu0 %v3747
  %3762 = vmatprep.subr.mxu0 0.0
  %3763 = vmatpush1.msra.mxu0 %v3746
  %3764 = vmatprep.subr.mxu0 0.0
  %3765 = vmatpush1.msra.mxu0 %v3745
  %3766 = vmatprep.subr.mxu0 0.0
  %3767 = vmatpush1.msra.mxu0 %v3744
  %3768 = vmatprep.subr.mxu0 0.0
  %3769 = vmatpush1.msra.mxu0 %v3743
  %3770 = vmatprep.subr.mxu0 0.0
  %3771 = vmatpush1.msra.mxu0 %v3742
  %3772 = vmatprep.subr.mxu0 0.0
  %3773 = vmatpush1.msra.mxu0 %v3741
  %3774 = vmatprep.subr.mxu0 0.0
  %3775 = vmatpush1.msra.mxu0 %v3740
  %3776 = vmatprep.subr.mxu0 0.0
  %3777 = vmatpush1.msra.mxu0 %v3739
  %3778 = vmatprep.subr.mxu0 0.0
  %3779 = vmatpush1.msra.mxu0 %v3738
  %3780 = vmatprep.subr.mxu0 0.0
  %3781 = vmatpush1.msra.mxu0 %v3737
  %3782 = vmatprep.subr.mxu0 0.0
  %3783 = vmatpush1.msra.mxu0 %v3736
  %3784 = vmatprep.subr.mxu0 0.0
  %3785 = vmatpush1.msra.mxu0 %v3735
  %3786 = vmatprep.subr.mxu0 0.0
  %3787 = vmatpush1.msra.mxu0 %v3734
  %3788 = vmatprep.subr.mxu0 0.0
  %3789 = vmatpush2.msra.mxu0 0.0
  %3790 = vmatprep.subr.mxu0 0.0
  %3791 = vmatpush2.msra.mxu0 0.0
  %3792 = vmatprep.subr.mxu0 0.0
  %3793 = vmatpush2.msra.mxu0 0.0
  %3794 = vmatprep.subr.mxu0 0.0
  %3795 = vmatpush2.msra.mxu0 0.0
  %3796 = vmatprep.subr.mxu0 0.0
  %3797 = vmatpush2.msra.mxu0 0.0
  %3798 = vmatprep.subr.mxu0 0.0
  %3799 = vmatpush2.msra.mxu0 0.0
  %3800 = vmatprep.subr.mxu0 0.0
  %3801 = vmatpush2.msra.mxu0 0.0
  %3802 = vmatprep.subr.mxu0 0.0
  %3803 = vmatpush2.msra.mxu0 0.0
  %3804 = vmatprep.subr.mxu0 0.0
  %3805 = vmatpush2.msra.mxu0 0.0
  %3806 = vmatprep.subr.mxu0 0.0
  %3807 = vmatpush2.msra.mxu0 0.0
  %3808 = vmatprep.subr.mxu0 0.0
  %3809 = vmatpush2.msra.mxu0 0.0
  %3810 = vmatprep.subr.mxu0 0.0
  %3811 = vmatpush2.msra.mxu0 0.0
  %3812 = vmatprep.subr.mxu0 0.0
  %3813 = vmatpush2.msra.mxu0 0.0
  %3814 = vmatprep.subr.mxu0 0.0
  %3815 = vmatpush2.msra.mxu0 %v3754
  %3816 = vmatprep.subr.mxu0 0.0
  %3817 = vmatpush2.msra.mxu0 %v3751
  %3818 = vmatprep.subr.mxu0 0.0
  %3819 = vmatpush2.msra.mxu0 %v3750
  %3820 = vmatprep.mubr.f32.mxu0 %v59
  %3821 = vmatmul.mubr.f32.gmra.mxu0 %v32
  %v3822 = vpop.f32.mrf.mxu0
  %v3823 = vadd.f32 0.0, %v3822
  %v3824 = vpop.f32.mrf.mxu0
  %3825 = vmatprep.mubr.f32.mxu0 %v62
  %3826 = vmatmul.mubr.f32.gmra.mxu0 %v34
  %v3827 = vpop.f32.mrf.mxu0
  %v3828 = vadd.f32 0.0, %v3827
  %v3829 = vpop.f32.mrf.mxu0
  %3830 = vdwg.mxu0
  %s3831 = scalar_lea.vmem %s0, 3800
  %v3832 = vld [vmem:[%s3831] sm:$0xff]
  %v3833 = vld [vmem:[%s3831 + $0x8] sm:$0xff]
  %v3834 = vld [vmem:[%s3831 + $0x10] sm:$0xff]
  %v3835 = vld [vmem:[%s3831 + $0x18] sm:$0xff]
  %v3836 = vld [vmem:[%s3831 + $0x20] sm:$0xff]
  %v3837 = vld [vmem:[%s3831 + $0x28] sm:$0xff]
  %v3838 = vld [vmem:[%s3831 + $0x30] sm:$0xff]
  %v3839 = vld [vmem:[%s3831 + $0x38] sm:$0xff]
  %v3840 = vld [vmem:[%s3831 + $0x40] sm:$0xff]
  %v3841 = vld [vmem:[%s3831 + $0x48] sm:$0xff]
  %v3842 = vld [vmem:[%s3831 + $0x50] sm:$0xff]
  %v3843 = vld [vmem:[%s3831 + $0x58] sm:$0xff]
  %v3844 = vld [vmem:[%s3831 + $0x60] sm:$0xff]
  %v3845 = vld [vmem:[%s3831 + $0x68] sm:$0xff]
  %v3846 = vld [vmem:[%s3831 + $0x70] sm:$0xff]
  %v3847 = vld [vmem:[%s3831 + $0x78] sm:$0xff]
  %v3848 = vld [vmem:[%s3831 + $0x80] sm:$0xff]
  %v3849 = vld [vmem:[%s3831 + $0x88] sm:$0xff]
  %v3850 = vld [vmem:[%s3831 + $0x90] sm:$0x3f]
  %v3852 = vsel %vm64, %v3850, 0
  %3854 = vmatprep.subr.mxu0 0.0
  %3855 = vmatpush1.msra.mxu0 %v3847
  %3856 = vmatprep.subr.mxu0 0.0
  %3857 = vmatpush1.msra.mxu0 %v3846
  %3858 = vmatprep.subr.mxu0 0.0
  %3859 = vmatpush1.msra.mxu0 %v3845
  %3860 = vmatprep.subr.mxu0 0.0
  %3861 = vmatpush1.msra.mxu0 %v3844
  %3862 = vmatprep.subr.mxu0 0.0
  %3863 = vmatpush1.msra.mxu0 %v3843
  %3864 = vmatprep.subr.mxu0 0.0
  %3865 = vmatpush1.msra.mxu0 %v3842
  %3866 = vmatprep.subr.mxu0 0.0
  %3867 = vmatpush1.msra.mxu0 %v3841
  %3868 = vmatprep.subr.mxu0 0.0
  %3869 = vmatpush1.msra.mxu0 %v3840
  %3870 = vmatprep.subr.mxu0 0.0
  %3871 = vmatpush1.msra.mxu0 %v3839
  %3872 = vmatprep.subr.mxu0 0.0
  %3873 = vmatpush1.msra.mxu0 %v3838
  %3874 = vmatprep.subr.mxu0 0.0
  %3875 = vmatpush1.msra.mxu0 %v3837
  %3876 = vmatprep.subr.mxu0 0.0
  %3877 = vmatpush1.msra.mxu0 %v3836
  %3878 = vmatprep.subr.mxu0 0.0
  %3879 = vmatpush1.msra.mxu0 %v3835
  %3880 = vmatprep.subr.mxu0 0.0
  %3881 = vmatpush1.msra.mxu0 %v3834
  %3882 = vmatprep.subr.mxu0 0.0
  %3883 = vmatpush1.msra.mxu0 %v3833
  %3884 = vmatprep.subr.mxu0 0.0
  %3885 = vmatpush1.msra.mxu0 %v3832
  %3886 = vmatprep.subr.mxu0 0.0
  %3887 = vmatpush2.msra.mxu0 0.0
  %3888 = vmatprep.subr.mxu0 0.0
  %3889 = vmatpush2.msra.mxu0 0.0
  %3890 = vmatprep.subr.mxu0 0.0
  %3891 = vmatpush2.msra.mxu0 0.0
  %3892 = vmatprep.subr.mxu0 0.0
  %3893 = vmatpush2.msra.mxu0 0.0
  %3894 = vmatprep.subr.mxu0 0.0
  %3895 = vmatpush2.msra.mxu0 0.0
  %3896 = vmatprep.subr.mxu0 0.0
  %3897 = vmatpush2.msra.mxu0 0.0
  %3898 = vmatprep.subr.mxu0 0.0
  %3899 = vmatpush2.msra.mxu0 0.0
  %3900 = vmatprep.subr.mxu0 0.0
  %3901 = vmatpush2.msra.mxu0 0.0
  %3902 = vmatprep.subr.mxu0 0.0
  %3903 = vmatpush2.msra.mxu0 0.0
  %3904 = vmatprep.subr.mxu0 0.0
  %3905 = vmatpush2.msra.mxu0 0.0
  %3906 = vmatprep.subr.mxu0 0.0
  %3907 = vmatpush2.msra.mxu0 0.0
  %3908 = vmatprep.subr.mxu0 0.0
  %3909 = vmatpush2.msra.mxu0 0.0
  %3910 = vmatprep.subr.mxu0 0.0
  %3911 = vmatpush2.msra.mxu0 0.0
  %3912 = vmatprep.subr.mxu0 0.0
  %3913 = vmatpush2.msra.mxu0 %v3852
  %3914 = vmatprep.subr.mxu0 0.0
  %3915 = vmatpush2.msra.mxu0 %v3849
  %3916 = vmatprep.subr.mxu0 0.0
  %3917 = vmatpush2.msra.mxu0 %v3848
  %3918 = vmatprep.mubr.f32.mxu0 %v59
  %3919 = vmatmul.mubr.f32.gmra.mxu0 %v32
  %v3920 = vpop.f32.mrf.mxu0
  %v3921 = vadd.f32 0.0, %v3920
  %v3922 = vpop.f32.mrf.mxu0
  %3923 = vmatprep.mubr.f32.mxu0 %v62
  %3924 = vmatmul.mubr.f32.gmra.mxu0 %v34
  %v3925 = vpop.f32.mrf.mxu0
  %v3926 = vadd.f32 0.0, %v3925
  %v3927 = vpop.f32.mrf.mxu0
  %3928 = vdwg.mxu0
  %v3929 = vmax.f32 %v3823, %v3921
  %v3930 = vmax.f32 %v3828, %v3926
  %s3931 = scalar_lea.vmem %s0, 3952
  %v3932 = vld [vmem:[%s3931] sm:$0xff]
  %v3933 = vld [vmem:[%s3931 + $0x8] sm:$0xff]
  %v3934 = vld [vmem:[%s3931 + $0x10] sm:$0xff]
  %v3935 = vld [vmem:[%s3931 + $0x18] sm:$0xff]
  %v3936 = vld [vmem:[%s3931 + $0x20] sm:$0xff]
  %v3937 = vld [vmem:[%s3931 + $0x28] sm:$0xff]
  %v3938 = vld [vmem:[%s3931 + $0x30] sm:$0xff]
  %v3939 = vld [vmem:[%s3931 + $0x38] sm:$0xff]
  %v3940 = vld [vmem:[%s3931 + $0x40] sm:$0xff]
  %v3941 = vld [vmem:[%s3931 + $0x48] sm:$0xff]
  %v3942 = vld [vmem:[%s3931 + $0x50] sm:$0xff]
  %v3943 = vld [vmem:[%s3931 + $0x58] sm:$0xff]
  %v3944 = vld [vmem:[%s3931 + $0x60] sm:$0xff]
  %v3945 = vld [vmem:[%s3931 + $0x68] sm:$0xff]
  %v3946 = vld [vmem:[%s3931 + $0x70] sm:$0xff]
  %v3947 = vld [vmem:[%s3931 + $0x78] sm:$0xff]
  %v3948 = vld [vmem:[%s3931 + $0x80] sm:$0xff]
  %v3949 = vld [vmem:[%s3931 + $0x88] sm:$0xff]
  %v3950 = vld [vmem:[%s3931 + $0x90] sm:$0x3f]
  %v3952 = vsel %vm64, %v3950, 0
  %3954 = vmatprep.subr.mxu0 0.0
  %3955 = vmatpush1.msra.mxu0 %v3947
  %3956 = vmatprep.subr.mxu0 0.0
  %3957 = vmatpush1.msra.mxu0 %v3946
  %3958 = vmatprep.subr.mxu0 0.0
  %3959 = vmatpush1.msra.mxu0 %v3945
  %3960 = vmatprep.subr.mxu0 0.0
  %3961 = vmatpush1.msra.mxu0 %v3944
  %3962 = vmatprep.subr.mxu0 0.0
  %3963 = vmatpush1.msra.mxu0 %v3943
  %3964 = vmatprep.subr.mxu0 0.0
  %3965 = vmatpush1.msra.mxu0 %v3942
  %3966 = vmatprep.subr.mxu0 0.0
  %3967 = vmatpush1.msra.mxu0 %v3941
  %3968 = vmatprep.subr.mxu0 0.0
  %3969 = vmatpush1.msra.mxu0 %v3940
  %3970 = vmatprep.subr.mxu0 0.0
  %3971 = vmatpush1.msra.mxu0 %v3939
  %3972 = vmatprep.subr.mxu0 0.0
  %3973 = vmatpush1.msra.mxu0 %v3938
  %3974 = vmatprep.subr.mxu0 0.0
  %3975 = vmatpush1.msra.mxu0 %v3937
  %3976 = vmatprep.subr.mxu0 0.0
  %3977 = vmatpush1.msra.mxu0 %v3936
  %3978 = vmatprep.subr.mxu0 0.0
  %3979 = vmatpush1.msra.mxu0 %v3935
  %3980 = vmatprep.subr.mxu0 0.0
  %3981 = vmatpush1.msra.mxu0 %v3934
  %3982 = vmatprep.subr.mxu0 0.0
  %3983 = vmatpush1.msra.mxu0 %v3933
  %3984 = vmatprep.subr.mxu0 0.0
  %3985 = vmatpush1.msra.mxu0 %v3932
  %3986 = vmatprep.subr.mxu0 0.0
  %3987 = vmatpush2.msra.mxu0 0.0
  %3988 = vmatprep.subr.mxu0 0.0
  %3989 = vmatpush2.msra.mxu0 0.0
  %3990 = vmatprep.subr.mxu0 0.0
  %3991 = vmatpush2.msra.mxu0 0.0
  %3992 = vmatprep.subr.mxu0 0.0
  %3993 = vmatpush2.msra.mxu0 0.0
  %3994 = vmatprep.subr.mxu0 0.0
  %3995 = vmatpush2.msra.mxu0 0.0
  %3996 = vmatprep.subr.mxu0 0.0
  %3997 = vmatpush2.msra.mxu0 0.0
  %3998 = vmatprep.subr.mxu0 0.0
  %3999 = vmatpush2.msra.mxu0 0.0
  %4000 = vmatprep.subr.mxu0 0.0
  %4001 = vmatpush2.msra.mxu0 0.0
  %4002 = vmatprep.subr.mxu0 0.0
  %4003 = vmatpush2.msra.mxu0 0.0
  %4004 = vmatprep.subr.mxu0 0.0
  %4005 = vmatpush2.msra.mxu0 0.0
  %4006 = vmatprep.subr.mxu0 0.0
  %4007 = vmatpush2.msra.mxu0 0.0
  %4008 = vmatprep.subr.mxu0 0.0
  %4009 = vmatpush2.msra.mxu0 0.0
  %4010 = vmatprep.subr.mxu0 0.0
  %4011 = vmatpush2.msra.mxu0 0.0
  %4012 = vmatprep.subr.mxu0 0.0
  %4013 = vmatpush2.msra.mxu0 %v3952
  %4014 = vmatprep.subr.mxu0 0.0
  %4015 = vmatpush2.msra.mxu0 %v3949
  %4016 = vmatprep.subr.mxu0 0.0
  %4017 = vmatpush2.msra.mxu0 %v3948
  %4018 = vmatprep.mubr.f32.mxu0 %v59
  %4019 = vmatmul.mubr.f32.gmra.mxu0 %v32
  %v4020 = vpop.f32.mrf.mxu0
  %v4021 = vadd.f32 0.0, %v4020
  %v4022 = vpop.f32.mrf.mxu0
  %4023 = vmatprep.mubr.f32.mxu0 %v62
  %4024 = vmatmul.mubr.f32.gmra.mxu0 %v34
  %v4025 = vpop.f32.mrf.mxu0
  %v4026 = vadd.f32 0.0, %v4025
  %v4027 = vpop.f32.mrf.mxu0
  %4028 = vdwg.mxu0
  %v4029 = vmax.f32 %v3929, %v4021
  %v4030 = vmax.f32 %v3930, %v4026
  %s4031 = scalar_lea.vmem %s0, 4104
  %v4032 = vld [vmem:[%s4031] sm:$0xff]
  %v4033 = vld [vmem:[%s4031 + $0x8] sm:$0xff]
  %v4034 = vld [vmem:[%s4031 + $0x10] sm:$0xff]
  %v4035 = vld [vmem:[%s4031 + $0x18] sm:$0xff]
  %v4036 = vld [vmem:[%s4031 + $0x20] sm:$0xff]
  %v4037 = vld [vmem:[%s4031 + $0x28] sm:$0xff]
  %v4038 = vld [vmem:[%s4031 + $0x30] sm:$0xff]
  %v4039 = vld [vmem:[%s4031 + $0x38] sm:$0xff]
  %v4040 = vld [vmem:[%s4031 + $0x40] sm:$0xff]
  %v4041 = vld [vmem:[%s4031 + $0x48] sm:$0xff]
  %v4042 = vld [vmem:[%s4031 + $0x50] sm:$0xff]
  %v4043 = vld [vmem:[%s4031 + $0x58] sm:$0xff]
  %v4044 = vld [vmem:[%s4031 + $0x60] sm:$0xff]
  %v4045 = vld [vmem:[%s4031 + $0x68] sm:$0xff]
  %v4046 = vld [vmem:[%s4031 + $0x70] sm:$0xff]
  %v4047 = vld [vmem:[%s4031 + $0x78] sm:$0xff]
  %v4048 = vld [vmem:[%s4031 + $0x80] sm:$0xff]
  %v4049 = vld [vmem:[%s4031 + $0x88] sm:$0xff]
  %v4050 = vld [vmem:[%s4031 + $0x90] sm:$0x3f]
  %v4052 = vsel %vm64, %v4050, 0
  %4054 = vmatprep.subr.mxu0 0.0
  %4055 = vmatpush1.msra.mxu0 %v4047
  %4056 = vmatprep.subr.mxu0 0.0
  %4057 = vmatpush1.msra.mxu0 %v4046
  %4058 = vmatprep.subr.mxu0 0.0
  %4059 = vmatpush1.msra.mxu0 %v4045
  %4060 = vmatprep.subr.mxu0 0.0
  %4061 = vmatpush1.msra.mxu0 %v4044
  %4062 = vmatprep.subr.mxu0 0.0
  %4063 = vmatpush1.msra.mxu0 %v4043
  %4064 = vmatprep.subr.mxu0 0.0
  %4065 = vmatpush1.msra.mxu0 %v4042
  %4066 = vmatprep.subr.mxu0 0.0
  %4067 = vmatpush1.msra.mxu0 %v4041
  %4068 = vmatprep.subr.mxu0 0.0
  %4069 = vmatpush1.msra.mxu0 %v4040
  %4070 = vmatprep.subr.mxu0 0.0
  %4071 = vmatpush1.msra.mxu0 %v4039
  %4072 = vmatprep.subr.mxu0 0.0
  %4073 = vmatpush1.msra.mxu0 %v4038
  %4074 = vmatprep.subr.mxu0 0.0
  %4075 = vmatpush1.msra.mxu0 %v4037
  %4076 = vmatprep.subr.mxu0 0.0
  %4077 = vmatpush1.msra.mxu0 %v4036
  %4078 = vmatprep.subr.mxu0 0.0
  %4079 = vmatpush1.msra.mxu0 %v4035
  %4080 = vmatprep.subr.mxu0 0.0
  %4081 = vmatpush1.msra.mxu0 %v4034
  %4082 = vmatprep.subr.mxu0 0.0
  %4083 = vmatpush1.msra.mxu0 %v4033
  %4084 = vmatprep.subr.mxu0 0.0
  %4085 = vmatpush1.msra.mxu0 %v4032
  %4086 = vmatprep.subr.mxu0 0.0
  %4087 = vmatpush2.msra.mxu0 0.0
  %4088 = vmatprep.subr.mxu0 0.0
  %4089 = vmatpush2.msra.mxu0 0.0
  %4090 = vmatprep.subr.mxu0 0.0
  %4091 = vmatpush2.msra.mxu0 0.0
  %4092 = vmatprep.subr.mxu0 0.0
  %4093 = vmatpush2.msra.mxu0 0.0
  %4094 = vmatprep.subr.mxu0 0.0
  %4095 = vmatpush2.msra.mxu0 0.0
  %4096 = vmatprep.subr.mxu0 0.0
  %4097 = vmatpush2.msra.mxu0 0.0
  %4098 = vmatprep.subr.mxu0 0.0
  %4099 = vmatpush2.msra.mxu0 0.0
  %4100 = vmatprep.subr.mxu0 0.0
  %4101 = vmatpush2.msra.mxu0 0.0
  %4102 = vmatprep.subr.mxu0 0.0
  %4103 = vmatpush2.msra.mxu0 0.0
  %4104 = vmatprep.subr.mxu0 0.0
  %4105 = vmatpush2.msra.mxu0 0.0
  %4106 = vmatprep.subr.mxu0 0.0
  %4107 = vmatpush2.msra.mxu0 0.0
  %4108 = vmatprep.subr.mxu0 0.0
  %4109 = vmatpush2.msra.mxu0 0.0
  %4110 = vmatprep.subr.mxu0 0.0
  %4111 = vmatpush2.msra.mxu0 0.0
  %4112 = vmatprep.subr.mxu0 0.0
  %4113 = vmatpush2.msra.mxu0 %v4052
  %4114 = vmatprep.subr.mxu0 0.0
  %4115 = vmatpush2.msra.mxu0 %v4049
  %4116 = vmatprep.subr.mxu0 0.0
  %4117 = vmatpush2.msra.mxu0 %v4048
  %4118 = vmatprep.mubr.f32.mxu0 %v59
  %4119 = vmatmul.mubr.f32.gmra.mxu0 %v32
  %v4120 = vpop.f32.mrf.mxu0
  %v4121 = vadd.f32 0.0, %v4120
  %v4122 = vpop.f32.mrf.mxu0
  %4123 = vmatprep.mubr.f32.mxu0 %v62
  %4124 = vmatmul.mubr.f32.gmra.mxu0 %v34
  %v4125 = vpop.f32.mrf.mxu0
  %v4126 = vadd.f32 0.0, %v4125
  %v4127 = vpop.f32.mrf.mxu0
  %4128 = vdwg.mxu0
  %v4129 = vmax.f32 %v4029, %v4121
  %v4130 = vmax.f32 %v4030, %v4126
  %v4131 = vadd.f32 %v4129, %v446
  %v4132 = vadd.f32 %v4130, %v451
  %v4133 = vmax.f32 %v4131, 0.0
  %v4134 = vmax.f32 %v4132, 0.0
  %s4135 = scalar_lea.vmem %s3, 720
  %v4136 = vld [vmem:[%s4135] sm:$0xff]
  %v4137 = vld [vmem:[%s4135 + $0x8] sm:$0xff]
  %v4138 = vld [vmem:[%s4135 + $0x10] sm:$0xff]
  %v4139 = vld [vmem:[%s4135 + $0x18] sm:$0xff]
  %v4140 = vld [vmem:[%s4135 + $0x20] sm:$0xff]
  %v4141 = vld [vmem:[%s4135 + $0x28] sm:$0xff]
  %v4142 = vld [vmem:[%s4135 + $0x30] sm:$0xff]
  %v4143 = vld [vmem:[%s4135 + $0x38] sm:$0xff]
  %v4144 = vld [vmem:[%s4135 + $0x40] sm:$0xff]
  %v4145 = vld [vmem:[%s4135 + $0x48] sm:$0xff]
  %v4146 = vld [vmem:[%s4135 + $0x50] sm:$0xff]
  %v4147 = vld [vmem:[%s4135 + $0x58] sm:$0xff]
  %v4148 = vld [vmem:[%s4135 + $0x60] sm:$0xff]
  %v4149 = vld [vmem:[%s4135 + $0x68] sm:$0xff]
  %v4150 = vld [vmem:[%s4135 + $0x70] sm:$0xff]
  %v4152 = vsel %vm890, %v4136, 0
  %v4155 = vsel %vm890, %v4137, 0
  %v4158 = vsel %vm890, %v4138, 0
  %v4161 = vsel %vm890, %v4139, 0
  %v4164 = vsel %vm890, %v4140, 0
  %v4167 = vsel %vm890, %v4141, 0
  %v4170 = vsel %vm890, %v4142, 0
  %v4173 = vsel %vm890, %v4143, 0
  %v4176 = vsel %vm890, %v4144, 0
  %v4179 = vsel %vm890, %v4145, 0
  %v4182 = vsel %vm890, %v4146, 0
  %v4185 = vsel %vm890, %v4147, 0
  %v4188 = vsel %vm890, %v4148, 0
  %v4191 = vsel %vm890, %v4149, 0
  %v4194 = vsel %vm890, %v4150, 0
  %4196 = vmatprep.subr.mxu0 0.0
  %4197 = vmatpush1.msra.mxu0 0.0
  %4198 = vmatprep.subr.mxu0 0.0
  %4199 = vmatpush1.msra.mxu0 0.0
  %4200 = vmatprep.subr.mxu0 0.0
  %4201 = vmatpush1.msra.mxu0 0.0
  %4202 = vmatprep.subr.mxu0 0.0
  %4203 = vmatpush1.msra.mxu0 0.0
  %4204 = vmatprep.subr.mxu0 0.0
  %4205 = vmatpush1.msra.mxu0 0.0
  %4206 = vmatprep.subr.mxu0 0.0
  %4207 = vmatpush1.msra.mxu0 0.0
  %4208 = vmatprep.subr.mxu0 0.0
  %4209 = vmatpush1.msra.mxu0 0.0
  %4210 = vmatprep.subr.mxu0 0.0
  %4211 = vmatpush1.msra.mxu0 0.0
  %4212 = vmatprep.subr.mxu0 0.0
  %4213 = vmatpush1.msra.mxu0 0.0
  %4214 = vmatprep.subr.mxu0 0.0
  %4215 = vmatpush1.msra.mxu0 0.0
  %4216 = vmatprep.subr.mxu0 0.0
  %4217 = vmatpush1.msra.mxu0 0.0
  %4218 = vmatprep.subr.mxu0 0.0
  %4219 = vmatpush1.msra.mxu0 0.0
  %4220 = vmatprep.subr.mxu0 0.0
  %4221 = vmatpush1.msra.mxu0 0.0
  %4222 = vmatprep.subr.mxu0 0.0
  %4223 = vmatpush1.msra.mxu0 0.0
  %4224 = vmatprep.subr.mxu0 0.0
  %4225 = vmatpush1.msra.mxu0 %v4134
  %4226 = vmatprep.subr.mxu0 0.0
  %4227 = vmatpush1.msra.mxu0 %v4133
  %4228 = vmatprep.subr.mxu0 0.0
  %4229 = vmatpush2.msra.mxu0 0.0
  %4230 = vmatprep.subr.mxu0 0.0
  %4231 = vmatpush2.msra.mxu0 0.0
  %4232 = vmatprep.subr.mxu0 0.0
  %4233 = vmatpush2.msra.mxu0 0.0
  %4234 = vmatprep.subr.mxu0 0.0
  %4235 = vmatpush2.msra.mxu0 0.0
  %4236 = vmatprep.subr.mxu0 0.0
  %4237 = vmatpush2.msra.mxu0 0.0
  %4238 = vmatprep.subr.mxu0 0.0
  %4239 = vmatpush2.msra.mxu0 0.0
  %4240 = vmatprep.subr.mxu0 0.0
  %4241 = vmatpush2.msra.mxu0 0.0
  %4242 = vmatprep.subr.mxu0 0.0
  %4243 = vmatpush2.msra.mxu0 0.0
  %4244 = vmatprep.subr.mxu0 0.0
  %4245 = vmatpush2.msra.mxu0 0.0
  %4246 = vmatprep.subr.mxu0 0.0
  %4247 = vmatpush2.msra.mxu0 0.0
  %4248 = vmatprep.subr.mxu0 0.0
  %4249 = vmatpush2.msra.mxu0 0.0
  %4250 = vmatprep.subr.mxu0 0.0
  %4251 = vmatpush2.msra.mxu0 0.0
  %4252 = vmatprep.subr.mxu0 0.0
  %4253 = vmatpush2.msra.mxu0 0.0
  %4254 = vmatprep.subr.mxu0 0.0
  %4255 = vmatpush2.msra.mxu0 0.0
  %4256 = vmatprep.subr.mxu0 0.0
  %4257 = vmatpush2.msra.mxu0 0.0
  %4258 = vmatprep.subr.mxu0 0.0
  %4259 = vmatpush2.msra.mxu0 0.0
  %4260 = vmatprep.mubr.f32.mxu0 0.0
  %4261 = vmatmul.mubr.f32.gmra.mxu0 %v4152
  %v4262 = vpop.f32.mrf.mxu0
  %v4263 = vadd.f32 0.0, %v4262
  %v4264 = vpop.f32.mrf.mxu0
  %4265 = vmatprep.mubr.f32.mxu0 0.0
  %4266 = vmatmul.mubr.f32.gmra.mxu0 %v4155
  %v4267 = vpop.f32.mrf.mxu0
  %v4268 = vadd.f32 0.0, %v4267
  %v4269 = vpop.f32.mrf.mxu0
  %4270 = vmatprep.mubr.f32.mxu0 0.0
  %4271 = vmatmul.mubr.f32.gmra.mxu0 %v4158
  %v4272 = vpop.f32.mrf.mxu0
  %v4273 = vadd.f32 0.0, %v4272
  %v4274 = vpop.f32.mrf.mxu0
  %4275 = vmatprep.mubr.f32.mxu0 0.0
  %4276 = vmatmul.mubr.f32.gmra.mxu0 %v4161
  %v4277 = vpop.f32.mrf.mxu0
  %v4278 = vadd.f32 0.0, %v4277
  %v4279 = vpop.f32.mrf.mxu0
  %4280 = vmatprep.mubr.f32.mxu0 0.0
  %4281 = vmatmul.mubr.f32.gmra.mxu0 %v4164
  %v4282 = vpop.f32.mrf.mxu0
  %v4283 = vadd.f32 0.0, %v4282
  %v4284 = vpop.f32.mrf.mxu0
  %4285 = vmatprep.mubr.f32.mxu0 0.0
  %4286 = vmatmul.mubr.f32.gmra.mxu0 %v4167
  %v4287 = vpop.f32.mrf.mxu0
  %v4288 = vadd.f32 0.0, %v4287
  %v4289 = vpop.f32.mrf.mxu0
  %4290 = vmatprep.mubr.f32.mxu0 0.0
  %4291 = vmatmul.mubr.f32.gmra.mxu0 %v4170
  %v4292 = vpop.f32.mrf.mxu0
  %v4293 = vadd.f32 0.0, %v4292
  %v4294 = vpop.f32.mrf.mxu0
  %4295 = vmatprep.mubr.f32.mxu0 0.0
  %4296 = vmatmul.mubr.f32.gmra.mxu0 %v4173
  %v4297 = vpop.f32.mrf.mxu0
  %v4298 = vadd.f32 0.0, %v4297
  %v4299 = vpop.f32.mrf.mxu0
  %4300 = vmatprep.mubr.f32.mxu0 0.0
  %4301 = vmatmul.mubr.f32.gmra.mxu0 %v4176
  %v4302 = vpop.f32.mrf.mxu0
  %v4303 = vadd.f32 0.0, %v4302
  %v4304 = vpop.f32.mrf.mxu0
  %4305 = vmatprep.mubr.f32.mxu0 0.0
  %4306 = vmatmul.mubr.f32.gmra.mxu0 %v4179
  %v4307 = vpop.f32.mrf.mxu0
  %v4308 = vadd.f32 0.0, %v4307
  %v4309 = vpop.f32.mrf.mxu0
  %4310 = vmatprep.mubr.f32.mxu0 0.0
  %4311 = vmatmul.mubr.f32.gmra.mxu0 %v4182
  %v4312 = vpop.f32.mrf.mxu0
  %v4313 = vadd.f32 0.0, %v4312
  %v4314 = vpop.f32.mrf.mxu0
  %4315 = vmatprep.mubr.f32.mxu0 0.0
  %4316 = vmatmul.mubr.f32.gmra.mxu0 %v4185
  %v4317 = vpop.f32.mrf.mxu0
  %v4318 = vadd.f32 0.0, %v4317
  %v4319 = vpop.f32.mrf.mxu0
  %4320 = vmatprep.mubr.f32.mxu0 0.0
  %4321 = vmatmul.mubr.f32.gmra.mxu0 %v4188
  %v4322 = vpop.f32.mrf.mxu0
  %v4323 = vadd.f32 0.0, %v4322
  %v4324 = vpop.f32.mrf.mxu0
  %4325 = vmatprep.mubr.f32.mxu0 0.0
  %4326 = vmatmul.mubr.f32.gmra.mxu0 %v4191
  %v4327 = vpop.f32.mrf.mxu0
  %v4328 = vadd.f32 0.0, %v4327
  %v4329 = vpop.f32.mrf.mxu0
  %4330 = vmatprep.mubr.f32.mxu0 0.0
  %4331 = vmatmul.mubr.f32.gmra.mxu0 %v4194
  %v4332 = vpop.f32.mrf.mxu0
  %v4333 = vadd.f32 0.0, %v4332
  %v4334 = vpop.f32.mrf.mxu0
  %4335 = vdwg.mxu0
  %v4336 = vadd.f32 %v3718, %v4263
  %v4337 = vadd.f32 %v3719, %v4268
  %v4338 = vadd.f32 %v3720, %v4273
  %v4339 = vadd.f32 %v3721, %v4278
  %v4340 = vadd.f32 %v3722, %v4283
  %v4341 = vadd.f32 %v3723, %v4288
  %v4342 = vadd.f32 %v3724, %v4293
  %v4343 = vadd.f32 %v3725, %v4298
  %v4344 = vadd.f32 %v3726, %v4303
  %v4345 = vadd.f32 %v3727, %v4308
  %v4346 = vadd.f32 %v3728, %v4313
  %v4347 = vadd.f32 %v3729, %v4318
  %v4348 = vadd.f32 %v3730, %v4323
  %v4349 = vadd.f32 %v3731, %v4328
  %v4350 = vadd.f32 %v3732, %v4333
  %s4351 = scalar_lea.vmem %s0, 4256
  %v4352 = vld [vmem:[%s4351] sm:$0xff]
  %v4353 = vld [vmem:[%s4351 + $0x8] sm:$0xff]
  %v4354 = vld [vmem:[%s4351 + $0x10] sm:$0xff]
  %v4355 = vld [vmem:[%s4351 + $0x18] sm:$0xff]
  %v4356 = vld [vmem:[%s4351 + $0x20] sm:$0xff]
  %v4357 = vld [vmem:[%s4351 + $0x28] sm:$0xff]
  %v4358 = vld [vmem:[%s4351 + $0x30] sm:$0xff]
  %v4359 = vld [vmem:[%s4351 + $0x38] sm:$0xff]
  %v4360 = vld [vmem:[%s4351 + $0x40] sm:$0xff]
  %v4361 = vld [vmem:[%s4351 + $0x48] sm:$0xff]
  %v4362 = vld [vmem:[%s4351 + $0x50] sm:$0xff]
  %v4363 = vld [vmem:[%s4351 + $0x58] sm:$0xff]
  %v4364 = vld [vmem:[%s4351 + $0x60] sm:$0xff]
  %v4365 = vld [vmem:[%s4351 + $0x68] sm:$0xff]
  %v4366 = vld [vmem:[%s4351 + $0x70] sm:$0xff]
  %v4367 = vld [vmem:[%s4351 + $0x78] sm:$0xff]
  %v4368 = vld [vmem:[%s4351 + $0x80] sm:$0xff]
  %v4369 = vld [vmem:[%s4351 + $0x88] sm:$0xff]
  %v4370 = vld [vmem:[%s4351 + $0x90] sm:$0x3f]
  %v4372 = vsel %vm64, %v4370, 0
  %4374 = vmatprep.subr.mxu0 0.0
  %4375 = vmatpush1.msra.mxu0 %v4367
  %4376 = vmatprep.subr.mxu0 0.0
  %4377 = vmatpush1.msra.mxu0 %v4366
  %4378 = vmatprep.subr.mxu0 0.0
  %4379 = vmatpush1.msra.mxu0 %v4365
  %4380 = vmatprep.subr.mxu0 0.0
  %4381 = vmatpush1.msra.mxu0 %v4364
  %4382 = vmatprep.subr.mxu0 0.0
  %4383 = vmatpush1.msra.mxu0 %v4363
  %4384 = vmatprep.subr.mxu0 0.0
  %4385 = vmatpush1.msra.mxu0 %v4362
  %4386 = vmatprep.subr.mxu0 0.0
  %4387 = vmatpush1.msra.mxu0 %v4361
  %4388 = vmatprep.subr.mxu0 0.0
  %4389 = vmatpush1.msra.mxu0 %v4360
  %4390 = vmatprep.subr.mxu0 0.0
  %4391 = vmatpush1.msra.mxu0 %v4359
  %4392 = vmatprep.subr.mxu0 0.0
  %4393 = vmatpush1.msra.mxu0 %v4358
  %4394 = vmatprep.subr.mxu0 0.0
  %4395 = vmatpush1.msra.mxu0 %v4357
  %4396 = vmatprep.subr.mxu0 0.0
  %4397 = vmatpush1.msra.mxu0 %v4356
  %4398 = vmatprep.subr.mxu0 0.0
  %4399 = vmatpush1.msra.mxu0 %v4355
  %4400 = vmatprep.subr.mxu0 0.0
  %4401 = vmatpush1.msra.mxu0 %v4354
  %4402 = vmatprep.subr.mxu0 0.0
  %4403 = vmatpush1.msra.mxu0 %v4353
  %4404 = vmatprep.subr.mxu0 0.0
  %4405 = vmatpush1.msra.mxu0 %v4352
  %4406 = vmatprep.subr.mxu0 0.0
  %4407 = vmatpush2.msra.mxu0 0.0
  %4408 = vmatprep.subr.mxu0 0.0
  %4409 = vmatpush2.msra.mxu0 0.0
  %4410 = vmatprep.subr.mxu0 0.0
  %4411 = vmatpush2.msra.mxu0 0.0
  %4412 = vmatprep.subr.mxu0 0.0
  %4413 = vmatpush2.msra.mxu0 0.0
  %4414 = vmatprep.subr.mxu0 0.0
  %4415 = vmatpush2.msra.mxu0 0.0
  %4416 = vmatprep.subr.mxu0 0.0
  %4417 = vmatpush2.msra.mxu0 0.0
  %4418 = vmatprep.subr.mxu0 0.0
  %4419 = vmatpush2.msra.mxu0 0.0
  %4420 = vmatprep.subr.mxu0 0.0
  %4421 = vmatpush2.msra.mxu0 0.0
  %4422 = vmatprep.subr.mxu0 0.0
  %4423 = vmatpush2.msra.mxu0 0.0
  %4424 = vmatprep.subr.mxu0 0.0
  %4425 = vmatpush2.msra.mxu0 0.0
  %4426 = vmatprep.subr.mxu0 0.0
  %4427 = vmatpush2.msra.mxu0 0.0
  %4428 = vmatprep.subr.mxu0 0.0
  %4429 = vmatpush2.msra.mxu0 0.0
  %4430 = vmatprep.subr.mxu0 0.0
  %4431 = vmatpush2.msra.mxu0 0.0
  %4432 = vmatprep.subr.mxu0 0.0
  %4433 = vmatpush2.msra.mxu0 %v4372
  %4434 = vmatprep.subr.mxu0 0.0
  %4435 = vmatpush2.msra.mxu0 %v4369
  %4436 = vmatprep.subr.mxu0 0.0
  %4437 = vmatpush2.msra.mxu0 %v4368
  %4438 = vmatprep.mubr.f32.mxu0 %v59
  %4439 = vmatmul.mubr.f32.gmra.mxu0 %v32
  %v4440 = vpop.f32.mrf.mxu0
  %v4441 = vadd.f32 0.0, %v4440
  %v4442 = vpop.f32.mrf.mxu0
  %4443 = vmatprep.mubr.f32.mxu0 %v62
  %4444 = vmatmul.mubr.f32.gmra.mxu0 %v34
  %v4445 = vpop.f32.mrf.mxu0
  %v4446 = vadd.f32 0.0, %v4445
  %v4447 = vpop.f32.mrf.mxu0
  %4448 = vdwg.mxu0
  %s4449 = scalar_lea.vmem %s0, 4408
  %v4450 = vld [vmem:[%s4449] sm:$0xff]
  %v4451 = vld [vmem:[%s4449 + $0x8] sm:$0xff]
  %v4452 = vld [vmem:[%s4449 + $0x10] sm:$0xff]
  %v4453 = vld [vmem:[%s4449 + $0x18] sm:$0xff]
  %v4454 = vld [vmem:[%s4449 + $0x20] sm:$0xff]
  %v4455 = vld [vmem:[%s4449 + $0x28] sm:$0xff]
  %v4456 = vld [vmem:[%s4449 + $0x30] sm:$0xff]
  %v4457 = vld [vmem:[%s4449 + $0x38] sm:$0xff]
  %v4458 = vld [vmem:[%s4449 + $0x40] sm:$0xff]
  %v4459 = vld [vmem:[%s4449 + $0x48] sm:$0xff]
  %v4460 = vld [vmem:[%s4449 + $0x50] sm:$0xff]
  %v4461 = vld [vmem:[%s4449 + $0x58] sm:$0xff]
  %v4462 = vld [vmem:[%s4449 + $0x60] sm:$0xff]
  %v4463 = vld [vmem:[%s4449 + $0x68] sm:$0xff]
  %v4464 = vld [vmem:[%s4449 + $0x70] sm:$0xff]
  %v4465 = vld [vmem:[%s4449 + $0x78] sm:$0xff]
  %v4466 = vld [vmem:[%s4449 + $0x80] sm:$0xff]
  %v4467 = vld [vmem:[%s4449 + $0x88] sm:$0xff]
  %v4468 = vld [vmem:[%s4449 + $0x90] sm:$0x3f]
  %v4470 = vsel %vm64, %v4468, 0
  %4472 = vmatprep.subr.mxu0 0.0
  %4473 = vmatpush1.msra.mxu0 %v4465
  %4474 = vmatprep.subr.mxu0 0.0
  %4475 = vmatpush1.msra.mxu0 %v4464
  %4476 = vmatprep.subr.mxu0 0.0
  %4477 = vmatpush1.msra.mxu0 %v4463
  %4478 = vmatprep.subr.mxu0 0.0
  %4479 = vmatpush1.msra.mxu0 %v4462
  %4480 = vmatprep.subr.mxu0 0.0
  %4481 = vmatpush1.msra.mxu0 %v4461
  %4482 = vmatprep.subr.mxu0 0.0
  %4483 = vmatpush1.msra.mxu0 %v4460
  %4484 = vmatprep.subr.mxu0 0.0
  %4485 = vmatpush1.msra.mxu0 %v4459
  %4486 = vmatprep.subr.mxu0 0.0
  %4487 = vmatpush1.msra.mxu0 %v4458
  %4488 = vmatprep.subr.mxu0 0.0
  %4489 = vmatpush1.msra.mxu0 %v4457
  %4490 = vmatprep.subr.mxu0 0.0
  %4491 = vmatpush1.msra.mxu0 %v4456
  %4492 = vmatprep.subr.mxu0 0.0
  %4493 = vmatpush1.msra.mxu0 %v4455
  %4494 = vmatprep.subr.mxu0 0.0
  %4495 = vmatpush1.msra.mxu0 %v4454
  %4496 = vmatprep.subr.mxu0 0.0
  %4497 = vmatpush1.msra.mxu0 %v4453
  %4498 = vmatprep.subr.mxu0 0.0
  %4499 = vmatpush1.msra.mxu0 %v4452
  %4500 = vmatprep.subr.mxu0 0.0
  %4501 = vmatpush1.msra.mxu0 %v4451
  %4502 = vmatprep.subr.mxu0 0.0
  %4503 = vmatpush1.msra.mxu0 %v4450
  %4504 = vmatprep.subr.mxu0 0.0
  %4505 = vmatpush2.msra.mxu0 0.0
  %4506 = vmatprep.subr.mxu0 0.0
  %4507 = vmatpush2.msra.mxu0 0.0
  %4508 = vmatprep.subr.mxu0 0.0
  %4509 = vmatpush2.msra.mxu0 0.0
  %4510 = vmatprep.subr.mxu0 0.0
  %4511 = vmatpush2.msra.mxu0 0.0
  %4512 = vmatprep.subr.mxu0 0.0
  %4513 = vmatpush2.msra.mxu0 0.0
  %4514 = vmatprep.subr.mxu0 0.0
  %4515 = vmatpush2.msra.mxu0 0.0
  %4516 = vmatprep.subr.mxu0 0.0
  %4517 = vmatpush2.msra.mxu0 0.0
  %4518 = vmatprep.subr.mxu0 0.0
  %4519 = vmatpush2.msra.mxu0 0.0
  %4520 = vmatprep.subr.mxu0 0.0
  %4521 = vmatpush2.msra.mxu0 0.0
  %4522 = vmatprep.subr.mxu0 0.0
  %4523 = vmatpush2.msra.mxu0 0.0
  %4524 = vmatprep.subr.mxu0 0.0
  %4525 = vmatpush2.msra.mxu0 0.0
  %4526 = vmatprep.subr.mxu0 0.0
  %4527 = vmatpush2.msra.mxu0 0.0
  %4528 = vmatprep.subr.mxu0 0.0
  %4529 = vmatpush2.msra.mxu0 0.0
  %4530 = vmatprep.subr.mxu0 0.0
  %4531 = vmatpush2.msra.mxu0 %v4470
  %4532 = vmatprep.subr.mxu0 0.0
  %4533 = vmatpush2.msra.mxu0 %v4467
  %4534 = vmatprep.subr.mxu0 0.0
  %4535 = vmatpush2.msra.mxu0 %v4466
  %4536 = vmatprep.mubr.f32.mxu0 %v59
  %4537 = vmatmul.mubr.f32.gmra.mxu0 %v32
  %v4538 = vpop.f32.mrf.mxu0
  %v4539 = vadd.f32 0.0, %v4538
  %v4540 = vpop.f32.mrf.mxu0
  %4541 = vmatprep.mubr.f32.mxu0 %v62
  %4542 = vmatmul.mubr.f32.gmra.mxu0 %v34
  %v4543 = vpop.f32.mrf.mxu0
  %v4544 = vadd.f32 0.0, %v4543
  %v4545 = vpop.f32.mrf.mxu0
  %4546 = vdwg.mxu0
  %v4547 = vmax.f32 %v4441, %v4539
  %v4548 = vmax.f32 %v4446, %v4544
  %s4549 = scalar_lea.vmem %s0, 4560
  %v4550 = vld [vmem:[%s4549] sm:$0xff]
  %v4551 = vld [vmem:[%s4549 + $0x8] sm:$0xff]
  %v4552 = vld [vmem:[%s4549 + $0x10] sm:$0xff]
  %v4553 = vld [vmem:[%s4549 + $0x18] sm:$0xff]
  %v4554 = vld [vmem:[%s4549 + $0x20] sm:$0xff]
  %v4555 = vld [vmem:[%s4549 + $0x28] sm:$0xff]
  %v4556 = vld [vmem:[%s4549 + $0x30] sm:$0xff]
  %v4557 = vld [vmem:[%s4549 + $0x38] sm:$0xff]
  %v4558 = vld [vmem:[%s4549 + $0x40] sm:$0xff]
  %v4559 = vld [vmem:[%s4549 + $0x48] sm:$0xff]
  %v4560 = vld [vmem:[%s4549 + $0x50] sm:$0xff]
  %v4561 = vld [vmem:[%s4549 + $0x58] sm:$0xff]
  %v4562 = vld [vmem:[%s4549 + $0x60] sm:$0xff]
  %v4563 = vld [vmem:[%s4549 + $0x68] sm:$0xff]
  %v4564 = vld [vmem:[%s4549 + $0x70] sm:$0xff]
  %v4565 = vld [vmem:[%s4549 + $0x78] sm:$0xff]
  %v4566 = vld [vmem:[%s4549 + $0x80] sm:$0xff]
  %v4567 = vld [vmem:[%s4549 + $0x88] sm:$0xff]
  %v4568 = vld [vmem:[%s4549 + $0x90] sm:$0x3f]
  %v4570 = vsel %vm64, %v4568, 0
  %4572 = vmatprep.subr.mxu0 0.0
  %4573 = vmatpush1.msra.mxu0 %v4565
  %4574 = vmatprep.subr.mxu0 0.0
  %4575 = vmatpush1.msra.mxu0 %v4564
  %4576 = vmatprep.subr.mxu0 0.0
  %4577 = vmatpush1.msra.mxu0 %v4563
  %4578 = vmatprep.subr.mxu0 0.0
  %4579 = vmatpush1.msra.mxu0 %v4562
  %4580 = vmatprep.subr.mxu0 0.0
  %4581 = vmatpush1.msra.mxu0 %v4561
  %4582 = vmatprep.subr.mxu0 0.0
  %4583 = vmatpush1.msra.mxu0 %v4560
  %4584 = vmatprep.subr.mxu0 0.0
  %4585 = vmatpush1.msra.mxu0 %v4559
  %4586 = vmatprep.subr.mxu0 0.0
  %4587 = vmatpush1.msra.mxu0 %v4558
  %4588 = vmatprep.subr.mxu0 0.0
  %4589 = vmatpush1.msra.mxu0 %v4557
  %4590 = vmatprep.subr.mxu0 0.0
  %4591 = vmatpush1.msra.mxu0 %v4556
  %4592 = vmatprep.subr.mxu0 0.0
  %4593 = vmatpush1.msra.mxu0 %v4555
  %4594 = vmatprep.subr.mxu0 0.0
  %4595 = vmatpush1.msra.mxu0 %v4554
  %4596 = vmatprep.subr.mxu0 0.0
  %4597 = vmatpush1.msra.mxu0 %v4553
  %4598 = vmatprep.subr.mxu0 0.0
  %4599 = vmatpush1.msra.mxu0 %v4552
  %4600 = vmatprep.subr.mxu0 0.0
  %4601 = vmatpush1.msra.mxu0 %v4551
  %4602 = vmatprep.subr.mxu0 0.0
  %4603 = vmatpush1.msra.mxu0 %v4550
  %4604 = vmatprep.subr.mxu0 0.0
  %4605 = vmatpush2.msra.mxu0 0.0
  %4606 = vmatprep.subr.mxu0 0.0
  %4607 = vmatpush2.msra.mxu0 0.0
  %4608 = vmatprep.subr.mxu0 0.0
  %4609 = vmatpush2.msra.mxu0 0.0
  %4610 = vmatprep.subr.mxu0 0.0
  %4611 = vmatpush2.msra.mxu0 0.0
  %4612 = vmatprep.subr.mxu0 0.0
  %4613 = vmatpush2.msra.mxu0 0.0
  %4614 = vmatprep.subr.mxu0 0.0
  %4615 = vmatpush2.msra.mxu0 0.0
  %4616 = vmatprep.subr.mxu0 0.0
  %4617 = vmatpush2.msra.mxu0 0.0
  %4618 = vmatprep.subr.mxu0 0.0
  %4619 = vmatpush2.msra.mxu0 0.0
  %4620 = vmatprep.subr.mxu0 0.0
  %4621 = vmatpush2.msra.mxu0 0.0
  %4622 = vmatprep.subr.mxu0 0.0
  %4623 = vmatpush2.msra.mxu0 0.0
  %4624 = vmatprep.subr.mxu0 0.0
  %4625 = vmatpush2.msra.mxu0 0.0
  %4626 = vmatprep.subr.mxu0 0.0
  %4627 = vmatpush2.msra.mxu0 0.0
  %4628 = vmatprep.subr.mxu0 0.0
  %4629 = vmatpush2.msra.mxu0 0.0
  %4630 = vmatprep.subr.mxu0 0.0
  %4631 = vmatpush2.msra.mxu0 %v4570
  %4632 = vmatprep.subr.mxu0 0.0
  %4633 = vmatpush2.msra.mxu0 %v4567
  %4634 = vmatprep.subr.mxu0 0.0
  %4635 = vmatpush2.msra.mxu0 %v4566
  %4636 = vmatprep.mubr.f32.mxu0 %v59
  %4637 = vmatmul.mubr.f32.gmra.mxu0 %v32
  %v4638 = vpop.f32.mrf.mxu0
  %v4639 = vadd.f32 0.0, %v4638
  %v4640 = vpop.f32.mrf.mxu0
  %4641 = vmatprep.mubr.f32.mxu0 %v62
  %4642 = vmatmul.mubr.f32.gmra.mxu0 %v34
  %v4643 = vpop.f32.mrf.mxu0
  %v4644 = vadd.f32 0.0, %v4643
  %v4645 = vpop.f32.mrf.mxu0
  %4646 = vdwg.mxu0
  %v4647 = vmax.f32 %v4547, %v4639
  %v4648 = vmax.f32 %v4548, %v4644
  %s4649 = scalar_lea.vmem %s0, 4712
  %v4650 = vld [vmem:[%s4649] sm:$0xff]
  %v4651 = vld [vmem:[%s4649 + $0x8] sm:$0xff]
  %v4652 = vld [vmem:[%s4649 + $0x10] sm:$0xff]
  %v4653 = vld [vmem:[%s4649 + $0x18] sm:$0xff]
  %v4654 = vld [vmem:[%s4649 + $0x20] sm:$0xff]
  %v4655 = vld [vmem:[%s4649 + $0x28] sm:$0xff]
  %v4656 = vld [vmem:[%s4649 + $0x30] sm:$0xff]
  %v4657 = vld [vmem:[%s4649 + $0x38] sm:$0xff]
  %v4658 = vld [vmem:[%s4649 + $0x40] sm:$0xff]
  %v4659 = vld [vmem:[%s4649 + $0x48] sm:$0xff]
  %v4660 = vld [vmem:[%s4649 + $0x50] sm:$0xff]
  %v4661 = vld [vmem:[%s4649 + $0x58] sm:$0xff]
  %v4662 = vld [vmem:[%s4649 + $0x60] sm:$0xff]
  %v4663 = vld [vmem:[%s4649 + $0x68] sm:$0xff]
  %v4664 = vld [vmem:[%s4649 + $0x70] sm:$0xff]
  %v4665 = vld [vmem:[%s4649 + $0x78] sm:$0xff]
  %v4666 = vld [vmem:[%s4649 + $0x80] sm:$0xff]
  %v4667 = vld [vmem:[%s4649 + $0x88] sm:$0xff]
  %v4668 = vld [vmem:[%s4649 + $0x90] sm:$0x3f]
  %v4670 = vsel %vm64, %v4668, 0
  %4672 = vmatprep.subr.mxu0 0.0
  %4673 = vmatpush1.msra.mxu0 %v4665
  %4674 = vmatprep.subr.mxu0 0.0
  %4675 = vmatpush1.msra.mxu0 %v4664
  %4676 = vmatprep.subr.mxu0 0.0
  %4677 = vmatpush1.msra.mxu0 %v4663
  %4678 = vmatprep.subr.mxu0 0.0
  %4679 = vmatpush1.msra.mxu0 %v4662
  %4680 = vmatprep.subr.mxu0 0.0
  %4681 = vmatpush1.msra.mxu0 %v4661
  %4682 = vmatprep.subr.mxu0 0.0
  %4683 = vmatpush1.msra.mxu0 %v4660
  %4684 = vmatprep.subr.mxu0 0.0
  %4685 = vmatpush1.msra.mxu0 %v4659
  %4686 = vmatprep.subr.mxu0 0.0
  %4687 = vmatpush1.msra.mxu0 %v4658
  %4688 = vmatprep.subr.mxu0 0.0
  %4689 = vmatpush1.msra.mxu0 %v4657
  %4690 = vmatprep.subr.mxu0 0.0
  %4691 = vmatpush1.msra.mxu0 %v4656
  %4692 = vmatprep.subr.mxu0 0.0
  %4693 = vmatpush1.msra.mxu0 %v4655
  %4694 = vmatprep.subr.mxu0 0.0
  %4695 = vmatpush1.msra.mxu0 %v4654
  %4696 = vmatprep.subr.mxu0 0.0
  %4697 = vmatpush1.msra.mxu0 %v4653
  %4698 = vmatprep.subr.mxu0 0.0
  %4699 = vmatpush1.msra.mxu0 %v4652
  %4700 = vmatprep.subr.mxu0 0.0
  %4701 = vmatpush1.msra.mxu0 %v4651
  %4702 = vmatprep.subr.mxu0 0.0
  %4703 = vmatpush1.msra.mxu0 %v4650
  %4704 = vmatprep.subr.mxu0 0.0
  %4705 = vmatpush2.msra.mxu0 0.0
  %4706 = vmatprep.subr.mxu0 0.0
  %4707 = vmatpush2.msra.mxu0 0.0
  %4708 = vmatprep.subr.mxu0 0.0
  %4709 = vmatpush2.msra.mxu0 0.0
  %4710 = vmatprep.subr.mxu0 0.0
  %4711 = vmatpush2.msra.mxu0 0.0
  %4712 = vmatprep.subr.mxu0 0.0
  %4713 = vmatpush2.msra.mxu0 0.0
  %4714 = vmatprep.subr.mxu0 0.0
  %4715 = vmatpush2.msra.mxu0 0.0
  %4716 = vmatprep.subr.mxu0 0.0
  %4717 = vmatpush2.msra.mxu0 0.0
  %4718 = vmatprep.subr.mxu0 0.0
  %4719 = vmatpush2.msra.mxu0 0.0
  %4720 = vmatprep.subr.mxu0 0.0
  %4721 = vmatpush2.msra.mxu0 0.0
  %4722 = vmatprep.subr.mxu0 0.0
  %4723 = vmatpush2.msra.mxu0 0.0
  %4724 = vmatprep.subr.mxu0 0.0
  %4725 = vmatpush2.msra.mxu0 0.0
  %4726 = vmatprep.subr.mxu0 0.0
  %4727 = vmatpush2.msra.mxu0 0.0
  %4728 = vmatprep.subr.mxu0 0.0
  %4729 = vmatpush2.msra.mxu0 0.0
  %4730 = vmatprep.subr.mxu0 0.0
  %4731 = vmatpush2.msra.mxu0 %v4670
  %4732 = vmatprep.subr.mxu0 0.0
  %4733 = vmatpush2.msra.mxu0 %v4667
  %4734 = vmatprep.subr.mxu0 0.0
  %4735 = vmatpush2.msra.mxu0 %v4666
  %4736 = vmatprep.mubr.f32.mxu0 %v59
  %4737 = vmatmul.mubr.f32.gmra.mxu0 %v32
  %v4738 = vpop.f32.mrf.mxu0
  %v4739 = vadd.f32 0.0, %v4738
  %v4740 = vpop.f32.mrf.mxu0
  %4741 = vmatprep.mubr.f32.mxu0 %v62
  %4742 = vmatmul.mubr.f32.gmra.mxu0 %v34
  %v4743 = vpop.f32.mrf.mxu0
  %v4744 = vadd.f32 0.0, %v4743
  %v4745 = vpop.f32.mrf.mxu0
  %4746 = vdwg.mxu0
  %v4747 = vmax.f32 %v4647, %v4739
  %v4748 = vmax.f32 %v4648, %v4744
  %v4749 = vadd.f32 %v4747, %v446
  %v4750 = vadd.f32 %v4748, %v451
  %v4751 = vmax.f32 %v4749, 0.0
  %v4752 = vmax.f32 %v4750, 0.0
  %s4753 = scalar_lea.vmem %s3, 840
  %v4754 = vld [vmem:[%s4753] sm:$0xff]
  %v4755 = vld [vmem:[%s4753 + $0x8] sm:$0xff]
  %v4756 = vld [vmem:[%s4753 + $0x10] sm:$0xff]
  %v4757 = vld [vmem:[%s4753 + $0x18] sm:$0xff]
  %v4758 = vld [vmem:[%s4753 + $0x20] sm:$0xff]
  %v4759 = vld [vmem:[%s4753 + $0x28] sm:$0xff]
  %v4760 = vld [vmem:[%s4753 + $0x30] sm:$0xff]
  %v4761 = vld [vmem:[%s4753 + $0x38] sm:$0xff]
  %v4762 = vld [vmem:[%s4753 + $0x40] sm:$0xff]
  %v4763 = vld [vmem:[%s4753 + $0x48] sm:$0xff]
  %v4764 = vld [vmem:[%s4753 + $0x50] sm:$0xff]
  %v4765 = vld [vmem:[%s4753 + $0x58] sm:$0xff]
  %v4766 = vld [vmem:[%s4753 + $0x60] sm:$0xff]
  %v4767 = vld [vmem:[%s4753 + $0x68] sm:$0xff]
  %v4768 = vld [vmem:[%s4753 + $0x70] sm:$0xff]
  %v4770 = vsel %vm890, %v4754, 0
  %v4773 = vsel %vm890, %v4755, 0
  %v4776 = vsel %vm890, %v4756, 0
  %v4779 = vsel %vm890, %v4757, 0
  %v4782 = vsel %vm890, %v4758, 0
  %v4785 = vsel %vm890, %v4759, 0
  %v4788 = vsel %vm890, %v4760, 0
  %v4791 = vsel %vm890, %v4761, 0
  %v4794 = vsel %vm890, %v4762, 0
  %v4797 = vsel %vm890, %v4763, 0
  %v4800 = vsel %vm890, %v4764, 0
  %v4803 = vsel %vm890, %v4765, 0
  %v4806 = vsel %vm890, %v4766, 0
  %v4809 = vsel %vm890, %v4767, 0
  %v4812 = vsel %vm890, %v4768, 0
  %4814 = vmatprep.subr.mxu0 0.0
  %4815 = vmatpush1.msra.mxu0 0.0
  %4816 = vmatprep.subr.mxu0 0.0
  %4817 = vmatpush1.msra.mxu0 0.0
  %4818 = vmatprep.subr.mxu0 0.0
  %4819 = vmatpush1.msra.mxu0 0.0
  %4820 = vmatprep.subr.mxu0 0.0
  %4821 = vmatpush1.msra.mxu0 0.0
  %4822 = vmatprep.subr.mxu0 0.0
  %4823 = vmatpush1.msra.mxu0 0.0
  %4824 = vmatprep.subr.mxu0 0.0
  %4825 = vmatpush1.msra.mxu0 0.0
  %4826 = vmatprep.subr.mxu0 0.0
  %4827 = vmatpush1.msra.mxu0 0.0
  %4828 = vmatprep.subr.mxu0 0.0
  %4829 = vmatpush1.msra.mxu0 0.0
  %4830 = vmatprep.subr.mxu0 0.0
  %4831 = vmatpush1.msra.mxu0 0.0
  %4832 = vmatprep.subr.mxu0 0.0
  %4833 = vmatpush1.msra.mxu0 0.0
  %4834 = vmatprep.subr.mxu0 0.0
  %4835 = vmatpush1.msra.mxu0 0.0
  %4836 = vmatprep.subr.mxu0 0.0
  %4837 = vmatpush1.msra.mxu0 0.0
  %4838 = vmatprep.subr.mxu0 0.0
  %4839 = vmatpush1.msra.mxu0 0.0
  %4840 = vmatprep.subr.mxu0 0.0
  %4841 = vmatpush1.msra.mxu0 0.0
  %4842 = vmatprep.subr.mxu0 0.0
  %4843 = vmatpush1.msra.mxu0 %v4752
  %4844 = vmatprep.subr.mxu0 0.0
  %4845 = vmatpush1.msra.mxu0 %v4751
  %4846 = vmatprep.subr.mxu0 0.0
  %4847 = vmatpush2.msra.mxu0 0.0
  %4848 = vmatprep.subr.mxu0 0.0
  %4849 = vmatpush2.msra.mxu0 0.0
  %4850 = vmatprep.subr.mxu0 0.0
  %4851 = vmatpush2.msra.mxu0 0.0
  %4852 = vmatprep.subr.mxu0 0.0
  %4853 = vmatpush2.msra.mxu0 0.0
  %4854 = vmatprep.subr.mxu0 0.0
  %4855 = vmatpush2.msra.mxu0 0.0
  %4856 = vmatprep.subr.mxu0 0.0
  %4857 = vmatpush2.msra.mxu0 0.0
  %4858 = vmatprep.subr.mxu0 0.0
  %4859 = vmatpush2.msra.mxu0 0.0
  %4860 = vmatprep.subr.mxu0 0.0
  %4861 = vmatpush2.msra.mxu0 0.0
  %4862 = vmatprep.subr.mxu0 0.0
  %4863 = vmatpush2.msra.mxu0 0.0
  %4864 = vmatprep.subr.mxu0 0.0
  %4865 = vmatpush2.msra.mxu0 0.0
  %4866 = vmatprep.subr.mxu0 0.0
  %4867 = vmatpush2.msra.mxu0 0.0
  %4868 = vmatprep.subr.mxu0 0.0
  %4869 = vmatpush2.msra.mxu0 0.0
  %4870 = vmatprep.subr.mxu0 0.0
  %4871 = vmatpush2.msra.mxu0 0.0
  %4872 = vmatprep.subr.mxu0 0.0
  %4873 = vmatpush2.msra.mxu0 0.0
  %4874 = vmatprep.subr.mxu0 0.0
  %4875 = vmatpush2.msra.mxu0 0.0
  %4876 = vmatprep.subr.mxu0 0.0
  %4877 = vmatpush2.msra.mxu0 0.0
  %4878 = vmatprep.mubr.f32.mxu0 0.0
  %4879 = vmatmul.mubr.f32.gmra.mxu0 %v4770
  %v4880 = vpop.f32.mrf.mxu0
  %v4881 = vadd.f32 0.0, %v4880
  %v4882 = vpop.f32.mrf.mxu0
  %4883 = vmatprep.mubr.f32.mxu0 0.0
  %4884 = vmatmul.mubr.f32.gmra.mxu0 %v4773
  %v4885 = vpop.f32.mrf.mxu0
  %v4886 = vadd.f32 0.0, %v4885
  %v4887 = vpop.f32.mrf.mxu0
  %4888 = vmatprep.mubr.f32.mxu0 0.0
  %4889 = vmatmul.mubr.f32.gmra.mxu0 %v4776
  %v4890 = vpop.f32.mrf.mxu0
  %v4891 = vadd.f32 0.0, %v4890
  %v4892 = vpop.f32.mrf.mxu0
  %4893 = vmatprep.mubr.f32.mxu0 0.0
  %4894 = vmatmul.mubr.f32.gmra.mxu0 %v4779
  %v4895 = vpop.f32.mrf.mxu0
  %v4896 = vadd.f32 0.0, %v4895
  %v4897 = vpop.f32.mrf.mxu0
  %4898 = vmatprep.mubr.f32.mxu0 0.0
  %4899 = vmatmul.mubr.f32.gmra.mxu0 %v4782
  %v4900 = vpop.f32.mrf.mxu0
  %v4901 = vadd.f32 0.0, %v4900
  %v4902 = vpop.f32.mrf.mxu0
  %4903 = vmatprep.mubr.f32.mxu0 0.0
  %4904 = vmatmul.mubr.f32.gmra.mxu0 %v4785
  %v4905 = vpop.f32.mrf.mxu0
  %v4906 = vadd.f32 0.0, %v4905
  %v4907 = vpop.f32.mrf.mxu0
  %4908 = vmatprep.mubr.f32.mxu0 0.0
  %4909 = vmatmul.mubr.f32.gmra.mxu0 %v4788
  %v4910 = vpop.f32.mrf.mxu0
  %v4911 = vadd.f32 0.0, %v4910
  %v4912 = vpop.f32.mrf.mxu0
  %4913 = vmatprep.mubr.f32.mxu0 0.0
  %4914 = vmatmul.mubr.f32.gmra.mxu0 %v4791
  %v4915 = vpop.f32.mrf.mxu0
  %v4916 = vadd.f32 0.0, %v4915
  %v4917 = vpop.f32.mrf.mxu0
  %4918 = vmatprep.mubr.f32.mxu0 0.0
  %4919 = vmatmul.mubr.f32.gmra.mxu0 %v4794
  %v4920 = vpop.f32.mrf.mxu0
  %v4921 = vadd.f32 0.0, %v4920
  %v4922 = vpop.f32.mrf.mxu0
  %4923 = vmatprep.mubr.f32.mxu0 0.0
  %4924 = vmatmul.mubr.f32.gmra.mxu0 %v4797
  %v4925 = vpop.f32.mrf.mxu0
  %v4926 = vadd.f32 0.0, %v4925
  %v4927 = vpop.f32.mrf.mxu0
  %4928 = vmatprep.mubr.f32.mxu0 0.0
  %4929 = vmatmul.mubr.f32.gmra.mxu0 %v4800
  %v4930 = vpop.f32.mrf.mxu0
  %v4931 = vadd.f32 0.0, %v4930
  %v4932 = vpop.f32.mrf.mxu0
  %4933 = vmatprep.mubr.f32.mxu0 0.0
  %4934 = vmatmul.mubr.f32.gmra.mxu0 %v4803
  %v4935 = vpop.f32.mrf.mxu0
  %v4936 = vadd.f32 0.0, %v4935
  %v4937 = vpop.f32.mrf.mxu0
  %4938 = vmatprep.mubr.f32.mxu0 0.0
  %4939 = vmatmul.mubr.f32.gmra.mxu0 %v4806
  %v4940 = vpop.f32.mrf.mxu0
  %v4941 = vadd.f32 0.0, %v4940
  %v4942 = vpop.f32.mrf.mxu0
  %4943 = vmatprep.mubr.f32.mxu0 0.0
  %4944 = vmatmul.mubr.f32.gmra.mxu0 %v4809
  %v4945 = vpop.f32.mrf.mxu0
  %v4946 = vadd.f32 0.0, %v4945
  %v4947 = vpop.f32.mrf.mxu0
  %4948 = vmatprep.mubr.f32.mxu0 0.0
  %4949 = vmatmul.mubr.f32.gmra.mxu0 %v4812
  %v4950 = vpop.f32.mrf.mxu0
  %v4951 = vadd.f32 0.0, %v4950
  %v4952 = vpop.f32.mrf.mxu0
  %4953 = vdwg.mxu0
  %v4954 = vadd.f32 %v4336, %v4881
  %v4955 = vadd.f32 %v4337, %v4886
  %v4956 = vadd.f32 %v4338, %v4891
  %v4957 = vadd.f32 %v4339, %v4896
  %v4958 = vadd.f32 %v4340, %v4901
  %v4959 = vadd.f32 %v4341, %v4906
  %v4960 = vadd.f32 %v4342, %v4911
  %v4961 = vadd.f32 %v4343, %v4916
  %v4962 = vadd.f32 %v4344, %v4921
  %v4963 = vadd.f32 %v4345, %v4926
  %v4964 = vadd.f32 %v4346, %v4931
  %v4965 = vadd.f32 %v4347, %v4936
  %v4966 = vadd.f32 %v4348, %v4941
  %v4967 = vadd.f32 %v4349, %v4946
  %v4968 = vadd.f32 %v4350, %v4951
  %s4969 = scalar_lea.vmem %s0, 4864
  %v4970 = vld [vmem:[%s4969] sm:$0xff]
  %v4971 = vld [vmem:[%s4969 + $0x8] sm:$0xff]
  %v4972 = vld [vmem:[%s4969 + $0x10] sm:$0xff]
  %v4973 = vld [vmem:[%s4969 + $0x18] sm:$0xff]
  %v4974 = vld [vmem:[%s4969 + $0x20] sm:$0xff]
  %v4975 = vld [vmem:[%s4969 + $0x28] sm:$0xff]
  %v4976 = vld [vmem:[%s4969 + $0x30] sm:$0xff]
  %v4977 = vld [vmem:[%s4969 + $0x38] sm:$0xff]
  %v4978 = vld [vmem:[%s4969 + $0x40] sm:$0xff]
  %v4979 = vld [vmem:[%s4969 + $0x48] sm:$0xff]
  %v4980 = vld [vmem:[%s4969 + $0x50] sm:$0xff]
  %v4981 = vld [vmem:[%s4969 + $0x58] sm:$0xff]
  %v4982 = vld [vmem:[%s4969 + $0x60] sm:$0xff]
  %v4983 = vld [vmem:[%s4969 + $0x68] sm:$0xff]
  %v4984 = vld [vmem:[%s4969 + $0x70] sm:$0xff]
  %v4985 = vld [vmem:[%s4969 + $0x78] sm:$0xff]
  %v4986 = vld [vmem:[%s4969 + $0x80] sm:$0xff]
  %v4987 = vld [vmem:[%s4969 + $0x88] sm:$0xff]
  %v4988 = vld [vmem:[%s4969 + $0x90] sm:$0x3f]
  %v4990 = vsel %vm64, %v4988, 0
  %4992 = vmatprep.subr.mxu0 0.0
  %4993 = vmatpush1.msra.mxu0 %v4985
  %4994 = vmatprep.subr.mxu0 0.0
  %4995 = vmatpush1.msra.mxu0 %v4984
  %4996 = vmatprep.subr.mxu0 0.0
  %4997 = vmatpush1.msra.mxu0 %v4983
  %4998 = vmatprep.subr.mxu0 0.0
  %4999 = vmatpush1.msra.mxu0 %v4982
  %5000 = vmatprep.subr.mxu0 0.0
  %5001 = vmatpush1.msra.mxu0 %v4981
  %5002 = vmatprep.subr.mxu0 0.0
  %5003 = vmatpush1.msra.mxu0 %v4980
  %5004 = vmatprep.subr.mxu0 0.0
  %5005 = vmatpush1.msra.mxu0 %v4979
  %5006 = vmatprep.subr.mxu0 0.0
  %5007 = vmatpush1.msra.mxu0 %v4978
  %5008 = vmatprep.subr.mxu0 0.0
  %5009 = vmatpush1.msra.mxu0 %v4977
  %5010 = vmatprep.subr.mxu0 0.0
  %5011 = vmatpush1.msra.mxu0 %v4976
  %5012 = vmatprep.subr.mxu0 0.0
  %5013 = vmatpush1.msra.mxu0 %v4975
  %5014 = vmatprep.subr.mxu0 0.0
  %5015 = vmatpush1.msra.mxu0 %v4974
  %5016 = vmatprep.subr.mxu0 0.0
  %5017 = vmatpush1.msra.mxu0 %v4973
  %5018 = vmatprep.subr.mxu0 0.0
  %5019 = vmatpush1.msra.mxu0 %v4972
  %5020 = vmatprep.subr.mxu0 0.0
  %5021 = vmatpush1.msra.mxu0 %v4971
  %5022 = vmatprep.subr.mxu0 0.0
  %5023 = vmatpush1.msra.mxu0 %v4970
  %5024 = vmatprep.subr.mxu0 0.0
  %5025 = vmatpush2.msra.mxu0 0.0
  %5026 = vmatprep.subr.mxu0 0.0
  %5027 = vmatpush2.msra.mxu0 0.0
  %5028 = vmatprep.subr.mxu0 0.0
  %5029 = vmatpush2.msra.mxu0 0.0
  %5030 = vmatprep.subr.mxu0 0.0
  %5031 = vmatpush2.msra.mxu0 0.0
  %5032 = vmatprep.subr.mxu0 0.0
  %5033 = vmatpush2.msra.mxu0 0.0
  %5034 = vmatprep.subr.mxu0 0.0
  %5035 = vmatpush2.msra.mxu0 0.0
  %5036 = vmatprep.subr.mxu0 0.0
  %5037 = vmatpush2.msra.mxu0 0.0
  %5038 = vmatprep.subr.mxu0 0.0
  %5039 = vmatpush2.msra.mxu0 0.0
  %5040 = vmatprep.subr.mxu0 0.0
  %5041 = vmatpush2.msra.mxu0 0.0
  %5042 = vmatprep.subr.mxu0 0.0
  %5043 = vmatpush2.msra.mxu0 0.0
  %5044 = vmatprep.subr.mxu0 0.0
  %5045 = vmatpush2.msra.mxu0 0.0
  %5046 = vmatprep.subr.mxu0 0.0
  %5047 = vmatpush2.msra.mxu0 0.0
  %5048 = vmatprep.subr.mxu0 0.0
  %5049 = vmatpush2.msra.mxu0 0.0
  %5050 = vmatprep.subr.mxu0 0.0
  %5051 = vmatpush2.msra.mxu0 %v4990
  %5052 = vmatprep.subr.mxu0 0.0
  %5053 = vmatpush2.msra.mxu0 %v4987
  %5054 = vmatprep.subr.mxu0 0.0
  %5055 = vmatpush2.msra.mxu0 %v4986
  %5056 = vmatprep.mubr.f32.mxu0 %v59
  %5057 = vmatmul.mubr.f32.gmra.mxu0 %v32
  %v5058 = vpop.f32.mrf.mxu0
  %v5059 = vadd.f32 0.0, %v5058
  %v5060 = vpop.f32.mrf.mxu0
  %5061 = vmatprep.mubr.f32.mxu0 %v62
  %5062 = vmatmul.mubr.f32.gmra.mxu0 %v34
  %v5063 = vpop.f32.mrf.mxu0
  %v5064 = vadd.f32 0.0, %v5063
  %v5065 = vpop.f32.mrf.mxu0
  %5066 = vdwg.mxu0
  %s5067 = scalar_lea.vmem %s0, 5016
  %v5068 = vld [vmem:[%s5067] sm:$0xff]
  %v5069 = vld [vmem:[%s5067 + $0x8] sm:$0xff]
  %v5070 = vld [vmem:[%s5067 + $0x10] sm:$0xff]
  %v5071 = vld [vmem:[%s5067 + $0x18] sm:$0xff]
  %v5072 = vld [vmem:[%s5067 + $0x20] sm:$0xff]
  %v5073 = vld [vmem:[%s5067 + $0x28] sm:$0xff]
  %v5074 = vld [vmem:[%s5067 + $0x30] sm:$0xff]
  %v5075 = vld [vmem:[%s5067 + $0x38] sm:$0xff]
  %v5076 = vld [vmem:[%s5067 + $0x40] sm:$0xff]
  %v5077 = vld [vmem:[%s5067 + $0x48] sm:$0xff]
  %v5078 = vld [vmem:[%s5067 + $0x50] sm:$0xff]
  %v5079 = vld [vmem:[%s5067 + $0x58] sm:$0xff]
  %v5080 = vld [vmem:[%s5067 + $0x60] sm:$0xff]
  %v5081 = vld [vmem:[%s5067 + $0x68] sm:$0xff]
  %v5082 = vld [vmem:[%s5067 + $0x70] sm:$0xff]
  %v5083 = vld [vmem:[%s5067 + $0x78] sm:$0xff]
  %v5084 = vld [vmem:[%s5067 + $0x80] sm:$0xff]
  %v5085 = vld [vmem:[%s5067 + $0x88] sm:$0xff]
  %v5086 = vld [vmem:[%s5067 + $0x90] sm:$0x3f]
  %v5088 = vsel %vm64, %v5086, 0
  %5090 = vmatprep.subr.mxu0 0.0
  %5091 = vmatpush1.msra.mxu0 %v5083
  %5092 = vmatprep.subr.mxu0 0.0
  %5093 = vmatpush1.msra.mxu0 %v5082
  %5094 = vmatprep.subr.mxu0 0.0
  %5095 = vmatpush1.msra.mxu0 %v5081
  %5096 = vmatprep.subr.mxu0 0.0
  %5097 = vmatpush1.msra.mxu0 %v5080
  %5098 = vmatprep.subr.mxu0 0.0
  %5099 = vmatpush1.msra.mxu0 %v5079
  %5100 = vmatprep.subr.mxu0 0.0
  %5101 = vmatpush1.msra.mxu0 %v5078
  %5102 = vmatprep.subr.mxu0 0.0
  %5103 = vmatpush1.msra.mxu0 %v5077
  %5104 = vmatprep.subr.mxu0 0.0
  %5105 = vmatpush1.msra.mxu0 %v5076
  %5106 = vmatprep.subr.mxu0 0.0
  %5107 = vmatpush1.msra.mxu0 %v5075
  %5108 = vmatprep.subr.mxu0 0.0
  %5109 = vmatpush1.msra.mxu0 %v5074
  %5110 = vmatprep.subr.mxu0 0.0
  %5111 = vmatpush1.msra.mxu0 %v5073
  %5112 = vmatprep.subr.mxu0 0.0
  %5113 = vmatpush1.msra.mxu0 %v5072
  %5114 = vmatprep.subr.mxu0 0.0
  %5115 = vmatpush1.msra.mxu0 %v5071
  %5116 = vmatprep.subr.mxu0 0.0
  %5117 = vmatpush1.msra.mxu0 %v5070
  %5118 = vmatprep.subr.mxu0 0.0
  %5119 = vmatpush1.msra.mxu0 %v5069
  %5120 = vmatprep.subr.mxu0 0.0
  %5121 = vmatpush1.msra.mxu0 %v5068
  %5122 = vmatprep.subr.mxu0 0.0
  %5123 = vmatpush2.msra.mxu0 0.0
  %5124 = vmatprep.subr.mxu0 0.0
  %5125 = vmatpush2.msra.mxu0 0.0
  %5126 = vmatprep.subr.mxu0 0.0
  %5127 = vmatpush2.msra.mxu0 0.0
  %5128 = vmatprep.subr.mxu0 0.0
  %5129 = vmatpush2.msra.mxu0 0.0
  %5130 = vmatprep.subr.mxu0 0.0
  %5131 = vmatpush2.msra.mxu0 0.0
  %5132 = vmatprep.subr.mxu0 0.0
  %5133 = vmatpush2.msra.mxu0 0.0
  %5134 = vmatprep.subr.mxu0 0.0
  %5135 = vmatpush2.msra.mxu0 0.0
  %5136 = vmatprep.subr.mxu0 0.0
  %5137 = vmatpush2.msra.mxu0 0.0
  %5138 = vmatprep.subr.mxu0 0.0
  %5139 = vmatpush2.msra.mxu0 0.0
  %5140 = vmatprep.subr.mxu0 0.0
  %5141 = vmatpush2.msra.mxu0 0.0
  %5142 = vmatprep.subr.mxu0 0.0
  %5143 = vmatpush2.msra.mxu0 0.0
  %5144 = vmatprep.subr.mxu0 0.0
  %5145 = vmatpush2.msra.mxu0 0.0
  %5146 = vmatprep.subr.mxu0 0.0
  %5147 = vmatpush2.msra.mxu0 0.0
  %5148 = vmatprep.subr.mxu0 0.0
  %5149 = vmatpush2.msra.mxu0 %v5088
  %5150 = vmatprep.subr.mxu0 0.0
  %5151 = vmatpush2.msra.mxu0 %v5085
  %5152 = vmatprep.subr.mxu0 0.0
  %5153 = vmatpush2.msra.mxu0 %v5084
  %5154 = vmatprep.mubr.f32.mxu0 %v59
  %5155 = vmatmul.mubr.f32.gmra.mxu0 %v32
  %v5156 = vpop.f32.mrf.mxu0
  %v5157 = vadd.f32 0.0, %v5156
  %v5158 = vpop.f32.mrf.mxu0
  %5159 = vmatprep.mubr.f32.mxu0 %v62
  %5160 = vmatmul.mubr.f32.gmra.mxu0 %v34
  %v5161 = vpop.f32.mrf.mxu0
  %v5162 = vadd.f32 0.0, %v5161
  %v5163 = vpop.f32.mrf.mxu0
  %5164 = vdwg.mxu0
  %v5165 = vmax.f32 %v5059, %v5157
  %v5166 = vmax.f32 %v5064, %v5162
  %s5167 = scalar_lea.vmem %s0, 5168
  %v5168 = vld [vmem:[%s5167] sm:$0xff]
  %v5169 = vld [vmem:[%s5167 + $0x8] sm:$0xff]
  %v5170 = vld [vmem:[%s5167 + $0x10] sm:$0xff]
  %v5171 = vld [vmem:[%s5167 + $0x18] sm:$0xff]
  %v5172 = vld [vmem:[%s5167 + $0x20] sm:$0xff]
  %v5173 = vld [vmem:[%s5167 + $0x28] sm:$0xff]
  %v5174 = vld [vmem:[%s5167 + $0x30] sm:$0xff]
  %v5175 = vld [vmem:[%s5167 + $0x38] sm:$0xff]
  %v5176 = vld [vmem:[%s5167 + $0x40] sm:$0xff]
  %v5177 = vld [vmem:[%s5167 + $0x48] sm:$0xff]
  %v5178 = vld [vmem:[%s5167 + $0x50] sm:$0xff]
  %v5179 = vld [vmem:[%s5167 + $0x58] sm:$0xff]
  %v5180 = vld [vmem:[%s5167 + $0x60] sm:$0xff]
  %v5181 = vld [vmem:[%s5167 + $0x68] sm:$0xff]
  %v5182 = vld [vmem:[%s5167 + $0x70] sm:$0xff]
  %v5183 = vld [vmem:[%s5167 + $0x78] sm:$0xff]
  %v5184 = vld [vmem:[%s5167 + $0x80] sm:$0xff]
  %v5185 = vld [vmem:[%s5167 + $0x88] sm:$0xff]
  %v5186 = vld [vmem:[%s5167 + $0x90] sm:$0x3f]
  %v5188 = vsel %vm64, %v5186, 0
  %5190 = vmatprep.subr.mxu0 0.0
  %5191 = vmatpush1.msra.mxu0 %v5183
  %5192 = vmatprep.subr.mxu0 0.0
  %5193 = vmatpush1.msra.mxu0 %v5182
  %5194 = vmatprep.subr.mxu0 0.0
  %5195 = vmatpush1.msra.mxu0 %v5181
  %5196 = vmatprep.subr.mxu0 0.0
  %5197 = vmatpush1.msra.mxu0 %v5180
  %5198 = vmatprep.subr.mxu0 0.0
  %5199 = vmatpush1.msra.mxu0 %v5179
  %5200 = vmatprep.subr.mxu0 0.0
  %5201 = vmatpush1.msra.mxu0 %v5178
  %5202 = vmatprep.subr.mxu0 0.0
  %5203 = vmatpush1.msra.mxu0 %v5177
  %5204 = vmatprep.subr.mxu0 0.0
  %5205 = vmatpush1.msra.mxu0 %v5176
  %5206 = vmatprep.subr.mxu0 0.0
  %5207 = vmatpush1.msra.mxu0 %v5175
  %5208 = vmatprep.subr.mxu0 0.0
  %5209 = vmatpush1.msra.mxu0 %v5174
  %5210 = vmatprep.subr.mxu0 0.0
  %5211 = vmatpush1.msra.mxu0 %v5173
  %5212 = vmatprep.subr.mxu0 0.0
  %5213 = vmatpush1.msra.mxu0 %v5172
  %5214 = vmatprep.subr.mxu0 0.0
  %5215 = vmatpush1.msra.mxu0 %v5171
  %5216 = vmatprep.subr.mxu0 0.0
  %5217 = vmatpush1.msra.mxu0 %v5170
  %5218 = vmatprep.subr.mxu0 0.0
  %5219 = vmatpush1.msra.mxu0 %v5169
  %5220 = vmatprep.subr.mxu0 0.0
  %5221 = vmatpush1.msra.mxu0 %v5168
  %5222 = vmatprep.subr.mxu0 0.0
  %5223 = vmatpush2.msra.mxu0 0.0
  %5224 = vmatprep.subr.mxu0 0.0
  %5225 = vmatpush2.msra.mxu0 0.0
  %5226 = vmatprep.subr.mxu0 0.0
  %5227 = vmatpush2.msra.mxu0 0.0
  %5228 = vmatprep.subr.mxu0 0.0
  %5229 = vmatpush2.msra.mxu0 0.0
  %5230 = vmatprep.subr.mxu0 0.0
  %5231 = vmatpush2.msra.mxu0 0.0
  %5232 = vmatprep.subr.mxu0 0.0
  %5233 = vmatpush2.msra.mxu0 0.0
  %5234 = vmatprep.subr.mxu0 0.0
  %5235 = vmatpush2.msra.mxu0 0.0
  %5236 = vmatprep.subr.mxu0 0.0
  %5237 = vmatpush2.msra.mxu0 0.0
  %5238 = vmatprep.subr.mxu0 0.0
  %5239 = vmatpush2.msra.mxu0 0.0
  %5240 = vmatprep.subr.mxu0 0.0
  %5241 = vmatpush2.msra.mxu0 0.0
  %5242 = vmatprep.subr.mxu0 0.0
  %5243 = vmatpush2.msra.mxu0 0.0
  %5244 = vmatprep.subr.mxu0 0.0
  %5245 = vmatpush2.msra.mxu0 0.0
  %5246 = vmatprep.subr.mxu0 0.0
  %5247 = vmatpush2.msra.mxu0 0.0
  %5248 = vmatprep.subr.mxu0 0.0
  %5249 = vmatpush2.msra.mxu0 %v5188
  %5250 = vmatprep.subr.mxu0 0.0
  %5251 = vmatpush2.msra.mxu0 %v5185
  %5252 = vmatprep.subr.mxu0 0.0
  %5253 = vmatpush2.msra.mxu0 %v5184
  %5254 = vmatprep.mubr.f32.mxu0 %v59
  %5255 = vmatmul.mubr.f32.gmra.mxu0 %v32
  %v5256 = vpop.f32.mrf.mxu0
  %v5257 = vadd.f32 0.0, %v5256
  %v5258 = vpop.f32.mrf.mxu0
  %5259 = vmatprep.mubr.f32.mxu0 %v62
  %5260 = vmatmul.mubr.f32.gmra.mxu0 %v34
  %v5261 = vpop.f32.mrf.mxu0
  %v5262 = vadd.f32 0.0, %v5261
  %v5263 = vpop.f32.mrf.mxu0
  %5264 = vdwg.mxu0
  %v5265 = vmax.f32 %v5165, %v5257
  %v5266 = vmax.f32 %v5166, %v5262
  %s5267 = scalar_lea.vmem %s0, 5320
  %v5268 = vld [vmem:[%s5267] sm:$0xff]
  %v5269 = vld [vmem:[%s5267 + $0x8] sm:$0xff]
  %v5270 = vld [vmem:[%s5267 + $0x10] sm:$0xff]
  %v5271 = vld [vmem:[%s5267 + $0x18] sm:$0xff]
  %v5272 = vld [vmem:[%s5267 + $0x20] sm:$0xff]
  %v5273 = vld [vmem:[%s5267 + $0x28] sm:$0xff]
  %v5274 = vld [vmem:[%s5267 + $0x30] sm:$0xff]
  %v5275 = vld [vmem:[%s5267 + $0x38] sm:$0xff]
  %v5276 = vld [vmem:[%s5267 + $0x40] sm:$0xff]
  %v5277 = vld [vmem:[%s5267 + $0x48] sm:$0xff]
  %v5278 = vld [vmem:[%s5267 + $0x50] sm:$0xff]
  %v5279 = vld [vmem:[%s5267 + $0x58] sm:$0xff]
  %v5280 = vld [vmem:[%s5267 + $0x60] sm:$0xff]
  %v5281 = vld [vmem:[%s5267 + $0x68] sm:$0xff]
  %v5282 = vld [vmem:[%s5267 + $0x70] sm:$0xff]
  %v5283 = vld [vmem:[%s5267 + $0x78] sm:$0xff]
  %v5284 = vld [vmem:[%s5267 + $0x80] sm:$0xff]
  %v5285 = vld [vmem:[%s5267 + $0x88] sm:$0xff]
  %v5286 = vld [vmem:[%s5267 + $0x90] sm:$0x3f]
  %v5288 = vsel %vm64, %v5286, 0
  %5290 = vmatprep.subr.mxu0 0.0
  %5291 = vmatpush1.msra.mxu0 %v5283
  %5292 = vmatprep.subr.mxu0 0.0
  %5293 = vmatpush1.msra.mxu0 %v5282
  %5294 = vmatprep.subr.mxu0 0.0
  %5295 = vmatpush1.msra.mxu0 %v5281
  %5296 = vmatprep.subr.mxu0 0.0
  %5297 = vmatpush1.msra.mxu0 %v5280
  %5298 = vmatprep.subr.mxu0 0.0
  %5299 = vmatpush1.msra.mxu0 %v5279
  %5300 = vmatprep.subr.mxu0 0.0
  %5301 = vmatpush1.msra.mxu0 %v5278
  %5302 = vmatprep.subr.mxu0 0.0
  %5303 = vmatpush1.msra.mxu0 %v5277
  %5304 = vmatprep.subr.mxu0 0.0
  %5305 = vmatpush1.msra.mxu0 %v5276
  %5306 = vmatprep.subr.mxu0 0.0
  %5307 = vmatpush1.msra.mxu0 %v5275
  %5308 = vmatprep.subr.mxu0 0.0
  %5309 = vmatpush1.msra.mxu0 %v5274
  %5310 = vmatprep.subr.mxu0 0.0
  %5311 = vmatpush1.msra.mxu0 %v5273
  %5312 = vmatprep.subr.mxu0 0.0
  %5313 = vmatpush1.msra.mxu0 %v5272
  %5314 = vmatprep.subr.mxu0 0.0
  %5315 = vmatpush1.msra.mxu0 %v5271
  %5316 = vmatprep.subr.mxu0 0.0
  %5317 = vmatpush1.msra.mxu0 %v5270
  %5318 = vmatprep.subr.mxu0 0.0
  %5319 = vmatpush1.msra.mxu0 %v5269
  %5320 = vmatprep.subr.mxu0 0.0
  %5321 = vmatpush1.msra.mxu0 %v5268
  %5322 = vmatprep.subr.mxu0 0.0
  %5323 = vmatpush2.msra.mxu0 0.0
  %5324 = vmatprep.subr.mxu0 0.0
  %5325 = vmatpush2.msra.mxu0 0.0
  %5326 = vmatprep.subr.mxu0 0.0
  %5327 = vmatpush2.msra.mxu0 0.0
  %5328 = vmatprep.subr.mxu0 0.0
  %5329 = vmatpush2.msra.mxu0 0.0
  %5330 = vmatprep.subr.mxu0 0.0
  %5331 = vmatpush2.msra.mxu0 0.0
  %5332 = vmatprep.subr.mxu0 0.0
  %5333 = vmatpush2.msra.mxu0 0.0
  %5334 = vmatprep.subr.mxu0 0.0
  %5335 = vmatpush2.msra.mxu0 0.0
  %5336 = vmatprep.subr.mxu0 0.0
  %5337 = vmatpush2.msra.mxu0 0.0
  %5338 = vmatprep.subr.mxu0 0.0
  %5339 = vmatpush2.msra.mxu0 0.0
  %5340 = vmatprep.subr.mxu0 0.0
  %5341 = vmatpush2.msra.mxu0 0.0
  %5342 = vmatprep.subr.mxu0 0.0
  %5343 = vmatpush2.msra.mxu0 0.0
  %5344 = vmatprep.subr.mxu0 0.0
  %5345 = vmatpush2.msra.mxu0 0.0
  %5346 = vmatprep.subr.mxu0 0.0
  %5347 = vmatpush2.msra.mxu0 0.0
  %5348 = vmatprep.subr.mxu0 0.0
  %5349 = vmatpush2.msra.mxu0 %v5288
  %5350 = vmatprep.subr.mxu0 0.0
  %5351 = vmatpush2.msra.mxu0 %v5285
  %5352 = vmatprep.subr.mxu0 0.0
  %5353 = vmatpush2.msra.mxu0 %v5284
  %5354 = vmatprep.mubr.f32.mxu0 %v59
  %5355 = vmatmul.mubr.f32.gmra.mxu0 %v32
  %v5356 = vpop.f32.mrf.mxu0
  %v5357 = vadd.f32 0.0, %v5356
  %v5358 = vpop.f32.mrf.mxu0
  %5359 = vmatprep.mubr.f32.mxu0 %v62
  %5360 = vmatmul.mubr.f32.gmra.mxu0 %v34
  %v5361 = vpop.f32.mrf.mxu0
  %v5362 = vadd.f32 0.0, %v5361
  %v5363 = vpop.f32.mrf.mxu0
  %5364 = vdwg.mxu0
  %v5365 = vmax.f32 %v5265, %v5357
  %v5366 = vmax.f32 %v5266, %v5362
  %v5367 = vadd.f32 %v5365, %v446
  %v5368 = vadd.f32 %v5366, %v451
  %v5369 = vmax.f32 %v5367, 0.0
  %v5370 = vmax.f32 %v5368, 0.0
  %s5371 = scalar_lea.vmem %s3, 960
  %v5372 = vld [vmem:[%s5371] sm:$0xff]
  %v5373 = vld [vmem:[%s5371 + $0x8] sm:$0xff]
  %v5374 = vld [vmem:[%s5371 + $0x10] sm:$0xff]
  %v5375 = vld [vmem:[%s5371 + $0x18] sm:$0xff]
  %v5376 = vld [vmem:[%s5371 + $0x20] sm:$0xff]
  %v5377 = vld [vmem:[%s5371 + $0x28] sm:$0xff]
  %v5378 = vld [vmem:[%s5371 + $0x30] sm:$0xff]
  %v5379 = vld [vmem:[%s5371 + $0x38] sm:$0xff]
  %v5380 = vld [vmem:[%s5371 + $0x40] sm:$0xff]
  %v5381 = vld [vmem:[%s5371 + $0x48] sm:$0xff]
  %v5382 = vld [vmem:[%s5371 + $0x50] sm:$0xff]
  %v5383 = vld [vmem:[%s5371 + $0x58] sm:$0xff]
  %v5384 = vld [vmem:[%s5371 + $0x60] sm:$0xff]
  %v5385 = vld [vmem:[%s5371 + $0x68] sm:$0xff]
  %v5386 = vld [vmem:[%s5371 + $0x70] sm:$0xff]
  %v5388 = vsel %vm890, %v5372, 0
  %v5391 = vsel %vm890, %v5373, 0
  %v5394 = vsel %vm890, %v5374, 0
  %v5397 = vsel %vm890, %v5375, 0
  %v5400 = vsel %vm890, %v5376, 0
  %v5403 = vsel %vm890, %v5377, 0
  %v5406 = vsel %vm890, %v5378, 0
  %v5409 = vsel %vm890, %v5379, 0
  %v5412 = vsel %vm890, %v5380, 0
  %v5415 = vsel %vm890, %v5381, 0
  %v5418 = vsel %vm890, %v5382, 0
  %v5421 = vsel %vm890, %v5383, 0
  %v5424 = vsel %vm890, %v5384, 0
  %v5427 = vsel %vm890, %v5385, 0
  %v5430 = vsel %vm890, %v5386, 0
  %5432 = vmatprep.subr.mxu0 0.0
  %5433 = vmatpush1.msra.mxu0 0.0
  %5434 = vmatprep.subr.mxu0 0.0
  %5435 = vmatpush1.msra.mxu0 0.0
  %5436 = vmatprep.subr.mxu0 0.0
  %5437 = vmatpush1.msra.mxu0 0.0
  %5438 = vmatprep.subr.mxu0 0.0
  %5439 = vmatpush1.msra.mxu0 0.0
  %5440 = vmatprep.subr.mxu0 0.0
  %5441 = vmatpush1.msra.mxu0 0.0
  %5442 = vmatprep.subr.mxu0 0.0
  %5443 = vmatpush1.msra.mxu0 0.0
  %5444 = vmatprep.subr.mxu0 0.0
  %5445 = vmatpush1.msra.mxu0 0.0
  %5446 = vmatprep.subr.mxu0 0.0
  %5447 = vmatpush1.msra.mxu0 0.0
  %5448 = vmatprep.subr.mxu0 0.0
  %5449 = vmatpush1.msra.mxu0 0.0
  %5450 = vmatprep.subr.mxu0 0.0
  %5451 = vmatpush1.msra.mxu0 0.0
  %5452 = vmatprep.subr.mxu0 0.0
  %5453 = vmatpush1.msra.mxu0 0.0
  %5454 = vmatprep.subr.mxu0 0.0
  %5455 = vmatpush1.msra.mxu0 0.0
  %5456 = vmatprep.subr.mxu0 0.0
  %5457 = vmatpush1.msra.mxu0 0.0
  %5458 = vmatprep.subr.mxu0 0.0
  %5459 = vmatpush1.msra.mxu0 0.0
  %5460 = vmatprep.subr.mxu0 0.0
  %5461 = vmatpush1.msra.mxu0 %v5370
  %5462 = vmatprep.subr.mxu0 0.0
  %5463 = vmatpush1.msra.mxu0 %v5369
  %5464 = vmatprep.subr.mxu0 0.0
  %5465 = vmatpush2.msra.mxu0 0.0
  %5466 = vmatprep.subr.mxu0 0.0
  %5467 = vmatpush2.msra.mxu0 0.0
  %5468 = vmatprep.subr.mxu0 0.0
  %5469 = vmatpush2.msra.mxu0 0.0
  %5470 = vmatprep.subr.mxu0 0.0
  %5471 = vmatpush2.msra.mxu0 0.0
  %5472 = vmatprep.subr.mxu0 0.0
  %5473 = vmatpush2.msra.mxu0 0.0
  %5474 = vmatprep.subr.mxu0 0.0
  %5475 = vmatpush2.msra.mxu0 0.0
  %5476 = vmatprep.subr.mxu0 0.0
  %5477 = vmatpush2.msra.mxu0 0.0
  %5478 = vmatprep.subr.mxu0 0.0
  %5479 = vmatpush2.msra.mxu0 0.0
  %5480 = vmatprep.subr.mxu0 0.0
  %5481 = vmatpush2.msra.mxu0 0.0
  %5482 = vmatprep.subr.mxu0 0.0
  %5483 = vmatpush2.msra.mxu0 0.0
  %5484 = vmatprep.subr.mxu0 0.0
  %5485 = vmatpush2.msra.mxu0 0.0
  %5486 = vmatprep.subr.mxu0 0.0
  %5487 = vmatpush2.msra.mxu0 0.0
  %5488 = vmatprep.subr.mxu0 0.0
  %5489 = vmatpush2.msra.mxu0 0.0
  %5490 = vmatprep.subr.mxu0 0.0
  %5491 = vmatpush2.msra.mxu0 0.0
  %5492 = vmatprep.subr.mxu0 0.0
  %5493 = vmatpush2.msra.mxu0 0.0
  %5494 = vmatprep.subr.mxu0 0.0
  %5495 = vmatpush2.msra.mxu0 0.0
  %5496 = vmatprep.mubr.f32.mxu0 0.0
  %5497 = vmatmul.mubr.f32.gmra.mxu0 %v5388
  %v5498 = vpop.f32.mrf.mxu0
  %v5499 = vadd.f32 0.0, %v5498
  %v5500 = vpop.f32.mrf.mxu0
  %5501 = vmatprep.mubr.f32.mxu0 0.0
  %5502 = vmatmul.mubr.f32.gmra.mxu0 %v5391
  %v5503 = vpop.f32.mrf.mxu0
  %v5504 = vadd.f32 0.0, %v5503
  %v5505 = vpop.f32.mrf.mxu0
  %5506 = vmatprep.mubr.f32.mxu0 0.0
  %5507 = vmatmul.mubr.f32.gmra.mxu0 %v5394
  %v5508 = vpop.f32.mrf.mxu0
  %v5509 = vadd.f32 0.0, %v5508
  %v5510 = vpop.f32.mrf.mxu0
  %5511 = vmatprep.mubr.f32.mxu0 0.0
  %5512 = vmatmul.mubr.f32.gmra.mxu0 %v5397
  %v5513 = vpop.f32.mrf.mxu0
  %v5514 = vadd.f32 0.0, %v5513
  %v5515 = vpop.f32.mrf.mxu0
  %5516 = vmatprep.mubr.f32.mxu0 0.0
  %5517 = vmatmul.mubr.f32.gmra.mxu0 %v5400
  %v5518 = vpop.f32.mrf.mxu0
  %v5519 = vadd.f32 0.0, %v5518
  %v5520 = vpop.f32.mrf.mxu0
  %5521 = vmatprep.mubr.f32.mxu0 0.0
  %5522 = vmatmul.mubr.f32.gmra.mxu0 %v5403
  %v5523 = vpop.f32.mrf.mxu0
  %v5524 = vadd.f32 0.0, %v5523
  %v5525 = vpop.f32.mrf.mxu0
  %5526 = vmatprep.mubr.f32.mxu0 0.0
  %5527 = vmatmul.mubr.f32.gmra.mxu0 %v5406
  %v5528 = vpop.f32.mrf.mxu0
  %v5529 = vadd.f32 0.0, %v5528
  %v5530 = vpop.f32.mrf.mxu0
  %5531 = vmatprep.mubr.f32.mxu0 0.0
  %5532 = vmatmul.mubr.f32.gmra.mxu0 %v5409
  %v5533 = vpop.f32.mrf.mxu0
  %v5534 = vadd.f32 0.0, %v5533
  %v5535 = vpop.f32.mrf.mxu0
  %5536 = vmatprep.mubr.f32.mxu0 0.0
  %5537 = vmatmul.mubr.f32.gmra.mxu0 %v5412
  %v5538 = vpop.f32.mrf.mxu0
  %v5539 = vadd.f32 0.0, %v5538
  %v5540 = vpop.f32.mrf.mxu0
  %5541 = vmatprep.mubr.f32.mxu0 0.0
  %5542 = vmatmul.mubr.f32.gmra.mxu0 %v5415
  %v5543 = vpop.f32.mrf.mxu0
  %v5544 = vadd.f32 0.0, %v5543
  %v5545 = vpop.f32.mrf.mxu0
  %5546 = vmatprep.mubr.f32.mxu0 0.0
  %5547 = vmatmul.mubr.f32.gmra.mxu0 %v5418
  %v5548 = vpop.f32.mrf.mxu0
  %v5549 = vadd.f32 0.0, %v5548
  %v5550 = vpop.f32.mrf.mxu0
  %5551 = vmatprep.mubr.f32.mxu0 0.0
  %5552 = vmatmul.mubr.f32.gmra.mxu0 %v5421
  %v5553 = vpop.f32.mrf.mxu0
  %v5554 = vadd.f32 0.0, %v5553
  %v5555 = vpop.f32.mrf.mxu0
  %5556 = vmatprep.mubr.f32.mxu0 0.0
  %5557 = vmatmul.mubr.f32.gmra.mxu0 %v5424
  %v5558 = vpop.f32.mrf.mxu0
  %v5559 = vadd.f32 0.0, %v5558
  %v5560 = vpop.f32.mrf.mxu0
  %5561 = vmatprep.mubr.f32.mxu0 0.0
  %5562 = vmatmul.mubr.f32.gmra.mxu0 %v5427
  %v5563 = vpop.f32.mrf.mxu0
  %v5564 = vadd.f32 0.0, %v5563
  %v5565 = vpop.f32.mrf.mxu0
  %5566 = vmatprep.mubr.f32.mxu0 0.0
  %5567 = vmatmul.mubr.f32.gmra.mxu0 %v5430
  %v5568 = vpop.f32.mrf.mxu0
  %v5569 = vadd.f32 0.0, %v5568
  %v5570 = vpop.f32.mrf.mxu0
  %5571 = vdwg.mxu0
  %v5572 = vadd.f32 %v4954, %v5499
  %v5573 = vadd.f32 %v4955, %v5504
  %v5574 = vadd.f32 %v4956, %v5509
  %v5575 = vadd.f32 %v4957, %v5514
  %v5576 = vadd.f32 %v4958, %v5519
  %v5577 = vadd.f32 %v4959, %v5524
  %v5578 = vadd.f32 %v4960, %v5529
  %v5579 = vadd.f32 %v4961, %v5534
  %v5580 = vadd.f32 %v4962, %v5539
  %v5581 = vadd.f32 %v4963, %v5544
  %v5582 = vadd.f32 %v4964, %v5549
  %v5583 = vadd.f32 %v4965, %v5554
  %v5584 = vadd.f32 %v4966, %v5559
  %v5585 = vadd.f32 %v4967, %v5564
  %v5586 = vadd.f32 %v4968, %v5569
  %s5587 = scalar_lea.vmem %s0, 5472
  %v5588 = vld [vmem:[%s5587] sm:$0xff]
  %v5589 = vld [vmem:[%s5587 + $0x8] sm:$0xff]
  %v5590 = vld [vmem:[%s5587 + $0x10] sm:$0xff]
  %v5591 = vld [vmem:[%s5587 + $0x18] sm:$0xff]
  %v5592 = vld [vmem:[%s5587 + $0x20] sm:$0xff]
  %v5593 = vld [vmem:[%s5587 + $0x28] sm:$0xff]
  %v5594 = vld [vmem:[%s5587 + $0x30] sm:$0xff]
  %v5595 = vld [vmem:[%s5587 + $0x38] sm:$0xff]
  %v5596 = vld [vmem:[%s5587 + $0x40] sm:$0xff]
  %v5597 = vld [vmem:[%s5587 + $0x48] sm:$0xff]
  %v5598 = vld [vmem:[%s5587 + $0x50] sm:$0xff]
  %v5599 = vld [vmem:[%s5587 + $0x58] sm:$0xff]
  %v5600 = vld [vmem:[%s5587 + $0x60] sm:$0xff]
  %v5601 = vld [vmem:[%s5587 + $0x68] sm:$0xff]
  %v5602 = vld [vmem:[%s5587 + $0x70] sm:$0xff]
  %v5603 = vld [vmem:[%s5587 + $0x78] sm:$0xff]
  %v5604 = vld [vmem:[%s5587 + $0x80] sm:$0xff]
  %v5605 = vld [vmem:[%s5587 + $0x88] sm:$0xff]
  %v5606 = vld [vmem:[%s5587 + $0x90] sm:$0x3f]
  %v5608 = vsel %vm64, %v5606, 0
  %5610 = vmatprep.subr.mxu0 0.0
  %5611 = vmatpush1.msra.mxu0 %v5603
  %5612 = vmatprep.subr.mxu0 0.0
  %5613 = vmatpush1.msra.mxu0 %v5602
  %5614 = vmatprep.subr.mxu0 0.0
  %5615 = vmatpush1.msra.mxu0 %v5601
  %5616 = vmatprep.subr.mxu0 0.0
  %5617 = vmatpush1.msra.mxu0 %v5600
  %5618 = vmatprep.subr.mxu0 0.0
  %5619 = vmatpush1.msra.mxu0 %v5599
  %5620 = vmatprep.subr.mxu0 0.0
  %5621 = vmatpush1.msra.mxu0 %v5598
  %5622 = vmatprep.subr.mxu0 0.0
  %5623 = vmatpush1.msra.mxu0 %v5597
  %5624 = vmatprep.subr.mxu0 0.0
  %5625 = vmatpush1.msra.mxu0 %v5596
  %5626 = vmatprep.subr.mxu0 0.0
  %5627 = vmatpush1.msra.mxu0 %v5595
  %5628 = vmatprep.subr.mxu0 0.0
  %5629 = vmatpush1.msra.mxu0 %v5594
  %5630 = vmatprep.subr.mxu0 0.0
  %5631 = vmatpush1.msra.mxu0 %v5593
  %5632 = vmatprep.subr.mxu0 0.0
  %5633 = vmatpush1.msra.mxu0 %v5592
  %5634 = vmatprep.subr.mxu0 0.0
  %5635 = vmatpush1.msra.mxu0 %v5591
  %5636 = vmatprep.subr.mxu0 0.0
  %5637 = vmatpush1.msra.mxu0 %v5590
  %5638 = vmatprep.subr.mxu0 0.0
  %5639 = vmatpush1.msra.mxu0 %v5589
  %5640 = vmatprep.subr.mxu0 0.0
  %5641 = vmatpush1.msra.mxu0 %v5588
  %5642 = vmatprep.subr.mxu0 0.0
  %5643 = vmatpush2.msra.mxu0 0.0
  %5644 = vmatprep.subr.mxu0 0.0
  %5645 = vmatpush2.msra.mxu0 0.0
  %5646 = vmatprep.subr.mxu0 0.0
  %5647 = vmatpush2.msra.mxu0 0.0
  %5648 = vmatprep.subr.mxu0 0.0
  %5649 = vmatpush2.msra.mxu0 0.0
  %5650 = vmatprep.subr.mxu0 0.0
  %5651 = vmatpush2.msra.mxu0 0.0
  %5652 = vmatprep.subr.mxu0 0.0
  %5653 = vmatpush2.msra.mxu0 0.0
  %5654 = vmatprep.subr.mxu0 0.0
  %5655 = vmatpush2.msra.mxu0 0.0
  %5656 = vmatprep.subr.mxu0 0.0
  %5657 = vmatpush2.msra.mxu0 0.0
  %5658 = vmatprep.subr.mxu0 0.0
  %5659 = vmatpush2.msra.mxu0 0.0
  %5660 = vmatprep.subr.mxu0 0.0
  %5661 = vmatpush2.msra.mxu0 0.0
  %5662 = vmatprep.subr.mxu0 0.0
  %5663 = vmatpush2.msra.mxu0 0.0
  %5664 = vmatprep.subr.mxu0 0.0
  %5665 = vmatpush2.msra.mxu0 0.0
  %5666 = vmatprep.subr.mxu0 0.0
  %5667 = vmatpush2.msra.mxu0 0.0
  %5668 = vmatprep.subr.mxu0 0.0
  %5669 = vmatpush2.msra.mxu0 %v5608
  %5670 = vmatprep.subr.mxu0 0.0
  %5671 = vmatpush2.msra.mxu0 %v5605
  %5672 = vmatprep.subr.mxu0 0.0
  %5673 = vmatpush2.msra.mxu0 %v5604
  %5674 = vmatprep.mubr.f32.mxu0 %v59
  %5675 = vmatmul.mubr.f32.gmra.mxu0 %v32
  %v5676 = vpop.f32.mrf.mxu0
  %v5677 = vadd.f32 0.0, %v5676
  %v5678 = vpop.f32.mrf.mxu0
  %5679 = vmatprep.mubr.f32.mxu0 %v62
  %5680 = vmatmul.mubr.f32.gmra.mxu0 %v34
  %v5681 = vpop.f32.mrf.mxu0
  %v5682 = vadd.f32 0.0, %v5681
  %v5683 = vpop.f32.mrf.mxu0
  %5684 = vdwg.mxu0
  %s5685 = scalar_lea.vmem %s0, 5624
  %v5686 = vld [vmem:[%s5685] sm:$0xff]
  %v5687 = vld [vmem:[%s5685 + $0x8] sm:$0xff]
  %v5688 = vld [vmem:[%s5685 + $0x10] sm:$0xff]
  %v5689 = vld [vmem:[%s5685 + $0x18] sm:$0xff]
  %v5690 = vld [vmem:[%s5685 + $0x20] sm:$0xff]
  %v5691 = vld [vmem:[%s5685 + $0x28] sm:$0xff]
  %v5692 = vld [vmem:[%s5685 + $0x30] sm:$0xff]
  %v5693 = vld [vmem:[%s5685 + $0x38] sm:$0xff]
  %v5694 = vld [vmem:[%s5685 + $0x40] sm:$0xff]
  %v5695 = vld [vmem:[%s5685 + $0x48] sm:$0xff]
  %v5696 = vld [vmem:[%s5685 + $0x50] sm:$0xff]
  %v5697 = vld [vmem:[%s5685 + $0x58] sm:$0xff]
  %v5698 = vld [vmem:[%s5685 + $0x60] sm:$0xff]
  %v5699 = vld [vmem:[%s5685 + $0x68] sm:$0xff]
  %v5700 = vld [vmem:[%s5685 + $0x70] sm:$0xff]
  %v5701 = vld [vmem:[%s5685 + $0x78] sm:$0xff]
  %v5702 = vld [vmem:[%s5685 + $0x80] sm:$0xff]
  %v5703 = vld [vmem:[%s5685 + $0x88] sm:$0xff]
  %v5704 = vld [vmem:[%s5685 + $0x90] sm:$0x3f]
  %v5706 = vsel %vm64, %v5704, 0
  %5708 = vmatprep.subr.mxu0 0.0
  %5709 = vmatpush1.msra.mxu0 %v5701
  %5710 = vmatprep.subr.mxu0 0.0
  %5711 = vmatpush1.msra.mxu0 %v5700
  %5712 = vmatprep.subr.mxu0 0.0
  %5713 = vmatpush1.msra.mxu0 %v5699
  %5714 = vmatprep.subr.mxu0 0.0
  %5715 = vmatpush1.msra.mxu0 %v5698
  %5716 = vmatprep.subr.mxu0 0.0
  %5717 = vmatpush1.msra.mxu0 %v5697
  %5718 = vmatprep.subr.mxu0 0.0
  %5719 = vmatpush1.msra.mxu0 %v5696
  %5720 = vmatprep.subr.mxu0 0.0
  %5721 = vmatpush1.msra.mxu0 %v5695
  %5722 = vmatprep.subr.mxu0 0.0
  %5723 = vmatpush1.msra.mxu0 %v5694
  %5724 = vmatprep.subr.mxu0 0.0
  %5725 = vmatpush1.msra.mxu0 %v5693
  %5726 = vmatprep.subr.mxu0 0.0
  %5727 = vmatpush1.msra.mxu0 %v5692
  %5728 = vmatprep.subr.mxu0 0.0
  %5729 = vmatpush1.msra.mxu0 %v5691
  %5730 = vmatprep.subr.mxu0 0.0
  %5731 = vmatpush1.msra.mxu0 %v5690
  %5732 = vmatprep.subr.mxu0 0.0
  %5733 = vmatpush1.msra.mxu0 %v5689
  %5734 = vmatprep.subr.mxu0 0.0
  %5735 = vmatpush1.msra.mxu0 %v5688
  %5736 = vmatprep.subr.mxu0 0.0
  %5737 = vmatpush1.msra.mxu0 %v5687
  %5738 = vmatprep.subr.mxu0 0.0
  %5739 = vmatpush1.msra.mxu0 %v5686
  %5740 = vmatprep.subr.mxu0 0.0
  %5741 = vmatpush2.msra.mxu0 0.0
  %5742 = vmatprep.subr.mxu0 0.0
  %5743 = vmatpush2.msra.mxu0 0.0
  %5744 = vmatprep.subr.mxu0 0.0
  %5745 = vmatpush2.msra.mxu0 0.0
  %5746 = vmatprep.subr.mxu0 0.0
  %5747 = vmatpush2.msra.mxu0 0.0
  %5748 = vmatprep.subr.mxu0 0.0
  %5749 = vmatpush2.msra.mxu0 0.0
  %5750 = vmatprep.subr.mxu0 0.0
  %5751 = vmatpush2.msra.mxu0 0.0
  %5752 = vmatprep.subr.mxu0 0.0
  %5753 = vmatpush2.msra.mxu0 0.0
  %5754 = vmatprep.subr.mxu0 0.0
  %5755 = vmatpush2.msra.mxu0 0.0
  %5756 = vmatprep.subr.mxu0 0.0
  %5757 = vmatpush2.msra.mxu0 0.0
  %5758 = vmatprep.subr.mxu0 0.0
  %5759 = vmatpush2.msra.mxu0 0.0
  %5760 = vmatprep.subr.mxu0 0.0
  %5761 = vmatpush2.msra.mxu0 0.0
  %5762 = vmatprep.subr.mxu0 0.0
  %5763 = vmatpush2.msra.mxu0 0.0
  %5764 = vmatprep.subr.mxu0 0.0
  %5765 = vmatpush2.msra.mxu0 0.0
  %5766 = vmatprep.subr.mxu0 0.0
  %5767 = vmatpush2.msra.mxu0 %v5706
  %5768 = vmatprep.subr.mxu0 0.0
  %5769 = vmatpush2.msra.mxu0 %v5703
  %5770 = vmatprep.subr.mxu0 0.0
  %5771 = vmatpush2.msra.mxu0 %v5702
  %5772 = vmatprep.mubr.f32.mxu0 %v59
  %5773 = vmatmul.mubr.f32.gmra.mxu0 %v32
  %v5774 = vpop.f32.mrf.mxu0
  %v5775 = vadd.f32 0.0, %v5774
  %v5776 = vpop.f32.mrf.mxu0
  %5777 = vmatprep.mubr.f32.mxu0 %v62
  %5778 = vmatmul.mubr.f32.gmra.mxu0 %v34
  %v5779 = vpop.f32.mrf.mxu0
  %v5780 = vadd.f32 0.0, %v5779
  %v5781 = vpop.f32.mrf.mxu0
  %5782 = vdwg.mxu0
  %v5783 = vmax.f32 %v5677, %v5775
  %v5784 = vmax.f32 %v5682, %v5780
  %s5785 = scalar_lea.vmem %s0, 5776
  %v5786 = vld [vmem:[%s5785] sm:$0xff]
  %v5787 = vld [vmem:[%s5785 + $0x8] sm:$0xff]
  %v5788 = vld [vmem:[%s5785 + $0x10] sm:$0xff]
  %v5789 = vld [vmem:[%s5785 + $0x18] sm:$0xff]
  %v5790 = vld [vmem:[%s5785 + $0x20] sm:$0xff]
  %v5791 = vld [vmem:[%s5785 + $0x28] sm:$0xff]
  %v5792 = vld [vmem:[%s5785 + $0x30] sm:$0xff]
  %v5793 = vld [vmem:[%s5785 + $0x38] sm:$0xff]
  %v5794 = vld [vmem:[%s5785 + $0x40] sm:$0xff]
  %v5795 = vld [vmem:[%s5785 + $0x48] sm:$0xff]
  %v5796 = vld [vmem:[%s5785 + $0x50] sm:$0xff]
  %v5797 = vld [vmem:[%s5785 + $0x58] sm:$0xff]
  %v5798 = vld [vmem:[%s5785 + $0x60] sm:$0xff]
  %v5799 = vld [vmem:[%s5785 + $0x68] sm:$0xff]
  %v5800 = vld [vmem:[%s5785 + $0x70] sm:$0xff]
  %v5801 = vld [vmem:[%s5785 + $0x78] sm:$0xff]
  %v5802 = vld [vmem:[%s5785 + $0x80] sm:$0xff]
  %v5803 = vld [vmem:[%s5785 + $0x88] sm:$0xff]
  %v5804 = vld [vmem:[%s5785 + $0x90] sm:$0x3f]
  %v5806 = vsel %vm64, %v5804, 0
  %5808 = vmatprep.subr.mxu0 0.0
  %5809 = vmatpush1.msra.mxu0 %v5801
  %5810 = vmatprep.subr.mxu0 0.0
  %5811 = vmatpush1.msra.mxu0 %v5800
  %5812 = vmatprep.subr.mxu0 0.0
  %5813 = vmatpush1.msra.mxu0 %v5799
  %5814 = vmatprep.subr.mxu0 0.0
  %5815 = vmatpush1.msra.mxu0 %v5798
  %5816 = vmatprep.subr.mxu0 0.0
  %5817 = vmatpush1.msra.mxu0 %v5797
  %5818 = vmatprep.subr.mxu0 0.0
  %5819 = vmatpush1.msra.mxu0 %v5796
  %5820 = vmatprep.subr.mxu0 0.0
  %5821 = vmatpush1.msra.mxu0 %v5795
  %5822 = vmatprep.subr.mxu0 0.0
  %5823 = vmatpush1.msra.mxu0 %v5794
  %5824 = vmatprep.subr.mxu0 0.0
  %5825 = vmatpush1.msra.mxu0 %v5793
  %5826 = vmatprep.subr.mxu0 0.0
  %5827 = vmatpush1.msra.mxu0 %v5792
  %5828 = vmatprep.subr.mxu0 0.0
  %5829 = vmatpush1.msra.mxu0 %v5791
  %5830 = vmatprep.subr.mxu0 0.0
  %5831 = vmatpush1.msra.mxu0 %v5790
  %5832 = vmatprep.subr.mxu0 0.0
  %5833 = vmatpush1.msra.mxu0 %v5789
  %5834 = vmatprep.subr.mxu0 0.0
  %5835 = vmatpush1.msra.mxu0 %v5788
  %5836 = vmatprep.subr.mxu0 0.0
  %5837 = vmatpush1.msra.mxu0 %v5787
  %5838 = vmatprep.subr.mxu0 0.0
  %5839 = vmatpush1.msra.mxu0 %v5786
  %5840 = vmatprep.subr.mxu0 0.0
  %5841 = vmatpush2.msra.mxu0 0.0
  %5842 = vmatprep.subr.mxu0 0.0
  %5843 = vmatpush2.msra.mxu0 0.0
  %5844 = vmatprep.subr.mxu0 0.0
  %5845 = vmatpush2.msra.mxu0 0.0
  %5846 = vmatprep.subr.mxu0 0.0
  %5847 = vmatpush2.msra.mxu0 0.0
  %5848 = vmatprep.subr.mxu0 0.0
  %5849 = vmatpush2.msra.mxu0 0.0
  %5850 = vmatprep.subr.mxu0 0.0
  %5851 = vmatpush2.msra.mxu0 0.0
  %5852 = vmatprep.subr.mxu0 0.0
  %5853 = vmatpush2.msra.mxu0 0.0
  %5854 = vmatprep.subr.mxu0 0.0
  %5855 = vmatpush2.msra.mxu0 0.0
  %5856 = vmatprep.subr.mxu0 0.0
  %5857 = vmatpush2.msra.mxu0 0.0
  %5858 = vmatprep.subr.mxu0 0.0
  %5859 = vmatpush2.msra.mxu0 0.0
  %5860 = vmatprep.subr.mxu0 0.0
  %5861 = vmatpush2.msra.mxu0 0.0
  %5862 = vmatprep.subr.mxu0 0.0
  %5863 = vmatpush2.msra.mxu0 0.0
  %5864 = vmatprep.subr.mxu0 0.0
  %5865 = vmatpush2.msra.mxu0 0.0
  %5866 = vmatprep.subr.mxu0 0.0
  %5867 = vmatpush2.msra.mxu0 %v5806
  %5868 = vmatprep.subr.mxu0 0.0
  %5869 = vmatpush2.msra.mxu0 %v5803
  %5870 = vmatprep.subr.mxu0 0.0
  %5871 = vmatpush2.msra.mxu0 %v5802
  %5872 = vmatprep.mubr.f32.mxu0 %v59
  %5873 = vmatmul.mubr.f32.gmra.mxu0 %v32
  %v5874 = vpop.f32.mrf.mxu0
  %v5875 = vadd.f32 0.0, %v5874
  %v5876 = vpop.f32.mrf.mxu0
  %5877 = vmatprep.mubr.f32.mxu0 %v62
  %5878 = vmatmul.mubr.f32.gmra.mxu0 %v34
  %v5879 = vpop.f32.mrf.mxu0
  %v5880 = vadd.f32 0.0, %v5879
  %v5881 = vpop.f32.mrf.mxu0
  %5882 = vdwg.mxu0
  %v5883 = vmax.f32 %v5783, %v5875
  %v5884 = vmax.f32 %v5784, %v5880
  %s5885 = scalar_lea.vmem %s0, 5928
  %v5886 = vld [vmem:[%s5885] sm:$0xff]
  %v5887 = vld [vmem:[%s5885 + $0x8] sm:$0xff]
  %v5888 = vld [vmem:[%s5885 + $0x10] sm:$0xff]
  %v5889 = vld [vmem:[%s5885 + $0x18] sm:$0xff]
  %v5890 = vld [vmem:[%s5885 + $0x20] sm:$0xff]
  %v5891 = vld [vmem:[%s5885 + $0x28] sm:$0xff]
  %v5892 = vld [vmem:[%s5885 + $0x30] sm:$0xff]
  %v5893 = vld [vmem:[%s5885 + $0x38] sm:$0xff]
  %v5894 = vld [vmem:[%s5885 + $0x40] sm:$0xff]
  %v5895 = vld [vmem:[%s5885 + $0x48] sm:$0xff]
  %v5896 = vld [vmem:[%s5885 + $0x50] sm:$0xff]
  %v5897 = vld [vmem:[%s5885 + $0x58] sm:$0xff]
  %v5898 = vld [vmem:[%s5885 + $0x60] sm:$0xff]
  %v5899 = vld [vmem:[%s5885 + $0x68] sm:$0xff]
  %v5900 = vld [vmem:[%s5885 + $0x70] sm:$0xff]
  %v5901 = vld [vmem:[%s5885 + $0x78] sm:$0xff]
  %v5902 = vld [vmem:[%s5885 + $0x80] sm:$0xff]
  %v5903 = vld [vmem:[%s5885 + $0x88] sm:$0xff]
  %v5904 = vld [vmem:[%s5885 + $0x90] sm:$0x3f]
  %v5906 = vsel %vm64, %v5904, 0
  %5908 = vmatprep.subr.mxu0 0.0
  %5909 = vmatpush1.msra.mxu0 %v5901
  %5910 = vmatprep.subr.mxu0 0.0
  %5911 = vmatpush1.msra.mxu0 %v5900
  %5912 = vmatprep.subr.mxu0 0.0
  %5913 = vmatpush1.msra.mxu0 %v5899
  %5914 = vmatprep.subr.mxu0 0.0
  %5915 = vmatpush1.msra.mxu0 %v5898
  %5916 = vmatprep.subr.mxu0 0.0
  %5917 = vmatpush1.msra.mxu0 %v5897
  %5918 = vmatprep.subr.mxu0 0.0
  %5919 = vmatpush1.msra.mxu0 %v5896
  %5920 = vmatprep.subr.mxu0 0.0
  %5921 = vmatpush1.msra.mxu0 %v5895
  %5922 = vmatprep.subr.mxu0 0.0
  %5923 = vmatpush1.msra.mxu0 %v5894
  %5924 = vmatprep.subr.mxu0 0.0
  %5925 = vmatpush1.msra.mxu0 %v5893
  %5926 = vmatprep.subr.mxu0 0.0
  %5927 = vmatpush1.msra.mxu0 %v5892
  %5928 = vmatprep.subr.mxu0 0.0
  %5929 = vmatpush1.msra.mxu0 %v5891
  %5930 = vmatprep.subr.mxu0 0.0
  %5931 = vmatpush1.msra.mxu0 %v5890
  %5932 = vmatprep.subr.mxu0 0.0
  %5933 = vmatpush1.msra.mxu0 %v5889
  %5934 = vmatprep.subr.mxu0 0.0
  %5935 = vmatpush1.msra.mxu0 %v5888
  %5936 = vmatprep.subr.mxu0 0.0
  %5937 = vmatpush1.msra.mxu0 %v5887
  %5938 = vmatprep.subr.mxu0 0.0
  %5939 = vmatpush1.msra.mxu0 %v5886
  %5940 = vmatprep.subr.mxu0 0.0
  %5941 = vmatpush2.msra.mxu0 0.0
  %5942 = vmatprep.subr.mxu0 0.0
  %5943 = vmatpush2.msra.mxu0 0.0
  %5944 = vmatprep.subr.mxu0 0.0
  %5945 = vmatpush2.msra.mxu0 0.0
  %5946 = vmatprep.subr.mxu0 0.0
  %5947 = vmatpush2.msra.mxu0 0.0
  %5948 = vmatprep.subr.mxu0 0.0
  %5949 = vmatpush2.msra.mxu0 0.0
  %5950 = vmatprep.subr.mxu0 0.0
  %5951 = vmatpush2.msra.mxu0 0.0
  %5952 = vmatprep.subr.mxu0 0.0
  %5953 = vmatpush2.msra.mxu0 0.0
  %5954 = vmatprep.subr.mxu0 0.0
  %5955 = vmatpush2.msra.mxu0 0.0
  %5956 = vmatprep.subr.mxu0 0.0
  %5957 = vmatpush2.msra.mxu0 0.0
  %5958 = vmatprep.subr.mxu0 0.0
  %5959 = vmatpush2.msra.mxu0 0.0
  %5960 = vmatprep.subr.mxu0 0.0
  %5961 = vmatpush2.msra.mxu0 0.0
  %5962 = vmatprep.subr.mxu0 0.0
  %5963 = vmatpush2.msra.mxu0 0.0
  %5964 = vmatprep.subr.mxu0 0.0
  %5965 = vmatpush2.msra.mxu0 0.0
  %5966 = vmatprep.subr.mxu0 0.0
  %5967 = vmatpush2.msra.mxu0 %v5906
  %5968 = vmatprep.subr.mxu0 0.0
  %5969 = vmatpush2.msra.mxu0 %v5903
  %5970 = vmatprep.subr.mxu0 0.0
  %5971 = vmatpush2.msra.mxu0 %v5902
  %5972 = vmatprep.mubr.f32.mxu0 %v59
  %5973 = vmatmul.mubr.f32.gmra.mxu0 %v32
  %v5974 = vpop.f32.mrf.mxu0
  %v5975 = vadd.f32 0.0, %v5974
  %v5976 = vpop.f32.mrf.mxu0
  %5977 = vmatprep.mubr.f32.mxu0 %v62
  %5978 = vmatmul.mubr.f32.gmra.mxu0 %v34
  %v5979 = vpop.f32.mrf.mxu0
  %v5980 = vadd.f32 0.0, %v5979
  %v5981 = vpop.f32.mrf.mxu0
  %5982 = vdwg.mxu0
  %v5983 = vmax.f32 %v5883, %v5975
  %v5984 = vmax.f32 %v5884, %v5980
  %v5985 = vadd.f32 %v5983, %v446
  %v5986 = vadd.f32 %v5984, %v451
  %v5987 = vmax.f32 %v5985, 0.0
  %v5988 = vmax.f32 %v5986, 0.0
  %s5989 = scalar_lea.vmem %s3, 1080
  %v5990 = vld [vmem:[%s5989] sm:$0xff]
  %v5991 = vld [vmem:[%s5989 + $0x8] sm:$0xff]
  %v5992 = vld [vmem:[%s5989 + $0x10] sm:$0xff]
  %v5993 = vld [vmem:[%s5989 + $0x18] sm:$0xff]
  %v5994 = vld [vmem:[%s5989 + $0x20] sm:$0xff]
  %v5995 = vld [vmem:[%s5989 + $0x28] sm:$0xff]
  %v5996 = vld [vmem:[%s5989 + $0x30] sm:$0xff]
  %v5997 = vld [vmem:[%s5989 + $0x38] sm:$0xff]
  %v5998 = vld [vmem:[%s5989 + $0x40] sm:$0xff]
  %v5999 = vld [vmem:[%s5989 + $0x48] sm:$0xff]
  %v6000 = vld [vmem:[%s5989 + $0x50] sm:$0xff]
  %v6001 = vld [vmem:[%s5989 + $0x58] sm:$0xff]
  %v6002 = vld [vmem:[%s5989 + $0x60] sm:$0xff]
  %v6003 = vld [vmem:[%s5989 + $0x68] sm:$0xff]
  %v6004 = vld [vmem:[%s5989 + $0x70] sm:$0xff]
  %v6006 = vsel %vm890, %v5990, 0
  %v6009 = vsel %vm890, %v5991, 0
  %v6012 = vsel %vm890, %v5992, 0
  %v6015 = vsel %vm890, %v5993, 0
  %v6018 = vsel %vm890, %v5994, 0
  %v6021 = vsel %vm890, %v5995, 0
  %v6024 = vsel %vm890, %v5996, 0
  %v6027 = vsel %vm890, %v5997, 0
  %v6030 = vsel %vm890, %v5998, 0
  %v6033 = vsel %vm890, %v5999, 0
  %v6036 = vsel %vm890, %v6000, 0
  %v6039 = vsel %vm890, %v6001, 0
  %v6042 = vsel %vm890, %v6002, 0
  %v6045 = vsel %vm890, %v6003, 0
  %v6048 = vsel %vm890, %v6004, 0
  %6050 = vmatprep.subr.mxu0 0.0
  %6051 = vmatpush1.msra.mxu0 0.0
  %6052 = vmatprep.subr.mxu0 0.0
  %6053 = vmatpush1.msra.mxu0 0.0
  %6054 = vmatprep.subr.mxu0 0.0
  %6055 = vmatpush1.msra.mxu0 0.0
  %6056 = vmatprep.subr.mxu0 0.0
  %6057 = vmatpush1.msra.mxu0 0.0
  %6058 = vmatprep.subr.mxu0 0.0
  %6059 = vmatpush1.msra.mxu0 0.0
  %6060 = vmatprep.subr.mxu0 0.0
  %6061 = vmatpush1.msra.mxu0 0.0
  %6062 = vmatprep.subr.mxu0 0.0
  %6063 = vmatpush1.msra.mxu0 0.0
  %6064 = vmatprep.subr.mxu0 0.0
  %6065 = vmatpush1.msra.mxu0 0.0
  %6066 = vmatprep.subr.mxu0 0.0
  %6067 = vmatpush1.msra.mxu0 0.0
  %6068 = vmatprep.subr.mxu0 0.0
  %6069 = vmatpush1.msra.mxu0 0.0
  %6070 = vmatprep.subr.mxu0 0.0
  %6071 = vmatpush1.msra.mxu0 0.0
  %6072 = vmatprep.subr.mxu0 0.0
  %6073 = vmatpush1.msra.mxu0 0.0
  %6074 = vmatprep.subr.mxu0 0.0
  %6075 = vmatpush1.msra.mxu0 0.0
  %6076 = vmatprep.subr.mxu0 0.0
  %6077 = vmatpush1.msra.mxu0 0.0
  %6078 = vmatprep.subr.mxu0 0.0
  %6079 = vmatpush1.msra.mxu0 %v5988
  %6080 = vmatprep.subr.mxu0 0.0
  %6081 = vmatpush1.msra.mxu0 %v5987
  %6082 = vmatprep.subr.mxu0 0.0
  %6083 = vmatpush2.msra.mxu0 0.0
  %6084 = vmatprep.subr.mxu0 0.0
  %6085 = vmatpush2.msra.mxu0 0.0
  %6086 = vmatprep.subr.mxu0 0.0
  %6087 = vmatpush2.msra.mxu0 0.0
  %6088 = vmatprep.subr.mxu0 0.0
  %6089 = vmatpush2.msra.mxu0 0.0
  %6090 = vmatprep.subr.mxu0 0.0
  %6091 = vmatpush2.msra.mxu0 0.0
  %6092 = vmatprep.subr.mxu0 0.0
  %6093 = vmatpush2.msra.mxu0 0.0
  %6094 = vmatprep.subr.mxu0 0.0
  %6095 = vmatpush2.msra.mxu0 0.0
  %6096 = vmatprep.subr.mxu0 0.0
  %6097 = vmatpush2.msra.mxu0 0.0
  %6098 = vmatprep.subr.mxu0 0.0
  %6099 = vmatpush2.msra.mxu0 0.0
  %6100 = vmatprep.subr.mxu0 0.0
  %6101 = vmatpush2.msra.mxu0 0.0
  %6102 = vmatprep.subr.mxu0 0.0
  %6103 = vmatpush2.msra.mxu0 0.0
  %6104 = vmatprep.subr.mxu0 0.0
  %6105 = vmatpush2.msra.mxu0 0.0
  %6106 = vmatprep.subr.mxu0 0.0
  %6107 = vmatpush2.msra.mxu0 0.0
  %6108 = vmatprep.subr.mxu0 0.0
  %6109 = vmatpush2.msra.mxu0 0.0
  %6110 = vmatprep.subr.mxu0 0.0
  %6111 = vmatpush2.msra.mxu0 0.0
  %6112 = vmatprep.subr.mxu0 0.0
  %6113 = vmatpush2.msra.mxu0 0.0
  %6114 = vmatprep.mubr.f32.mxu0 0.0
  %6115 = vmatmul.mubr.f32.gmra.mxu0 %v6006
  %v6116 = vpop.f32.mrf.mxu0
  %v6117 = vadd.f32 0.0, %v6116
  %v6118 = vpop.f32.mrf.mxu0
  %6119 = vmatprep.mubr.f32.mxu0 0.0
  %6120 = vmatmul.mubr.f32.gmra.mxu0 %v6009
  %v6121 = vpop.f32.mrf.mxu0
  %v6122 = vadd.f32 0.0, %v6121
  %v6123 = vpop.f32.mrf.mxu0
  %6124 = vmatprep.mubr.f32.mxu0 0.0
  %6125 = vmatmul.mubr.f32.gmra.mxu0 %v6012
  %v6126 = vpop.f32.mrf.mxu0
  %v6127 = vadd.f32 0.0, %v6126
  %v6128 = vpop.f32.mrf.mxu0
  %6129 = vmatprep.mubr.f32.mxu0 0.0
  %6130 = vmatmul.mubr.f32.gmra.mxu0 %v6015
  %v6131 = vpop.f32.mrf.mxu0
  %v6132 = vadd.f32 0.0, %v6131
  %v6133 = vpop.f32.mrf.mxu0
  %6134 = vmatprep.mubr.f32.mxu0 0.0
  %6135 = vmatmul.mubr.f32.gmra.mxu0 %v6018
  %v6136 = vpop.f32.mrf.mxu0
  %v6137 = vadd.f32 0.0, %v6136
  %v6138 = vpop.f32.mrf.mxu0
  %6139 = vmatprep.mubr.f32.mxu0 0.0
  %6140 = vmatmul.mubr.f32.gmra.mxu0 %v6021
  %v6141 = vpop.f32.mrf.mxu0
  %v6142 = vadd.f32 0.0, %v6141
  %v6143 = vpop.f32.mrf.mxu0
  %6144 = vmatprep.mubr.f32.mxu0 0.0
  %6145 = vmatmul.mubr.f32.gmra.mxu0 %v6024
  %v6146 = vpop.f32.mrf.mxu0
  %v6147 = vadd.f32 0.0, %v6146
  %v6148 = vpop.f32.mrf.mxu0
  %6149 = vmatprep.mubr.f32.mxu0 0.0
  %6150 = vmatmul.mubr.f32.gmra.mxu0 %v6027
  %v6151 = vpop.f32.mrf.mxu0
  %v6152 = vadd.f32 0.0, %v6151
  %v6153 = vpop.f32.mrf.mxu0
  %6154 = vmatprep.mubr.f32.mxu0 0.0
  %6155 = vmatmul.mubr.f32.gmra.mxu0 %v6030
  %v6156 = vpop.f32.mrf.mxu0
  %v6157 = vadd.f32 0.0, %v6156
  %v6158 = vpop.f32.mrf.mxu0
  %6159 = vmatprep.mubr.f32.mxu0 0.0
  %6160 = vmatmul.mubr.f32.gmra.mxu0 %v6033
  %v6161 = vpop.f32.mrf.mxu0
  %v6162 = vadd.f32 0.0, %v6161
  %v6163 = vpop.f32.mrf.mxu0
  %6164 = vmatprep.mubr.f32.mxu0 0.0
  %6165 = vmatmul.mubr.f32.gmra.mxu0 %v6036
  %v6166 = vpop.f32.mrf.mxu0
  %v6167 = vadd.f32 0.0, %v6166
  %v6168 = vpop.f32.mrf.mxu0
  %6169 = vmatprep.mubr.f32.mxu0 0.0
  %6170 = vmatmul.mubr.f32.gmra.mxu0 %v6039
  %v6171 = vpop.f32.mrf.mxu0
  %v6172 = vadd.f32 0.0, %v6171
  %v6173 = vpop.f32.mrf.mxu0
  %6174 = vmatprep.mubr.f32.mxu0 0.0
  %6175 = vmatmul.mubr.f32.gmra.mxu0 %v6042
  %v6176 = vpop.f32.mrf.mxu0
  %v6177 = vadd.f32 0.0, %v6176
  %v6178 = vpop.f32.mrf.mxu0
  %6179 = vmatprep.mubr.f32.mxu0 0.0
  %6180 = vmatmul.mubr.f32.gmra.mxu0 %v6045
  %v6181 = vpop.f32.mrf.mxu0
  %v6182 = vadd.f32 0.0, %v6181
  %v6183 = vpop.f32.mrf.mxu0
  %6184 = vmatprep.mubr.f32.mxu0 0.0
  %6185 = vmatmul.mubr.f32.gmra.mxu0 %v6048
  %v6186 = vpop.f32.mrf.mxu0
  %v6187 = vadd.f32 0.0, %v6186
  %v6188 = vpop.f32.mrf.mxu0
  %6189 = vdwg.mxu0
  %v6190 = vadd.f32 %v5572, %v6117
  %v6191 = vadd.f32 %v5573, %v6122
  %v6192 = vadd.f32 %v5574, %v6127
  %v6193 = vadd.f32 %v5575, %v6132
  %v6194 = vadd.f32 %v5576, %v6137
  %v6195 = vadd.f32 %v5577, %v6142
  %v6196 = vadd.f32 %v5578, %v6147
  %v6197 = vadd.f32 %v5579, %v6152
  %v6198 = vadd.f32 %v5580, %v6157
  %v6199 = vadd.f32 %v5581, %v6162
  %v6200 = vadd.f32 %v5582, %v6167
  %v6201 = vadd.f32 %v5583, %v6172
  %v6202 = vadd.f32 %v5584, %v6177
  %v6203 = vadd.f32 %v5585, %v6182
  %v6204 = vadd.f32 %v5586, %v6187
  %s6205 = scalar_lea.vmem %s0, 6080
  %v6206 = vld [vmem:[%s6205] sm:$0xff]
  %v6207 = vld [vmem:[%s6205 + $0x8] sm:$0xff]
  %v6208 = vld [vmem:[%s6205 + $0x10] sm:$0xff]
  %v6209 = vld [vmem:[%s6205 + $0x18] sm:$0xff]
  %v6210 = vld [vmem:[%s6205 + $0x20] sm:$0xff]
  %v6211 = vld [vmem:[%s6205 + $0x28] sm:$0xff]
  %v6212 = vld [vmem:[%s6205 + $0x30] sm:$0xff]
  %v6213 = vld [vmem:[%s6205 + $0x38] sm:$0xff]
  %v6214 = vld [vmem:[%s6205 + $0x40] sm:$0xff]
  %v6215 = vld [vmem:[%s6205 + $0x48] sm:$0xff]
  %v6216 = vld [vmem:[%s6205 + $0x50] sm:$0xff]
  %v6217 = vld [vmem:[%s6205 + $0x58] sm:$0xff]
  %v6218 = vld [vmem:[%s6205 + $0x60] sm:$0xff]
  %v6219 = vld [vmem:[%s6205 + $0x68] sm:$0xff]
  %v6220 = vld [vmem:[%s6205 + $0x70] sm:$0xff]
  %v6221 = vld [vmem:[%s6205 + $0x78] sm:$0xff]
  %v6222 = vld [vmem:[%s6205 + $0x80] sm:$0xff]
  %v6223 = vld [vmem:[%s6205 + $0x88] sm:$0xff]
  %v6224 = vld [vmem:[%s6205 + $0x90] sm:$0x3f]
  %v6226 = vsel %vm64, %v6224, 0
  %6228 = vmatprep.subr.mxu0 0.0
  %6229 = vmatpush1.msra.mxu0 %v6221
  %6230 = vmatprep.subr.mxu0 0.0
  %6231 = vmatpush1.msra.mxu0 %v6220
  %6232 = vmatprep.subr.mxu0 0.0
  %6233 = vmatpush1.msra.mxu0 %v6219
  %6234 = vmatprep.subr.mxu0 0.0
  %6235 = vmatpush1.msra.mxu0 %v6218
  %6236 = vmatprep.subr.mxu0 0.0
  %6237 = vmatpush1.msra.mxu0 %v6217
  %6238 = vmatprep.subr.mxu0 0.0
  %6239 = vmatpush1.msra.mxu0 %v6216
  %6240 = vmatprep.subr.mxu0 0.0
  %6241 = vmatpush1.msra.mxu0 %v6215
  %6242 = vmatprep.subr.mxu0 0.0
  %6243 = vmatpush1.msra.mxu0 %v6214
  %6244 = vmatprep.subr.mxu0 0.0
  %6245 = vmatpush1.msra.mxu0 %v6213
  %6246 = vmatprep.subr.mxu0 0.0
  %6247 = vmatpush1.msra.mxu0 %v6212
  %6248 = vmatprep.subr.mxu0 0.0
  %6249 = vmatpush1.msra.mxu0 %v6211
  %6250 = vmatprep.subr.mxu0 0.0
  %6251 = vmatpush1.msra.mxu0 %v6210
  %6252 = vmatprep.subr.mxu0 0.0
  %6253 = vmatpush1.msra.mxu0 %v6209
  %6254 = vmatprep.subr.mxu0 0.0
  %6255 = vmatpush1.msra.mxu0 %v6208
  %6256 = vmatprep.subr.mxu0 0.0
  %6257 = vmatpush1.msra.mxu0 %v6207
  %6258 = vmatprep.subr.mxu0 0.0
  %6259 = vmatpush1.msra.mxu0 %v6206
  %6260 = vmatprep.subr.mxu0 0.0
  %6261 = vmatpush2.msra.mxu0 0.0
  %6262 = vmatprep.subr.mxu0 0.0
  %6263 = vmatpush2.msra.mxu0 0.0
  %6264 = vmatprep.subr.mxu0 0.0
  %6265 = vmatpush2.msra.mxu0 0.0
  %6266 = vmatprep.subr.mxu0 0.0
  %6267 = vmatpush2.msra.mxu0 0.0
  %6268 = vmatprep.subr.mxu0 0.0
  %6269 = vmatpush2.msra.mxu0 0.0
  %6270 = vmatprep.subr.mxu0 0.0
  %6271 = vmatpush2.msra.mxu0 0.0
  %6272 = vmatprep.subr.mxu0 0.0
  %6273 = vmatpush2.msra.mxu0 0.0
  %6274 = vmatprep.subr.mxu0 0.0
  %6275 = vmatpush2.msra.mxu0 0.0
  %6276 = vmatprep.subr.mxu0 0.0
  %6277 = vmatpush2.msra.mxu0 0.0
  %6278 = vmatprep.subr.mxu0 0.0
  %6279 = vmatpush2.msra.mxu0 0.0
  %6280 = vmatprep.subr.mxu0 0.0
  %6281 = vmatpush2.msra.mxu0 0.0
  %6282 = vmatprep.subr.mxu0 0.0
  %6283 = vmatpush2.msra.mxu0 0.0
  %6284 = vmatprep.subr.mxu0 0.0
  %6285 = vmatpush2.msra.mxu0 0.0
  %6286 = vmatprep.subr.mxu0 0.0
  %6287 = vmatpush2.msra.mxu0 %v6226
  %6288 = vmatprep.subr.mxu0 0.0
  %6289 = vmatpush2.msra.mxu0 %v6223
  %6290 = vmatprep.subr.mxu0 0.0
  %6291 = vmatpush2.msra.mxu0 %v6222
  %6292 = vmatprep.mubr.f32.mxu0 %v59
  %6293 = vmatmul.mubr.f32.gmra.mxu0 %v32
  %v6294 = vpop.f32.mrf.mxu0
  %v6295 = vadd.f32 0.0, %v6294
  %v6296 = vpop.f32.mrf.mxu0
  %6297 = vmatprep.mubr.f32.mxu0 %v62
  %6298 = vmatmul.mubr.f32.gmra.mxu0 %v34
  %v6299 = vpop.f32.mrf.mxu0
  %v6300 = vadd.f32 0.0, %v6299
  %v6301 = vpop.f32.mrf.mxu0
  %6302 = vdwg.mxu0
  %s6303 = scalar_lea.vmem %s0, 6232
  %v6304 = vld [vmem:[%s6303] sm:$0xff]
  %v6305 = vld [vmem:[%s6303 + $0x8] sm:$0xff]
  %v6306 = vld [vmem:[%s6303 + $0x10] sm:$0xff]
  %v6307 = vld [vmem:[%s6303 + $0x18] sm:$0xff]
  %v6308 = vld [vmem:[%s6303 + $0x20] sm:$0xff]
  %v6309 = vld [vmem:[%s6303 + $0x28] sm:$0xff]
  %v6310 = vld [vmem:[%s6303 + $0x30] sm:$0xff]
  %v6311 = vld [vmem:[%s6303 + $0x38] sm:$0xff]
  %v6312 = vld [vmem:[%s6303 + $0x40] sm:$0xff]
  %v6313 = vld [vmem:[%s6303 + $0x48] sm:$0xff]
  %v6314 = vld [vmem:[%s6303 + $0x50] sm:$0xff]
  %v6315 = vld [vmem:[%s6303 + $0x58] sm:$0xff]
  %v6316 = vld [vmem:[%s6303 + $0x60] sm:$0xff]
  %v6317 = vld [vmem:[%s6303 + $0x68] sm:$0xff]
  %v6318 = vld [vmem:[%s6303 + $0x70] sm:$0xff]
  %v6319 = vld [vmem:[%s6303 + $0x78] sm:$0xff]
  %v6320 = vld [vmem:[%s6303 + $0x80] sm:$0xff]
  %v6321 = vld [vmem:[%s6303 + $0x88] sm:$0xff]
  %v6322 = vld [vmem:[%s6303 + $0x90] sm:$0x3f]
  %v6324 = vsel %vm64, %v6322, 0
  %6326 = vmatprep.subr.mxu0 0.0
  %6327 = vmatpush1.msra.mxu0 %v6319
  %6328 = vmatprep.subr.mxu0 0.0
  %6329 = vmatpush1.msra.mxu0 %v6318
  %6330 = vmatprep.subr.mxu0 0.0
  %6331 = vmatpush1.msra.mxu0 %v6317
  %6332 = vmatprep.subr.mxu0 0.0
  %6333 = vmatpush1.msra.mxu0 %v6316
  %6334 = vmatprep.subr.mxu0 0.0
  %6335 = vmatpush1.msra.mxu0 %v6315
  %6336 = vmatprep.subr.mxu0 0.0
  %6337 = vmatpush1.msra.mxu0 %v6314
  %6338 = vmatprep.subr.mxu0 0.0
  %6339 = vmatpush1.msra.mxu0 %v6313
  %6340 = vmatprep.subr.mxu0 0.0
  %6341 = vmatpush1.msra.mxu0 %v6312
  %6342 = vmatprep.subr.mxu0 0.0
  %6343 = vmatpush1.msra.mxu0 %v6311
  %6344 = vmatprep.subr.mxu0 0.0
  %6345 = vmatpush1.msra.mxu0 %v6310
  %6346 = vmatprep.subr.mxu0 0.0
  %6347 = vmatpush1.msra.mxu0 %v6309
  %6348 = vmatprep.subr.mxu0 0.0
  %6349 = vmatpush1.msra.mxu0 %v6308
  %6350 = vmatprep.subr.mxu0 0.0
  %6351 = vmatpush1.msra.mxu0 %v6307
  %6352 = vmatprep.subr.mxu0 0.0
  %6353 = vmatpush1.msra.mxu0 %v6306
  %6354 = vmatprep.subr.mxu0 0.0
  %6355 = vmatpush1.msra.mxu0 %v6305
  %6356 = vmatprep.subr.mxu0 0.0
  %6357 = vmatpush1.msra.mxu0 %v6304
  %6358 = vmatprep.subr.mxu0 0.0
  %6359 = vmatpush2.msra.mxu0 0.0
  %6360 = vmatprep.subr.mxu0 0.0
  %6361 = vmatpush2.msra.mxu0 0.0
  %6362 = vmatprep.subr.mxu0 0.0
  %6363 = vmatpush2.msra.mxu0 0.0
  %6364 = vmatprep.subr.mxu0 0.0
  %6365 = vmatpush2.msra.mxu0 0.0
  %6366 = vmatprep.subr.mxu0 0.0
  %6367 = vmatpush2.msra.mxu0 0.0
  %6368 = vmatprep.subr.mxu0 0.0
  %6369 = vmatpush2.msra.mxu0 0.0
  %6370 = vmatprep.subr.mxu0 0.0
  %6371 = vmatpush2.msra.mxu0 0.0
  %6372 = vmatprep.subr.mxu0 0.0
  %6373 = vmatpush2.msra.mxu0 0.0
  %6374 = vmatprep.subr.mxu0 0.0
  %6375 = vmatpush2.msra.mxu0 0.0
  %6376 = vmatprep.subr.mxu0 0.0
  %6377 = vmatpush2.msra.mxu0 0.0
  %6378 = vmatprep.subr.mxu0 0.0
  %6379 = vmatpush2.msra.mxu0 0.0
  %6380 = vmatprep.subr.mxu0 0.0
  %6381 = vmatpush2.msra.mxu0 0.0
  %6382 = vmatprep.subr.mxu0 0.0
  %6383 = vmatpush2.msra.mxu0 0.0
  %6384 = vmatprep.subr.mxu0 0.0
  %6385 = vmatpush2.msra.mxu0 %v6324
  %6386 = vmatprep.subr.mxu0 0.0
  %6387 = vmatpush2.msra.mxu0 %v6321
  %6388 = vmatprep.subr.mxu0 0.0
  %6389 = vmatpush2.msra.mxu0 %v6320
  %6390 = vmatprep.mubr.f32.mxu0 %v59
  %6391 = vmatmul.mubr.f32.gmra.mxu0 %v32
  %v6392 = vpop.f32.mrf.mxu0
  %v6393 = vadd.f32 0.0, %v6392
  %v6394 = vpop.f32.mrf.mxu0
  %6395 = vmatprep.mubr.f32.mxu0 %v62
  %6396 = vmatmul.mubr.f32.gmra.mxu0 %v34
  %v6397 = vpop.f32.mrf.mxu0
  %v6398 = vadd.f32 0.0, %v6397
  %v6399 = vpop.f32.mrf.mxu0
  %6400 = vdwg.mxu0
  %v6401 = vmax.f32 %v6295, %v6393
  %v6402 = vmax.f32 %v6300, %v6398
  %s6403 = scalar_lea.vmem %s0, 6384
  %v6404 = vld [vmem:[%s6403] sm:$0xff]
  %v6405 = vld [vmem:[%s6403 + $0x8] sm:$0xff]
  %v6406 = vld [vmem:[%s6403 + $0x10] sm:$0xff]
  %v6407 = vld [vmem:[%s6403 + $0x18] sm:$0xff]
  %v6408 = vld [vmem:[%s6403 + $0x20] sm:$0xff]
  %v6409 = vld [vmem:[%s6403 + $0x28] sm:$0xff]
  %v6410 = vld [vmem:[%s6403 + $0x30] sm:$0xff]
  %v6411 = vld [vmem:[%s6403 + $0x38] sm:$0xff]
  %v6412 = vld [vmem:[%s6403 + $0x40] sm:$0xff]
  %v6413 = vld [vmem:[%s6403 + $0x48] sm:$0xff]
  %v6414 = vld [vmem:[%s6403 + $0x50] sm:$0xff]
  %v6415 = vld [vmem:[%s6403 + $0x58] sm:$0xff]
  %v6416 = vld [vmem:[%s6403 + $0x60] sm:$0xff]
  %v6417 = vld [vmem:[%s6403 + $0x68] sm:$0xff]
  %v6418 = vld [vmem:[%s6403 + $0x70] sm:$0xff]
  %v6419 = vld [vmem:[%s6403 + $0x78] sm:$0xff]
  %v6420 = vld [vmem:[%s6403 + $0x80] sm:$0xff]
  %v6421 = vld [vmem:[%s6403 + $0x88] sm:$0xff]
  %v6422 = vld [vmem:[%s6403 + $0x90] sm:$0x3f]
  %v6424 = vsel %vm64, %v6422, 0
  %6426 = vmatprep.subr.mxu0 0.0
  %6427 = vmatpush1.msra.mxu0 %v6419
  %6428 = vmatprep.subr.mxu0 0.0
  %6429 = vmatpush1.msra.mxu0 %v6418
  %6430 = vmatprep.subr.mxu0 0.0
  %6431 = vmatpush1.msra.mxu0 %v6417
  %6432 = vmatprep.subr.mxu0 0.0
  %6433 = vmatpush1.msra.mxu0 %v6416
  %6434 = vmatprep.subr.mxu0 0.0
  %6435 = vmatpush1.msra.mxu0 %v6415
  %6436 = vmatprep.subr.mxu0 0.0
  %6437 = vmatpush1.msra.mxu0 %v6414
  %6438 = vmatprep.subr.mxu0 0.0
  %6439 = vmatpush1.msra.mxu0 %v6413
  %6440 = vmatprep.subr.mxu0 0.0
  %6441 = vmatpush1.msra.mxu0 %v6412
  %6442 = vmatprep.subr.mxu0 0.0
  %6443 = vmatpush1.msra.mxu0 %v6411
  %6444 = vmatprep.subr.mxu0 0.0
  %6445 = vmatpush1.msra.mxu0 %v6410
  %6446 = vmatprep.subr.mxu0 0.0
  %6447 = vmatpush1.msra.mxu0 %v6409
  %6448 = vmatprep.subr.mxu0 0.0
  %6449 = vmatpush1.msra.mxu0 %v6408
  %6450 = vmatprep.subr.mxu0 0.0
  %6451 = vmatpush1.msra.mxu0 %v6407
  %6452 = vmatprep.subr.mxu0 0.0
  %6453 = vmatpush1.msra.mxu0 %v6406
  %6454 = vmatprep.subr.mxu0 0.0
  %6455 = vmatpush1.msra.mxu0 %v6405
  %6456 = vmatprep.subr.mxu0 0.0
  %6457 = vmatpush1.msra.mxu0 %v6404
  %6458 = vmatprep.subr.mxu0 0.0
  %6459 = vmatpush2.msra.mxu0 0.0
  %6460 = vmatprep.subr.mxu0 0.0
  %6461 = vmatpush2.msra.mxu0 0.0
  %6462 = vmatprep.subr.mxu0 0.0
  %6463 = vmatpush2.msra.mxu0 0.0
  %6464 = vmatprep.subr.mxu0 0.0
  %6465 = vmatpush2.msra.mxu0 0.0
  %6466 = vmatprep.subr.mxu0 0.0
  %6467 = vmatpush2.msra.mxu0 0.0
  %6468 = vmatprep.subr.mxu0 0.0
  %6469 = vmatpush2.msra.mxu0 0.0
  %6470 = vmatprep.subr.mxu0 0.0
  %6471 = vmatpush2.msra.mxu0 0.0
  %6472 = vmatprep.subr.mxu0 0.0
  %6473 = vmatpush2.msra.mxu0 0.0
  %6474 = vmatprep.subr.mxu0 0.0
  %6475 = vmatpush2.msra.mxu0 0.0
  %6476 = vmatprep.subr.mxu0 0.0
  %6477 = vmatpush2.msra.mxu0 0.0
  %6478 = vmatprep.subr.mxu0 0.0
  %6479 = vmatpush2.msra.mxu0 0.0
  %6480 = vmatprep.subr.mxu0 0.0
  %6481 = vmatpush2.msra.mxu0 0.0
  %6482 = vmatprep.subr.mxu0 0.0
  %6483 = vmatpush2.msra.mxu0 0.0
  %6484 = vmatprep.subr.mxu0 0.0
  %6485 = vmatpush2.msra.mxu0 %v6424
  %6486 = vmatprep.subr.mxu0 0.0
  %6487 = vmatpush2.msra.mxu0 %v6421
  %6488 = vmatprep.subr.mxu0 0.0
  %6489 = vmatpush2.msra.mxu0 %v6420
  %6490 = vmatprep.mubr.f32.mxu0 %v59
  %6491 = vmatmul.mubr.f32.gmra.mxu0 %v32
  %v6492 = vpop.f32.mrf.mxu0
  %v6493 = vadd.f32 0.0, %v6492
  %v6494 = vpop.f32.mrf.mxu0
  %6495 = vmatprep.mubr.f32.mxu0 %v62
  %6496 = vmatmul.mubr.f32.gmra.mxu0 %v34
  %v6497 = vpop.f32.mrf.mxu0
  %v6498 = vadd.f32 0.0, %v6497
  %v6499 = vpop.f32.mrf.mxu0
  %6500 = vdwg.mxu0
  %v6501 = vmax.f32 %v6401, %v6493
  %v6502 = vmax.f32 %v6402, %v6498
  %s6503 = scalar_lea.vmem %s0, 6536
  %v6504 = vld [vmem:[%s6503] sm:$0xff]
  %v6505 = vld [vmem:[%s6503 + $0x8] sm:$0xff]
  %v6506 = vld [vmem:[%s6503 + $0x10] sm:$0xff]
  %v6507 = vld [vmem:[%s6503 + $0x18] sm:$0xff]
  %v6508 = vld [vmem:[%s6503 + $0x20] sm:$0xff]
  %v6509 = vld [vmem:[%s6503 + $0x28] sm:$0xff]
  %v6510 = vld [vmem:[%s6503 + $0x30] sm:$0xff]
  %v6511 = vld [vmem:[%s6503 + $0x38] sm:$0xff]
  %v6512 = vld [vmem:[%s6503 + $0x40] sm:$0xff]
  %v6513 = vld [vmem:[%s6503 + $0x48] sm:$0xff]
  %v6514 = vld [vmem:[%s6503 + $0x50] sm:$0xff]
  %v6515 = vld [vmem:[%s6503 + $0x58] sm:$0xff]
  %v6516 = vld [vmem:[%s6503 + $0x60] sm:$0xff]
  %v6517 = vld [vmem:[%s6503 + $0x68] sm:$0xff]
  %v6518 = vld [vmem:[%s6503 + $0x70] sm:$0xff]
  %v6519 = vld [vmem:[%s6503 + $0x78] sm:$0xff]
  %v6520 = vld [vmem:[%s6503 + $0x80] sm:$0xff]
  %v6521 = vld [vmem:[%s6503 + $0x88] sm:$0xff]
  %v6522 = vld [vmem:[%s6503 + $0x90] sm:$0x3f]
  %v6524 = vsel %vm64, %v6522, 0
  %6526 = vmatprep.subr.mxu0 0.0
  %6527 = vmatpush1.msra.mxu0 %v6519
  %6528 = vmatprep.subr.mxu0 0.0
  %6529 = vmatpush1.msra.mxu0 %v6518
  %6530 = vmatprep.subr.mxu0 0.0
  %6531 = vmatpush1.msra.mxu0 %v6517
  %6532 = vmatprep.subr.mxu0 0.0
  %6533 = vmatpush1.msra.mxu0 %v6516
  %6534 = vmatprep.subr.mxu0 0.0
  %6535 = vmatpush1.msra.mxu0 %v6515
  %6536 = vmatprep.subr.mxu0 0.0
  %6537 = vmatpush1.msra.mxu0 %v6514
  %6538 = vmatprep.subr.mxu0 0.0
  %6539 = vmatpush1.msra.mxu0 %v6513
  %6540 = vmatprep.subr.mxu0 0.0
  %6541 = vmatpush1.msra.mxu0 %v6512
  %6542 = vmatprep.subr.mxu0 0.0
  %6543 = vmatpush1.msra.mxu0 %v6511
  %6544 = vmatprep.subr.mxu0 0.0
  %6545 = vmatpush1.msra.mxu0 %v6510
  %6546 = vmatprep.subr.mxu0 0.0
  %6547 = vmatpush1.msra.mxu0 %v6509
  %6548 = vmatprep.subr.mxu0 0.0
  %6549 = vmatpush1.msra.mxu0 %v6508
  %6550 = vmatprep.subr.mxu0 0.0
  %6551 = vmatpush1.msra.mxu0 %v6507
  %6552 = vmatprep.subr.mxu0 0.0
  %6553 = vmatpush1.msra.mxu0 %v6506
  %6554 = vmatprep.subr.mxu0 0.0
  %6555 = vmatpush1.msra.mxu0 %v6505
  %6556 = vmatprep.subr.mxu0 0.0
  %6557 = vmatpush1.msra.mxu0 %v6504
  %6558 = vmatprep.subr.mxu0 0.0
  %6559 = vmatpush2.msra.mxu0 0.0
  %6560 = vmatprep.subr.mxu0 0.0
  %6561 = vmatpush2.msra.mxu0 0.0
  %6562 = vmatprep.subr.mxu0 0.0
  %6563 = vmatpush2.msra.mxu0 0.0
  %6564 = vmatprep.subr.mxu0 0.0
  %6565 = vmatpush2.msra.mxu0 0.0
  %6566 = vmatprep.subr.mxu0 0.0
  %6567 = vmatpush2.msra.mxu0 0.0
  %6568 = vmatprep.subr.mxu0 0.0
  %6569 = vmatpush2.msra.mxu0 0.0
  %6570 = vmatprep.subr.mxu0 0.0
  %6571 = vmatpush2.msra.mxu0 0.0
  %6572 = vmatprep.subr.mxu0 0.0
  %6573 = vmatpush2.msra.mxu0 0.0
  %6574 = vmatprep.subr.mxu0 0.0
  %6575 = vmatpush2.msra.mxu0 0.0
  %6576 = vmatprep.subr.mxu0 0.0
  %6577 = vmatpush2.msra.mxu0 0.0
  %6578 = vmatprep.subr.mxu0 0.0
  %6579 = vmatpush2.msra.mxu0 0.0
  %6580 = vmatprep.subr.mxu0 0.0
  %6581 = vmatpush2.msra.mxu0 0.0
  %6582 = vmatprep.subr.mxu0 0.0
  %6583 = vmatpush2.msra.mxu0 0.0
  %6584 = vmatprep.subr.mxu0 0.0
  %6585 = vmatpush2.msra.mxu0 %v6524
  %6586 = vmatprep.subr.mxu0 0.0
  %6587 = vmatpush2.msra.mxu0 %v6521
  %6588 = vmatprep.subr.mxu0 0.0
  %6589 = vmatpush2.msra.mxu0 %v6520
  %6590 = vmatprep.mubr.f32.mxu0 %v59
  %6591 = vmatmul.mubr.f32.gmra.mxu0 %v32
  %v6592 = vpop.f32.mrf.mxu0
  %v6593 = vadd.f32 0.0, %v6592
  %v6594 = vpop.f32.mrf.mxu0
  %6595 = vmatprep.mubr.f32.mxu0 %v62
  %6596 = vmatmul.mubr.f32.gmra.mxu0 %v34
  %v6597 = vpop.f32.mrf.mxu0
  %v6598 = vadd.f32 0.0, %v6597
  %v6599 = vpop.f32.mrf.mxu0
  %6600 = vdwg.mxu0
  %v6601 = vmax.f32 %v6501, %v6593
  %v6602 = vmax.f32 %v6502, %v6598
  %v6603 = vadd.f32 %v6601, %v446
  %v6604 = vadd.f32 %v6602, %v451
  %v6605 = vmax.f32 %v6603, 0.0
  %v6606 = vmax.f32 %v6604, 0.0
  %s6607 = scalar_lea.vmem %s3, 1200
  %v6608 = vld [vmem:[%s6607] sm:$0xff]
  %v6609 = vld [vmem:[%s6607 + $0x8] sm:$0xff]
  %v6610 = vld [vmem:[%s6607 + $0x10] sm:$0xff]
  %v6611 = vld [vmem:[%s6607 + $0x18] sm:$0xff]
  %v6612 = vld [vmem:[%s6607 + $0x20] sm:$0xff]
  %v6613 = vld [vmem:[%s6607 + $0x28] sm:$0xff]
  %v6614 = vld [vmem:[%s6607 + $0x30] sm:$0xff]
  %v6615 = vld [vmem:[%s6607 + $0x38] sm:$0xff]
  %v6616 = vld [vmem:[%s6607 + $0x40] sm:$0xff]
  %v6617 = vld [vmem:[%s6607 + $0x48] sm:$0xff]
  %v6618 = vld [vmem:[%s6607 + $0x50] sm:$0xff]
  %v6619 = vld [vmem:[%s6607 + $0x58] sm:$0xff]
  %v6620 = vld [vmem:[%s6607 + $0x60] sm:$0xff]
  %v6621 = vld [vmem:[%s6607 + $0x68] sm:$0xff]
  %v6622 = vld [vmem:[%s6607 + $0x70] sm:$0xff]
  %v6624 = vsel %vm890, %v6608, 0
  %v6627 = vsel %vm890, %v6609, 0
  %v6630 = vsel %vm890, %v6610, 0
  %v6633 = vsel %vm890, %v6611, 0
  %v6636 = vsel %vm890, %v6612, 0
  %v6639 = vsel %vm890, %v6613, 0
  %v6642 = vsel %vm890, %v6614, 0
  %v6645 = vsel %vm890, %v6615, 0
  %v6648 = vsel %vm890, %v6616, 0
  %v6651 = vsel %vm890, %v6617, 0
  %v6654 = vsel %vm890, %v6618, 0
  %v6657 = vsel %vm890, %v6619, 0
  %v6660 = vsel %vm890, %v6620, 0
  %v6663 = vsel %vm890, %v6621, 0
  %v6666 = vsel %vm890, %v6622, 0
  %6668 = vmatprep.subr.mxu0 0.0
  %6669 = vmatpush1.msra.mxu0 0.0
  %6670 = vmatprep.subr.mxu0 0.0
  %6671 = vmatpush1.msra.mxu0 0.0
  %6672 = vmatprep.subr.mxu0 0.0
  %6673 = vmatpush1.msra.mxu0 0.0
  %6674 = vmatprep.subr.mxu0 0.0
  %6675 = vmatpush1.msra.mxu0 0.0
  %6676 = vmatprep.subr.mxu0 0.0
  %6677 = vmatpush1.msra.mxu0 0.0
  %6678 = vmatprep.subr.mxu0 0.0
  %6679 = vmatpush1.msra.mxu0 0.0
  %6680 = vmatprep.subr.mxu0 0.0
  %6681 = vmatpush1.msra.mxu0 0.0
  %6682 = vmatprep.subr.mxu0 0.0
  %6683 = vmatpush1.msra.mxu0 0.0
  %6684 = vmatprep.subr.mxu0 0.0
  %6685 = vmatpush1.msra.mxu0 0.0
  %6686 = vmatprep.subr.mxu0 0.0
  %6687 = vmatpush1.msra.mxu0 0.0
  %6688 = vmatprep.subr.mxu0 0.0
  %6689 = vmatpush1.msra.mxu0 0.0
  %6690 = vmatprep.subr.mxu0 0.0
  %6691 = vmatpush1.msra.mxu0 0.0
  %6692 = vmatprep.subr.mxu0 0.0
  %6693 = vmatpush1.msra.mxu0 0.0
  %6694 = vmatprep.subr.mxu0 0.0
  %6695 = vmatpush1.msra.mxu0 0.0
  %6696 = vmatprep.subr.mxu0 0.0
  %6697 = vmatpush1.msra.mxu0 %v6606
  %6698 = vmatprep.subr.mxu0 0.0
  %6699 = vmatpush1.msra.mxu0 %v6605
  %6700 = vmatprep.subr.mxu0 0.0
  %6701 = vmatpush2.msra.mxu0 0.0
  %6702 = vmatprep.subr.mxu0 0.0
  %6703 = vmatpush2.msra.mxu0 0.0
  %6704 = vmatprep.subr.mxu0 0.0
  %6705 = vmatpush2.msra.mxu0 0.0
  %6706 = vmatprep.subr.mxu0 0.0
  %6707 = vmatpush2.msra.mxu0 0.0
  %6708 = vmatprep.subr.mxu0 0.0
  %6709 = vmatpush2.msra.mxu0 0.0
  %6710 = vmatprep.subr.mxu0 0.0
  %6711 = vmatpush2.msra.mxu0 0.0
  %6712 = vmatprep.subr.mxu0 0.0
  %6713 = vmatpush2.msra.mxu0 0.0
  %6714 = vmatprep.subr.mxu0 0.0
  %6715 = vmatpush2.msra.mxu0 0.0
  %6716 = vmatprep.subr.mxu0 0.0
  %6717 = vmatpush2.msra.mxu0 0.0
  %6718 = vmatprep.subr.mxu0 0.0
  %6719 = vmatpush2.msra.mxu0 0.0
  %6720 = vmatprep.subr.mxu0 0.0
  %6721 = vmatpush2.msra.mxu0 0.0
  %6722 = vmatprep.subr.mxu0 0.0
  %6723 = vmatpush2.msra.mxu0 0.0
  %6724 = vmatprep.subr.mxu0 0.0
  %6725 = vmatpush2.msra.mxu0 0.0
  %6726 = vmatprep.subr.mxu0 0.0
  %6727 = vmatpush2.msra.mxu0 0.0
  %6728 = vmatprep.subr.mxu0 0.0
  %6729 = vmatpush2.msra.mxu0 0.0
  %6730 = vmatprep.subr.mxu0 0.0
  %6731 = vmatpush2.msra.mxu0 0.0
  %6732 = vmatprep.mubr.f32.mxu0 0.0
  %6733 = vmatmul.mubr.f32.gmra.mxu0 %v6624
  %v6734 = vpop.f32.mrf.mxu0
  %v6735 = vadd.f32 0.0, %v6734
  %v6736 = vpop.f32.mrf.mxu0
  %6737 = vmatprep.mubr.f32.mxu0 0.0
  %6738 = vmatmul.mubr.f32.gmra.mxu0 %v6627
  %v6739 = vpop.f32.mrf.mxu0
  %v6740 = vadd.f32 0.0, %v6739
  %v6741 = vpop.f32.mrf.mxu0
  %6742 = vmatprep.mubr.f32.mxu0 0.0
  %6743 = vmatmul.mubr.f32.gmra.mxu0 %v6630
  %v6744 = vpop.f32.mrf.mxu0
  %v6745 = vadd.f32 0.0, %v6744
  %v6746 = vpop.f32.mrf.mxu0
  %6747 = vmatprep.mubr.f32.mxu0 0.0
  %6748 = vmatmul.mubr.f32.gmra.mxu0 %v6633
  %v6749 = vpop.f32.mrf.mxu0
  %v6750 = vadd.f32 0.0, %v6749
  %v6751 = vpop.f32.mrf.mxu0
  %6752 = vmatprep.mubr.f32.mxu0 0.0
  %6753 = vmatmul.mubr.f32.gmra.mxu0 %v6636
  %v6754 = vpop.f32.mrf.mxu0
  %v6755 = vadd.f32 0.0, %v6754
  %v6756 = vpop.f32.mrf.mxu0
  %6757 = vmatprep.mubr.f32.mxu0 0.0
  %6758 = vmatmul.mubr.f32.gmra.mxu0 %v6639
  %v6759 = vpop.f32.mrf.mxu0
  %v6760 = vadd.f32 0.0, %v6759
  %v6761 = vpop.f32.mrf.mxu0
  %6762 = vmatprep.mubr.f32.mxu0 0.0
  %6763 = vmatmul.mubr.f32.gmra.mxu0 %v6642
  %v6764 = vpop.f32.mrf.mxu0
  %v6765 = vadd.f32 0.0, %v6764
  %v6766 = vpop.f32.mrf.mxu0
  %6767 = vmatprep.mubr.f32.mxu0 0.0
  %6768 = vmatmul.mubr.f32.gmra.mxu0 %v6645
  %v6769 = vpop.f32.mrf.mxu0
  %v6770 = vadd.f32 0.0, %v6769
  %v6771 = vpop.f32.mrf.mxu0
  %6772 = vmatprep.mubr.f32.mxu0 0.0
  %6773 = vmatmul.mubr.f32.gmra.mxu0 %v6648
  %v6774 = vpop.f32.mrf.mxu0
  %v6775 = vadd.f32 0.0, %v6774
  %v6776 = vpop.f32.mrf.mxu0
  %6777 = vmatprep.mubr.f32.mxu0 0.0
  %6778 = vmatmul.mubr.f32.gmra.mxu0 %v6651
  %v6779 = vpop.f32.mrf.mxu0
  %v6780 = vadd.f32 0.0, %v6779
  %v6781 = vpop.f32.mrf.mxu0
  %6782 = vmatprep.mubr.f32.mxu0 0.0
  %6783 = vmatmul.mubr.f32.gmra.mxu0 %v6654
  %v6784 = vpop.f32.mrf.mxu0
  %v6785 = vadd.f32 0.0, %v6784
  %v6786 = vpop.f32.mrf.mxu0
  %6787 = vmatprep.mubr.f32.mxu0 0.0
  %6788 = vmatmul.mubr.f32.gmra.mxu0 %v6657
  %v6789 = vpop.f32.mrf.mxu0
  %v6790 = vadd.f32 0.0, %v6789
  %v6791 = vpop.f32.mrf.mxu0
  %6792 = vmatprep.mubr.f32.mxu0 0.0
  %6793 = vmatmul.mubr.f32.gmra.mxu0 %v6660
  %v6794 = vpop.f32.mrf.mxu0
  %v6795 = vadd.f32 0.0, %v6794
  %v6796 = vpop.f32.mrf.mxu0
  %6797 = vmatprep.mubr.f32.mxu0 0.0
  %6798 = vmatmul.mubr.f32.gmra.mxu0 %v6663
  %v6799 = vpop.f32.mrf.mxu0
  %v6800 = vadd.f32 0.0, %v6799
  %v6801 = vpop.f32.mrf.mxu0
  %6802 = vmatprep.mubr.f32.mxu0 0.0
  %6803 = vmatmul.mubr.f32.gmra.mxu0 %v6666
  %v6804 = vpop.f32.mrf.mxu0
  %v6805 = vadd.f32 0.0, %v6804
  %v6806 = vpop.f32.mrf.mxu0
  %6807 = vdwg.mxu0
  %v6808 = vadd.f32 %v6190, %v6735
  %v6809 = vadd.f32 %v6191, %v6740
  %v6810 = vadd.f32 %v6192, %v6745
  %v6811 = vadd.f32 %v6193, %v6750
  %v6812 = vadd.f32 %v6194, %v6755
  %v6813 = vadd.f32 %v6195, %v6760
  %v6814 = vadd.f32 %v6196, %v6765
  %v6815 = vadd.f32 %v6197, %v6770
  %v6816 = vadd.f32 %v6198, %v6775
  %v6817 = vadd.f32 %v6199, %v6780
  %v6818 = vadd.f32 %v6200, %v6785
  %v6819 = vadd.f32 %v6201, %v6790
  %v6820 = vadd.f32 %v6202, %v6795
  %v6821 = vadd.f32 %v6203, %v6800
  %v6822 = vadd.f32 %v6204, %v6805
  %s6823 = scalar_lea.vmem %s0, 6688
  %v6824 = vld [vmem:[%s6823] sm:$0xff]
  %v6825 = vld [vmem:[%s6823 + $0x8] sm:$0xff]
  %v6826 = vld [vmem:[%s6823 + $0x10] sm:$0xff]
  %v6827 = vld [vmem:[%s6823 + $0x18] sm:$0xff]
  %v6828 = vld [vmem:[%s6823 + $0x20] sm:$0xff]
  %v6829 = vld [vmem:[%s6823 + $0x28] sm:$0xff]
  %v6830 = vld [vmem:[%s6823 + $0x30] sm:$0xff]
  %v6831 = vld [vmem:[%s6823 + $0x38] sm:$0xff]
  %v6832 = vld [vmem:[%s6823 + $0x40] sm:$0xff]
  %v6833 = vld [vmem:[%s6823 + $0x48] sm:$0xff]
  %v6834 = vld [vmem:[%s6823 + $0x50] sm:$0xff]
  %v6835 = vld [vmem:[%s6823 + $0x58] sm:$0xff]
  %v6836 = vld [vmem:[%s6823 + $0x60] sm:$0xff]
  %v6837 = vld [vmem:[%s6823 + $0x68] sm:$0xff]
  %v6838 = vld [vmem:[%s6823 + $0x70] sm:$0xff]
  %v6839 = vld [vmem:[%s6823 + $0x78] sm:$0xff]
  %v6840 = vld [vmem:[%s6823 + $0x80] sm:$0xff]
  %v6841 = vld [vmem:[%s6823 + $0x88] sm:$0xff]
  %v6842 = vld [vmem:[%s6823 + $0x90] sm:$0x3f]
  %v6844 = vsel %vm64, %v6842, 0
  %6846 = vmatprep.subr.mxu0 0.0
  %6847 = vmatpush1.msra.mxu0 %v6839
  %6848 = vmatprep.subr.mxu0 0.0
  %6849 = vmatpush1.msra.mxu0 %v6838
  %6850 = vmatprep.subr.mxu0 0.0
  %6851 = vmatpush1.msra.mxu0 %v6837
  %6852 = vmatprep.subr.mxu0 0.0
  %6853 = vmatpush1.msra.mxu0 %v6836
  %6854 = vmatprep.subr.mxu0 0.0
  %6855 = vmatpush1.msra.mxu0 %v6835
  %6856 = vmatprep.subr.mxu0 0.0
  %6857 = vmatpush1.msra.mxu0 %v6834
  %6858 = vmatprep.subr.mxu0 0.0
  %6859 = vmatpush1.msra.mxu0 %v6833
  %6860 = vmatprep.subr.mxu0 0.0
  %6861 = vmatpush1.msra.mxu0 %v6832
  %6862 = vmatprep.subr.mxu0 0.0
  %6863 = vmatpush1.msra.mxu0 %v6831
  %6864 = vmatprep.subr.mxu0 0.0
  %6865 = vmatpush1.msra.mxu0 %v6830
  %6866 = vmatprep.subr.mxu0 0.0
  %6867 = vmatpush1.msra.mxu0 %v6829
  %6868 = vmatprep.subr.mxu0 0.0
  %6869 = vmatpush1.msra.mxu0 %v6828
  %6870 = vmatprep.subr.mxu0 0.0
  %6871 = vmatpush1.msra.mxu0 %v6827
  %6872 = vmatprep.subr.mxu0 0.0
  %6873 = vmatpush1.msra.mxu0 %v6826
  %6874 = vmatprep.subr.mxu0 0.0
  %6875 = vmatpush1.msra.mxu0 %v6825
  %6876 = vmatprep.subr.mxu0 0.0
  %6877 = vmatpush1.msra.mxu0 %v6824
  %6878 = vmatprep.subr.mxu0 0.0
  %6879 = vmatpush2.msra.mxu0 0.0
  %6880 = vmatprep.subr.mxu0 0.0
  %6881 = vmatpush2.msra.mxu0 0.0
  %6882 = vmatprep.subr.mxu0 0.0
  %6883 = vmatpush2.msra.mxu0 0.0
  %6884 = vmatprep.subr.mxu0 0.0
  %6885 = vmatpush2.msra.mxu0 0.0
  %6886 = vmatprep.subr.mxu0 0.0
  %6887 = vmatpush2.msra.mxu0 0.0
  %6888 = vmatprep.subr.mxu0 0.0
  %6889 = vmatpush2.msra.mxu0 0.0
  %6890 = vmatprep.subr.mxu0 0.0
  %6891 = vmatpush2.msra.mxu0 0.0
  %6892 = vmatprep.subr.mxu0 0.0
  %6893 = vmatpush2.msra.mxu0 0.0
  %6894 = vmatprep.subr.mxu0 0.0
  %6895 = vmatpush2.msra.mxu0 0.0
  %6896 = vmatprep.subr.mxu0 0.0
  %6897 = vmatpush2.msra.mxu0 0.0
  %6898 = vmatprep.subr.mxu0 0.0
  %6899 = vmatpush2.msra.mxu0 0.0
  %6900 = vmatprep.subr.mxu0 0.0
  %6901 = vmatpush2.msra.mxu0 0.0
  %6902 = vmatprep.subr.mxu0 0.0
  %6903 = vmatpush2.msra.mxu0 0.0
  %6904 = vmatprep.subr.mxu0 0.0
  %6905 = vmatpush2.msra.mxu0 %v6844
  %6906 = vmatprep.subr.mxu0 0.0
  %6907 = vmatpush2.msra.mxu0 %v6841
  %6908 = vmatprep.subr.mxu0 0.0
  %6909 = vmatpush2.msra.mxu0 %v6840
  %6910 = vmatprep.mubr.f32.mxu0 %v59
  %6911 = vmatmul.mubr.f32.gmra.mxu0 %v32
  %v6912 = vpop.f32.mrf.mxu0
  %v6913 = vadd.f32 0.0, %v6912
  %v6914 = vpop.f32.mrf.mxu0
  %6915 = vmatprep.mubr.f32.mxu0 %v62
  %6916 = vmatmul.mubr.f32.gmra.mxu0 %v34
  %v6917 = vpop.f32.mrf.mxu0
  %v6918 = vadd.f32 0.0, %v6917
  %v6919 = vpop.f32.mrf.mxu0
  %6920 = vdwg.mxu0
  %s6921 = scalar_lea.vmem %s0, 6840
  %v6922 = vld [vmem:[%s6921] sm:$0xff]
  %v6923 = vld [vmem:[%s6921 + $0x8] sm:$0xff]
  %v6924 = vld [vmem:[%s6921 + $0x10] sm:$0xff]
  %v6925 = vld [vmem:[%s6921 + $0x18] sm:$0xff]
  %v6926 = vld [vmem:[%s6921 + $0x20] sm:$0xff]
  %v6927 = vld [vmem:[%s6921 + $0x28] sm:$0xff]
  %v6928 = vld [vmem:[%s6921 + $0x30] sm:$0xff]
  %v6929 = vld [vmem:[%s6921 + $0x38] sm:$0xff]
  %v6930 = vld [vmem:[%s6921 + $0x40] sm:$0xff]
  %v6931 = vld [vmem:[%s6921 + $0x48] sm:$0xff]
  %v6932 = vld [vmem:[%s6921 + $0x50] sm:$0xff]
  %v6933 = vld [vmem:[%s6921 + $0x58] sm:$0xff]
  %v6934 = vld [vmem:[%s6921 + $0x60] sm:$0xff]
  %v6935 = vld [vmem:[%s6921 + $0x68] sm:$0xff]
  %v6936 = vld [vmem:[%s6921 + $0x70] sm:$0xff]
  %v6937 = vld [vmem:[%s6921 + $0x78] sm:$0xff]
  %v6938 = vld [vmem:[%s6921 + $0x80] sm:$0xff]
  %v6939 = vld [vmem:[%s6921 + $0x88] sm:$0xff]
  %v6940 = vld [vmem:[%s6921 + $0x90] sm:$0x3f]
  %v6942 = vsel %vm64, %v6940, 0
  %6944 = vmatprep.subr.mxu0 0.0
  %6945 = vmatpush1.msra.mxu0 %v6937
  %6946 = vmatprep.subr.mxu0 0.0
  %6947 = vmatpush1.msra.mxu0 %v6936
  %6948 = vmatprep.subr.mxu0 0.0
  %6949 = vmatpush1.msra.mxu0 %v6935
  %6950 = vmatprep.subr.mxu0 0.0
  %6951 = vmatpush1.msra.mxu0 %v6934
  %6952 = vmatprep.subr.mxu0 0.0
  %6953 = vmatpush1.msra.mxu0 %v6933
  %6954 = vmatprep.subr.mxu0 0.0
  %6955 = vmatpush1.msra.mxu0 %v6932
  %6956 = vmatprep.subr.mxu0 0.0
  %6957 = vmatpush1.msra.mxu0 %v6931
  %6958 = vmatprep.subr.mxu0 0.0
  %6959 = vmatpush1.msra.mxu0 %v6930
  %6960 = vmatprep.subr.mxu0 0.0
  %6961 = vmatpush1.msra.mxu0 %v6929
  %6962 = vmatprep.subr.mxu0 0.0
  %6963 = vmatpush1.msra.mxu0 %v6928
  %6964 = vmatprep.subr.mxu0 0.0
  %6965 = vmatpush1.msra.mxu0 %v6927
  %6966 = vmatprep.subr.mxu0 0.0
  %6967 = vmatpush1.msra.mxu0 %v6926
  %6968 = vmatprep.subr.mxu0 0.0
  %6969 = vmatpush1.msra.mxu0 %v6925
  %6970 = vmatprep.subr.mxu0 0.0
  %6971 = vmatpush1.msra.mxu0 %v6924
  %6972 = vmatprep.subr.mxu0 0.0
  %6973 = vmatpush1.msra.mxu0 %v6923
  %6974 = vmatprep.subr.mxu0 0.0
  %6975 = vmatpush1.msra.mxu0 %v6922
  %6976 = vmatprep.subr.mxu0 0.0
  %6977 = vmatpush2.msra.mxu0 0.0
  %6978 = vmatprep.subr.mxu0 0.0
  %6979 = vmatpush2.msra.mxu0 0.0
  %6980 = vmatprep.subr.mxu0 0.0
  %6981 = vmatpush2.msra.mxu0 0.0
  %6982 = vmatprep.subr.mxu0 0.0
  %6983 = vmatpush2.msra.mxu0 0.0
  %6984 = vmatprep.subr.mxu0 0.0
  %6985 = vmatpush2.msra.mxu0 0.0
  %6986 = vmatprep.subr.mxu0 0.0
  %6987 = vmatpush2.msra.mxu0 0.0
  %6988 = vmatprep.subr.mxu0 0.0
  %6989 = vmatpush2.msra.mxu0 0.0
  %6990 = vmatprep.subr.mxu0 0.0
  %6991 = vmatpush2.msra.mxu0 0.0
  %6992 = vmatprep.subr.mxu0 0.0
  %6993 = vmatpush2.msra.mxu0 0.0
  %6994 = vmatprep.subr.mxu0 0.0
  %6995 = vmatpush2.msra.mxu0 0.0
  %6996 = vmatprep.subr.mxu0 0.0
  %6997 = vmatpush2.msra.mxu0 0.0
  %6998 = vmatprep.subr.mxu0 0.0
  %6999 = vmatpush2.msra.mxu0 0.0
  %7000 = vmatprep.subr.mxu0 0.0
  %7001 = vmatpush2.msra.mxu0 0.0
  %7002 = vmatprep.subr.mxu0 0.0
  %7003 = vmatpush2.msra.mxu0 %v6942
  %7004 = vmatprep.subr.mxu0 0.0
  %7005 = vmatpush2.msra.mxu0 %v6939
  %7006 = vmatprep.subr.mxu0 0.0
  %7007 = vmatpush2.msra.mxu0 %v6938
  %7008 = vmatprep.mubr.f32.mxu0 %v59
  %7009 = vmatmul.mubr.f32.gmra.mxu0 %v32
  %v7010 = vpop.f32.mrf.mxu0
  %v7011 = vadd.f32 0.0, %v7010
  %v7012 = vpop.f32.mrf.mxu0
  %7013 = vmatprep.mubr.f32.mxu0 %v62
  %7014 = vmatmul.mubr.f32.gmra.mxu0 %v34
  %v7015 = vpop.f32.mrf.mxu0
  %v7016 = vadd.f32 0.0, %v7015
  %v7017 = vpop.f32.mrf.mxu0
  %7018 = vdwg.mxu0
  %v7019 = vmax.f32 %v6913, %v7011
  %v7020 = vmax.f32 %v6918, %v7016
  %s7021 = scalar_lea.vmem %s0, 6992
  %v7022 = vld [vmem:[%s7021] sm:$0xff]
  %v7023 = vld [vmem:[%s7021 + $0x8] sm:$0xff]
  %v7024 = vld [vmem:[%s7021 + $0x10] sm:$0xff]
  %v7025 = vld [vmem:[%s7021 + $0x18] sm:$0xff]
  %v7026 = vld [vmem:[%s7021 + $0x20] sm:$0xff]
  %v7027 = vld [vmem:[%s7021 + $0x28] sm:$0xff]
  %v7028 = vld [vmem:[%s7021 + $0x30] sm:$0xff]
  %v7029 = vld [vmem:[%s7021 + $0x38] sm:$0xff]
  %v7030 = vld [vmem:[%s7021 + $0x40] sm:$0xff]
  %v7031 = vld [vmem:[%s7021 + $0x48] sm:$0xff]
  %v7032 = vld [vmem:[%s7021 + $0x50] sm:$0xff]
  %v7033 = vld [vmem:[%s7021 + $0x58] sm:$0xff]
  %v7034 = vld [vmem:[%s7021 + $0x60] sm:$0xff]
  %v7035 = vld [vmem:[%s7021 + $0x68] sm:$0xff]
  %v7036 = vld [vmem:[%s7021 + $0x70] sm:$0xff]
  %v7037 = vld [vmem:[%s7021 + $0x78] sm:$0xff]
  %v7038 = vld [vmem:[%s7021 + $0x80] sm:$0xff]
  %v7039 = vld [vmem:[%s7021 + $0x88] sm:$0xff]
  %v7040 = vld [vmem:[%s7021 + $0x90] sm:$0x3f]
  %v7042 = vsel %vm64, %v7040, 0
  %7044 = vmatprep.subr.mxu0 0.0
  %7045 = vmatpush1.msra.mxu0 %v7037
  %7046 = vmatprep.subr.mxu0 0.0
  %7047 = vmatpush1.msra.mxu0 %v7036
  %7048 = vmatprep.subr.mxu0 0.0
  %7049 = vmatpush1.msra.mxu0 %v7035
  %7050 = vmatprep.subr.mxu0 0.0
  %7051 = vmatpush1.msra.mxu0 %v7034
  %7052 = vmatprep.subr.mxu0 0.0
  %7053 = vmatpush1.msra.mxu0 %v7033
  %7054 = vmatprep.subr.mxu0 0.0
  %7055 = vmatpush1.msra.mxu0 %v7032
  %7056 = vmatprep.subr.mxu0 0.0
  %7057 = vmatpush1.msra.mxu0 %v7031
  %7058 = vmatprep.subr.mxu0 0.0
  %7059 = vmatpush1.msra.mxu0 %v7030
  %7060 = vmatprep.subr.mxu0 0.0
  %7061 = vmatpush1.msra.mxu0 %v7029
  %7062 = vmatprep.subr.mxu0 0.0
  %7063 = vmatpush1.msra.mxu0 %v7028
  %7064 = vmatprep.subr.mxu0 0.0
  %7065 = vmatpush1.msra.mxu0 %v7027
  %7066 = vmatprep.subr.mxu0 0.0
  %7067 = vmatpush1.msra.mxu0 %v7026
  %7068 = vmatprep.subr.mxu0 0.0
  %7069 = vmatpush1.msra.mxu0 %v7025
  %7070 = vmatprep.subr.mxu0 0.0
  %7071 = vmatpush1.msra.mxu0 %v7024
  %7072 = vmatprep.subr.mxu0 0.0
  %7073 = vmatpush1.msra.mxu0 %v7023
  %7074 = vmatprep.subr.mxu0 0.0
  %7075 = vmatpush1.msra.mxu0 %v7022
  %7076 = vmatprep.subr.mxu0 0.0
  %7077 = vmatpush2.msra.mxu0 0.0
  %7078 = vmatprep.subr.mxu0 0.0
  %7079 = vmatpush2.msra.mxu0 0.0
  %7080 = vmatprep.subr.mxu0 0.0
  %7081 = vmatpush2.msra.mxu0 0.0
  %7082 = vmatprep.subr.mxu0 0.0
  %7083 = vmatpush2.msra.mxu0 0.0
  %7084 = vmatprep.subr.mxu0 0.0
  %7085 = vmatpush2.msra.mxu0 0.0
  %7086 = vmatprep.subr.mxu0 0.0
  %7087 = vmatpush2.msra.mxu0 0.0
  %7088 = vmatprep.subr.mxu0 0.0
  %7089 = vmatpush2.msra.mxu0 0.0
  %7090 = vmatprep.subr.mxu0 0.0
  %7091 = vmatpush2.msra.mxu0 0.0
  %7092 = vmatprep.subr.mxu0 0.0
  %7093 = vmatpush2.msra.mxu0 0.0
  %7094 = vmatprep.subr.mxu0 0.0
  %7095 = vmatpush2.msra.mxu0 0.0
  %7096 = vmatprep.subr.mxu0 0.0
  %7097 = vmatpush2.msra.mxu0 0.0
  %7098 = vmatprep.subr.mxu0 0.0
  %7099 = vmatpush2.msra.mxu0 0.0
  %7100 = vmatprep.subr.mxu0 0.0
  %7101 = vmatpush2.msra.mxu0 0.0
  %7102 = vmatprep.subr.mxu0 0.0
  %7103 = vmatpush2.msra.mxu0 %v7042
  %7104 = vmatprep.subr.mxu0 0.0
  %7105 = vmatpush2.msra.mxu0 %v7039
  %7106 = vmatprep.subr.mxu0 0.0
  %7107 = vmatpush2.msra.mxu0 %v7038
  %7108 = vmatprep.mubr.f32.mxu0 %v59
  %7109 = vmatmul.mubr.f32.gmra.mxu0 %v32
  %v7110 = vpop.f32.mrf.mxu0
  %v7111 = vadd.f32 0.0, %v7110
  %v7112 = vpop.f32.mrf.mxu0
  %7113 = vmatprep.mubr.f32.mxu0 %v62
  %7114 = vmatmul.mubr.f32.gmra.mxu0 %v34
  %v7115 = vpop.f32.mrf.mxu0
  %v7116 = vadd.f32 0.0, %v7115
  %v7117 = vpop.f32.mrf.mxu0
  %7118 = vdwg.mxu0
  %v7119 = vmax.f32 %v7019, %v7111
  %v7120 = vmax.f32 %v7020, %v7116
  %s7121 = scalar_lea.vmem %s0, 7144
  %v7122 = vld [vmem:[%s7121] sm:$0xff]
  %v7123 = vld [vmem:[%s7121 + $0x8] sm:$0xff]
  %v7124 = vld [vmem:[%s7121 + $0x10] sm:$0xff]
  %v7125 = vld [vmem:[%s7121 + $0x18] sm:$0xff]
  %v7126 = vld [vmem:[%s7121 + $0x20] sm:$0xff]
  %v7127 = vld [vmem:[%s7121 + $0x28] sm:$0xff]
  %v7128 = vld [vmem:[%s7121 + $0x30] sm:$0xff]
  %v7129 = vld [vmem:[%s7121 + $0x38] sm:$0xff]
  %v7130 = vld [vmem:[%s7121 + $0x40] sm:$0xff]
  %v7131 = vld [vmem:[%s7121 + $0x48] sm:$0xff]
  %v7132 = vld [vmem:[%s7121 + $0x50] sm:$0xff]
  %v7133 = vld [vmem:[%s7121 + $0x58] sm:$0xff]
  %v7134 = vld [vmem:[%s7121 + $0x60] sm:$0xff]
  %v7135 = vld [vmem:[%s7121 + $0x68] sm:$0xff]
  %v7136 = vld [vmem:[%s7121 + $0x70] sm:$0xff]
  %v7137 = vld [vmem:[%s7121 + $0x78] sm:$0xff]
  %v7138 = vld [vmem:[%s7121 + $0x80] sm:$0xff]
  %v7139 = vld [vmem:[%s7121 + $0x88] sm:$0xff]
  %v7140 = vld [vmem:[%s7121 + $0x90] sm:$0x3f]
  %v7142 = vsel %vm64, %v7140, 0
  %7144 = vmatprep.subr.mxu0 0.0
  %7145 = vmatpush1.msra.mxu0 %v7137
  %7146 = vmatprep.subr.mxu0 0.0
  %7147 = vmatpush1.msra.mxu0 %v7136
  %7148 = vmatprep.subr.mxu0 0.0
  %7149 = vmatpush1.msra.mxu0 %v7135
  %7150 = vmatprep.subr.mxu0 0.0
  %7151 = vmatpush1.msra.mxu0 %v7134
  %7152 = vmatprep.subr.mxu0 0.0
  %7153 = vmatpush1.msra.mxu0 %v7133
  %7154 = vmatprep.subr.mxu0 0.0
  %7155 = vmatpush1.msra.mxu0 %v7132
  %7156 = vmatprep.subr.mxu0 0.0
  %7157 = vmatpush1.msra.mxu0 %v7131
  %7158 = vmatprep.subr.mxu0 0.0
  %7159 = vmatpush1.msra.mxu0 %v7130
  %7160 = vmatprep.subr.mxu0 0.0
  %7161 = vmatpush1.msra.mxu0 %v7129
  %7162 = vmatprep.subr.mxu0 0.0
  %7163 = vmatpush1.msra.mxu0 %v7128
  %7164 = vmatprep.subr.mxu0 0.0
  %7165 = vmatpush1.msra.mxu0 %v7127
  %7166 = vmatprep.subr.mxu0 0.0
  %7167 = vmatpush1.msra.mxu0 %v7126
  %7168 = vmatprep.subr.mxu0 0.0
  %7169 = vmatpush1.msra.mxu0 %v7125
  %7170 = vmatprep.subr.mxu0 0.0
  %7171 = vmatpush1.msra.mxu0 %v7124
  %7172 = vmatprep.subr.mxu0 0.0
  %7173 = vmatpush1.msra.mxu0 %v7123
  %7174 = vmatprep.subr.mxu0 0.0
  %7175 = vmatpush1.msra.mxu0 %v7122
  %7176 = vmatprep.subr.mxu0 0.0
  %7177 = vmatpush2.msra.mxu0 0.0
  %7178 = vmatprep.subr.mxu0 0.0
  %7179 = vmatpush2.msra.mxu0 0.0
  %7180 = vmatprep.subr.mxu0 0.0
  %7181 = vmatpush2.msra.mxu0 0.0
  %7182 = vmatprep.subr.mxu0 0.0
  %7183 = vmatpush2.msra.mxu0 0.0
  %7184 = vmatprep.subr.mxu0 0.0
  %7185 = vmatpush2.msra.mxu0 0.0
  %7186 = vmatprep.subr.mxu0 0.0
  %7187 = vmatpush2.msra.mxu0 0.0
  %7188 = vmatprep.subr.mxu0 0.0
  %7189 = vmatpush2.msra.mxu0 0.0
  %7190 = vmatprep.subr.mxu0 0.0
  %7191 = vmatpush2.msra.mxu0 0.0
  %7192 = vmatprep.subr.mxu0 0.0
  %7193 = vmatpush2.msra.mxu0 0.0
  %7194 = vmatprep.subr.mxu0 0.0
  %7195 = vmatpush2.msra.mxu0 0.0
  %7196 = vmatprep.subr.mxu0 0.0
  %7197 = vmatpush2.msra.mxu0 0.0
  %7198 = vmatprep.subr.mxu0 0.0
  %7199 = vmatpush2.msra.mxu0 0.0
  %7200 = vmatprep.subr.mxu0 0.0
  %7201 = vmatpush2.msra.mxu0 0.0
  %7202 = vmatprep.subr.mxu0 0.0
  %7203 = vmatpush2.msra.mxu0 %v7142
  %7204 = vmatprep.subr.mxu0 0.0
  %7205 = vmatpush2.msra.mxu0 %v7139
  %7206 = vmatprep.subr.mxu0 0.0
  %7207 = vmatpush2.msra.mxu0 %v7138
  %7208 = vmatprep.mubr.f32.mxu0 %v59
  %7209 = vmatmul.mubr.f32.gmra.mxu0 %v32
  %v7210 = vpop.f32.mrf.mxu0
  %v7211 = vadd.f32 0.0, %v7210
  %v7212 = vpop.f32.mrf.mxu0
  %7213 = vmatprep.mubr.f32.mxu0 %v62
  %7214 = vmatmul.mubr.f32.gmra.mxu0 %v34
  %v7215 = vpop.f32.mrf.mxu0
  %v7216 = vadd.f32 0.0, %v7215
  %v7217 = vpop.f32.mrf.mxu0
  %7218 = vdwg.mxu0
  %v7219 = vmax.f32 %v7119, %v7211
  %v7220 = vmax.f32 %v7120, %v7216
  %v7221 = vadd.f32 %v7219, %v446
  %v7222 = vadd.f32 %v7220, %v451
  %v7223 = vmax.f32 %v7221, 0.0
  %v7224 = vmax.f32 %v7222, 0.0
  %s7225 = scalar_lea.vmem %s3, 1320
  %v7226 = vld [vmem:[%s7225] sm:$0xff]
  %v7227 = vld [vmem:[%s7225 + $0x8] sm:$0xff]
  %v7228 = vld [vmem:[%s7225 + $0x10] sm:$0xff]
  %v7229 = vld [vmem:[%s7225 + $0x18] sm:$0xff]
  %v7230 = vld [vmem:[%s7225 + $0x20] sm:$0xff]
  %v7231 = vld [vmem:[%s7225 + $0x28] sm:$0xff]
  %v7232 = vld [vmem:[%s7225 + $0x30] sm:$0xff]
  %v7233 = vld [vmem:[%s7225 + $0x38] sm:$0xff]
  %v7234 = vld [vmem:[%s7225 + $0x40] sm:$0xff]
  %v7235 = vld [vmem:[%s7225 + $0x48] sm:$0xff]
  %v7236 = vld [vmem:[%s7225 + $0x50] sm:$0xff]
  %v7237 = vld [vmem:[%s7225 + $0x58] sm:$0xff]
  %v7238 = vld [vmem:[%s7225 + $0x60] sm:$0xff]
  %v7239 = vld [vmem:[%s7225 + $0x68] sm:$0xff]
  %v7240 = vld [vmem:[%s7225 + $0x70] sm:$0xff]
  %v7242 = vsel %vm890, %v7226, 0
  %v7245 = vsel %vm890, %v7227, 0
  %v7248 = vsel %vm890, %v7228, 0
  %v7251 = vsel %vm890, %v7229, 0
  %v7254 = vsel %vm890, %v7230, 0
  %v7257 = vsel %vm890, %v7231, 0
  %v7260 = vsel %vm890, %v7232, 0
  %v7263 = vsel %vm890, %v7233, 0
  %v7266 = vsel %vm890, %v7234, 0
  %v7269 = vsel %vm890, %v7235, 0
  %v7272 = vsel %vm890, %v7236, 0
  %v7275 = vsel %vm890, %v7237, 0
  %v7278 = vsel %vm890, %v7238, 0
  %v7281 = vsel %vm890, %v7239, 0
  %v7284 = vsel %vm890, %v7240, 0
  %7286 = vmatprep.subr.mxu0 0.0
  %7287 = vmatpush1.msra.mxu0 0.0
  %7288 = vmatprep.subr.mxu0 0.0
  %7289 = vmatpush1.msra.mxu0 0.0
  %7290 = vmatprep.subr.mxu0 0.0
  %7291 = vmatpush1.msra.mxu0 0.0
  %7292 = vmatprep.subr.mxu0 0.0
  %7293 = vmatpush1.msra.mxu0 0.0
  %7294 = vmatprep.subr.mxu0 0.0
  %7295 = vmatpush1.msra.mxu0 0.0
  %7296 = vmatprep.subr.mxu0 0.0
  %7297 = vmatpush1.msra.mxu0 0.0
  %7298 = vmatprep.subr.mxu0 0.0
  %7299 = vmatpush1.msra.mxu0 0.0
  %7300 = vmatprep.subr.mxu0 0.0
  %7301 = vmatpush1.msra.mxu0 0.0
  %7302 = vmatprep.subr.mxu0 0.0
  %7303 = vmatpush1.msra.mxu0 0.0
  %7304 = vmatprep.subr.mxu0 0.0
  %7305 = vmatpush1.msra.mxu0 0.0
  %7306 = vmatprep.subr.mxu0 0.0
  %7307 = vmatpush1.msra.mxu0 0.0
  %7308 = vmatprep.subr.mxu0 0.0
  %7309 = vmatpush1.msra.mxu0 0.0
  %7310 = vmatprep.subr.mxu0 0.0
  %7311 = vmatpush1.msra.mxu0 0.0
  %7312 = vmatprep.subr.mxu0 0.0
  %7313 = vmatpush1.msra.mxu0 0.0
  %7314 = vmatprep.subr.mxu0 0.0
  %7315 = vmatpush1.msra.mxu0 %v7224
  %7316 = vmatprep.subr.mxu0 0.0
  %7317 = vmatpush1.msra.mxu0 %v7223
  %7318 = vmatprep.subr.mxu0 0.0
  %7319 = vmatpush2.msra.mxu0 0.0
  %7320 = vmatprep.subr.mxu0 0.0
  %7321 = vmatpush2.msra.mxu0 0.0
  %7322 = vmatprep.subr.mxu0 0.0
  %7323 = vmatpush2.msra.mxu0 0.0
  %7324 = vmatprep.subr.mxu0 0.0
  %7325 = vmatpush2.msra.mxu0 0.0
  %7326 = vmatprep.subr.mxu0 0.0
  %7327 = vmatpush2.msra.mxu0 0.0
  %7328 = vmatprep.subr.mxu0 0.0
  %7329 = vmatpush2.msra.mxu0 0.0
  %7330 = vmatprep.subr.mxu0 0.0
  %7331 = vmatpush2.msra.mxu0 0.0
  %7332 = vmatprep.subr.mxu0 0.0
  %7333 = vmatpush2.msra.mxu0 0.0
  %7334 = vmatprep.subr.mxu0 0.0
  %7335 = vmatpush2.msra.mxu0 0.0
  %7336 = vmatprep.subr.mxu0 0.0
  %7337 = vmatpush2.msra.mxu0 0.0
  %7338 = vmatprep.subr.mxu0 0.0
  %7339 = vmatpush2.msra.mxu0 0.0
  %7340 = vmatprep.subr.mxu0 0.0
  %7341 = vmatpush2.msra.mxu0 0.0
  %7342 = vmatprep.subr.mxu0 0.0
  %7343 = vmatpush2.msra.mxu0 0.0
  %7344 = vmatprep.subr.mxu0 0.0
  %7345 = vmatpush2.msra.mxu0 0.0
  %7346 = vmatprep.subr.mxu0 0.0
  %7347 = vmatpush2.msra.mxu0 0.0
  %7348 = vmatprep.subr.mxu0 0.0
  %7349 = vmatpush2.msra.mxu0 0.0
  %7350 = vmatprep.mubr.f32.mxu0 0.0
  %7351 = vmatmul.mubr.f32.gmra.mxu0 %v7242
  %v7352 = vpop.f32.mrf.mxu0
  %v7353 = vadd.f32 0.0, %v7352
  %v7354 = vpop.f32.mrf.mxu0
  %7355 = vmatprep.mubr.f32.mxu0 0.0
  %7356 = vmatmul.mubr.f32.gmra.mxu0 %v7245
  %v7357 = vpop.f32.mrf.mxu0
  %v7358 = vadd.f32 0.0, %v7357
  %v7359 = vpop.f32.mrf.mxu0
  %7360 = vmatprep.mubr.f32.mxu0 0.0
  %7361 = vmatmul.mubr.f32.gmra.mxu0 %v7248
  %v7362 = vpop.f32.mrf.mxu0
  %v7363 = vadd.f32 0.0, %v7362
  %v7364 = vpop.f32.mrf.mxu0
  %7365 = vmatprep.mubr.f32.mxu0 0.0
  %7366 = vmatmul.mubr.f32.gmra.mxu0 %v7251
  %v7367 = vpop.f32.mrf.mxu0
  %v7368 = vadd.f32 0.0, %v7367
  %v7369 = vpop.f32.mrf.mxu0
  %7370 = vmatprep.mubr.f32.mxu0 0.0
  %7371 = vmatmul.mubr.f32.gmra.mxu0 %v7254
  %v7372 = vpop.f32.mrf.mxu0
  %v7373 = vadd.f32 0.0, %v7372
  %v7374 = vpop.f32.mrf.mxu0
  %7375 = vmatprep.mubr.f32.mxu0 0.0
  %7376 = vmatmul.mubr.f32.gmra.mxu0 %v7257
  %v7377 = vpop.f32.mrf.mxu0
  %v7378 = vadd.f32 0.0, %v7377
  %v7379 = vpop.f32.mrf.mxu0
  %7380 = vmatprep.mubr.f32.mxu0 0.0
  %7381 = vmatmul.mubr.f32.gmra.mxu0 %v7260
  %v7382 = vpop.f32.mrf.mxu0
  %v7383 = vadd.f32 0.0, %v7382
  %v7384 = vpop.f32.mrf.mxu0
  %7385 = vmatprep.mubr.f32.mxu0 0.0
  %7386 = vmatmul.mubr.f32.gmra.mxu0 %v7263
  %v7387 = vpop.f32.mrf.mxu0
  %v7388 = vadd.f32 0.0, %v7387
  %v7389 = vpop.f32.mrf.mxu0
  %7390 = vmatprep.mubr.f32.mxu0 0.0
  %7391 = vmatmul.mubr.f32.gmra.mxu0 %v7266
  %v7392 = vpop.f32.mrf.mxu0
  %v7393 = vadd.f32 0.0, %v7392
  %v7394 = vpop.f32.mrf.mxu0
  %7395 = vmatprep.mubr.f32.mxu0 0.0
  %7396 = vmatmul.mubr.f32.gmra.mxu0 %v7269
  %v7397 = vpop.f32.mrf.mxu0
  %v7398 = vadd.f32 0.0, %v7397
  %v7399 = vpop.f32.mrf.mxu0
  %7400 = vmatprep.mubr.f32.mxu0 0.0
  %7401 = vmatmul.mubr.f32.gmra.mxu0 %v7272
  %v7402 = vpop.f32.mrf.mxu0
  %v7403 = vadd.f32 0.0, %v7402
  %v7404 = vpop.f32.mrf.mxu0
  %7405 = vmatprep.mubr.f32.mxu0 0.0
  %7406 = vmatmul.mubr.f32.gmra.mxu0 %v7275
  %v7407 = vpop.f32.mrf.mxu0
  %v7408 = vadd.f32 0.0, %v7407
  %v7409 = vpop.f32.mrf.mxu0
  %7410 = vmatprep.mubr.f32.mxu0 0.0
  %7411 = vmatmul.mubr.f32.gmra.mxu0 %v7278
  %v7412 = vpop.f32.mrf.mxu0
  %v7413 = vadd.f32 0.0, %v7412
  %v7414 = vpop.f32.mrf.mxu0
  %7415 = vmatprep.mubr.f32.mxu0 0.0
  %7416 = vmatmul.mubr.f32.gmra.mxu0 %v7281
  %v7417 = vpop.f32.mrf.mxu0
  %v7418 = vadd.f32 0.0, %v7417
  %v7419 = vpop.f32.mrf.mxu0
  %7420 = vmatprep.mubr.f32.mxu0 0.0
  %7421 = vmatmul.mubr.f32.gmra.mxu0 %v7284
  %v7422 = vpop.f32.mrf.mxu0
  %v7423 = vadd.f32 0.0, %v7422
  %v7424 = vpop.f32.mrf.mxu0
  %7425 = vdwg.mxu0
  %v7426 = vadd.f32 %v6808, %v7353
  %v7427 = vadd.f32 %v6809, %v7358
  %v7428 = vadd.f32 %v6810, %v7363
  %v7429 = vadd.f32 %v6811, %v7368
  %v7430 = vadd.f32 %v6812, %v7373
  %v7431 = vadd.f32 %v6813, %v7378
  %v7432 = vadd.f32 %v6814, %v7383
  %v7433 = vadd.f32 %v6815, %v7388
  %v7434 = vadd.f32 %v6816, %v7393
  %v7435 = vadd.f32 %v6817, %v7398
  %v7436 = vadd.f32 %v6818, %v7403
  %v7437 = vadd.f32 %v6819, %v7408
  %v7438 = vadd.f32 %v6820, %v7413
  %v7439 = vadd.f32 %v6821, %v7418
  %v7440 = vadd.f32 %v6822, %v7423
  %s7441 = scalar_lea.vmem %s0, 7296
  %v7442 = vld [vmem:[%s7441] sm:$0xff]
  %v7443 = vld [vmem:[%s7441 + $0x8] sm:$0xff]
  %v7444 = vld [vmem:[%s7441 + $0x10] sm:$0xff]
  %v7445 = vld [vmem:[%s7441 + $0x18] sm:$0xff]
  %v7446 = vld [vmem:[%s7441 + $0x20] sm:$0xff]
  %v7447 = vld [vmem:[%s7441 + $0x28] sm:$0xff]
  %v7448 = vld [vmem:[%s7441 + $0x30] sm:$0xff]
  %v7449 = vld [vmem:[%s7441 + $0x38] sm:$0xff]
  %v7450 = vld [vmem:[%s7441 + $0x40] sm:$0xff]
  %v7451 = vld [vmem:[%s7441 + $0x48] sm:$0xff]
  %v7452 = vld [vmem:[%s7441 + $0x50] sm:$0xff]
  %v7453 = vld [vmem:[%s7441 + $0x58] sm:$0xff]
  %v7454 = vld [vmem:[%s7441 + $0x60] sm:$0xff]
  %v7455 = vld [vmem:[%s7441 + $0x68] sm:$0xff]
  %v7456 = vld [vmem:[%s7441 + $0x70] sm:$0xff]
  %v7457 = vld [vmem:[%s7441 + $0x78] sm:$0xff]
  %v7458 = vld [vmem:[%s7441 + $0x80] sm:$0xff]
  %v7459 = vld [vmem:[%s7441 + $0x88] sm:$0xff]
  %v7460 = vld [vmem:[%s7441 + $0x90] sm:$0x3f]
  %v7462 = vsel %vm64, %v7460, 0
  %7464 = vmatprep.subr.mxu0 0.0
  %7465 = vmatpush1.msra.mxu0 %v7457
  %7466 = vmatprep.subr.mxu0 0.0
  %7467 = vmatpush1.msra.mxu0 %v7456
  %7468 = vmatprep.subr.mxu0 0.0
  %7469 = vmatpush1.msra.mxu0 %v7455
  %7470 = vmatprep.subr.mxu0 0.0
  %7471 = vmatpush1.msra.mxu0 %v7454
  %7472 = vmatprep.subr.mxu0 0.0
  %7473 = vmatpush1.msra.mxu0 %v7453
  %7474 = vmatprep.subr.mxu0 0.0
  %7475 = vmatpush1.msra.mxu0 %v7452
  %7476 = vmatprep.subr.mxu0 0.0
  %7477 = vmatpush1.msra.mxu0 %v7451
  %7478 = vmatprep.subr.mxu0 0.0
  %7479 = vmatpush1.msra.mxu0 %v7450
  %7480 = vmatprep.subr.mxu0 0.0
  %7481 = vmatpush1.msra.mxu0 %v7449
  %7482 = vmatprep.subr.mxu0 0.0
  %7483 = vmatpush1.msra.mxu0 %v7448
  %7484 = vmatprep.subr.mxu0 0.0
  %7485 = vmatpush1.msra.mxu0 %v7447
  %7486 = vmatprep.subr.mxu0 0.0
  %7487 = vmatpush1.msra.mxu0 %v7446
  %7488 = vmatprep.subr.mxu0 0.0
  %7489 = vmatpush1.msra.mxu0 %v7445
  %7490 = vmatprep.subr.mxu0 0.0
  %7491 = vmatpush1.msra.mxu0 %v7444
  %7492 = vmatprep.subr.mxu0 0.0
  %7493 = vmatpush1.msra.mxu0 %v7443
  %7494 = vmatprep.subr.mxu0 0.0
  %7495 = vmatpush1.msra.mxu0 %v7442
  %7496 = vmatprep.subr.mxu0 0.0
  %7497 = vmatpush2.msra.mxu0 0.0
  %7498 = vmatprep.subr.mxu0 0.0
  %7499 = vmatpush2.msra.mxu0 0.0
  %7500 = vmatprep.subr.mxu0 0.0
  %7501 = vmatpush2.msra.mxu0 0.0
  %7502 = vmatprep.subr.mxu0 0.0
  %7503 = vmatpush2.msra.mxu0 0.0
  %7504 = vmatprep.subr.mxu0 0.0
  %7505 = vmatpush2.msra.mxu0 0.0
  %7506 = vmatprep.subr.mxu0 0.0
  %7507 = vmatpush2.msra.mxu0 0.0
  %7508 = vmatprep.subr.mxu0 0.0
  %7509 = vmatpush2.msra.mxu0 0.0
  %7510 = vmatprep.subr.mxu0 0.0
  %7511 = vmatpush2.msra.mxu0 0.0
  %7512 = vmatprep.subr.mxu0 0.0
  %7513 = vmatpush2.msra.mxu0 0.0
  %7514 = vmatprep.subr.mxu0 0.0
  %7515 = vmatpush2.msra.mxu0 0.0
  %7516 = vmatprep.subr.mxu0 0.0
  %7517 = vmatpush2.msra.mxu0 0.0
  %7518 = vmatprep.subr.mxu0 0.0
  %7519 = vmatpush2.msra.mxu0 0.0
  %7520 = vmatprep.subr.mxu0 0.0
  %7521 = vmatpush2.msra.mxu0 0.0
  %7522 = vmatprep.subr.mxu0 0.0
  %7523 = vmatpush2.msra.mxu0 %v7462
  %7524 = vmatprep.subr.mxu0 0.0
  %7525 = vmatpush2.msra.mxu0 %v7459
  %7526 = vmatprep.subr.mxu0 0.0
  %7527 = vmatpush2.msra.mxu0 %v7458
  %7528 = vmatprep.mubr.f32.mxu0 %v59
  %7529 = vmatmul.mubr.f32.gmra.mxu0 %v32
  %v7530 = vpop.f32.mrf.mxu0
  %v7531 = vadd.f32 0.0, %v7530
  %v7532 = vpop.f32.mrf.mxu0
  %7533 = vmatprep.mubr.f32.mxu0 %v62
  %7534 = vmatmul.mubr.f32.gmra.mxu0 %v34
  %v7535 = vpop.f32.mrf.mxu0
  %v7536 = vadd.f32 0.0, %v7535
  %v7537 = vpop.f32.mrf.mxu0
  %7538 = vdwg.mxu0
  %s7539 = scalar_lea.vmem %s0, 7448
  %v7540 = vld [vmem:[%s7539] sm:$0xff]
  %v7541 = vld [vmem:[%s7539 + $0x8] sm:$0xff]
  %v7542 = vld [vmem:[%s7539 + $0x10] sm:$0xff]
  %v7543 = vld [vmem:[%s7539 + $0x18] sm:$0xff]
  %v7544 = vld [vmem:[%s7539 + $0x20] sm:$0xff]
  %v7545 = vld [vmem:[%s7539 + $0x28] sm:$0xff]
  %v7546 = vld [vmem:[%s7539 + $0x30] sm:$0xff]
  %v7547 = vld [vmem:[%s7539 + $0x38] sm:$0xff]
  %v7548 = vld [vmem:[%s7539 + $0x40] sm:$0xff]
  %v7549 = vld [vmem:[%s7539 + $0x48] sm:$0xff]
  %v7550 = vld [vmem:[%s7539 + $0x50] sm:$0xff]
  %v7551 = vld [vmem:[%s7539 + $0x58] sm:$0xff]
  %v7552 = vld [vmem:[%s7539 + $0x60] sm:$0xff]
  %v7553 = vld [vmem:[%s7539 + $0x68] sm:$0xff]
  %v7554 = vld [vmem:[%s7539 + $0x70] sm:$0xff]
  %v7555 = vld [vmem:[%s7539 + $0x78] sm:$0xff]
  %v7556 = vld [vmem:[%s7539 + $0x80] sm:$0xff]
  %v7557 = vld [vmem:[%s7539 + $0x88] sm:$0xff]
  %v7558 = vld [vmem:[%s7539 + $0x90] sm:$0x3f]
  %v7560 = vsel %vm64, %v7558, 0
  %7562 = vmatprep.subr.mxu0 0.0
  %7563 = vmatpush1.msra.mxu0 %v7555
  %7564 = vmatprep.subr.mxu0 0.0
  %7565 = vmatpush1.msra.mxu0 %v7554
  %7566 = vmatprep.subr.mxu0 0.0
  %7567 = vmatpush1.msra.mxu0 %v7553
  %7568 = vmatprep.subr.mxu0 0.0
  %7569 = vmatpush1.msra.mxu0 %v7552
  %7570 = vmatprep.subr.mxu0 0.0
  %7571 = vmatpush1.msra.mxu0 %v7551
  %7572 = vmatprep.subr.mxu0 0.0
  %7573 = vmatpush1.msra.mxu0 %v7550
  %7574 = vmatprep.subr.mxu0 0.0
  %7575 = vmatpush1.msra.mxu0 %v7549
  %7576 = vmatprep.subr.mxu0 0.0
  %7577 = vmatpush1.msra.mxu0 %v7548
  %7578 = vmatprep.subr.mxu0 0.0
  %7579 = vmatpush1.msra.mxu0 %v7547
  %7580 = vmatprep.subr.mxu0 0.0
  %7581 = vmatpush1.msra.mxu0 %v7546
  %7582 = vmatprep.subr.mxu0 0.0
  %7583 = vmatpush1.msra.mxu0 %v7545
  %7584 = vmatprep.subr.mxu0 0.0
  %7585 = vmatpush1.msra.mxu0 %v7544
  %7586 = vmatprep.subr.mxu0 0.0
  %7587 = vmatpush1.msra.mxu0 %v7543
  %7588 = vmatprep.subr.mxu0 0.0
  %7589 = vmatpush1.msra.mxu0 %v7542
  %7590 = vmatprep.subr.mxu0 0.0
  %7591 = vmatpush1.msra.mxu0 %v7541
  %7592 = vmatprep.subr.mxu0 0.0
  %7593 = vmatpush1.msra.mxu0 %v7540
  %7594 = vmatprep.subr.mxu0 0.0
  %7595 = vmatpush2.msra.mxu0 0.0
  %7596 = vmatprep.subr.mxu0 0.0
  %7597 = vmatpush2.msra.mxu0 0.0
  %7598 = vmatprep.subr.mxu0 0.0
  %7599 = vmatpush2.msra.mxu0 0.0
  %7600 = vmatprep.subr.mxu0 0.0
  %7601 = vmatpush2.msra.mxu0 0.0
  %7602 = vmatprep.subr.mxu0 0.0
  %7603 = vmatpush2.msra.mxu0 0.0
  %7604 = vmatprep.subr.mxu0 0.0
  %7605 = vmatpush2.msra.mxu0 0.0
  %7606 = vmatprep.subr.mxu0 0.0
  %7607 = vmatpush2.msra.mxu0 0.0
  %7608 = vmatprep.subr.mxu0 0.0
  %7609 = vmatpush2.msra.mxu0 0.0
  %7610 = vmatprep.subr.mxu0 0.0
  %7611 = vmatpush2.msra.mxu0 0.0
  %7612 = vmatprep.subr.mxu0 0.0
  %7613 = vmatpush2.msra.mxu0 0.0
  %7614 = vmatprep.subr.mxu0 0.0
  %7615 = vmatpush2.msra.mxu0 0.0
  %7616 = vmatprep.subr.mxu0 0.0
  %7617 = vmatpush2.msra.mxu0 0.0
  %7618 = vmatprep.subr.mxu0 0.0
  %7619 = vmatpush2.msra.mxu0 0.0
  %7620 = vmatprep.subr.mxu0 0.0
  %7621 = vmatpush2.msra.mxu0 %v7560
  %7622 = vmatprep.subr.mxu0 0.0
  %7623 = vmatpush2.msra.mxu0 %v7557
  %7624 = vmatprep.subr.mxu0 0.0
  %7625 = vmatpush2.msra.mxu0 %v7556
  %7626 = vmatprep.mubr.f32.mxu0 %v59
  %7627 = vmatmul.mubr.f32.gmra.mxu0 %v32
  %v7628 = vpop.f32.mrf.mxu0
  %v7629 = vadd.f32 0.0, %v7628
  %v7630 = vpop.f32.mrf.mxu0
  %7631 = vmatprep.mubr.f32.mxu0 %v62
  %7632 = vmatmul.mubr.f32.gmra.mxu0 %v34
  %v7633 = vpop.f32.mrf.mxu0
  %v7634 = vadd.f32 0.0, %v7633
  %v7635 = vpop.f32.mrf.mxu0
  %7636 = vdwg.mxu0
  %v7637 = vmax.f32 %v7531, %v7629
  %v7638 = vmax.f32 %v7536, %v7634
  %s7639 = scalar_lea.vmem %s0, 7600
  %v7640 = vld [vmem:[%s7639] sm:$0xff]
  %v7641 = vld [vmem:[%s7639 + $0x8] sm:$0xff]
  %v7642 = vld [vmem:[%s7639 + $0x10] sm:$0xff]
  %v7643 = vld [vmem:[%s7639 + $0x18] sm:$0xff]
  %v7644 = vld [vmem:[%s7639 + $0x20] sm:$0xff]
  %v7645 = vld [vmem:[%s7639 + $0x28] sm:$0xff]
  %v7646 = vld [vmem:[%s7639 + $0x30] sm:$0xff]
  %v7647 = vld [vmem:[%s7639 + $0x38] sm:$0xff]
  %v7648 = vld [vmem:[%s7639 + $0x40] sm:$0xff]
  %v7649 = vld [vmem:[%s7639 + $0x48] sm:$0xff]
  %v7650 = vld [vmem:[%s7639 + $0x50] sm:$0xff]
  %v7651 = vld [vmem:[%s7639 + $0x58] sm:$0xff]
  %v7652 = vld [vmem:[%s7639 + $0x60] sm:$0xff]
  %v7653 = vld [vmem:[%s7639 + $0x68] sm:$0xff]
  %v7654 = vld [vmem:[%s7639 + $0x70] sm:$0xff]
  %v7655 = vld [vmem:[%s7639 + $0x78] sm:$0xff]
  %v7656 = vld [vmem:[%s7639 + $0x80] sm:$0xff]
  %v7657 = vld [vmem:[%s7639 + $0x88] sm:$0xff]
  %v7658 = vld [vmem:[%s7639 + $0x90] sm:$0x3f]
  %v7660 = vsel %vm64, %v7658, 0
  %7662 = vmatprep.subr.mxu0 0.0
  %7663 = vmatpush1.msra.mxu0 %v7655
  %7664 = vmatprep.subr.mxu0 0.0
  %7665 = vmatpush1.msra.mxu0 %v7654
  %7666 = vmatprep.subr.mxu0 0.0
  %7667 = vmatpush1.msra.mxu0 %v7653
  %7668 = vmatprep.subr.mxu0 0.0
  %7669 = vmatpush1.msra.mxu0 %v7652
  %7670 = vmatprep.subr.mxu0 0.0
  %7671 = vmatpush1.msra.mxu0 %v7651
  %7672 = vmatprep.subr.mxu0 0.0
  %7673 = vmatpush1.msra.mxu0 %v7650
  %7674 = vmatprep.subr.mxu0 0.0
  %7675 = vmatpush1.msra.mxu0 %v7649
  %7676 = vmatprep.subr.mxu0 0.0
  %7677 = vmatpush1.msra.mxu0 %v7648
  %7678 = vmatprep.subr.mxu0 0.0
  %7679 = vmatpush1.msra.mxu0 %v7647
  %7680 = vmatprep.subr.mxu0 0.0
  %7681 = vmatpush1.msra.mxu0 %v7646
  %7682 = vmatprep.subr.mxu0 0.0
  %7683 = vmatpush1.msra.mxu0 %v7645
  %7684 = vmatprep.subr.mxu0 0.0
  %7685 = vmatpush1.msra.mxu0 %v7644
  %7686 = vmatprep.subr.mxu0 0.0
  %7687 = vmatpush1.msra.mxu0 %v7643
  %7688 = vmatprep.subr.mxu0 0.0
  %7689 = vmatpush1.msra.mxu0 %v7642
  %7690 = vmatprep.subr.mxu0 0.0
  %7691 = vmatpush1.msra.mxu0 %v7641
  %7692 = vmatprep.subr.mxu0 0.0
  %7693 = vmatpush1.msra.mxu0 %v7640
  %7694 = vmatprep.subr.mxu0 0.0
  %7695 = vmatpush2.msra.mxu0 0.0
  %7696 = vmatprep.subr.mxu0 0.0
  %7697 = vmatpush2.msra.mxu0 0.0
  %7698 = vmatprep.subr.mxu0 0.0
  %7699 = vmatpush2.msra.mxu0 0.0
  %7700 = vmatprep.subr.mxu0 0.0
  %7701 = vmatpush2.msra.mxu0 0.0
  %7702 = vmatprep.subr.mxu0 0.0
  %7703 = vmatpush2.msra.mxu0 0.0
  %7704 = vmatprep.subr.mxu0 0.0
  %7705 = vmatpush2.msra.mxu0 0.0
  %7706 = vmatprep.subr.mxu0 0.0
  %7707 = vmatpush2.msra.mxu0 0.0
  %7708 = vmatprep.subr.mxu0 0.0
  %7709 = vmatpush2.msra.mxu0 0.0
  %7710 = vmatprep.subr.mxu0 0.0
  %7711 = vmatpush2.msra.mxu0 0.0
  %7712 = vmatprep.subr.mxu0 0.0
  %7713 = vmatpush2.msra.mxu0 0.0
  %7714 = vmatprep.subr.mxu0 0.0
  %7715 = vmatpush2.msra.mxu0 0.0
  %7716 = vmatprep.subr.mxu0 0.0
  %7717 = vmatpush2.msra.mxu0 0.0
  %7718 = vmatprep.subr.mxu0 0.0
  %7719 = vmatpush2.msra.mxu0 0.0
  %7720 = vmatprep.subr.mxu0 0.0
  %7721 = vmatpush2.msra.mxu0 %v7660
  %7722 = vmatprep.subr.mxu0 0.0
  %7723 = vmatpush2.msra.mxu0 %v7657
  %7724 = vmatprep.subr.mxu0 0.0
  %7725 = vmatpush2.msra.mxu0 %v7656
  %7726 = vmatprep.mubr.f32.mxu0 %v59
  %7727 = vmatmul.mubr.f32.gmra.mxu0 %v32
  %v7728 = vpop.f32.mrf.mxu0
  %v7729 = vadd.f32 0.0, %v7728
  %v7730 = vpop.f32.mrf.mxu0
  %7731 = vmatprep.mubr.f32.mxu0 %v62
  %7732 = vmatmul.mubr.f32.gmra.mxu0 %v34
  %v7733 = vpop.f32.mrf.mxu0
  %v7734 = vadd.f32 0.0, %v7733
  %v7735 = vpop.f32.mrf.mxu0
  %7736 = vdwg.mxu0
  %v7737 = vmax.f32 %v7637, %v7729
  %v7738 = vmax.f32 %v7638, %v7734
  %s7739 = scalar_lea.vmem %s0, 7752
  %v7740 = vld [vmem:[%s7739] sm:$0xff]
  %v7741 = vld [vmem:[%s7739 + $0x8] sm:$0xff]
  %v7742 = vld [vmem:[%s7739 + $0x10] sm:$0xff]
  %v7743 = vld [vmem:[%s7739 + $0x18] sm:$0xff]
  %v7744 = vld [vmem:[%s7739 + $0x20] sm:$0xff]
  %v7745 = vld [vmem:[%s7739 + $0x28] sm:$0xff]
  %v7746 = vld [vmem:[%s7739 + $0x30] sm:$0xff]
  %v7747 = vld [vmem:[%s7739 + $0x38] sm:$0xff]
  %v7748 = vld [vmem:[%s7739 + $0x40] sm:$0xff]
  %v7749 = vld [vmem:[%s7739 + $0x48] sm:$0xff]
  %v7750 = vld [vmem:[%s7739 + $0x50] sm:$0xff]
  %v7751 = vld [vmem:[%s7739 + $0x58] sm:$0xff]
  %v7752 = vld [vmem:[%s7739 + $0x60] sm:$0xff]
  %v7753 = vld [vmem:[%s7739 + $0x68] sm:$0xff]
  %v7754 = vld [vmem:[%s7739 + $0x70] sm:$0xff]
  %v7755 = vld [vmem:[%s7739 + $0x78] sm:$0xff]
  %v7756 = vld [vmem:[%s7739 + $0x80] sm:$0xff]
  %v7757 = vld [vmem:[%s7739 + $0x88] sm:$0xff]
  %v7758 = vld [vmem:[%s7739 + $0x90] sm:$0x3f]
  %v7760 = vsel %vm64, %v7758, 0
  %7762 = vmatprep.subr.mxu0 0.0
  %7763 = vmatpush1.msra.mxu0 %v7755
  %7764 = vmatprep.subr.mxu0 0.0
  %7765 = vmatpush1.msra.mxu0 %v7754
  %7766 = vmatprep.subr.mxu0 0.0
  %7767 = vmatpush1.msra.mxu0 %v7753
  %7768 = vmatprep.subr.mxu0 0.0
  %7769 = vmatpush1.msra.mxu0 %v7752
  %7770 = vmatprep.subr.mxu0 0.0
  %7771 = vmatpush1.msra.mxu0 %v7751
  %7772 = vmatprep.subr.mxu0 0.0
  %7773 = vmatpush1.msra.mxu0 %v7750
  %7774 = vmatprep.subr.mxu0 0.0
  %7775 = vmatpush1.msra.mxu0 %v7749
  %7776 = vmatprep.subr.mxu0 0.0
  %7777 = vmatpush1.msra.mxu0 %v7748
  %7778 = vmatprep.subr.mxu0 0.0
  %7779 = vmatpush1.msra.mxu0 %v7747
  %7780 = vmatprep.subr.mxu0 0.0
  %7781 = vmatpush1.msra.mxu0 %v7746
  %7782 = vmatprep.subr.mxu0 0.0
  %7783 = vmatpush1.msra.mxu0 %v7745
  %7784 = vmatprep.subr.mxu0 0.0
  %7785 = vmatpush1.msra.mxu0 %v7744
  %7786 = vmatprep.subr.mxu0 0.0
  %7787 = vmatpush1.msra.mxu0 %v7743
  %7788 = vmatprep.subr.mxu0 0.0
  %7789 = vmatpush1.msra.mxu0 %v7742
  %7790 = vmatprep.subr.mxu0 0.0
  %7791 = vmatpush1.msra.mxu0 %v7741
  %7792 = vmatprep.subr.mxu0 0.0
  %7793 = vmatpush1.msra.mxu0 %v7740
  %7794 = vmatprep.subr.mxu0 0.0
  %7795 = vmatpush2.msra.mxu0 0.0
  %7796 = vmatprep.subr.mxu0 0.0
  %7797 = vmatpush2.msra.mxu0 0.0
  %7798 = vmatprep.subr.mxu0 0.0
  %7799 = vmatpush2.msra.mxu0 0.0
  %7800 = vmatprep.subr.mxu0 0.0
  %7801 = vmatpush2.msra.mxu0 0.0
  %7802 = vmatprep.subr.mxu0 0.0
  %7803 = vmatpush2.msra.mxu0 0.0
  %7804 = vmatprep.subr.mxu0 0.0
  %7805 = vmatpush2.msra.mxu0 0.0
  %7806 = vmatprep.subr.mxu0 0.0
  %7807 = vmatpush2.msra.mxu0 0.0
  %7808 = vmatprep.subr.mxu0 0.0
  %7809 = vmatpush2.msra.mxu0 0.0
  %7810 = vmatprep.subr.mxu0 0.0
  %7811 = vmatpush2.msra.mxu0 0.0
  %7812 = vmatprep.subr.mxu0 0.0
  %7813 = vmatpush2.msra.mxu0 0.0
  %7814 = vmatprep.subr.mxu0 0.0
  %7815 = vmatpush2.msra.mxu0 0.0
  %7816 = vmatprep.subr.mxu0 0.0
  %7817 = vmatpush2.msra.mxu0 0.0
  %7818 = vmatprep.subr.mxu0 0.0
  %7819 = vmatpush2.msra.mxu0 0.0
  %7820 = vmatprep.subr.mxu0 0.0
  %7821 = vmatpush2.msra.mxu0 %v7760
  %7822 = vmatprep.subr.mxu0 0.0
  %7823 = vmatpush2.msra.mxu0 %v7757
  %7824 = vmatprep.subr.mxu0 0.0
  %7825 = vmatpush2.msra.mxu0 %v7756
  %7826 = vmatprep.mubr.f32.mxu0 %v59
  %7827 = vmatmul.mubr.f32.gmra.mxu0 %v32
  %v7828 = vpop.f32.mrf.mxu0
  %v7829 = vadd.f32 0.0, %v7828
  %v7830 = vpop.f32.mrf.mxu0
  %7831 = vmatprep.mubr.f32.mxu0 %v62
  %7832 = vmatmul.mubr.f32.gmra.mxu0 %v34
  %v7833 = vpop.f32.mrf.mxu0
  %v7834 = vadd.f32 0.0, %v7833
  %v7835 = vpop.f32.mrf.mxu0
  %7836 = vdwg.mxu0
  %v7837 = vmax.f32 %v7737, %v7829
  %v7838 = vmax.f32 %v7738, %v7834
  %v7839 = vadd.f32 %v7837, %v446
  %v7840 = vadd.f32 %v7838, %v451
  %v7841 = vmax.f32 %v7839, 0.0
  %v7842 = vmax.f32 %v7840, 0.0
  %s7843 = scalar_lea.vmem %s3, 1440
  %v7844 = vld [vmem:[%s7843] sm:$0xff]
  %v7845 = vld [vmem:[%s7843 + $0x8] sm:$0xff]
  %v7846 = vld [vmem:[%s7843 + $0x10] sm:$0xff]
  %v7847 = vld [vmem:[%s7843 + $0x18] sm:$0xff]
  %v7848 = vld [vmem:[%s7843 + $0x20] sm:$0xff]
  %v7849 = vld [vmem:[%s7843 + $0x28] sm:$0xff]
  %v7850 = vld [vmem:[%s7843 + $0x30] sm:$0xff]
  %v7851 = vld [vmem:[%s7843 + $0x38] sm:$0xff]
  %v7852 = vld [vmem:[%s7843 + $0x40] sm:$0xff]
  %v7853 = vld [vmem:[%s7843 + $0x48] sm:$0xff]
  %v7854 = vld [vmem:[%s7843 + $0x50] sm:$0xff]
  %v7855 = vld [vmem:[%s7843 + $0x58] sm:$0xff]
  %v7856 = vld [vmem:[%s7843 + $0x60] sm:$0xff]
  %v7857 = vld [vmem:[%s7843 + $0x68] sm:$0xff]
  %v7858 = vld [vmem:[%s7843 + $0x70] sm:$0xff]
  %v7860 = vsel %vm890, %v7844, 0
  %v7863 = vsel %vm890, %v7845, 0
  %v7866 = vsel %vm890, %v7846, 0
  %v7869 = vsel %vm890, %v7847, 0
  %v7872 = vsel %vm890, %v7848, 0
  %v7875 = vsel %vm890, %v7849, 0
  %v7878 = vsel %vm890, %v7850, 0
  %v7881 = vsel %vm890, %v7851, 0
  %v7884 = vsel %vm890, %v7852, 0
  %v7887 = vsel %vm890, %v7853, 0
  %v7890 = vsel %vm890, %v7854, 0
  %v7893 = vsel %vm890, %v7855, 0
  %v7896 = vsel %vm890, %v7856, 0
  %v7899 = vsel %vm890, %v7857, 0
  %v7902 = vsel %vm890, %v7858, 0
  %7904 = vmatprep.subr.mxu0 0.0
  %7905 = vmatpush1.msra.mxu0 0.0
  %7906 = vmatprep.subr.mxu0 0.0
  %7907 = vmatpush1.msra.mxu0 0.0
  %7908 = vmatprep.subr.mxu0 0.0
  %7909 = vmatpush1.msra.mxu0 0.0
  %7910 = vmatprep.subr.mxu0 0.0
  %7911 = vmatpush1.msra.mxu0 0.0
  %7912 = vmatprep.subr.mxu0 0.0
  %7913 = vmatpush1.msra.mxu0 0.0
  %7914 = vmatprep.subr.mxu0 0.0
  %7915 = vmatpush1.msra.mxu0 0.0
  %7916 = vmatprep.subr.mxu0 0.0
  %7917 = vmatpush1.msra.mxu0 0.0
  %7918 = vmatprep.subr.mxu0 0.0
  %7919 = vmatpush1.msra.mxu0 0.0
  %7920 = vmatprep.subr.mxu0 0.0
  %7921 = vmatpush1.msra.mxu0 0.0
  %7922 = vmatprep.subr.mxu0 0.0
  %7923 = vmatpush1.msra.mxu0 0.0
  %7924 = vmatprep.subr.mxu0 0.0
  %7925 = vmatpush1.msra.mxu0 0.0
  %7926 = vmatprep.subr.mxu0 0.0
  %7927 = vmatpush1.msra.mxu0 0.0
  %7928 = vmatprep.subr.mxu0 0.0
  %7929 = vmatpush1.msra.mxu0 0.0
  %7930 = vmatprep.subr.mxu0 0.0
  %7931 = vmatpush1.msra.mxu0 0.0
  %7932 = vmatprep.subr.mxu0 0.0
  %7933 = vmatpush1.msra.mxu0 %v7842
  %7934 = vmatprep.subr.mxu0 0.0
  %7935 = vmatpush1.msra.mxu0 %v7841
  %7936 = vmatprep.subr.mxu0 0.0
  %7937 = vmatpush2.msra.mxu0 0.0
  %7938 = vmatprep.subr.mxu0 0.0
  %7939 = vmatpush2.msra.mxu0 0.0
  %7940 = vmatprep.subr.mxu0 0.0
  %7941 = vmatpush2.msra.mxu0 0.0
  %7942 = vmatprep.subr.mxu0 0.0
  %7943 = vmatpush2.msra.mxu0 0.0
  %7944 = vmatprep.subr.mxu0 0.0
  %7945 = vmatpush2.msra.mxu0 0.0
  %7946 = vmatprep.subr.mxu0 0.0
  %7947 = vmatpush2.msra.mxu0 0.0
  %7948 = vmatprep.subr.mxu0 0.0
  %7949 = vmatpush2.msra.mxu0 0.0
  %7950 = vmatprep.subr.mxu0 0.0
  %7951 = vmatpush2.msra.mxu0 0.0
  %7952 = vmatprep.subr.mxu0 0.0
  %7953 = vmatpush2.msra.mxu0 0.0
  %7954 = vmatprep.subr.mxu0 0.0
  %7955 = vmatpush2.msra.mxu0 0.0
  %7956 = vmatprep.subr.mxu0 0.0
  %7957 = vmatpush2.msra.mxu0 0.0
  %7958 = vmatprep.subr.mxu0 0.0
  %7959 = vmatpush2.msra.mxu0 0.0
  %7960 = vmatprep.subr.mxu0 0.0
  %7961 = vmatpush2.msra.mxu0 0.0
  %7962 = vmatprep.subr.mxu0 0.0
  %7963 = vmatpush2.msra.mxu0 0.0
  %7964 = vmatprep.subr.mxu0 0.0
  %7965 = vmatpush2.msra.mxu0 0.0
  %7966 = vmatprep.subr.mxu0 0.0
  %7967 = vmatpush2.msra.mxu0 0.0
  %7968 = vmatprep.mubr.f32.mxu0 0.0
  %7969 = vmatmul.mubr.f32.gmra.mxu0 %v7860
  %v7970 = vpop.f32.mrf.mxu0
  %v7971 = vadd.f32 0.0, %v7970
  %v7972 = vpop.f32.mrf.mxu0
  %7973 = vmatprep.mubr.f32.mxu0 0.0
  %7974 = vmatmul.mubr.f32.gmra.mxu0 %v7863
  %v7975 = vpop.f32.mrf.mxu0
  %v7976 = vadd.f32 0.0, %v7975
  %v7977 = vpop.f32.mrf.mxu0
  %7978 = vmatprep.mubr.f32.mxu0 0.0
  %7979 = vmatmul.mubr.f32.gmra.mxu0 %v7866
  %v7980 = vpop.f32.mrf.mxu0
  %v7981 = vadd.f32 0.0, %v7980
  %v7982 = vpop.f32.mrf.mxu0
  %7983 = vmatprep.mubr.f32.mxu0 0.0
  %7984 = vmatmul.mubr.f32.gmra.mxu0 %v7869
  %v7985 = vpop.f32.mrf.mxu0
  %v7986 = vadd.f32 0.0, %v7985
  %v7987 = vpop.f32.mrf.mxu0
  %7988 = vmatprep.mubr.f32.mxu0 0.0
  %7989 = vmatmul.mubr.f32.gmra.mxu0 %v7872
  %v7990 = vpop.f32.mrf.mxu0
  %v7991 = vadd.f32 0.0, %v7990
  %v7992 = vpop.f32.mrf.mxu0
  %7993 = vmatprep.mubr.f32.mxu0 0.0
  %7994 = vmatmul.mubr.f32.gmra.mxu0 %v7875
  %v7995 = vpop.f32.mrf.mxu0
  %v7996 = vadd.f32 0.0, %v7995
  %v7997 = vpop.f32.mrf.mxu0
  %7998 = vmatprep.mubr.f32.mxu0 0.0
  %7999 = vmatmul.mubr.f32.gmra.mxu0 %v7878
  %v8000 = vpop.f32.mrf.mxu0
  %v8001 = vadd.f32 0.0, %v8000
  %v8002 = vpop.f32.mrf.mxu0
  %8003 = vmatprep.mubr.f32.mxu0 0.0
  %8004 = vmatmul.mubr.f32.gmra.mxu0 %v7881
  %v8005 = vpop.f32.mrf.mxu0
  %v8006 = vadd.f32 0.0, %v8005
  %v8007 = vpop.f32.mrf.mxu0
  %8008 = vmatprep.mubr.f32.mxu0 0.0
  %8009 = vmatmul.mubr.f32.gmra.mxu0 %v7884
  %v8010 = vpop.f32.mrf.mxu0
  %v8011 = vadd.f32 0.0, %v8010
  %v8012 = vpop.f32.mrf.mxu0
  %8013 = vmatprep.mubr.f32.mxu0 0.0
  %8014 = vmatmul.mubr.f32.gmra.mxu0 %v7887
  %v8015 = vpop.f32.mrf.mxu0
  %v8016 = vadd.f32 0.0, %v8015
  %v8017 = vpop.f32.mrf.mxu0
  %8018 = vmatprep.mubr.f32.mxu0 0.0
  %8019 = vmatmul.mubr.f32.gmra.mxu0 %v7890
  %v8020 = vpop.f32.mrf.mxu0
  %v8021 = vadd.f32 0.0, %v8020
  %v8022 = vpop.f32.mrf.mxu0
  %8023 = vmatprep.mubr.f32.mxu0 0.0
  %8024 = vmatmul.mubr.f32.gmra.mxu0 %v7893
  %v8025 = vpop.f32.mrf.mxu0
  %v8026 = vadd.f32 0.0, %v8025
  %v8027 = vpop.f32.mrf.mxu0
  %8028 = vmatprep.mubr.f32.mxu0 0.0
  %8029 = vmatmul.mubr.f32.gmra.mxu0 %v7896
  %v8030 = vpop.f32.mrf.mxu0
  %v8031 = vadd.f32 0.0, %v8030
  %v8032 = vpop.f32.mrf.mxu0
  %8033 = vmatprep.mubr.f32.mxu0 0.0
  %8034 = vmatmul.mubr.f32.gmra.mxu0 %v7899
  %v8035 = vpop.f32.mrf.mxu0
  %v8036 = vadd.f32 0.0, %v8035
  %v8037 = vpop.f32.mrf.mxu0
  %8038 = vmatprep.mubr.f32.mxu0 0.0
  %8039 = vmatmul.mubr.f32.gmra.mxu0 %v7902
  %v8040 = vpop.f32.mrf.mxu0
  %v8041 = vadd.f32 0.0, %v8040
  %v8042 = vpop.f32.mrf.mxu0
  %8043 = vdwg.mxu0
  %v8044 = vadd.f32 %v7426, %v7971
  %v8045 = vadd.f32 %v7427, %v7976
  %v8046 = vadd.f32 %v7428, %v7981
  %v8047 = vadd.f32 %v7429, %v7986
  %v8048 = vadd.f32 %v7430, %v7991
  %v8049 = vadd.f32 %v7431, %v7996
  %v8050 = vadd.f32 %v7432, %v8001
  %v8051 = vadd.f32 %v7433, %v8006
  %v8052 = vadd.f32 %v7434, %v8011
  %v8053 = vadd.f32 %v7435, %v8016
  %v8054 = vadd.f32 %v7436, %v8021
  %v8055 = vadd.f32 %v7437, %v8026
  %v8056 = vadd.f32 %v7438, %v8031
  %v8057 = vadd.f32 %v7439, %v8036
  %v8058 = vadd.f32 %v7440, %v8041
  %s8059 = scalar_lea.vmem %s0, 7904
  %v8060 = vld [vmem:[%s8059] sm:$0xff]
  %v8061 = vld [vmem:[%s8059 + $0x8] sm:$0xff]
  %v8062 = vld [vmem:[%s8059 + $0x10] sm:$0xff]
  %v8063 = vld [vmem:[%s8059 + $0x18] sm:$0xff]
  %v8064 = vld [vmem:[%s8059 + $0x20] sm:$0xff]
  %v8065 = vld [vmem:[%s8059 + $0x28] sm:$0xff]
  %v8066 = vld [vmem:[%s8059 + $0x30] sm:$0xff]
  %v8067 = vld [vmem:[%s8059 + $0x38] sm:$0xff]
  %v8068 = vld [vmem:[%s8059 + $0x40] sm:$0xff]
  %v8069 = vld [vmem:[%s8059 + $0x48] sm:$0xff]
  %v8070 = vld [vmem:[%s8059 + $0x50] sm:$0xff]
  %v8071 = vld [vmem:[%s8059 + $0x58] sm:$0xff]
  %v8072 = vld [vmem:[%s8059 + $0x60] sm:$0xff]
  %v8073 = vld [vmem:[%s8059 + $0x68] sm:$0xff]
  %v8074 = vld [vmem:[%s8059 + $0x70] sm:$0xff]
  %v8075 = vld [vmem:[%s8059 + $0x78] sm:$0xff]
  %v8076 = vld [vmem:[%s8059 + $0x80] sm:$0xff]
  %v8077 = vld [vmem:[%s8059 + $0x88] sm:$0xff]
  %v8078 = vld [vmem:[%s8059 + $0x90] sm:$0x3f]
  %v8080 = vsel %vm64, %v8078, 0
  %8082 = vmatprep.subr.mxu0 0.0
  %8083 = vmatpush1.msra.mxu0 %v8075
  %8084 = vmatprep.subr.mxu0 0.0
  %8085 = vmatpush1.msra.mxu0 %v8074
  %8086 = vmatprep.subr.mxu0 0.0
  %8087 = vmatpush1.msra.mxu0 %v8073
  %8088 = vmatprep.subr.mxu0 0.0
  %8089 = vmatpush1.msra.mxu0 %v8072
  %8090 = vmatprep.subr.mxu0 0.0
  %8091 = vmatpush1.msra.mxu0 %v8071
  %8092 = vmatprep.subr.mxu0 0.0
  %8093 = vmatpush1.msra.mxu0 %v8070
  %8094 = vmatprep.subr.mxu0 0.0
  %8095 = vmatpush1.msra.mxu0 %v8069
  %8096 = vmatprep.subr.mxu0 0.0
  %8097 = vmatpush1.msra.mxu0 %v8068
  %8098 = vmatprep.subr.mxu0 0.0
  %8099 = vmatpush1.msra.mxu0 %v8067
  %8100 = vmatprep.subr.mxu0 0.0
  %8101 = vmatpush1.msra.mxu0 %v8066
  %8102 = vmatprep.subr.mxu0 0.0
  %8103 = vmatpush1.msra.mxu0 %v8065
  %8104 = vmatprep.subr.mxu0 0.0
  %8105 = vmatpush1.msra.mxu0 %v8064
  %8106 = vmatprep.subr.mxu0 0.0
  %8107 = vmatpush1.msra.mxu0 %v8063
  %8108 = vmatprep.subr.mxu0 0.0
  %8109 = vmatpush1.msra.mxu0 %v8062
  %8110 = vmatprep.subr.mxu0 0.0
  %8111 = vmatpush1.msra.mxu0 %v8061
  %8112 = vmatprep.subr.mxu0 0.0
  %8113 = vmatpush1.msra.mxu0 %v8060
  %8114 = vmatprep.subr.mxu0 0.0
  %8115 = vmatpush2.msra.mxu0 0.0
  %8116 = vmatprep.subr.mxu0 0.0
  %8117 = vmatpush2.msra.mxu0 0.0
  %8118 = vmatprep.subr.mxu0 0.0
  %8119 = vmatpush2.msra.mxu0 0.0
  %8120 = vmatprep.subr.mxu0 0.0
  %8121 = vmatpush2.msra.mxu0 0.0
  %8122 = vmatprep.subr.mxu0 0.0
  %8123 = vmatpush2.msra.mxu0 0.0
  %8124 = vmatprep.subr.mxu0 0.0
  %8125 = vmatpush2.msra.mxu0 0.0
  %8126 = vmatprep.subr.mxu0 0.0
  %8127 = vmatpush2.msra.mxu0 0.0
  %8128 = vmatprep.subr.mxu0 0.0
  %8129 = vmatpush2.msra.mxu0 0.0
  %8130 = vmatprep.subr.mxu0 0.0
  %8131 = vmatpush2.msra.mxu0 0.0
  %8132 = vmatprep.subr.mxu0 0.0
  %8133 = vmatpush2.msra.mxu0 0.0
  %8134 = vmatprep.subr.mxu0 0.0
  %8135 = vmatpush2.msra.mxu0 0.0
  %8136 = vmatprep.subr.mxu0 0.0
  %8137 = vmatpush2.msra.mxu0 0.0
  %8138 = vmatprep.subr.mxu0 0.0
  %8139 = vmatpush2.msra.mxu0 0.0
  %8140 = vmatprep.subr.mxu0 0.0
  %8141 = vmatpush2.msra.mxu0 %v8080
  %8142 = vmatprep.subr.mxu0 0.0
  %8143 = vmatpush2.msra.mxu0 %v8077
  %8144 = vmatprep.subr.mxu0 0.0
  %8145 = vmatpush2.msra.mxu0 %v8076
  %8146 = vmatprep.mubr.f32.mxu0 %v59
  %8147 = vmatmul.mubr.f32.gmra.mxu0 %v32
  %v8148 = vpop.f32.mrf.mxu0
  %v8149 = vadd.f32 0.0, %v8148
  %v8150 = vpop.f32.mrf.mxu0
  %8151 = vmatprep.mubr.f32.mxu0 %v62
  %8152 = vmatmul.mubr.f32.gmra.mxu0 %v34
  %v8153 = vpop.f32.mrf.mxu0
  %v8154 = vadd.f32 0.0, %v8153
  %v8155 = vpop.f32.mrf.mxu0
  %8156 = vdwg.mxu0
  %s8157 = scalar_lea.vmem %s0, 8056
  %v8158 = vld [vmem:[%s8157] sm:$0xff]
  %v8159 = vld [vmem:[%s8157 + $0x8] sm:$0xff]
  %v8160 = vld [vmem:[%s8157 + $0x10] sm:$0xff]
  %v8161 = vld [vmem:[%s8157 + $0x18] sm:$0xff]
  %v8162 = vld [vmem:[%s8157 + $0x20] sm:$0xff]
  %v8163 = vld [vmem:[%s8157 + $0x28] sm:$0xff]
  %v8164 = vld [vmem:[%s8157 + $0x30] sm:$0xff]
  %v8165 = vld [vmem:[%s8157 + $0x38] sm:$0xff]
  %v8166 = vld [vmem:[%s8157 + $0x40] sm:$0xff]
  %v8167 = vld [vmem:[%s8157 + $0x48] sm:$0xff]
  %v8168 = vld [vmem:[%s8157 + $0x50] sm:$0xff]
  %v8169 = vld [vmem:[%s8157 + $0x58] sm:$0xff]
  %v8170 = vld [vmem:[%s8157 + $0x60] sm:$0xff]
  %v8171 = vld [vmem:[%s8157 + $0x68] sm:$0xff]
  %v8172 = vld [vmem:[%s8157 + $0x70] sm:$0xff]
  %v8173 = vld [vmem:[%s8157 + $0x78] sm:$0xff]
  %v8174 = vld [vmem:[%s8157 + $0x80] sm:$0xff]
  %v8175 = vld [vmem:[%s8157 + $0x88] sm:$0xff]
  %v8176 = vld [vmem:[%s8157 + $0x90] sm:$0x3f]
  %v8178 = vsel %vm64, %v8176, 0
  %8180 = vmatprep.subr.mxu0 0.0
  %8181 = vmatpush1.msra.mxu0 %v8173
  %8182 = vmatprep.subr.mxu0 0.0
  %8183 = vmatpush1.msra.mxu0 %v8172
  %8184 = vmatprep.subr.mxu0 0.0
  %8185 = vmatpush1.msra.mxu0 %v8171
  %8186 = vmatprep.subr.mxu0 0.0
  %8187 = vmatpush1.msra.mxu0 %v8170
  %8188 = vmatprep.subr.mxu0 0.0
  %8189 = vmatpush1.msra.mxu0 %v8169
  %8190 = vmatprep.subr.mxu0 0.0
  %8191 = vmatpush1.msra.mxu0 %v8168
  %8192 = vmatprep.subr.mxu0 0.0
  %8193 = vmatpush1.msra.mxu0 %v8167
  %8194 = vmatprep.subr.mxu0 0.0
  %8195 = vmatpush1.msra.mxu0 %v8166
  %8196 = vmatprep.subr.mxu0 0.0
  %8197 = vmatpush1.msra.mxu0 %v8165
  %8198 = vmatprep.subr.mxu0 0.0
  %8199 = vmatpush1.msra.mxu0 %v8164
  %8200 = vmatprep.subr.mxu0 0.0
  %8201 = vmatpush1.msra.mxu0 %v8163
  %8202 = vmatprep.subr.mxu0 0.0
  %8203 = vmatpush1.msra.mxu0 %v8162
  %8204 = vmatprep.subr.mxu0 0.0
  %8205 = vmatpush1.msra.mxu0 %v8161
  %8206 = vmatprep.subr.mxu0 0.0
  %8207 = vmatpush1.msra.mxu0 %v8160
  %8208 = vmatprep.subr.mxu0 0.0
  %8209 = vmatpush1.msra.mxu0 %v8159
  %8210 = vmatprep.subr.mxu0 0.0
  %8211 = vmatpush1.msra.mxu0 %v8158
  %8212 = vmatprep.subr.mxu0 0.0
  %8213 = vmatpush2.msra.mxu0 0.0
  %8214 = vmatprep.subr.mxu0 0.0
  %8215 = vmatpush2.msra.mxu0 0.0
  %8216 = vmatprep.subr.mxu0 0.0
  %8217 = vmatpush2.msra.mxu0 0.0
  %8218 = vmatprep.subr.mxu0 0.0
  %8219 = vmatpush2.msra.mxu0 0.0
  %8220 = vmatprep.subr.mxu0 0.0
  %8221 = vmatpush2.msra.mxu0 0.0
  %8222 = vmatprep.subr.mxu0 0.0
  %8223 = vmatpush2.msra.mxu0 0.0
  %8224 = vmatprep.subr.mxu0 0.0
  %8225 = vmatpush2.msra.mxu0 0.0
  %8226 = vmatprep.subr.mxu0 0.0
  %8227 = vmatpush2.msra.mxu0 0.0
  %8228 = vmatprep.subr.mxu0 0.0
  %8229 = vmatpush2.msra.mxu0 0.0
  %8230 = vmatprep.subr.mxu0 0.0
  %8231 = vmatpush2.msra.mxu0 0.0
  %8232 = vmatprep.subr.mxu0 0.0
  %8233 = vmatpush2.msra.mxu0 0.0
  %8234 = vmatprep.subr.mxu0 0.0
  %8235 = vmatpush2.msra.mxu0 0.0
  %8236 = vmatprep.subr.mxu0 0.0
  %8237 = vmatpush2.msra.mxu0 0.0
  %8238 = vmatprep.subr.mxu0 0.0
  %8239 = vmatpush2.msra.mxu0 %v8178
  %8240 = vmatprep.subr.mxu0 0.0
  %8241 = vmatpush2.msra.mxu0 %v8175
  %8242 = vmatprep.subr.mxu0 0.0
  %8243 = vmatpush2.msra.mxu0 %v8174
  %8244 = vmatprep.mubr.f32.mxu0 %v59
  %8245 = vmatmul.mubr.f32.gmra.mxu0 %v32
  %v8246 = vpop.f32.mrf.mxu0
  %v8247 = vadd.f32 0.0, %v8246
  %v8248 = vpop.f32.mrf.mxu0
  %8249 = vmatprep.mubr.f32.mxu0 %v62
  %8250 = vmatmul.mubr.f32.gmra.mxu0 %v34
  %v8251 = vpop.f32.mrf.mxu0
  %v8252 = vadd.f32 0.0, %v8251
  %v8253 = vpop.f32.mrf.mxu0
  %8254 = vdwg.mxu0
  %v8255 = vmax.f32 %v8149, %v8247
  %v8256 = vmax.f32 %v8154, %v8252
  %s8257 = scalar_lea.vmem %s0, 8208
  %v8258 = vld [vmem:[%s8257] sm:$0xff]
  %v8259 = vld [vmem:[%s8257 + $0x8] sm:$0xff]
  %v8260 = vld [vmem:[%s8257 + $0x10] sm:$0xff]
  %v8261 = vld [vmem:[%s8257 + $0x18] sm:$0xff]
  %v8262 = vld [vmem:[%s8257 + $0x20] sm:$0xff]
  %v8263 = vld [vmem:[%s8257 + $0x28] sm:$0xff]
  %v8264 = vld [vmem:[%s8257 + $0x30] sm:$0xff]
  %v8265 = vld [vmem:[%s8257 + $0x38] sm:$0xff]
  %v8266 = vld [vmem:[%s8257 + $0x40] sm:$0xff]
  %v8267 = vld [vmem:[%s8257 + $0x48] sm:$0xff]
  %v8268 = vld [vmem:[%s8257 + $0x50] sm:$0xff]
  %v8269 = vld [vmem:[%s8257 + $0x58] sm:$0xff]
  %v8270 = vld [vmem:[%s8257 + $0x60] sm:$0xff]
  %v8271 = vld [vmem:[%s8257 + $0x68] sm:$0xff]
  %v8272 = vld [vmem:[%s8257 + $0x70] sm:$0xff]
  %v8273 = vld [vmem:[%s8257 + $0x78] sm:$0xff]
  %v8274 = vld [vmem:[%s8257 + $0x80] sm:$0xff]
  %v8275 = vld [vmem:[%s8257 + $0x88] sm:$0xff]
  %v8276 = vld [vmem:[%s8257 + $0x90] sm:$0x3f]
  %v8278 = vsel %vm64, %v8276, 0
  %8280 = vmatprep.subr.mxu0 0.0
  %8281 = vmatpush1.msra.mxu0 %v8273
  %8282 = vmatprep.subr.mxu0 0.0
  %8283 = vmatpush1.msra.mxu0 %v8272
  %8284 = vmatprep.subr.mxu0 0.0
  %8285 = vmatpush1.msra.mxu0 %v8271
  %8286 = vmatprep.subr.mxu0 0.0
  %8287 = vmatpush1.msra.mxu0 %v8270
  %8288 = vmatprep.subr.mxu0 0.0
  %8289 = vmatpush1.msra.mxu0 %v8269
  %8290 = vmatprep.subr.mxu0 0.0
  %8291 = vmatpush1.msra.mxu0 %v8268
  %8292 = vmatprep.subr.mxu0 0.0
  %8293 = vmatpush1.msra.mxu0 %v8267
  %8294 = vmatprep.subr.mxu0 0.0
  %8295 = vmatpush1.msra.mxu0 %v8266
  %8296 = vmatprep.subr.mxu0 0.0
  %8297 = vmatpush1.msra.mxu0 %v8265
  %8298 = vmatprep.subr.mxu0 0.0
  %8299 = vmatpush1.msra.mxu0 %v8264
  %8300 = vmatprep.subr.mxu0 0.0
  %8301 = vmatpush1.msra.mxu0 %v8263
  %8302 = vmatprep.subr.mxu0 0.0
  %8303 = vmatpush1.msra.mxu0 %v8262
  %8304 = vmatprep.subr.mxu0 0.0
  %8305 = vmatpush1.msra.mxu0 %v8261
  %8306 = vmatprep.subr.mxu0 0.0
  %8307 = vmatpush1.msra.mxu0 %v8260
  %8308 = vmatprep.subr.mxu0 0.0
  %8309 = vmatpush1.msra.mxu0 %v8259
  %8310 = vmatprep.subr.mxu0 0.0
  %8311 = vmatpush1.msra.mxu0 %v8258
  %8312 = vmatprep.subr.mxu0 0.0
  %8313 = vmatpush2.msra.mxu0 0.0
  %8314 = vmatprep.subr.mxu0 0.0
  %8315 = vmatpush2.msra.mxu0 0.0
  %8316 = vmatprep.subr.mxu0 0.0
  %8317 = vmatpush2.msra.mxu0 0.0
  %8318 = vmatprep.subr.mxu0 0.0
  %8319 = vmatpush2.msra.mxu0 0.0
  %8320 = vmatprep.subr.mxu0 0.0
  %8321 = vmatpush2.msra.mxu0 0.0
  %8322 = vmatprep.subr.mxu0 0.0
  %8323 = vmatpush2.msra.mxu0 0.0
  %8324 = vmatprep.subr.mxu0 0.0
  %8325 = vmatpush2.msra.mxu0 0.0
  %8326 = vmatprep.subr.mxu0 0.0
  %8327 = vmatpush2.msra.mxu0 0.0
  %8328 = vmatprep.subr.mxu0 0.0
  %8329 = vmatpush2.msra.mxu0 0.0
  %8330 = vmatprep.subr.mxu0 0.0
  %8331 = vmatpush2.msra.mxu0 0.0
  %8332 = vmatprep.subr.mxu0 0.0
  %8333 = vmatpush2.msra.mxu0 0.0
  %8334 = vmatprep.subr.mxu0 0.0
  %8335 = vmatpush2.msra.mxu0 0.0
  %8336 = vmatprep.subr.mxu0 0.0
  %8337 = vmatpush2.msra.mxu0 0.0
  %8338 = vmatprep.subr.mxu0 0.0
  %8339 = vmatpush2.msra.mxu0 %v8278
  %8340 = vmatprep.subr.mxu0 0.0
  %8341 = vmatpush2.msra.mxu0 %v8275
  %8342 = vmatprep.subr.mxu0 0.0
  %8343 = vmatpush2.msra.mxu0 %v8274
  %8344 = vmatprep.mubr.f32.mxu0 %v59
  %8345 = vmatmul.mubr.f32.gmra.mxu0 %v32
  %v8346 = vpop.f32.mrf.mxu0
  %v8347 = vadd.f32 0.0, %v8346
  %v8348 = vpop.f32.mrf.mxu0
  %8349 = vmatprep.mubr.f32.mxu0 %v62
  %8350 = vmatmul.mubr.f32.gmra.mxu0 %v34
  %v8351 = vpop.f32.mrf.mxu0
  %v8352 = vadd.f32 0.0, %v8351
  %v8353 = vpop.f32.mrf.mxu0
  %8354 = vdwg.mxu0
  %v8355 = vmax.f32 %v8255, %v8347
  %v8356 = vmax.f32 %v8256, %v8352
  %s8357 = scalar_lea.vmem %s0, 8360
  %v8358 = vld [vmem:[%s8357] sm:$0xff]
  %v8359 = vld [vmem:[%s8357 + $0x8] sm:$0xff]
  %v8360 = vld [vmem:[%s8357 + $0x10] sm:$0xff]
  %v8361 = vld [vmem:[%s8357 + $0x18] sm:$0xff]
  %v8362 = vld [vmem:[%s8357 + $0x20] sm:$0xff]
  %v8363 = vld [vmem:[%s8357 + $0x28] sm:$0xff]
  %v8364 = vld [vmem:[%s8357 + $0x30] sm:$0xff]
  %v8365 = vld [vmem:[%s8357 + $0x38] sm:$0xff]
  %v8366 = vld [vmem:[%s8357 + $0x40] sm:$0xff]
  %v8367 = vld [vmem:[%s8357 + $0x48] sm:$0xff]
  %v8368 = vld [vmem:[%s8357 + $0x50] sm:$0xff]
  %v8369 = vld [vmem:[%s8357 + $0x58] sm:$0xff]
  %v8370 = vld [vmem:[%s8357 + $0x60] sm:$0xff]
  %v8371 = vld [vmem:[%s8357 + $0x68] sm:$0xff]
  %v8372 = vld [vmem:[%s8357 + $0x70] sm:$0xff]
  %v8373 = vld [vmem:[%s8357 + $0x78] sm:$0xff]
  %v8374 = vld [vmem:[%s8357 + $0x80] sm:$0xff]
  %v8375 = vld [vmem:[%s8357 + $0x88] sm:$0xff]
  %v8376 = vld [vmem:[%s8357 + $0x90] sm:$0x3f]
  %v8378 = vsel %vm64, %v8376, 0
  %8380 = vmatprep.subr.mxu0 0.0
  %8381 = vmatpush1.msra.mxu0 %v8373
  %8382 = vmatprep.subr.mxu0 0.0
  %8383 = vmatpush1.msra.mxu0 %v8372
  %8384 = vmatprep.subr.mxu0 0.0
  %8385 = vmatpush1.msra.mxu0 %v8371
  %8386 = vmatprep.subr.mxu0 0.0
  %8387 = vmatpush1.msra.mxu0 %v8370
  %8388 = vmatprep.subr.mxu0 0.0
  %8389 = vmatpush1.msra.mxu0 %v8369
  %8390 = vmatprep.subr.mxu0 0.0
  %8391 = vmatpush1.msra.mxu0 %v8368
  %8392 = vmatprep.subr.mxu0 0.0
  %8393 = vmatpush1.msra.mxu0 %v8367
  %8394 = vmatprep.subr.mxu0 0.0
  %8395 = vmatpush1.msra.mxu0 %v8366
  %8396 = vmatprep.subr.mxu0 0.0
  %8397 = vmatpush1.msra.mxu0 %v8365
  %8398 = vmatprep.subr.mxu0 0.0
  %8399 = vmatpush1.msra.mxu0 %v8364
  %8400 = vmatprep.subr.mxu0 0.0
  %8401 = vmatpush1.msra.mxu0 %v8363
  %8402 = vmatprep.subr.mxu0 0.0
  %8403 = vmatpush1.msra.mxu0 %v8362
  %8404 = vmatprep.subr.mxu0 0.0
  %8405 = vmatpush1.msra.mxu0 %v8361
  %8406 = vmatprep.subr.mxu0 0.0
  %8407 = vmatpush1.msra.mxu0 %v8360
  %8408 = vmatprep.subr.mxu0 0.0
  %8409 = vmatpush1.msra.mxu0 %v8359
  %8410 = vmatprep.subr.mxu0 0.0
  %8411 = vmatpush1.msra.mxu0 %v8358
  %8412 = vmatprep.subr.mxu0 0.0
  %8413 = vmatpush2.msra.mxu0 0.0
  %8414 = vmatprep.subr.mxu0 0.0
  %8415 = vmatpush2.msra.mxu0 0.0
  %8416 = vmatprep.subr.mxu0 0.0
  %8417 = vmatpush2.msra.mxu0 0.0
  %8418 = vmatprep.subr.mxu0 0.0
  %8419 = vmatpush2.msra.mxu0 0.0
  %8420 = vmatprep.subr.mxu0 0.0
  %8421 = vmatpush2.msra.mxu0 0.0
  %8422 = vmatprep.subr.mxu0 0.0
  %8423 = vmatpush2.msra.mxu0 0.0
  %8424 = vmatprep.subr.mxu0 0.0
  %8425 = vmatpush2.msra.mxu0 0.0
  %8426 = vmatprep.subr.mxu0 0.0
  %8427 = vmatpush2.msra.mxu0 0.0
  %8428 = vmatprep.subr.mxu0 0.0
  %8429 = vmatpush2.msra.mxu0 0.0
  %8430 = vmatprep.subr.mxu0 0.0
  %8431 = vmatpush2.msra.mxu0 0.0
  %8432 = vmatprep.subr.mxu0 0.0
  %8433 = vmatpush2.msra.mxu0 0.0
  %8434 = vmatprep.subr.mxu0 0.0
  %8435 = vmatpush2.msra.mxu0 0.0
  %8436 = vmatprep.subr.mxu0 0.0
  %8437 = vmatpush2.msra.mxu0 0.0
  %8438 = vmatprep.subr.mxu0 0.0
  %8439 = vmatpush2.msra.mxu0 %v8378
  %8440 = vmatprep.subr.mxu0 0.0
  %8441 = vmatpush2.msra.mxu0 %v8375
  %8442 = vmatprep.subr.mxu0 0.0
  %8443 = vmatpush2.msra.mxu0 %v8374
  %8444 = vmatprep.mubr.f32.mxu0 %v59
  %8445 = vmatmul.mubr.f32.gmra.mxu0 %v32
  %v8446 = vpop.f32.mrf.mxu0
  %v8447 = vadd.f32 0.0, %v8446
  %v8448 = vpop.f32.mrf.mxu0
  %8449 = vmatprep.mubr.f32.mxu0 %v62
  %8450 = vmatmul.mubr.f32.gmra.mxu0 %v34
  %v8451 = vpop.f32.mrf.mxu0
  %v8452 = vadd.f32 0.0, %v8451
  %v8453 = vpop.f32.mrf.mxu0
  %8454 = vdwg.mxu0
  %v8455 = vmax.f32 %v8355, %v8447
  %v8456 = vmax.f32 %v8356, %v8452
  %v8457 = vadd.f32 %v8455, %v446
  %v8458 = vadd.f32 %v8456, %v451
  %v8459 = vmax.f32 %v8457, 0.0
  %v8460 = vmax.f32 %v8458, 0.0
  %s8461 = scalar_lea.vmem %s3, 1560
  %v8462 = vld [vmem:[%s8461] sm:$0xff]
  %v8463 = vld [vmem:[%s8461 + $0x8] sm:$0xff]
  %v8464 = vld [vmem:[%s8461 + $0x10] sm:$0xff]
  %v8465 = vld [vmem:[%s8461 + $0x18] sm:$0xff]
  %v8466 = vld [vmem:[%s8461 + $0x20] sm:$0xff]
  %v8467 = vld [vmem:[%s8461 + $0x28] sm:$0xff]
  %v8468 = vld [vmem:[%s8461 + $0x30] sm:$0xff]
  %v8469 = vld [vmem:[%s8461 + $0x38] sm:$0xff]
  %v8470 = vld [vmem:[%s8461 + $0x40] sm:$0xff]
  %v8471 = vld [vmem:[%s8461 + $0x48] sm:$0xff]
  %v8472 = vld [vmem:[%s8461 + $0x50] sm:$0xff]
  %v8473 = vld [vmem:[%s8461 + $0x58] sm:$0xff]
  %v8474 = vld [vmem:[%s8461 + $0x60] sm:$0xff]
  %v8475 = vld [vmem:[%s8461 + $0x68] sm:$0xff]
  %v8476 = vld [vmem:[%s8461 + $0x70] sm:$0xff]
  %v8478 = vsel %vm890, %v8462, 0
  %v8481 = vsel %vm890, %v8463, 0
  %v8484 = vsel %vm890, %v8464, 0
  %v8487 = vsel %vm890, %v8465, 0
  %v8490 = vsel %vm890, %v8466, 0
  %v8493 = vsel %vm890, %v8467, 0
  %v8496 = vsel %vm890, %v8468, 0
  %v8499 = vsel %vm890, %v8469, 0
  %v8502 = vsel %vm890, %v8470, 0
  %v8505 = vsel %vm890, %v8471, 0
  %v8508 = vsel %vm890, %v8472, 0
  %v8511 = vsel %vm890, %v8473, 0
  %v8514 = vsel %vm890, %v8474, 0
  %v8517 = vsel %vm890, %v8475, 0
  %v8520 = vsel %vm890, %v8476, 0
  %8522 = vmatprep.subr.mxu0 0.0
  %8523 = vmatpush1.msra.mxu0 0.0
  %8524 = vmatprep.subr.mxu0 0.0
  %8525 = vmatpush1.msra.mxu0 0.0
  %8526 = vmatprep.subr.mxu0 0.0
  %8527 = vmatpush1.msra.mxu0 0.0
  %8528 = vmatprep.subr.mxu0 0.0
  %8529 = vmatpush1.msra.mxu0 0.0
  %8530 = vmatprep.subr.mxu0 0.0
  %8531 = vmatpush1.msra.mxu0 0.0
  %8532 = vmatprep.subr.mxu0 0.0
  %8533 = vmatpush1.msra.mxu0 0.0
  %8534 = vmatprep.subr.mxu0 0.0
  %8535 = vmatpush1.msra.mxu0 0.0
  %8536 = vmatprep.subr.mxu0 0.0
  %8537 = vmatpush1.msra.mxu0 0.0
  %8538 = vmatprep.subr.mxu0 0.0
  %8539 = vmatpush1.msra.mxu0 0.0
  %8540 = vmatprep.subr.mxu0 0.0
  %8541 = vmatpush1.msra.mxu0 0.0
  %8542 = vmatprep.subr.mxu0 0.0
  %8543 = vmatpush1.msra.mxu0 0.0
  %8544 = vmatprep.subr.mxu0 0.0
  %8545 = vmatpush1.msra.mxu0 0.0
  %8546 = vmatprep.subr.mxu0 0.0
  %8547 = vmatpush1.msra.mxu0 0.0
  %8548 = vmatprep.subr.mxu0 0.0
  %8549 = vmatpush1.msra.mxu0 0.0
  %8550 = vmatprep.subr.mxu0 0.0
  %8551 = vmatpush1.msra.mxu0 %v8460
  %8552 = vmatprep.subr.mxu0 0.0
  %8553 = vmatpush1.msra.mxu0 %v8459
  %8554 = vmatprep.subr.mxu0 0.0
  %8555 = vmatpush2.msra.mxu0 0.0
  %8556 = vmatprep.subr.mxu0 0.0
  %8557 = vmatpush2.msra.mxu0 0.0
  %8558 = vmatprep.subr.mxu0 0.0
  %8559 = vmatpush2.msra.mxu0 0.0
  %8560 = vmatprep.subr.mxu0 0.0
  %8561 = vmatpush2.msra.mxu0 0.0
  %8562 = vmatprep.subr.mxu0 0.0
  %8563 = vmatpush2.msra.mxu0 0.0
  %8564 = vmatprep.subr.mxu0 0.0
  %8565 = vmatpush2.msra.mxu0 0.0
  %8566 = vmatprep.subr.mxu0 0.0
  %8567 = vmatpush2.msra.mxu0 0.0
  %8568 = vmatprep.subr.mxu0 0.0
  %8569 = vmatpush2.msra.mxu0 0.0
  %8570 = vmatprep.subr.mxu0 0.0
  %8571 = vmatpush2.msra.mxu0 0.0
  %8572 = vmatprep.subr.mxu0 0.0
  %8573 = vmatpush2.msra.mxu0 0.0
  %8574 = vmatprep.subr.mxu0 0.0
  %8575 = vmatpush2.msra.mxu0 0.0
  %8576 = vmatprep.subr.mxu0 0.0
  %8577 = vmatpush2.msra.mxu0 0.0
  %8578 = vmatprep.subr.mxu0 0.0
  %8579 = vmatpush2.msra.mxu0 0.0
  %8580 = vmatprep.subr.mxu0 0.0
  %8581 = vmatpush2.msra.mxu0 0.0
  %8582 = vmatprep.subr.mxu0 0.0
  %8583 = vmatpush2.msra.mxu0 0.0
  %8584 = vmatprep.subr.mxu0 0.0
  %8585 = vmatpush2.msra.mxu0 0.0
  %8586 = vmatprep.mubr.f32.mxu0 0.0
  %8587 = vmatmul.mubr.f32.gmra.mxu0 %v8478
  %v8588 = vpop.f32.mrf.mxu0
  %v8589 = vadd.f32 0.0, %v8588
  %v8590 = vpop.f32.mrf.mxu0
  %8591 = vmatprep.mubr.f32.mxu0 0.0
  %8592 = vmatmul.mubr.f32.gmra.mxu0 %v8481
  %v8593 = vpop.f32.mrf.mxu0
  %v8594 = vadd.f32 0.0, %v8593
  %v8595 = vpop.f32.mrf.mxu0
  %8596 = vmatprep.mubr.f32.mxu0 0.0
  %8597 = vmatmul.mubr.f32.gmra.mxu0 %v8484
  %v8598 = vpop.f32.mrf.mxu0
  %v8599 = vadd.f32 0.0, %v8598
  %v8600 = vpop.f32.mrf.mxu0
  %8601 = vmatprep.mubr.f32.mxu0 0.0
  %8602 = vmatmul.mubr.f32.gmra.mxu0 %v8487
  %v8603 = vpop.f32.mrf.mxu0
  %v8604 = vadd.f32 0.0, %v8603
  %v8605 = vpop.f32.mrf.mxu0
  %8606 = vmatprep.mubr.f32.mxu0 0.0
  %8607 = vmatmul.mubr.f32.gmra.mxu0 %v8490
  %v8608 = vpop.f32.mrf.mxu0
  %v8609 = vadd.f32 0.0, %v8608
  %v8610 = vpop.f32.mrf.mxu0
  %8611 = vmatprep.mubr.f32.mxu0 0.0
  %8612 = vmatmul.mubr.f32.gmra.mxu0 %v8493
  %v8613 = vpop.f32.mrf.mxu0
  %v8614 = vadd.f32 0.0, %v8613
  %v8615 = vpop.f32.mrf.mxu0
  %8616 = vmatprep.mubr.f32.mxu0 0.0
  %8617 = vmatmul.mubr.f32.gmra.mxu0 %v8496
  %v8618 = vpop.f32.mrf.mxu0
  %v8619 = vadd.f32 0.0, %v8618
  %v8620 = vpop.f32.mrf.mxu0
  %8621 = vmatprep.mubr.f32.mxu0 0.0
  %8622 = vmatmul.mubr.f32.gmra.mxu0 %v8499
  %v8623 = vpop.f32.mrf.mxu0
  %v8624 = vadd.f32 0.0, %v8623
  %v8625 = vpop.f32.mrf.mxu0
  %8626 = vmatprep.mubr.f32.mxu0 0.0
  %8627 = vmatmul.mubr.f32.gmra.mxu0 %v8502
  %v8628 = vpop.f32.mrf.mxu0
  %v8629 = vadd.f32 0.0, %v8628
  %v8630 = vpop.f32.mrf.mxu0
  %8631 = vmatprep.mubr.f32.mxu0 0.0
  %8632 = vmatmul.mubr.f32.gmra.mxu0 %v8505
  %v8633 = vpop.f32.mrf.mxu0
  %v8634 = vadd.f32 0.0, %v8633
  %v8635 = vpop.f32.mrf.mxu0
  %8636 = vmatprep.mubr.f32.mxu0 0.0
  %8637 = vmatmul.mubr.f32.gmra.mxu0 %v8508
  %v8638 = vpop.f32.mrf.mxu0
  %v8639 = vadd.f32 0.0, %v8638
  %v8640 = vpop.f32.mrf.mxu0
  %8641 = vmatprep.mubr.f32.mxu0 0.0
  %8642 = vmatmul.mubr.f32.gmra.mxu0 %v8511
  %v8643 = vpop.f32.mrf.mxu0
  %v8644 = vadd.f32 0.0, %v8643
  %v8645 = vpop.f32.mrf.mxu0
  %8646 = vmatprep.mubr.f32.mxu0 0.0
  %8647 = vmatmul.mubr.f32.gmra.mxu0 %v8514
  %v8648 = vpop.f32.mrf.mxu0
  %v8649 = vadd.f32 0.0, %v8648
  %v8650 = vpop.f32.mrf.mxu0
  %8651 = vmatprep.mubr.f32.mxu0 0.0
  %8652 = vmatmul.mubr.f32.gmra.mxu0 %v8517
  %v8653 = vpop.f32.mrf.mxu0
  %v8654 = vadd.f32 0.0, %v8653
  %v8655 = vpop.f32.mrf.mxu0
  %8656 = vmatprep.mubr.f32.mxu0 0.0
  %8657 = vmatmul.mubr.f32.gmra.mxu0 %v8520
  %v8658 = vpop.f32.mrf.mxu0
  %v8659 = vadd.f32 0.0, %v8658
  %v8660 = vpop.f32.mrf.mxu0
  %8661 = vdwg.mxu0
  %v8662 = vadd.f32 %v8044, %v8589
  %v8663 = vadd.f32 %v8045, %v8594
  %v8664 = vadd.f32 %v8046, %v8599
  %v8665 = vadd.f32 %v8047, %v8604
  %v8666 = vadd.f32 %v8048, %v8609
  %v8667 = vadd.f32 %v8049, %v8614
  %v8668 = vadd.f32 %v8050, %v8619
  %v8669 = vadd.f32 %v8051, %v8624
  %v8670 = vadd.f32 %v8052, %v8629
  %v8671 = vadd.f32 %v8053, %v8634
  %v8672 = vadd.f32 %v8054, %v8639
  %v8673 = vadd.f32 %v8055, %v8644
  %v8674 = vadd.f32 %v8056, %v8649
  %v8675 = vadd.f32 %v8057, %v8654
  %v8676 = vadd.f32 %v8058, %v8659
  %s8677 = scalar_lea.vmem %s0, 8512
  %v8678 = vld [vmem:[%s8677] sm:$0xff]
  %v8679 = vld [vmem:[%s8677 + $0x8] sm:$0xff]
  %v8680 = vld [vmem:[%s8677 + $0x10] sm:$0xff]
  %v8681 = vld [vmem:[%s8677 + $0x18] sm:$0xff]
  %v8682 = vld [vmem:[%s8677 + $0x20] sm:$0xff]
  %v8683 = vld [vmem:[%s8677 + $0x28] sm:$0xff]
  %v8684 = vld [vmem:[%s8677 + $0x30] sm:$0xff]
  %v8685 = vld [vmem:[%s8677 + $0x38] sm:$0xff]
  %v8686 = vld [vmem:[%s8677 + $0x40] sm:$0xff]
  %v8687 = vld [vmem:[%s8677 + $0x48] sm:$0xff]
  %v8688 = vld [vmem:[%s8677 + $0x50] sm:$0xff]
  %v8689 = vld [vmem:[%s8677 + $0x58] sm:$0xff]
  %v8690 = vld [vmem:[%s8677 + $0x60] sm:$0xff]
  %v8691 = vld [vmem:[%s8677 + $0x68] sm:$0xff]
  %v8692 = vld [vmem:[%s8677 + $0x70] sm:$0xff]
  %v8693 = vld [vmem:[%s8677 + $0x78] sm:$0xff]
  %v8694 = vld [vmem:[%s8677 + $0x80] sm:$0xff]
  %v8695 = vld [vmem:[%s8677 + $0x88] sm:$0xff]
  %v8696 = vld [vmem:[%s8677 + $0x90] sm:$0x3f]
  %v8698 = vsel %vm64, %v8696, 0
  %8700 = vmatprep.subr.mxu0 0.0
  %8701 = vmatpush1.msra.mxu0 %v8693
  %8702 = vmatprep.subr.mxu0 0.0
  %8703 = vmatpush1.msra.mxu0 %v8692
  %8704 = vmatprep.subr.mxu0 0.0
  %8705 = vmatpush1.msra.mxu0 %v8691
  %8706 = vmatprep.subr.mxu0 0.0
  %8707 = vmatpush1.msra.mxu0 %v8690
  %8708 = vmatprep.subr.mxu0 0.0
  %8709 = vmatpush1.msra.mxu0 %v8689
  %8710 = vmatprep.subr.mxu0 0.0
  %8711 = vmatpush1.msra.mxu0 %v8688
  %8712 = vmatprep.subr.mxu0 0.0
  %8713 = vmatpush1.msra.mxu0 %v8687
  %8714 = vmatprep.subr.mxu0 0.0
  %8715 = vmatpush1.msra.mxu0 %v8686
  %8716 = vmatprep.subr.mxu0 0.0
  %8717 = vmatpush1.msra.mxu0 %v8685
  %8718 = vmatprep.subr.mxu0 0.0
  %8719 = vmatpush1.msra.mxu0 %v8684
  %8720 = vmatprep.subr.mxu0 0.0
  %8721 = vmatpush1.msra.mxu0 %v8683
  %8722 = vmatprep.subr.mxu0 0.0
  %8723 = vmatpush1.msra.mxu0 %v8682
  %8724 = vmatprep.subr.mxu0 0.0
  %8725 = vmatpush1.msra.mxu0 %v8681
  %8726 = vmatprep.subr.mxu0 0.0
  %8727 = vmatpush1.msra.mxu0 %v8680
  %8728 = vmatprep.subr.mxu0 0.0
  %8729 = vmatpush1.msra.mxu0 %v8679
  %8730 = vmatprep.subr.mxu0 0.0
  %8731 = vmatpush1.msra.mxu0 %v8678
  %8732 = vmatprep.subr.mxu0 0.0
  %8733 = vmatpush2.msra.mxu0 0.0
  %8734 = vmatprep.subr.mxu0 0.0
  %8735 = vmatpush2.msra.mxu0 0.0
  %8736 = vmatprep.subr.mxu0 0.0
  %8737 = vmatpush2.msra.mxu0 0.0
  %8738 = vmatprep.subr.mxu0 0.0
  %8739 = vmatpush2.msra.mxu0 0.0
  %8740 = vmatprep.subr.mxu0 0.0
  %8741 = vmatpush2.msra.mxu0 0.0
  %8742 = vmatprep.subr.mxu0 0.0
  %8743 = vmatpush2.msra.mxu0 0.0
  %8744 = vmatprep.subr.mxu0 0.0
  %8745 = vmatpush2.msra.mxu0 0.0
  %8746 = vmatprep.subr.mxu0 0.0
  %8747 = vmatpush2.msra.mxu0 0.0
  %8748 = vmatprep.subr.mxu0 0.0
  %8749 = vmatpush2.msra.mxu0 0.0
  %8750 = vmatprep.subr.mxu0 0.0
  %8751 = vmatpush2.msra.mxu0 0.0
  %8752 = vmatprep.subr.mxu0 0.0
  %8753 = vmatpush2.msra.mxu0 0.0
  %8754 = vmatprep.subr.mxu0 0.0
  %8755 = vmatpush2.msra.mxu0 0.0
  %8756 = vmatprep.subr.mxu0 0.0
  %8757 = vmatpush2.msra.mxu0 0.0
  %8758 = vmatprep.subr.mxu0 0.0
  %8759 = vmatpush2.msra.mxu0 %v8698
  %8760 = vmatprep.subr.mxu0 0.0
  %8761 = vmatpush2.msra.mxu0 %v8695
  %8762 = vmatprep.subr.mxu0 0.0
  %8763 = vmatpush2.msra.mxu0 %v8694
  %8764 = vmatprep.mubr.f32.mxu0 %v59
  %8765 = vmatmul.mubr.f32.gmra.mxu0 %v32
  %v8766 = vpop.f32.mrf.mxu0
  %v8767 = vadd.f32 0.0, %v8766
  %v8768 = vpop.f32.mrf.mxu0
  %8769 = vmatprep.mubr.f32.mxu0 %v62
  %8770 = vmatmul.mubr.f32.gmra.mxu0 %v34
  %v8771 = vpop.f32.mrf.mxu0
  %v8772 = vadd.f32 0.0, %v8771
  %v8773 = vpop.f32.mrf.mxu0
  %8774 = vdwg.mxu0
  %s8775 = scalar_lea.vmem %s0, 8664
  %v8776 = vld [vmem:[%s8775] sm:$0xff]
  %v8777 = vld [vmem:[%s8775 + $0x8] sm:$0xff]
  %v8778 = vld [vmem:[%s8775 + $0x10] sm:$0xff]
  %v8779 = vld [vmem:[%s8775 + $0x18] sm:$0xff]
  %v8780 = vld [vmem:[%s8775 + $0x20] sm:$0xff]
  %v8781 = vld [vmem:[%s8775 + $0x28] sm:$0xff]
  %v8782 = vld [vmem:[%s8775 + $0x30] sm:$0xff]
  %v8783 = vld [vmem:[%s8775 + $0x38] sm:$0xff]
  %v8784 = vld [vmem:[%s8775 + $0x40] sm:$0xff]
  %v8785 = vld [vmem:[%s8775 + $0x48] sm:$0xff]
  %v8786 = vld [vmem:[%s8775 + $0x50] sm:$0xff]
  %v8787 = vld [vmem:[%s8775 + $0x58] sm:$0xff]
  %v8788 = vld [vmem:[%s8775 + $0x60] sm:$0xff]
  %v8789 = vld [vmem:[%s8775 + $0x68] sm:$0xff]
  %v8790 = vld [vmem:[%s8775 + $0x70] sm:$0xff]
  %v8791 = vld [vmem:[%s8775 + $0x78] sm:$0xff]
  %v8792 = vld [vmem:[%s8775 + $0x80] sm:$0xff]
  %v8793 = vld [vmem:[%s8775 + $0x88] sm:$0xff]
  %v8794 = vld [vmem:[%s8775 + $0x90] sm:$0x3f]
  %v8796 = vsel %vm64, %v8794, 0
  %8798 = vmatprep.subr.mxu0 0.0
  %8799 = vmatpush1.msra.mxu0 %v8791
  %8800 = vmatprep.subr.mxu0 0.0
  %8801 = vmatpush1.msra.mxu0 %v8790
  %8802 = vmatprep.subr.mxu0 0.0
  %8803 = vmatpush1.msra.mxu0 %v8789
  %8804 = vmatprep.subr.mxu0 0.0
  %8805 = vmatpush1.msra.mxu0 %v8788
  %8806 = vmatprep.subr.mxu0 0.0
  %8807 = vmatpush1.msra.mxu0 %v8787
  %8808 = vmatprep.subr.mxu0 0.0
  %8809 = vmatpush1.msra.mxu0 %v8786
  %8810 = vmatprep.subr.mxu0 0.0
  %8811 = vmatpush1.msra.mxu0 %v8785
  %8812 = vmatprep.subr.mxu0 0.0
  %8813 = vmatpush1.msra.mxu0 %v8784
  %8814 = vmatprep.subr.mxu0 0.0
  %8815 = vmatpush1.msra.mxu0 %v8783
  %8816 = vmatprep.subr.mxu0 0.0
  %8817 = vmatpush1.msra.mxu0 %v8782
  %8818 = vmatprep.subr.mxu0 0.0
  %8819 = vmatpush1.msra.mxu0 %v8781
  %8820 = vmatprep.subr.mxu0 0.0
  %8821 = vmatpush1.msra.mxu0 %v8780
  %8822 = vmatprep.subr.mxu0 0.0
  %8823 = vmatpush1.msra.mxu0 %v8779
  %8824 = vmatprep.subr.mxu0 0.0
  %8825 = vmatpush1.msra.mxu0 %v8778
  %8826 = vmatprep.subr.mxu0 0.0
  %8827 = vmatpush1.msra.mxu0 %v8777
  %8828 = vmatprep.subr.mxu0 0.0
  %8829 = vmatpush1.msra.mxu0 %v8776
  %8830 = vmatprep.subr.mxu0 0.0
  %8831 = vmatpush2.msra.mxu0 0.0
  %8832 = vmatprep.subr.mxu0 0.0
  %8833 = vmatpush2.msra.mxu0 0.0
  %8834 = vmatprep.subr.mxu0 0.0
  %8835 = vmatpush2.msra.mxu0 0.0
  %8836 = vmatprep.subr.mxu0 0.0
  %8837 = vmatpush2.msra.mxu0 0.0
  %8838 = vmatprep.subr.mxu0 0.0
  %8839 = vmatpush2.msra.mxu0 0.0
  %8840 = vmatprep.subr.mxu0 0.0
  %8841 = vmatpush2.msra.mxu0 0.0
  %8842 = vmatprep.subr.mxu0 0.0
  %8843 = vmatpush2.msra.mxu0 0.0
  %8844 = vmatprep.subr.mxu0 0.0
  %8845 = vmatpush2.msra.mxu0 0.0
  %8846 = vmatprep.subr.mxu0 0.0
  %8847 = vmatpush2.msra.mxu0 0.0
  %8848 = vmatprep.subr.mxu0 0.0
  %8849 = vmatpush2.msra.mxu0 0.0
  %8850 = vmatprep.subr.mxu0 0.0
  %8851 = vmatpush2.msra.mxu0 0.0
  %8852 = vmatprep.subr.mxu0 0.0
  %8853 = vmatpush2.msra.mxu0 0.0
  %8854 = vmatprep.subr.mxu0 0.0
  %8855 = vmatpush2.msra.mxu0 0.0
  %8856 = vmatprep.subr.mxu0 0.0
  %8857 = vmatpush2.msra.mxu0 %v8796
  %8858 = vmatprep.subr.mxu0 0.0
  %8859 = vmatpush2.msra.mxu0 %v8793
  %8860 = vmatprep.subr.mxu0 0.0
  %8861 = vmatpush2.msra.mxu0 %v8792
  %8862 = vmatprep.mubr.f32.mxu0 %v59
  %8863 = vmatmul.mubr.f32.gmra.mxu0 %v32
  %v8864 = vpop.f32.mrf.mxu0
  %v8865 = vadd.f32 0.0, %v8864
  %v8866 = vpop.f32.mrf.mxu0
  %8867 = vmatprep.mubr.f32.mxu0 %v62
  %8868 = vmatmul.mubr.f32.gmra.mxu0 %v34
  %v8869 = vpop.f32.mrf.mxu0
  %v8870 = vadd.f32 0.0, %v8869
  %v8871 = vpop.f32.mrf.mxu0
  %8872 = vdwg.mxu0
  %v8873 = vmax.f32 %v8767, %v8865
  %v8874 = vmax.f32 %v8772, %v8870
  %s8875 = scalar_lea.vmem %s0, 8816
  %v8876 = vld [vmem:[%s8875] sm:$0xff]
  %v8877 = vld [vmem:[%s8875 + $0x8] sm:$0xff]
  %v8878 = vld [vmem:[%s8875 + $0x10] sm:$0xff]
  %v8879 = vld [vmem:[%s8875 + $0x18] sm:$0xff]
  %v8880 = vld [vmem:[%s8875 + $0x20] sm:$0xff]
  %v8881 = vld [vmem:[%s8875 + $0x28] sm:$0xff]
  %v8882 = vld [vmem:[%s8875 + $0x30] sm:$0xff]
  %v8883 = vld [vmem:[%s8875 + $0x38] sm:$0xff]
  %v8884 = vld [vmem:[%s8875 + $0x40] sm:$0xff]
  %v8885 = vld [vmem:[%s8875 + $0x48] sm:$0xff]
  %v8886 = vld [vmem:[%s8875 + $0x50] sm:$0xff]
  %v8887 = vld [vmem:[%s8875 + $0x58] sm:$0xff]
  %v8888 = vld [vmem:[%s8875 + $0x60] sm:$0xff]
  %v8889 = vld [vmem:[%s8875 + $0x68] sm:$0xff]
  %v8890 = vld [vmem:[%s8875 + $0x70] sm:$0xff]
  %v8891 = vld [vmem:[%s8875 + $0x78] sm:$0xff]
  %v8892 = vld [vmem:[%s8875 + $0x80] sm:$0xff]
  %v8893 = vld [vmem:[%s8875 + $0x88] sm:$0xff]
  %v8894 = vld [vmem:[%s8875 + $0x90] sm:$0x3f]
  %v8896 = vsel %vm64, %v8894, 0
  %8898 = vmatprep.subr.mxu0 0.0
  %8899 = vmatpush1.msra.mxu0 %v8891
  %8900 = vmatprep.subr.mxu0 0.0
  %8901 = vmatpush1.msra.mxu0 %v8890
  %8902 = vmatprep.subr.mxu0 0.0
  %8903 = vmatpush1.msra.mxu0 %v8889
  %8904 = vmatprep.subr.mxu0 0.0
  %8905 = vmatpush1.msra.mxu0 %v8888
  %8906 = vmatprep.subr.mxu0 0.0
  %8907 = vmatpush1.msra.mxu0 %v8887
  %8908 = vmatprep.subr.mxu0 0.0
  %8909 = vmatpush1.msra.mxu0 %v8886
  %8910 = vmatprep.subr.mxu0 0.0
  %8911 = vmatpush1.msra.mxu0 %v8885
  %8912 = vmatprep.subr.mxu0 0.0
  %8913 = vmatpush1.msra.mxu0 %v8884
  %8914 = vmatprep.subr.mxu0 0.0
  %8915 = vmatpush1.msra.mxu0 %v8883
  %8916 = vmatprep.subr.mxu0 0.0
  %8917 = vmatpush1.msra.mxu0 %v8882
  %8918 = vmatprep.subr.mxu0 0.0
  %8919 = vmatpush1.msra.mxu0 %v8881
  %8920 = vmatprep.subr.mxu0 0.0
  %8921 = vmatpush1.msra.mxu0 %v8880
  %8922 = vmatprep.subr.mxu0 0.0
  %8923 = vmatpush1.msra.mxu0 %v8879
  %8924 = vmatprep.subr.mxu0 0.0
  %8925 = vmatpush1.msra.mxu0 %v8878
  %8926 = vmatprep.subr.mxu0 0.0
  %8927 = vmatpush1.msra.mxu0 %v8877
  %8928 = vmatprep.subr.mxu0 0.0
  %8929 = vmatpush1.msra.mxu0 %v8876
  %8930 = vmatprep.subr.mxu0 0.0
  %8931 = vmatpush2.msra.mxu0 0.0
  %8932 = vmatprep.subr.mxu0 0.0
  %8933 = vmatpush2.msra.mxu0 0.0
  %8934 = vmatprep.subr.mxu0 0.0
  %8935 = vmatpush2.msra.mxu0 0.0
  %8936 = vmatprep.subr.mxu0 0.0
  %8937 = vmatpush2.msra.mxu0 0.0
  %8938 = vmatprep.subr.mxu0 0.0
  %8939 = vmatpush2.msra.mxu0 0.0
  %8940 = vmatprep.subr.mxu0 0.0
  %8941 = vmatpush2.msra.mxu0 0.0
  %8942 = vmatprep.subr.mxu0 0.0
  %8943 = vmatpush2.msra.mxu0 0.0
  %8944 = vmatprep.subr.mxu0 0.0
  %8945 = vmatpush2.msra.mxu0 0.0
  %8946 = vmatprep.subr.mxu0 0.0
  %8947 = vmatpush2.msra.mxu0 0.0
  %8948 = vmatprep.subr.mxu0 0.0
  %8949 = vmatpush2.msra.mxu0 0.0
  %8950 = vmatprep.subr.mxu0 0.0
  %8951 = vmatpush2.msra.mxu0 0.0
  %8952 = vmatprep.subr.mxu0 0.0
  %8953 = vmatpush2.msra.mxu0 0.0
  %8954 = vmatprep.subr.mxu0 0.0
  %8955 = vmatpush2.msra.mxu0 0.0
  %8956 = vmatprep.subr.mxu0 0.0
  %8957 = vmatpush2.msra.mxu0 %v8896
  %8958 = vmatprep.subr.mxu0 0.0
  %8959 = vmatpush2.msra.mxu0 %v8893
  %8960 = vmatprep.subr.mxu0 0.0
  %8961 = vmatpush2.msra.mxu0 %v8892
  %8962 = vmatprep.mubr.f32.mxu0 %v59
  %8963 = vmatmul.mubr.f32.gmra.mxu0 %v32
  %v8964 = vpop.f32.mrf.mxu0
  %v8965 = vadd.f32 0.0, %v8964
  %v8966 = vpop.f32.mrf.mxu0
  %8967 = vmatprep.mubr.f32.mxu0 %v62
  %8968 = vmatmul.mubr.f32.gmra.mxu0 %v34
  %v8969 = vpop.f32.mrf.mxu0
  %v8970 = vadd.f32 0.0, %v8969
  %v8971 = vpop.f32.mrf.mxu0
  %8972 = vdwg.mxu0
  %v8973 = vmax.f32 %v8873, %v8965
  %v8974 = vmax.f32 %v8874, %v8970
  %s8975 = scalar_lea.vmem %s0, 8968
  %v8976 = vld [vmem:[%s8975] sm:$0xff]
  %v8977 = vld [vmem:[%s8975 + $0x8] sm:$0xff]
  %v8978 = vld [vmem:[%s8975 + $0x10] sm:$0xff]
  %v8979 = vld [vmem:[%s8975 + $0x18] sm:$0xff]
  %v8980 = vld [vmem:[%s8975 + $0x20] sm:$0xff]
  %v8981 = vld [vmem:[%s8975 + $0x28] sm:$0xff]
  %v8982 = vld [vmem:[%s8975 + $0x30] sm:$0xff]
  %v8983 = vld [vmem:[%s8975 + $0x38] sm:$0xff]
  %v8984 = vld [vmem:[%s8975 + $0x40] sm:$0xff]
  %v8985 = vld [vmem:[%s8975 + $0x48] sm:$0xff]
  %v8986 = vld [vmem:[%s8975 + $0x50] sm:$0xff]
  %v8987 = vld [vmem:[%s8975 + $0x58] sm:$0xff]
  %v8988 = vld [vmem:[%s8975 + $0x60] sm:$0xff]
  %v8989 = vld [vmem:[%s8975 + $0x68] sm:$0xff]
  %v8990 = vld [vmem:[%s8975 + $0x70] sm:$0xff]
  %v8991 = vld [vmem:[%s8975 + $0x78] sm:$0xff]
  %v8992 = vld [vmem:[%s8975 + $0x80] sm:$0xff]
  %v8993 = vld [vmem:[%s8975 + $0x88] sm:$0xff]
  %v8994 = vld [vmem:[%s8975 + $0x90] sm:$0x3f]
  %v8996 = vsel %vm64, %v8994, 0
  %8998 = vmatprep.subr.mxu0 0.0
  %8999 = vmatpush1.msra.mxu0 %v8991
  %9000 = vmatprep.subr.mxu0 0.0
  %9001 = vmatpush1.msra.mxu0 %v8990
  %9002 = vmatprep.subr.mxu0 0.0
  %9003 = vmatpush1.msra.mxu0 %v8989
  %9004 = vmatprep.subr.mxu0 0.0
  %9005 = vmatpush1.msra.mxu0 %v8988
  %9006 = vmatprep.subr.mxu0 0.0
  %9007 = vmatpush1.msra.mxu0 %v8987
  %9008 = vmatprep.subr.mxu0 0.0
  %9009 = vmatpush1.msra.mxu0 %v8986
  %9010 = vmatprep.subr.mxu0 0.0
  %9011 = vmatpush1.msra.mxu0 %v8985
  %9012 = vmatprep.subr.mxu0 0.0
  %9013 = vmatpush1.msra.mxu0 %v8984
  %9014 = vmatprep.subr.mxu0 0.0
  %9015 = vmatpush1.msra.mxu0 %v8983
  %9016 = vmatprep.subr.mxu0 0.0
  %9017 = vmatpush1.msra.mxu0 %v8982
  %9018 = vmatprep.subr.mxu0 0.0
  %9019 = vmatpush1.msra.mxu0 %v8981
  %9020 = vmatprep.subr.mxu0 0.0
  %9021 = vmatpush1.msra.mxu0 %v8980
  %9022 = vmatprep.subr.mxu0 0.0
  %9023 = vmatpush1.msra.mxu0 %v8979
  %9024 = vmatprep.subr.mxu0 0.0
  %9025 = vmatpush1.msra.mxu0 %v8978
  %9026 = vmatprep.subr.mxu0 0.0
  %9027 = vmatpush1.msra.mxu0 %v8977
  %9028 = vmatprep.subr.mxu0 0.0
  %9029 = vmatpush1.msra.mxu0 %v8976
  %9030 = vmatprep.subr.mxu0 0.0
  %9031 = vmatpush2.msra.mxu0 0.0
  %9032 = vmatprep.subr.mxu0 0.0
  %9033 = vmatpush2.msra.mxu0 0.0
  %9034 = vmatprep.subr.mxu0 0.0
  %9035 = vmatpush2.msra.mxu0 0.0
  %9036 = vmatprep.subr.mxu0 0.0
  %9037 = vmatpush2.msra.mxu0 0.0
  %9038 = vmatprep.subr.mxu0 0.0
  %9039 = vmatpush2.msra.mxu0 0.0
  %9040 = vmatprep.subr.mxu0 0.0
  %9041 = vmatpush2.msra.mxu0 0.0
  %9042 = vmatprep.subr.mxu0 0.0
  %9043 = vmatpush2.msra.mxu0 0.0
  %9044 = vmatprep.subr.mxu0 0.0
  %9045 = vmatpush2.msra.mxu0 0.0
  %9046 = vmatprep.subr.mxu0 0.0
  %9047 = vmatpush2.msra.mxu0 0.0
  %9048 = vmatprep.subr.mxu0 0.0
  %9049 = vmatpush2.msra.mxu0 0.0
  %9050 = vmatprep.subr.mxu0 0.0
  %9051 = vmatpush2.msra.mxu0 0.0
  %9052 = vmatprep.subr.mxu0 0.0
  %9053 = vmatpush2.msra.mxu0 0.0
  %9054 = vmatprep.subr.mxu0 0.0
  %9055 = vmatpush2.msra.mxu0 0.0
  %9056 = vmatprep.subr.mxu0 0.0
  %9057 = vmatpush2.msra.mxu0 %v8996
  %9058 = vmatprep.subr.mxu0 0.0
  %9059 = vmatpush2.msra.mxu0 %v8993
  %9060 = vmatprep.subr.mxu0 0.0
  %9061 = vmatpush2.msra.mxu0 %v8992
  %9062 = vmatprep.mubr.f32.mxu0 %v59
  %9063 = vmatmul.mubr.f32.gmra.mxu0 %v32
  %v9064 = vpop.f32.mrf.mxu0
  %v9065 = vadd.f32 0.0, %v9064
  %v9066 = vpop.f32.mrf.mxu0
  %9067 = vmatprep.mubr.f32.mxu0 %v62
  %9068 = vmatmul.mubr.f32.gmra.mxu0 %v34
  %v9069 = vpop.f32.mrf.mxu0
  %v9070 = vadd.f32 0.0, %v9069
  %v9071 = vpop.f32.mrf.mxu0
  %9072 = vdwg.mxu0
  %v9073 = vmax.f32 %v8973, %v9065
  %v9074 = vmax.f32 %v8974, %v9070
  %v9075 = vadd.f32 %v9073, %v446
  %v9076 = vadd.f32 %v9074, %v451
  %v9077 = vmax.f32 %v9075, 0.0
  %v9078 = vmax.f32 %v9076, 0.0
  %s9079 = scalar_lea.vmem %s3, 1680
  %v9080 = vld [vmem:[%s9079] sm:$0xff]
  %v9081 = vld [vmem:[%s9079 + $0x8] sm:$0xff]
  %v9082 = vld [vmem:[%s9079 + $0x10] sm:$0xff]
  %v9083 = vld [vmem:[%s9079 + $0x18] sm:$0xff]
  %v9084 = vld [vmem:[%s9079 + $0x20] sm:$0xff]
  %v9085 = vld [vmem:[%s9079 + $0x28] sm:$0xff]
  %v9086 = vld [vmem:[%s9079 + $0x30] sm:$0xff]
  %v9087 = vld [vmem:[%s9079 + $0x38] sm:$0xff]
  %v9088 = vld [vmem:[%s9079 + $0x40] sm:$0xff]
  %v9089 = vld [vmem:[%s9079 + $0x48] sm:$0xff]
  %v9090 = vld [vmem:[%s9079 + $0x50] sm:$0xff]
  %v9091 = vld [vmem:[%s9079 + $0x58] sm:$0xff]
  %v9092 = vld [vmem:[%s9079 + $0x60] sm:$0xff]
  %v9093 = vld [vmem:[%s9079 + $0x68] sm:$0xff]
  %v9094 = vld [vmem:[%s9079 + $0x70] sm:$0xff]
  %v9096 = vsel %vm890, %v9080, 0
  %v9099 = vsel %vm890, %v9081, 0
  %v9102 = vsel %vm890, %v9082, 0
  %v9105 = vsel %vm890, %v9083, 0
  %v9108 = vsel %vm890, %v9084, 0
  %v9111 = vsel %vm890, %v9085, 0
  %v9114 = vsel %vm890, %v9086, 0
  %v9117 = vsel %vm890, %v9087, 0
  %v9120 = vsel %vm890, %v9088, 0
  %v9123 = vsel %vm890, %v9089, 0
  %v9126 = vsel %vm890, %v9090, 0
  %v9129 = vsel %vm890, %v9091, 0
  %v9132 = vsel %vm890, %v9092, 0
  %v9135 = vsel %vm890, %v9093, 0
  %v9138 = vsel %vm890, %v9094, 0
  %9140 = vmatprep.subr.mxu0 0.0
  %9141 = vmatpush1.msra.mxu0 0.0
  %9142 = vmatprep.subr.mxu0 0.0
  %9143 = vmatpush1.msra.mxu0 0.0
  %9144 = vmatprep.subr.mxu0 0.0
  %9145 = vmatpush1.msra.mxu0 0.0
  %9146 = vmatprep.subr.mxu0 0.0
  %9147 = vmatpush1.msra.mxu0 0.0
  %9148 = vmatprep.subr.mxu0 0.0
  %9149 = vmatpush1.msra.mxu0 0.0
  %9150 = vmatprep.subr.mxu0 0.0
  %9151 = vmatpush1.msra.mxu0 0.0
  %9152 = vmatprep.subr.mxu0 0.0
  %9153 = vmatpush1.msra.mxu0 0.0
  %9154 = vmatprep.subr.mxu0 0.0
  %9155 = vmatpush1.msra.mxu0 0.0
  %9156 = vmatprep.subr.mxu0 0.0
  %9157 = vmatpush1.msra.mxu0 0.0
  %9158 = vmatprep.subr.mxu0 0.0
  %9159 = vmatpush1.msra.mxu0 0.0
  %9160 = vmatprep.subr.mxu0 0.0
  %9161 = vmatpush1.msra.mxu0 0.0
  %9162 = vmatprep.subr.mxu0 0.0
  %9163 = vmatpush1.msra.mxu0 0.0
  %9164 = vmatprep.subr.mxu0 0.0
  %9165 = vmatpush1.msra.mxu0 0.0
  %9166 = vmatprep.subr.mxu0 0.0
  %9167 = vmatpush1.msra.mxu0 0.0
  %9168 = vmatprep.subr.mxu0 0.0
  %9169 = vmatpush1.msra.mxu0 %v9078
  %9170 = vmatprep.subr.mxu0 0.0
  %9171 = vmatpush1.msra.mxu0 %v9077
  %9172 = vmatprep.subr.mxu0 0.0
  %9173 = vmatpush2.msra.mxu0 0.0
  %9174 = vmatprep.subr.mxu0 0.0
  %9175 = vmatpush2.msra.mxu0 0.0
  %9176 = vmatprep.subr.mxu0 0.0
  %9177 = vmatpush2.msra.mxu0 0.0
  %9178 = vmatprep.subr.mxu0 0.0
  %9179 = vmatpush2.msra.mxu0 0.0
  %9180 = vmatprep.subr.mxu0 0.0
  %9181 = vmatpush2.msra.mxu0 0.0
  %9182 = vmatprep.subr.mxu0 0.0
  %9183 = vmatpush2.msra.mxu0 0.0
  %9184 = vmatprep.subr.mxu0 0.0
  %9185 = vmatpush2.msra.mxu0 0.0
  %9186 = vmatprep.subr.mxu0 0.0
  %9187 = vmatpush2.msra.mxu0 0.0
  %9188 = vmatprep.subr.mxu0 0.0
  %9189 = vmatpush2.msra.mxu0 0.0
  %9190 = vmatprep.subr.mxu0 0.0
  %9191 = vmatpush2.msra.mxu0 0.0
  %9192 = vmatprep.subr.mxu0 0.0
  %9193 = vmatpush2.msra.mxu0 0.0
  %9194 = vmatprep.subr.mxu0 0.0
  %9195 = vmatpush2.msra.mxu0 0.0
  %9196 = vmatprep.subr.mxu0 0.0
  %9197 = vmatpush2.msra.mxu0 0.0
  %9198 = vmatprep.subr.mxu0 0.0
  %9199 = vmatpush2.msra.mxu0 0.0
  %9200 = vmatprep.subr.mxu0 0.0
  %9201 = vmatpush2.msra.mxu0 0.0
  %9202 = vmatprep.subr.mxu0 0.0
  %9203 = vmatpush2.msra.mxu0 0.0
  %9204 = vmatprep.mubr.f32.mxu0 0.0
  %9205 = vmatmul.mubr.f32.gmra.mxu0 %v9096
  %v9206 = vpop.f32.mrf.mxu0
  %v9207 = vadd.f32 0.0, %v9206
  %v9208 = vpop.f32.mrf.mxu0
  %9209 = vmatprep.mubr.f32.mxu0 0.0
  %9210 = vmatmul.mubr.f32.gmra.mxu0 %v9099
  %v9211 = vpop.f32.mrf.mxu0
  %v9212 = vadd.f32 0.0, %v9211
  %v9213 = vpop.f32.mrf.mxu0
  %9214 = vmatprep.mubr.f32.mxu0 0.0
  %9215 = vmatmul.mubr.f32.gmra.mxu0 %v9102
  %v9216 = vpop.f32.mrf.mxu0
  %v9217 = vadd.f32 0.0, %v9216
  %v9218 = vpop.f32.mrf.mxu0
  %9219 = vmatprep.mubr.f32.mxu0 0.0
  %9220 = vmatmul.mubr.f32.gmra.mxu0 %v9105
  %v9221 = vpop.f32.mrf.mxu0
  %v9222 = vadd.f32 0.0, %v9221
  %v9223 = vpop.f32.mrf.mxu0
  %9224 = vmatprep.mubr.f32.mxu0 0.0
  %9225 = vmatmul.mubr.f32.gmra.mxu0 %v9108
  %v9226 = vpop.f32.mrf.mxu0
  %v9227 = vadd.f32 0.0, %v9226
  %v9228 = vpop.f32.mrf.mxu0
  %9229 = vmatprep.mubr.f32.mxu0 0.0
  %9230 = vmatmul.mubr.f32.gmra.mxu0 %v9111
  %v9231 = vpop.f32.mrf.mxu0
  %v9232 = vadd.f32 0.0, %v9231
  %v9233 = vpop.f32.mrf.mxu0
  %9234 = vmatprep.mubr.f32.mxu0 0.0
  %9235 = vmatmul.mubr.f32.gmra.mxu0 %v9114
  %v9236 = vpop.f32.mrf.mxu0
  %v9237 = vadd.f32 0.0, %v9236
  %v9238 = vpop.f32.mrf.mxu0
  %9239 = vmatprep.mubr.f32.mxu0 0.0
  %9240 = vmatmul.mubr.f32.gmra.mxu0 %v9117
  %v9241 = vpop.f32.mrf.mxu0
  %v9242 = vadd.f32 0.0, %v9241
  %v9243 = vpop.f32.mrf.mxu0
  %9244 = vmatprep.mubr.f32.mxu0 0.0
  %9245 = vmatmul.mubr.f32.gmra.mxu0 %v9120
  %v9246 = vpop.f32.mrf.mxu0
  %v9247 = vadd.f32 0.0, %v9246
  %v9248 = vpop.f32.mrf.mxu0
  %9249 = vmatprep.mubr.f32.mxu0 0.0
  %9250 = vmatmul.mubr.f32.gmra.mxu0 %v9123
  %v9251 = vpop.f32.mrf.mxu0
  %v9252 = vadd.f32 0.0, %v9251
  %v9253 = vpop.f32.mrf.mxu0
  %9254 = vmatprep.mubr.f32.mxu0 0.0
  %9255 = vmatmul.mubr.f32.gmra.mxu0 %v9126
  %v9256 = vpop.f32.mrf.mxu0
  %v9257 = vadd.f32 0.0, %v9256
  %v9258 = vpop.f32.mrf.mxu0
  %9259 = vmatprep.mubr.f32.mxu0 0.0
  %9260 = vmatmul.mubr.f32.gmra.mxu0 %v9129
  %v9261 = vpop.f32.mrf.mxu0
  %v9262 = vadd.f32 0.0, %v9261
  %v9263 = vpop.f32.mrf.mxu0
  %9264 = vmatprep.mubr.f32.mxu0 0.0
  %9265 = vmatmul.mubr.f32.gmra.mxu0 %v9132
  %v9266 = vpop.f32.mrf.mxu0
  %v9267 = vadd.f32 0.0, %v9266
  %v9268 = vpop.f32.mrf.mxu0
  %9269 = vmatprep.mubr.f32.mxu0 0.0
  %9270 = vmatmul.mubr.f32.gmra.mxu0 %v9135
  %v9271 = vpop.f32.mrf.mxu0
  %v9272 = vadd.f32 0.0, %v9271
  %v9273 = vpop.f32.mrf.mxu0
  %9274 = vmatprep.mubr.f32.mxu0 0.0
  %9275 = vmatmul.mubr.f32.gmra.mxu0 %v9138
  %v9276 = vpop.f32.mrf.mxu0
  %v9277 = vadd.f32 0.0, %v9276
  %v9278 = vpop.f32.mrf.mxu0
  %9279 = vdwg.mxu0
  %v9280 = vadd.f32 %v8662, %v9207
  %v9281 = vadd.f32 %v8663, %v9212
  %v9282 = vadd.f32 %v8664, %v9217
  %v9283 = vadd.f32 %v8665, %v9222
  %v9284 = vadd.f32 %v8666, %v9227
  %v9285 = vadd.f32 %v8667, %v9232
  %v9286 = vadd.f32 %v8668, %v9237
  %v9287 = vadd.f32 %v8669, %v9242
  %v9288 = vadd.f32 %v8670, %v9247
  %v9289 = vadd.f32 %v8671, %v9252
  %v9290 = vadd.f32 %v8672, %v9257
  %v9291 = vadd.f32 %v8673, %v9262
  %v9292 = vadd.f32 %v8674, %v9267
  %v9293 = vadd.f32 %v8675, %v9272
  %v9294 = vadd.f32 %v8676, %v9277
  %s9295 = scalar_lea.vmem %s0, 9120
  %v9296 = vld [vmem:[%s9295] sm:$0xff]
  %v9297 = vld [vmem:[%s9295 + $0x8] sm:$0xff]
  %v9298 = vld [vmem:[%s9295 + $0x10] sm:$0xff]
  %v9299 = vld [vmem:[%s9295 + $0x18] sm:$0xff]
  %v9300 = vld [vmem:[%s9295 + $0x20] sm:$0xff]
  %v9301 = vld [vmem:[%s9295 + $0x28] sm:$0xff]
  %v9302 = vld [vmem:[%s9295 + $0x30] sm:$0xff]
  %v9303 = vld [vmem:[%s9295 + $0x38] sm:$0xff]
  %v9304 = vld [vmem:[%s9295 + $0x40] sm:$0xff]
  %v9305 = vld [vmem:[%s9295 + $0x48] sm:$0xff]
  %v9306 = vld [vmem:[%s9295 + $0x50] sm:$0xff]
  %v9307 = vld [vmem:[%s9295 + $0x58] sm:$0xff]
  %v9308 = vld [vmem:[%s9295 + $0x60] sm:$0xff]
  %v9309 = vld [vmem:[%s9295 + $0x68] sm:$0xff]
  %v9310 = vld [vmem:[%s9295 + $0x70] sm:$0xff]
  %v9311 = vld [vmem:[%s9295 + $0x78] sm:$0xff]
  %v9312 = vld [vmem:[%s9295 + $0x80] sm:$0xff]
  %v9313 = vld [vmem:[%s9295 + $0x88] sm:$0xff]
  %v9314 = vld [vmem:[%s9295 + $0x90] sm:$0x3f]
  %v9316 = vsel %vm64, %v9314, 0
  %9318 = vmatprep.subr.mxu0 0.0
  %9319 = vmatpush1.msra.mxu0 %v9311
  %9320 = vmatprep.subr.mxu0 0.0
  %9321 = vmatpush1.msra.mxu0 %v9310
  %9322 = vmatprep.subr.mxu0 0.0
  %9323 = vmatpush1.msra.mxu0 %v9309
  %9324 = vmatprep.subr.mxu0 0.0
  %9325 = vmatpush1.msra.mxu0 %v9308
  %9326 = vmatprep.subr.mxu0 0.0
  %9327 = vmatpush1.msra.mxu0 %v9307
  %9328 = vmatprep.subr.mxu0 0.0
  %9329 = vmatpush1.msra.mxu0 %v9306
  %9330 = vmatprep.subr.mxu0 0.0
  %9331 = vmatpush1.msra.mxu0 %v9305
  %9332 = vmatprep.subr.mxu0 0.0
  %9333 = vmatpush1.msra.mxu0 %v9304
  %9334 = vmatprep.subr.mxu0 0.0
  %9335 = vmatpush1.msra.mxu0 %v9303
  %9336 = vmatprep.subr.mxu0 0.0
  %9337 = vmatpush1.msra.mxu0 %v9302
  %9338 = vmatprep.subr.mxu0 0.0
  %9339 = vmatpush1.msra.mxu0 %v9301
  %9340 = vmatprep.subr.mxu0 0.0
  %9341 = vmatpush1.msra.mxu0 %v9300
  %9342 = vmatprep.subr.mxu0 0.0
  %9343 = vmatpush1.msra.mxu0 %v9299
  %9344 = vmatprep.subr.mxu0 0.0
  %9345 = vmatpush1.msra.mxu0 %v9298
  %9346 = vmatprep.subr.mxu0 0.0
  %9347 = vmatpush1.msra.mxu0 %v9297
  %9348 = vmatprep.subr.mxu0 0.0
  %9349 = vmatpush1.msra.mxu0 %v9296
  %9350 = vmatprep.subr.mxu0 0.0
  %9351 = vmatpush2.msra.mxu0 0.0
  %9352 = vmatprep.subr.mxu0 0.0
  %9353 = vmatpush2.msra.mxu0 0.0
  %9354 = vmatprep.subr.mxu0 0.0
  %9355 = vmatpush2.msra.mxu0 0.0
  %9356 = vmatprep.subr.mxu0 0.0
  %9357 = vmatpush2.msra.mxu0 0.0
  %9358 = vmatprep.subr.mxu0 0.0
  %9359 = vmatpush2.msra.mxu0 0.0
  %9360 = vmatprep.subr.mxu0 0.0
  %9361 = vmatpush2.msra.mxu0 0.0
  %9362 = vmatprep.subr.mxu0 0.0
  %9363 = vmatpush2.msra.mxu0 0.0
  %9364 = vmatprep.subr.mxu0 0.0
  %9365 = vmatpush2.msra.mxu0 0.0
  %9366 = vmatprep.subr.mxu0 0.0
  %9367 = vmatpush2.msra.mxu0 0.0
  %9368 = vmatprep.subr.mxu0 0.0
  %9369 = vmatpush2.msra.mxu0 0.0
  %9370 = vmatprep.subr.mxu0 0.0
  %9371 = vmatpush2.msra.mxu0 0.0
  %9372 = vmatprep.subr.mxu0 0.0
  %9373 = vmatpush2.msra.mxu0 0.0
  %9374 = vmatprep.subr.mxu0 0.0
  %9375 = vmatpush2.msra.mxu0 0.0
  %9376 = vmatprep.subr.mxu0 0.0
  %9377 = vmatpush2.msra.mxu0 %v9316
  %9378 = vmatprep.subr.mxu0 0.0
  %9379 = vmatpush2.msra.mxu0 %v9313
  %9380 = vmatprep.subr.mxu0 0.0
  %9381 = vmatpush2.msra.mxu0 %v9312
  %9382 = vmatprep.mubr.f32.mxu0 %v59
  %9383 = vmatmul.mubr.f32.gmra.mxu0 %v32
  %v9384 = vpop.f32.mrf.mxu0
  %v9385 = vadd.f32 0.0, %v9384
  %v9386 = vpop.f32.mrf.mxu0
  %9387 = vmatprep.mubr.f32.mxu0 %v62
  %9388 = vmatmul.mubr.f32.gmra.mxu0 %v34
  %v9389 = vpop.f32.mrf.mxu0
  %v9390 = vadd.f32 0.0, %v9389
  %v9391 = vpop.f32.mrf.mxu0
  %9392 = vdwg.mxu0
  %s9393 = scalar_lea.vmem %s0, 9272
  %v9394 = vld [vmem:[%s9393] sm:$0xff]
  %v9395 = vld [vmem:[%s9393 + $0x8] sm:$0xff]
  %v9396 = vld [vmem:[%s9393 + $0x10] sm:$0xff]
  %v9397 = vld [vmem:[%s9393 + $0x18] sm:$0xff]
  %v9398 = vld [vmem:[%s9393 + $0x20] sm:$0xff]
  %v9399 = vld [vmem:[%s9393 + $0x28] sm:$0xff]
  %v9400 = vld [vmem:[%s9393 + $0x30] sm:$0xff]
  %v9401 = vld [vmem:[%s9393 + $0x38] sm:$0xff]
  %v9402 = vld [vmem:[%s9393 + $0x40] sm:$0xff]
  %v9403 = vld [vmem:[%s9393 + $0x48] sm:$0xff]
  %v9404 = vld [vmem:[%s9393 + $0x50] sm:$0xff]
  %v9405 = vld [vmem:[%s9393 + $0x58] sm:$0xff]
  %v9406 = vld [vmem:[%s9393 + $0x60] sm:$0xff]
  %v9407 = vld [vmem:[%s9393 + $0x68] sm:$0xff]
  %v9408 = vld [vmem:[%s9393 + $0x70] sm:$0xff]
  %v9409 = vld [vmem:[%s9393 + $0x78] sm:$0xff]
  %v9410 = vld [vmem:[%s9393 + $0x80] sm:$0xff]
  %v9411 = vld [vmem:[%s9393 + $0x88] sm:$0xff]
  %v9412 = vld [vmem:[%s9393 + $0x90] sm:$0x3f]
  %v9414 = vsel %vm64, %v9412, 0
  %9416 = vmatprep.subr.mxu0 0.0
  %9417 = vmatpush1.msra.mxu0 %v9409
  %9418 = vmatprep.subr.mxu0 0.0
  %9419 = vmatpush1.msra.mxu0 %v9408
  %9420 = vmatprep.subr.mxu0 0.0
  %9421 = vmatpush1.msra.mxu0 %v9407
  %9422 = vmatprep.subr.mxu0 0.0
  %9423 = vmatpush1.msra.mxu0 %v9406
  %9424 = vmatprep.subr.mxu0 0.0
  %9425 = vmatpush1.msra.mxu0 %v9405
  %9426 = vmatprep.subr.mxu0 0.0
  %9427 = vmatpush1.msra.mxu0 %v9404
  %9428 = vmatprep.subr.mxu0 0.0
  %9429 = vmatpush1.msra.mxu0 %v9403
  %9430 = vmatprep.subr.mxu0 0.0
  %9431 = vmatpush1.msra.mxu0 %v9402
  %9432 = vmatprep.subr.mxu0 0.0
  %9433 = vmatpush1.msra.mxu0 %v9401
  %9434 = vmatprep.subr.mxu0 0.0
  %9435 = vmatpush1.msra.mxu0 %v9400
  %9436 = vmatprep.subr.mxu0 0.0
  %9437 = vmatpush1.msra.mxu0 %v9399
  %9438 = vmatprep.subr.mxu0 0.0
  %9439 = vmatpush1.msra.mxu0 %v9398
  %9440 = vmatprep.subr.mxu0 0.0
  %9441 = vmatpush1.msra.mxu0 %v9397
  %9442 = vmatprep.subr.mxu0 0.0
  %9443 = vmatpush1.msra.mxu0 %v9396
  %9444 = vmatprep.subr.mxu0 0.0
  %9445 = vmatpush1.msra.mxu0 %v9395
  %9446 = vmatprep.subr.mxu0 0.0
  %9447 = vmatpush1.msra.mxu0 %v9394
  %9448 = vmatprep.subr.mxu0 0.0
  %9449 = vmatpush2.msra.mxu0 0.0
  %9450 = vmatprep.subr.mxu0 0.0
  %9451 = vmatpush2.msra.mxu0 0.0
  %9452 = vmatprep.subr.mxu0 0.0
  %9453 = vmatpush2.msra.mxu0 0.0
  %9454 = vmatprep.subr.mxu0 0.0
  %9455 = vmatpush2.msra.mxu0 0.0
  %9456 = vmatprep.subr.mxu0 0.0
  %9457 = vmatpush2.msra.mxu0 0.0
  %9458 = vmatprep.subr.mxu0 0.0
  %9459 = vmatpush2.msra.mxu0 0.0
  %9460 = vmatprep.subr.mxu0 0.0
  %9461 = vmatpush2.msra.mxu0 0.0
  %9462 = vmatprep.subr.mxu0 0.0
  %9463 = vmatpush2.msra.mxu0 0.0
  %9464 = vmatprep.subr.mxu0 0.0
  %9465 = vmatpush2.msra.mxu0 0.0
  %9466 = vmatprep.subr.mxu0 0.0
  %9467 = vmatpush2.msra.mxu0 0.0
  %9468 = vmatprep.subr.mxu0 0.0
  %9469 = vmatpush2.msra.mxu0 0.0
  %9470 = vmatprep.subr.mxu0 0.0
  %9471 = vmatpush2.msra.mxu0 0.0
  %9472 = vmatprep.subr.mxu0 0.0
  %9473 = vmatpush2.msra.mxu0 0.0
  %9474 = vmatprep.subr.mxu0 0.0
  %9475 = vmatpush2.msra.mxu0 %v9414
  %9476 = vmatprep.subr.mxu0 0.0
  %9477 = vmatpush2.msra.mxu0 %v9411
  %9478 = vmatprep.subr.mxu0 0.0
  %9479 = vmatpush2.msra.mxu0 %v9410
  %9480 = vmatprep.mubr.f32.mxu0 %v59
  %9481 = vmatmul.mubr.f32.gmra.mxu0 %v32
  %v9482 = vpop.f32.mrf.mxu0
  %v9483 = vadd.f32 0.0, %v9482
  %v9484 = vpop.f32.mrf.mxu0
  %9485 = vmatprep.mubr.f32.mxu0 %v62
  %9486 = vmatmul.mubr.f32.gmra.mxu0 %v34
  %v9487 = vpop.f32.mrf.mxu0
  %v9488 = vadd.f32 0.0, %v9487
  %v9489 = vpop.f32.mrf.mxu0
  %9490 = vdwg.mxu0
  %v9491 = vmax.f32 %v9385, %v9483
  %v9492 = vmax.f32 %v9390, %v9488
  %s9493 = scalar_lea.vmem %s0, 9424
  %v9494 = vld [vmem:[%s9493] sm:$0xff]
  %v9495 = vld [vmem:[%s9493 + $0x8] sm:$0xff]
  %v9496 = vld [vmem:[%s9493 + $0x10] sm:$0xff]
  %v9497 = vld [vmem:[%s9493 + $0x18] sm:$0xff]
  %v9498 = vld [vmem:[%s9493 + $0x20] sm:$0xff]
  %v9499 = vld [vmem:[%s9493 + $0x28] sm:$0xff]
  %v9500 = vld [vmem:[%s9493 + $0x30] sm:$0xff]
  %v9501 = vld [vmem:[%s9493 + $0x38] sm:$0xff]
  %v9502 = vld [vmem:[%s9493 + $0x40] sm:$0xff]
  %v9503 = vld [vmem:[%s9493 + $0x48] sm:$0xff]
  %v9504 = vld [vmem:[%s9493 + $0x50] sm:$0xff]
  %v9505 = vld [vmem:[%s9493 + $0x58] sm:$0xff]
  %v9506 = vld [vmem:[%s9493 + $0x60] sm:$0xff]
  %v9507 = vld [vmem:[%s9493 + $0x68] sm:$0xff]
  %v9508 = vld [vmem:[%s9493 + $0x70] sm:$0xff]
  %v9509 = vld [vmem:[%s9493 + $0x78] sm:$0xff]
  %v9510 = vld [vmem:[%s9493 + $0x80] sm:$0xff]
  %v9511 = vld [vmem:[%s9493 + $0x88] sm:$0xff]
  %v9512 = vld [vmem:[%s9493 + $0x90] sm:$0x3f]
  %v9514 = vsel %vm64, %v9512, 0
  %9516 = vmatprep.subr.mxu0 0.0
  %9517 = vmatpush1.msra.mxu0 %v9509
  %9518 = vmatprep.subr.mxu0 0.0
  %9519 = vmatpush1.msra.mxu0 %v9508
  %9520 = vmatprep.subr.mxu0 0.0
  %9521 = vmatpush1.msra.mxu0 %v9507
  %9522 = vmatprep.subr.mxu0 0.0
  %9523 = vmatpush1.msra.mxu0 %v9506
  %9524 = vmatprep.subr.mxu0 0.0
  %9525 = vmatpush1.msra.mxu0 %v9505
  %9526 = vmatprep.subr.mxu0 0.0
  %9527 = vmatpush1.msra.mxu0 %v9504
  %9528 = vmatprep.subr.mxu0 0.0
  %9529 = vmatpush1.msra.mxu0 %v9503
  %9530 = vmatprep.subr.mxu0 0.0
  %9531 = vmatpush1.msra.mxu0 %v9502
  %9532 = vmatprep.subr.mxu0 0.0
  %9533 = vmatpush1.msra.mxu0 %v9501
  %9534 = vmatprep.subr.mxu0 0.0
  %9535 = vmatpush1.msra.mxu0 %v9500
  %9536 = vmatprep.subr.mxu0 0.0
  %9537 = vmatpush1.msra.mxu0 %v9499
  %9538 = vmatprep.subr.mxu0 0.0
  %9539 = vmatpush1.msra.mxu0 %v9498
  %9540 = vmatprep.subr.mxu0 0.0
  %9541 = vmatpush1.msra.mxu0 %v9497
  %9542 = vmatprep.subr.mxu0 0.0
  %9543 = vmatpush1.msra.mxu0 %v9496
  %9544 = vmatprep.subr.mxu0 0.0
  %9545 = vmatpush1.msra.mxu0 %v9495
  %9546 = vmatprep.subr.mxu0 0.0
  %9547 = vmatpush1.msra.mxu0 %v9494
  %9548 = vmatprep.subr.mxu0 0.0
  %9549 = vmatpush2.msra.mxu0 0.0
  %9550 = vmatprep.subr.mxu0 0.0
  %9551 = vmatpush2.msra.mxu0 0.0
  %9552 = vmatprep.subr.mxu0 0.0
  %9553 = vmatpush2.msra.mxu0 0.0
  %9554 = vmatprep.subr.mxu0 0.0
  %9555 = vmatpush2.msra.mxu0 0.0
  %9556 = vmatprep.subr.mxu0 0.0
  %9557 = vmatpush2.msra.mxu0 0.0
  %9558 = vmatprep.subr.mxu0 0.0
  %9559 = vmatpush2.msra.mxu0 0.0
  %9560 = vmatprep.subr.mxu0 0.0
  %9561 = vmatpush2.msra.mxu0 0.0
  %9562 = vmatprep.subr.mxu0 0.0
  %9563 = vmatpush2.msra.mxu0 0.0
  %9564 = vmatprep.subr.mxu0 0.0
  %9565 = vmatpush2.msra.mxu0 0.0
  %9566 = vmatprep.subr.mxu0 0.0
  %9567 = vmatpush2.msra.mxu0 0.0
  %9568 = vmatprep.subr.mxu0 0.0
  %9569 = vmatpush2.msra.mxu0 0.0
  %9570 = vmatprep.subr.mxu0 0.0
  %9571 = vmatpush2.msra.mxu0 0.0
  %9572 = vmatprep.subr.mxu0 0.0
  %9573 = vmatpush2.msra.mxu0 0.0
  %9574 = vmatprep.subr.mxu0 0.0
  %9575 = vmatpush2.msra.mxu0 %v9514
  %9576 = vmatprep.subr.mxu0 0.0
  %9577 = vmatpush2.msra.mxu0 %v9511
  %9578 = vmatprep.subr.mxu0 0.0
  %9579 = vmatpush2.msra.mxu0 %v9510
  %9580 = vmatprep.mubr.f32.mxu0 %v59
  %9581 = vmatmul.mubr.f32.gmra.mxu0 %v32
  %v9582 = vpop.f32.mrf.mxu0
  %v9583 = vadd.f32 0.0, %v9582
  %v9584 = vpop.f32.mrf.mxu0
  %9585 = vmatprep.mubr.f32.mxu0 %v62
  %9586 = vmatmul.mubr.f32.gmra.mxu0 %v34
  %v9587 = vpop.f32.mrf.mxu0
  %v9588 = vadd.f32 0.0, %v9587
  %v9589 = vpop.f32.mrf.mxu0
  %9590 = vdwg.mxu0
  %v9591 = vmax.f32 %v9491, %v9583
  %v9592 = vmax.f32 %v9492, %v9588
  %s9593 = scalar_lea.vmem %s0, 9576
  %v9594 = vld [vmem:[%s9593] sm:$0xff]
  %v9595 = vld [vmem:[%s9593 + $0x8] sm:$0xff]
  %v9596 = vld [vmem:[%s9593 + $0x10] sm:$0xff]
  %v9597 = vld [vmem:[%s9593 + $0x18] sm:$0xff]
  %v9598 = vld [vmem:[%s9593 + $0x20] sm:$0xff]
  %v9599 = vld [vmem:[%s9593 + $0x28] sm:$0xff]
  %v9600 = vld [vmem:[%s9593 + $0x30] sm:$0xff]
  %v9601 = vld [vmem:[%s9593 + $0x38] sm:$0xff]
  %v9602 = vld [vmem:[%s9593 + $0x40] sm:$0xff]
  %v9603 = vld [vmem:[%s9593 + $0x48] sm:$0xff]
  %v9604 = vld [vmem:[%s9593 + $0x50] sm:$0xff]
  %v9605 = vld [vmem:[%s9593 + $0x58] sm:$0xff]
  %v9606 = vld [vmem:[%s9593 + $0x60] sm:$0xff]
  %v9607 = vld [vmem:[%s9593 + $0x68] sm:$0xff]
  %v9608 = vld [vmem:[%s9593 + $0x70] sm:$0xff]
  %v9609 = vld [vmem:[%s9593 + $0x78] sm:$0xff]
  %v9610 = vld [vmem:[%s9593 + $0x80] sm:$0xff]
  %v9611 = vld [vmem:[%s9593 + $0x88] sm:$0xff]
  %v9612 = vld [vmem:[%s9593 + $0x90] sm:$0x3f]
  %v9614 = vsel %vm64, %v9612, 0
  %9616 = vmatprep.subr.mxu0 0.0
  %9617 = vmatpush1.msra.mxu0 %v9609
  %9618 = vmatprep.subr.mxu0 0.0
  %9619 = vmatpush1.msra.mxu0 %v9608
  %9620 = vmatprep.subr.mxu0 0.0
  %9621 = vmatpush1.msra.mxu0 %v9607
  %9622 = vmatprep.subr.mxu0 0.0
  %9623 = vmatpush1.msra.mxu0 %v9606
  %9624 = vmatprep.subr.mxu0 0.0
  %9625 = vmatpush1.msra.mxu0 %v9605
  %9626 = vmatprep.subr.mxu0 0.0
  %9627 = vmatpush1.msra.mxu0 %v9604
  %9628 = vmatprep.subr.mxu0 0.0
  %9629 = vmatpush1.msra.mxu0 %v9603
  %9630 = vmatprep.subr.mxu0 0.0
  %9631 = vmatpush1.msra.mxu0 %v9602
  %9632 = vmatprep.subr.mxu0 0.0
  %9633 = vmatpush1.msra.mxu0 %v9601
  %9634 = vmatprep.subr.mxu0 0.0
  %9635 = vmatpush1.msra.mxu0 %v9600
  %9636 = vmatprep.subr.mxu0 0.0
  %9637 = vmatpush1.msra.mxu0 %v9599
  %9638 = vmatprep.subr.mxu0 0.0
  %9639 = vmatpush1.msra.mxu0 %v9598
  %9640 = vmatprep.subr.mxu0 0.0
  %9641 = vmatpush1.msra.mxu0 %v9597
  %9642 = vmatprep.subr.mxu0 0.0
  %9643 = vmatpush1.msra.mxu0 %v9596
  %9644 = vmatprep.subr.mxu0 0.0
  %9645 = vmatpush1.msra.mxu0 %v9595
  %9646 = vmatprep.subr.mxu0 0.0
  %9647 = vmatpush1.msra.mxu0 %v9594
  %9648 = vmatprep.subr.mxu0 0.0
  %9649 = vmatpush2.msra.mxu0 0.0
  %9650 = vmatprep.subr.mxu0 0.0
  %9651 = vmatpush2.msra.mxu0 0.0
  %9652 = vmatprep.subr.mxu0 0.0
  %9653 = vmatpush2.msra.mxu0 0.0
  %9654 = vmatprep.subr.mxu0 0.0
  %9655 = vmatpush2.msra.mxu0 0.0
  %9656 = vmatprep.subr.mxu0 0.0
  %9657 = vmatpush2.msra.mxu0 0.0
  %9658 = vmatprep.subr.mxu0 0.0
  %9659 = vmatpush2.msra.mxu0 0.0
  %9660 = vmatprep.subr.mxu0 0.0
  %9661 = vmatpush2.msra.mxu0 0.0
  %9662 = vmatprep.subr.mxu0 0.0
  %9663 = vmatpush2.msra.mxu0 0.0
  %9664 = vmatprep.subr.mxu0 0.0
  %9665 = vmatpush2.msra.mxu0 0.0
  %9666 = vmatprep.subr.mxu0 0.0
  %9667 = vmatpush2.msra.mxu0 0.0
  %9668 = vmatprep.subr.mxu0 0.0
  %9669 = vmatpush2.msra.mxu0 0.0
  %9670 = vmatprep.subr.mxu0 0.0
  %9671 = vmatpush2.msra.mxu0 0.0
  %9672 = vmatprep.subr.mxu0 0.0
  %9673 = vmatpush2.msra.mxu0 0.0
  %9674 = vmatprep.subr.mxu0 0.0
  %9675 = vmatpush2.msra.mxu0 %v9614
  %9676 = vmatprep.subr.mxu0 0.0
  %9677 = vmatpush2.msra.mxu0 %v9611
  %9678 = vmatprep.subr.mxu0 0.0
  %9679 = vmatpush2.msra.mxu0 %v9610
  %9680 = vmatprep.mubr.f32.mxu0 %v59
  %9681 = vmatmul.mubr.f32.gmra.mxu0 %v32
  %v9682 = vpop.f32.mrf.mxu0
  %v9683 = vadd.f32 0.0, %v9682
  %v9684 = vpop.f32.mrf.mxu0
  %9685 = vmatprep.mubr.f32.mxu0 %v62
  %9686 = vmatmul.mubr.f32.gmra.mxu0 %v34
  %v9687 = vpop.f32.mrf.mxu0
  %v9688 = vadd.f32 0.0, %v9687
  %v9689 = vpop.f32.mrf.mxu0
  %9690 = vdwg.mxu0
  %v9691 = vmax.f32 %v9591, %v9683
  %v9692 = vmax.f32 %v9592, %v9688
  %v9693 = vadd.f32 %v9691, %v446
  %v9694 = vadd.f32 %v9692, %v451
  %v9695 = vmax.f32 %v9693, 0.0
  %v9696 = vmax.f32 %v9694, 0.0
  %s9697 = scalar_lea.vmem %s3, 1800
  %v9698 = vld [vmem:[%s9697] sm:$0xff]
  %v9699 = vld [vmem:[%s9697 + $0x8] sm:$0xff]
  %v9700 = vld [vmem:[%s9697 + $0x10] sm:$0xff]
  %v9701 = vld [vmem:[%s9697 + $0x18] sm:$0xff]
  %v9702 = vld [vmem:[%s9697 + $0x20] sm:$0xff]
  %v9703 = vld [vmem:[%s9697 + $0x28] sm:$0xff]
  %v9704 = vld [vmem:[%s9697 + $0x30] sm:$0xff]
  %v9705 = vld [vmem:[%s9697 + $0x38] sm:$0xff]
  %v9706 = vld [vmem:[%s9697 + $0x40] sm:$0xff]
  %v9707 = vld [vmem:[%s9697 + $0x48] sm:$0xff]
  %v9708 = vld [vmem:[%s9697 + $0x50] sm:$0xff]
  %v9709 = vld [vmem:[%s9697 + $0x58] sm:$0xff]
  %v9710 = vld [vmem:[%s9697 + $0x60] sm:$0xff]
  %v9711 = vld [vmem:[%s9697 + $0x68] sm:$0xff]
  %v9712 = vld [vmem:[%s9697 + $0x70] sm:$0xff]
  %v9714 = vsel %vm890, %v9698, 0
  %v9717 = vsel %vm890, %v9699, 0
  %v9720 = vsel %vm890, %v9700, 0
  %v9723 = vsel %vm890, %v9701, 0
  %v9726 = vsel %vm890, %v9702, 0
  %v9729 = vsel %vm890, %v9703, 0
  %v9732 = vsel %vm890, %v9704, 0
  %v9735 = vsel %vm890, %v9705, 0
  %v9738 = vsel %vm890, %v9706, 0
  %v9741 = vsel %vm890, %v9707, 0
  %v9744 = vsel %vm890, %v9708, 0
  %v9747 = vsel %vm890, %v9709, 0
  %v9750 = vsel %vm890, %v9710, 0
  %v9753 = vsel %vm890, %v9711, 0
  %v9756 = vsel %vm890, %v9712, 0
  %9758 = vmatprep.subr.mxu0 0.0
  %9759 = vmatpush1.msra.mxu0 0.0
  %9760 = vmatprep.subr.mxu0 0.0
  %9761 = vmatpush1.msra.mxu0 0.0
  %9762 = vmatprep.subr.mxu0 0.0
  %9763 = vmatpush1.msra.mxu0 0.0
  %9764 = vmatprep.subr.mxu0 0.0
  %9765 = vmatpush1.msra.mxu0 0.0
  %9766 = vmatprep.subr.mxu0 0.0
  %9767 = vmatpush1.msra.mxu0 0.0
  %9768 = vmatprep.subr.mxu0 0.0
  %9769 = vmatpush1.msra.mxu0 0.0
  %9770 = vmatprep.subr.mxu0 0.0
  %9771 = vmatpush1.msra.mxu0 0.0
  %9772 = vmatprep.subr.mxu0 0.0
  %9773 = vmatpush1.msra.mxu0 0.0
  %9774 = vmatprep.subr.mxu0 0.0
  %9775 = vmatpush1.msra.mxu0 0.0
  %9776 = vmatprep.subr.mxu0 0.0
  %9777 = vmatpush1.msra.mxu0 0.0
  %9778 = vmatprep.subr.mxu0 0.0
  %9779 = vmatpush1.msra.mxu0 0.0
  %9780 = vmatprep.subr.mxu0 0.0
  %9781 = vmatpush1.msra.mxu0 0.0
  %9782 = vmatprep.subr.mxu0 0.0
  %9783 = vmatpush1.msra.mxu0 0.0
  %9784 = vmatprep.subr.mxu0 0.0
  %9785 = vmatpush1.msra.mxu0 0.0
  %9786 = vmatprep.subr.mxu0 0.0
  %9787 = vmatpush1.msra.mxu0 %v9696
  %9788 = vmatprep.subr.mxu0 0.0
  %9789 = vmatpush1.msra.mxu0 %v9695
  %9790 = vmatprep.subr.mxu0 0.0
  %9791 = vmatpush2.msra.mxu0 0.0
  %9792 = vmatprep.subr.mxu0 0.0
  %9793 = vmatpush2.msra.mxu0 0.0
  %9794 = vmatprep.subr.mxu0 0.0
  %9795 = vmatpush2.msra.mxu0 0.0
  %9796 = vmatprep.subr.mxu0 0.0
  %9797 = vmatpush2.msra.mxu0 0.0
  %9798 = vmatprep.subr.mxu0 0.0
  %9799 = vmatpush2.msra.mxu0 0.0
  %9800 = vmatprep.subr.mxu0 0.0
  %9801 = vmatpush2.msra.mxu0 0.0
  %9802 = vmatprep.subr.mxu0 0.0
  %9803 = vmatpush2.msra.mxu0 0.0
  %9804 = vmatprep.subr.mxu0 0.0
  %9805 = vmatpush2.msra.mxu0 0.0
  %9806 = vmatprep.subr.mxu0 0.0
  %9807 = vmatpush2.msra.mxu0 0.0
  %9808 = vmatprep.subr.mxu0 0.0
  %9809 = vmatpush2.msra.mxu0 0.0
  %9810 = vmatprep.subr.mxu0 0.0
  %9811 = vmatpush2.msra.mxu0 0.0
  %9812 = vmatprep.subr.mxu0 0.0
  %9813 = vmatpush2.msra.mxu0 0.0
  %9814 = vmatprep.subr.mxu0 0.0
  %9815 = vmatpush2.msra.mxu0 0.0
  %9816 = vmatprep.subr.mxu0 0.0
  %9817 = vmatpush2.msra.mxu0 0.0
  %9818 = vmatprep.subr.mxu0 0.0
  %9819 = vmatpush2.msra.mxu0 0.0
  %9820 = vmatprep.subr.mxu0 0.0
  %9821 = vmatpush2.msra.mxu0 0.0
  %9822 = vmatprep.mubr.f32.mxu0 0.0
  %9823 = vmatmul.mubr.f32.gmra.mxu0 %v9714
  %v9824 = vpop.f32.mrf.mxu0
  %v9825 = vadd.f32 0.0, %v9824
  %v9826 = vpop.f32.mrf.mxu0
  %9827 = vmatprep.mubr.f32.mxu0 0.0
  %9828 = vmatmul.mubr.f32.gmra.mxu0 %v9717
  %v9829 = vpop.f32.mrf.mxu0
  %v9830 = vadd.f32 0.0, %v9829
  %v9831 = vpop.f32.mrf.mxu0
  %9832 = vmatprep.mubr.f32.mxu0 0.0
  %9833 = vmatmul.mubr.f32.gmra.mxu0 %v9720
  %v9834 = vpop.f32.mrf.mxu0
  %v9835 = vadd.f32 0.0, %v9834
  %v9836 = vpop.f32.mrf.mxu0
  %9837 = vmatprep.mubr.f32.mxu0 0.0
  %9838 = vmatmul.mubr.f32.gmra.mxu0 %v9723
  %v9839 = vpop.f32.mrf.mxu0
  %v9840 = vadd.f32 0.0, %v9839
  %v9841 = vpop.f32.mrf.mxu0
  %9842 = vmatprep.mubr.f32.mxu0 0.0
  %9843 = vmatmul.mubr.f32.gmra.mxu0 %v9726
  %v9844 = vpop.f32.mrf.mxu0
  %v9845 = vadd.f32 0.0, %v9844
  %v9846 = vpop.f32.mrf.mxu0
  %9847 = vmatprep.mubr.f32.mxu0 0.0
  %9848 = vmatmul.mubr.f32.gmra.mxu0 %v9729
  %v9849 = vpop.f32.mrf.mxu0
  %v9850 = vadd.f32 0.0, %v9849
  %v9851 = vpop.f32.mrf.mxu0
  %9852 = vmatprep.mubr.f32.mxu0 0.0
  %9853 = vmatmul.mubr.f32.gmra.mxu0 %v9732
  %v9854 = vpop.f32.mrf.mxu0
  %v9855 = vadd.f32 0.0, %v9854
  %v9856 = vpop.f32.mrf.mxu0
  %9857 = vmatprep.mubr.f32.mxu0 0.0
  %9858 = vmatmul.mubr.f32.gmra.mxu0 %v9735
  %v9859 = vpop.f32.mrf.mxu0
  %v9860 = vadd.f32 0.0, %v9859
  %v9861 = vpop.f32.mrf.mxu0
  %9862 = vmatprep.mubr.f32.mxu0 0.0
  %9863 = vmatmul.mubr.f32.gmra.mxu0 %v9738
  %v9864 = vpop.f32.mrf.mxu0
  %v9865 = vadd.f32 0.0, %v9864
  %v9866 = vpop.f32.mrf.mxu0
  %9867 = vmatprep.mubr.f32.mxu0 0.0
  %9868 = vmatmul.mubr.f32.gmra.mxu0 %v9741
  %v9869 = vpop.f32.mrf.mxu0
  %v9870 = vadd.f32 0.0, %v9869
  %v9871 = vpop.f32.mrf.mxu0
  %9872 = vmatprep.mubr.f32.mxu0 0.0
  %9873 = vmatmul.mubr.f32.gmra.mxu0 %v9744
  %v9874 = vpop.f32.mrf.mxu0
  %v9875 = vadd.f32 0.0, %v9874
  %v9876 = vpop.f32.mrf.mxu0
  %9877 = vmatprep.mubr.f32.mxu0 0.0
  %9878 = vmatmul.mubr.f32.gmra.mxu0 %v9747
  %v9879 = vpop.f32.mrf.mxu0
  %v9880 = vadd.f32 0.0, %v9879
  %v9881 = vpop.f32.mrf.mxu0
  %9882 = vmatprep.mubr.f32.mxu0 0.0
  %9883 = vmatmul.mubr.f32.gmra.mxu0 %v9750
  %v9884 = vpop.f32.mrf.mxu0
  %v9885 = vadd.f32 0.0, %v9884
  %v9886 = vpop.f32.mrf.mxu0
  %9887 = vmatprep.mubr.f32.mxu0 0.0
  %9888 = vmatmul.mubr.f32.gmra.mxu0 %v9753
  %v9889 = vpop.f32.mrf.mxu0
  %v9890 = vadd.f32 0.0, %v9889
  %v9891 = vpop.f32.mrf.mxu0
  %9892 = vmatprep.mubr.f32.mxu0 0.0
  %9893 = vmatmul.mubr.f32.gmra.mxu0 %v9756
  %v9894 = vpop.f32.mrf.mxu0
  %v9895 = vadd.f32 0.0, %v9894
  %v9896 = vpop.f32.mrf.mxu0
  %9897 = vdwg.mxu0
  %v9898 = vadd.f32 %v9280, %v9825
  %v9899 = vadd.f32 %v9281, %v9830
  %v9900 = vadd.f32 %v9282, %v9835
  %v9901 = vadd.f32 %v9283, %v9840
  %v9902 = vadd.f32 %v9284, %v9845
  %v9903 = vadd.f32 %v9285, %v9850
  %v9904 = vadd.f32 %v9286, %v9855
  %v9905 = vadd.f32 %v9287, %v9860
  %v9906 = vadd.f32 %v9288, %v9865
  %v9907 = vadd.f32 %v9289, %v9870
  %v9908 = vadd.f32 %v9290, %v9875
  %v9909 = vadd.f32 %v9291, %v9880
  %v9910 = vadd.f32 %v9292, %v9885
  %v9911 = vadd.f32 %v9293, %v9890
  %v9912 = vadd.f32 %v9294, %v9895
  %v9913 = vld [vmem:[%s4] sm:$0xff]
  %v9914 = vld [vmem:[%s4 + $0x8] sm:$0xff]
  %v9915 = vld [vmem:[%s4 + $0x10] sm:$0xff]
  %v9916 = vld [vmem:[%s4 + $0x18] sm:$0xff]
  %v9917 = vld [vmem:[%s4 + $0x20] sm:$0xff]
  %v9918 = vld [vmem:[%s4 + $0x28] sm:$0xff]
  %v9919 = vld [vmem:[%s4 + $0x30] sm:$0xff]
  %v9920 = vld [vmem:[%s4 + $0x38] sm:$0xff]
  %v9921 = vld [vmem:[%s4 + $0x40] sm:$0xff]
  %v9922 = vld [vmem:[%s4 + $0x48] sm:$0xff]
  %v9923 = vld [vmem:[%s4 + $0x50] sm:$0xff]
  %v9924 = vld [vmem:[%s4 + $0x58] sm:$0xff]
  %v9925 = vld [vmem:[%s4 + $0x60] sm:$0xff]
  %v9926 = vld [vmem:[%s4 + $0x68] sm:$0xff]
  %v9927 = vld [vmem:[%s4 + $0x70] sm:$0xff]
  %9929 = vset.pattern.permute.xlu0 0
  %9930 = vperm.xlu0 %9929, %v9913
  %v9931 = vpop.permute.xlu0 %9930
  %9934 = vset.pattern.permute.xlu0 0
  %9935 = vperm.xlu0 %9934, %v9914
  %v9936 = vpop.permute.xlu0 %9935
  %9939 = vset.pattern.permute.xlu0 0
  %9940 = vperm.xlu0 %9939, %v9915
  %v9941 = vpop.permute.xlu0 %9940
  %9944 = vset.pattern.permute.xlu0 0
  %9945 = vperm.xlu0 %9944, %v9916
  %v9946 = vpop.permute.xlu0 %9945
  %9949 = vset.pattern.permute.xlu0 0
  %9950 = vperm.xlu0 %9949, %v9917
  %v9951 = vpop.permute.xlu0 %9950
  %9954 = vset.pattern.permute.xlu0 0
  %9955 = vperm.xlu0 %9954, %v9918
  %v9956 = vpop.permute.xlu0 %9955
  %9959 = vset.pattern.permute.xlu0 0
  %9960 = vperm.xlu0 %9959, %v9919
  %v9961 = vpop.permute.xlu0 %9960
  %9964 = vset.pattern.permute.xlu0 0
  %9965 = vperm.xlu0 %9964, %v9920
  %v9966 = vpop.permute.xlu0 %9965
  %9969 = vset.pattern.permute.xlu0 0
  %9970 = vperm.xlu0 %9969, %v9921
  %v9971 = vpop.permute.xlu0 %9970
  %9974 = vset.pattern.permute.xlu0 0
  %9975 = vperm.xlu0 %9974, %v9922
  %v9976 = vpop.permute.xlu0 %9975
  %9979 = vset.pattern.permute.xlu0 0
  %9980 = vperm.xlu0 %9979, %v9923
  %v9981 = vpop.permute.xlu0 %9980
  %9984 = vset.pattern.permute.xlu0 0
  %9985 = vperm.xlu0 %9984, %v9924
  %v9986 = vpop.permute.xlu0 %9985
  %9989 = vset.pattern.permute.xlu0 0
  %9990 = vperm.xlu0 %9989, %v9925
  %v9991 = vpop.permute.xlu0 %9990
  %9994 = vset.pattern.permute.xlu0 0
  %9995 = vperm.xlu0 %9994, %v9926
  %v9996 = vpop.permute.xlu0 %9995
  %9999 = vset.pattern.permute.xlu0 0
  %10000 = vperm.xlu0 %9999, %v9927
  %v10001 = vpop.permute.xlu0 %10000
  %v10003 = vadd.f32 %v9898, %v9931
  %v10004 = vadd.f32 %v9899, %v9936
  %v10005 = vadd.f32 %v9900, %v9941
  %v10006 = vadd.f32 %v9901, %v9946
  %v10007 = vadd.f32 %v9902, %v9951
  %v10008 = vadd.f32 %v9903, %v9956
  %v10009 = vadd.f32 %v9904, %v9961
  %v10010 = vadd.f32 %v9905, %v9966
  %v10011 = vadd.f32 %v9906, %v9971
  %v10012 = vadd.f32 %v9907, %v9976
  %v10013 = vadd.f32 %v9908, %v9981
  %v10014 = vadd.f32 %v9909, %v9986
  %v10015 = vadd.f32 %v9910, %v9991
  %v10016 = vadd.f32 %v9911, %v9996
  %v10017 = vadd.f32 %v9912, %v10001
  %v10018 = vmax.f32 %v10003, 0.0
  %v10019 = vmax.f32 %v10004, 0.0
  %v10020 = vmax.f32 %v10005, 0.0
  %v10021 = vmax.f32 %v10006, 0.0
  %v10022 = vmax.f32 %v10007, 0.0
  %v10023 = vmax.f32 %v10008, 0.0
  %v10024 = vmax.f32 %v10009, 0.0
  %v10025 = vmax.f32 %v10010, 0.0
  %v10026 = vmax.f32 %v10011, 0.0
  %v10027 = vmax.f32 %v10012, 0.0
  %v10028 = vmax.f32 %v10013, 0.0
  %v10029 = vmax.f32 %v10014, 0.0
  %v10030 = vmax.f32 %v10015, 0.0
  %v10031 = vmax.f32 %v10016, 0.0
  %v10032 = vmax.f32 %v10017, 0.0
  %v10033 = vld [vmem:[%s5] sm:$0xff]
  %v10034 = vld [vmem:[%s5 + $0x8] sm:$0xff]
  %v10035 = vld [vmem:[%s5 + $0x10] sm:$0xff]
  %v10036 = vld [vmem:[%s5 + $0x18] sm:$0xff]
  %v10037 = vld [vmem:[%s5 + $0x20] sm:$0xff]
  %v10038 = vld [vmem:[%s5 + $0x28] sm:$0xff]
  %v10039 = vld [vmem:[%s5 + $0x30] sm:$0xff]
  %v10040 = vld [vmem:[%s5 + $0x38] sm:$0xff]
  %v10041 = vld [vmem:[%s5 + $0x40] sm:$0xff]
  %v10042 = vld [vmem:[%s5 + $0x48] sm:$0xff]
  %v10043 = vld [vmem:[%s5 + $0x50] sm:$0xf]
  %v10044 = vld [vmem:[%s6] sm:$0xff]
  %v10045 = vld [vmem:[%s6 + $0x8] sm:$0xff]
  %v10046 = vld [vmem:[%s6 + $0x10] sm:$0xff]
  %v10047 = vld [vmem:[%s6 + $0x18] sm:$0xff]
  %v10048 = vld [vmem:[%s6 + $0x20] sm:$0xff]
  %v10049 = vld [vmem:[%s6 + $0x28] sm:$0xff]
  %v10050 = vld [vmem:[%s6 + $0x30] sm:$0xff]
  %v10051 = vld [vmem:[%s6 + $0x38] sm:$0xff]
  %v10052 = vld [vmem:[%s6 + $0x40] sm:$0xff]
  %v10053 = vld [vmem:[%s6 + $0x48] sm:$0xff]
  %v10054 = vld [vmem:[%s6 + $0x50] sm:$0xf]
  %10056 = vset.pattern.permute.xlu0 0
  %10057 = vperm.xlu0 %10056, %v10044
  %v10058 = vpop.permute.xlu0 %10057
  %10061 = vset.pattern.permute.xlu0 0
  %10062 = vperm.xlu0 %10061, %v10045
  %v10063 = vpop.permute.xlu0 %10062
  %10066 = vset.pattern.permute.xlu0 0
  %10067 = vperm.xlu0 %10066, %v10046
  %v10068 = vpop.permute.xlu0 %10067
  %10071 = vset.pattern.permute.xlu0 0
  %10072 = vperm.xlu0 %10071, %v10047
  %v10073 = vpop.permute.xlu0 %10072
  %10076 = vset.pattern.permute.xlu0 0
  %10077 = vperm.xlu0 %10076, %v10048
  %v10078 = vpop.permute.xlu0 %10077
  %10081 = vset.pattern.permute.xlu0 0
  %10082 = vperm.xlu0 %10081, %v10049
  %v10083 = vpop.permute.xlu0 %10082
  %10086 = vset.pattern.permute.xlu0 0
  %10087 = vperm.xlu0 %10086, %v10050
  %v10088 = vpop.permute.xlu0 %10087
  %10091 = vset.pattern.permute.xlu0 0
  %10092 = vperm.xlu0 %10091, %v10051
  %v10093 = vpop.permute.xlu0 %10092
  %10096 = vset.pattern.permute.xlu0 0
  %10097 = vperm.xlu0 %10096, %v10052
  %v10098 = vpop.permute.xlu0 %10097
  %10101 = vset.pattern.permute.xlu0 0
  %10102 = vperm.xlu0 %10101, %v10053
  %v10103 = vpop.permute.xlu0 %10102
  %10106 = vset.pattern.permute.xlu0 0
  %10107 = vperm.xlu0 %10106, %v10054
  %v10108 = vpop.permute.xlu0 %10107
  %vm10110 = vcmask 982016
  %v10112 = vsel %vm10110, %v10033, 0
  %v10115 = vsel %vm10110, %v10034, 0
  %v10118 = vsel %vm10110, %v10035, 0
  %v10121 = vsel %vm10110, %v10036, 0
  %v10124 = vsel %vm10110, %v10037, 0
  %v10127 = vsel %vm10110, %v10038, 0
  %v10130 = vsel %vm10110, %v10039, 0
  %v10133 = vsel %vm10110, %v10040, 0
  %v10136 = vsel %vm10110, %v10041, 0
  %v10139 = vsel %vm10110, %v10042, 0
  %v10142 = vsel %vm10110, %v10043, 0
  %10144 = vmatprep.subr.mxu0 0.0
  %10145 = vmatpush1.msra.mxu0 0.0
  %10146 = vmatprep.subr.mxu0 0.0
  %10147 = vmatpush1.msra.mxu0 %v10032
  %10148 = vmatprep.subr.mxu0 0.0
  %10149 = vmatpush1.msra.mxu0 %v10031
  %10150 = vmatprep.subr.mxu0 0.0
  %10151 = vmatpush1.msra.mxu0 %v10030
  %10152 = vmatprep.subr.mxu0 0.0
  %10153 = vmatpush1.msra.mxu0 %v10029
  %10154 = vmatprep.subr.mxu0 0.0
  %10155 = vmatpush1.msra.mxu0 %v10028
  %10156 = vmatprep.subr.mxu0 0.0
  %10157 = vmatpush1.msra.mxu0 %v10027
  %10158 = vmatprep.subr.mxu0 0.0
  %10159 = vmatpush1.msra.mxu0 %v10026
  %10160 = vmatprep.subr.mxu0 0.0
  %10161 = vmatpush1.msra.mxu0 %v10025
  %10162 = vmatprep.subr.mxu0 0.0
  %10163 = vmatpush1.msra.mxu0 %v10024
  %10164 = vmatprep.subr.mxu0 0.0
  %10165 = vmatpush1.msra.mxu0 %v10023
  %10166 = vmatprep.subr.mxu0 0.0
  %10167 = vmatpush1.msra.mxu0 %v10022
  %10168 = vmatprep.subr.mxu0 0.0
  %10169 = vmatpush1.msra.mxu0 %v10021
  %10170 = vmatprep.subr.mxu0 0.0
  %10171 = vmatpush1.msra.mxu0 %v10020
  %10172 = vmatprep.subr.mxu0 0.0
  %10173 = vmatpush1.msra.mxu0 %v10019
  %10174 = vmatprep.subr.mxu0 0.0
  %10175 = vmatpush1.msra.mxu0 %v10018
  %10176 = vmatprep.subr.mxu0 0.0
  %10177 = vmatpush2.msra.mxu0 0.0
  %10178 = vmatprep.subr.mxu0 0.0
  %10179 = vmatpush2.msra.mxu0 0.0
  %10180 = vmatprep.subr.mxu0 0.0
  %10181 = vmatpush2.msra.mxu0 0.0
  %10182 = vmatprep.subr.mxu0 0.0
  %10183 = vmatpush2.msra.mxu0 0.0
  %10184 = vmatprep.subr.mxu0 0.0
  %10185 = vmatpush2.msra.mxu0 0.0
  %10186 = vmatprep.subr.mxu0 0.0
  %10187 = vmatpush2.msra.mxu0 0.0
  %10188 = vmatprep.subr.mxu0 0.0
  %10189 = vmatpush2.msra.mxu0 0.0
  %10190 = vmatprep.subr.mxu0 0.0
  %10191 = vmatpush2.msra.mxu0 0.0
  %10192 = vmatprep.subr.mxu0 0.0
  %10193 = vmatpush2.msra.mxu0 0.0
  %10194 = vmatprep.subr.mxu0 0.0
  %10195 = vmatpush2.msra.mxu0 0.0
  %10196 = vmatprep.subr.mxu0 0.0
  %10197 = vmatpush2.msra.mxu0 0.0
  %10198 = vmatprep.subr.mxu0 0.0
  %10199 = vmatpush2.msra.mxu0 0.0
  %10200 = vmatprep.subr.mxu0 0.0
  %10201 = vmatpush2.msra.mxu0 0.0
  %10202 = vmatprep.subr.mxu0 0.0
  %10203 = vmatpush2.msra.mxu0 0.0
  %10204 = vmatprep.subr.mxu0 0.0
  %10205 = vmatpush2.msra.mxu0 0.0
  %10206 = vmatprep.subr.mxu0 0.0
  %10207 = vmatpush2.msra.mxu0 0.0
  %10208 = vmatprep.mubr.f32.mxu0 0.0
  %10209 = vmatmul.mubr.f32.gmra.mxu0 %v10112
  %v10210 = vpop.f32.mrf.mxu0
  %v10211 = vadd.f32 %v10058, %v10210
  %v10212 = vpop.f32.mrf.mxu0
  %10213 = vmatprep.mubr.f32.mxu0 0.0
  %10214 = vmatmul.mubr.f32.gmra.mxu0 %v10115
  %v10215 = vpop.f32.mrf.mxu0
  %v10216 = vadd.f32 %v10063, %v10215
  %v10217 = vpop.f32.mrf.mxu0
  %10218 = vmatprep.mubr.f32.mxu0 0.0
  %10219 = vmatmul.mubr.f32.gmra.mxu0 %v10118
  %v10220 = vpop.f32.mrf.mxu0
  %v10221 = vadd.f32 %v10068, %v10220
  %v10222 = vpop.f32.mrf.mxu0
  %10223 = vmatprep.mubr.f32.mxu0 0.0
  %10224 = vmatmul.mubr.f32.gmra.mxu0 %v10121
  %v10225 = vpop.f32.mrf.mxu0
  %v10226 = vadd.f32 %v10073, %v10225
  %v10227 = vpop.f32.mrf.mxu0
  %10228 = vmatprep.mubr.f32.mxu0 0.0
  %10229 = vmatmul.mubr.f32.gmra.mxu0 %v10124
  %v10230 = vpop.f32.mrf.mxu0
  %v10231 = vadd.f32 %v10078, %v10230
  %v10232 = vpop.f32.mrf.mxu0
  %10233 = vmatprep.mubr.f32.mxu0 0.0
  %10234 = vmatmul.mubr.f32.gmra.mxu0 %v10127
  %v10235 = vpop.f32.mrf.mxu0
  %v10236 = vadd.f32 %v10083, %v10235
  %v10237 = vpop.f32.mrf.mxu0
  %10238 = vmatprep.mubr.f32.mxu0 0.0
  %10239 = vmatmul.mubr.f32.gmra.mxu0 %v10130
  %v10240 = vpop.f32.mrf.mxu0
  %v10241 = vadd.f32 %v10088, %v10240
  %v10242 = vpop.f32.mrf.mxu0
  %10243 = vmatprep.mubr.f32.mxu0 0.0
  %10244 = vmatmul.mubr.f32.gmra.mxu0 %v10133
  %v10245 = vpop.f32.mrf.mxu0
  %v10246 = vadd.f32 %v10093, %v10245
  %v10247 = vpop.f32.mrf.mxu0
  %10248 = vmatprep.mubr.f32.mxu0 0.0
  %10249 = vmatmul.mubr.f32.gmra.mxu0 %v10136
  %v10250 = vpop.f32.mrf.mxu0
  %v10251 = vadd.f32 %v10098, %v10250
  %v10252 = vpop.f32.mrf.mxu0
  %10253 = vmatprep.mubr.f32.mxu0 0.0
  %10254 = vmatmul.mubr.f32.gmra.mxu0 %v10139
  %v10255 = vpop.f32.mrf.mxu0
  %v10256 = vadd.f32 %v10103, %v10255
  %v10257 = vpop.f32.mrf.mxu0
  %10258 = vmatprep.mubr.f32.mxu0 0.0
  %10259 = vmatmul.mubr.f32.gmra.mxu0 %v10142
  %v10260 = vpop.f32.mrf.mxu0
  %v10261 = vadd.f32 %v10108, %v10260
  %v10262 = vpop.f32.mrf.mxu0
  %10263 = vdwg.mxu0
  %v10264 = vmax.f32 %v10211, 0.0
  %v10265 = vmax.f32 %v10216, 0.0
  %v10266 = vmax.f32 %v10221, 0.0
  %v10267 = vmax.f32 %v10226, 0.0
  %v10268 = vmax.f32 %v10231, 0.0
  %v10269 = vmax.f32 %v10236, 0.0
  %v10270 = vmax.f32 %v10241, 0.0
  %v10271 = vmax.f32 %v10246, 0.0
  %v10272 = vmax.f32 %v10251, 0.0
  %v10273 = vmax.f32 %v10256, 0.0
  %v10274 = vmax.f32 %v10261, 0.0
  %v10275 = vld [vmem:[%s7] sm:$0xff]
  %v10276 = vld [vmem:[%s7 + $0x8] sm:$0x3]
  %v10277 = vld [vmem:[%s8] sm:$0xff]
  %v10278 = vld [vmem:[%s8 + $0x8] sm:$0x3]
  %10280 = vset.pattern.permute.xlu0 0
  %10281 = vperm.xlu0 %10280, %v10277
  %v10282 = vpop.permute.xlu0 %10281
  %10285 = vset.pattern.permute.xlu0 0
  %10286 = vperm.xlu0 %10285, %v10278
  %v10287 = vpop.permute.xlu0 %10286
  %vm10289 = vcmask 687104
  %v10291 = vsel %vm10289, %v10275, 0
  %v10294 = vsel %vm10289, %v10276, 0
  %vm10296 = vcmask 1043456
  %v10298 = vsel %vm10296, %v10274, 0
  %10300 = vmatprep.subr.mxu0 0.0
  %10301 = vmatpush1.msra.mxu0 0.0
  %10302 = vmatprep.subr.mxu0 0.0
  %10303 = vmatpush1.msra.mxu0 0.0
  %10304 = vmatprep.subr.mxu0 0.0
  %10305 = vmatpush1.msra.mxu0 0.0
  %10306 = vmatprep.subr.mxu0 0.0
  %10307 = vmatpush1.msra.mxu0 0.0
  %10308 = vmatprep.subr.mxu0 0.0
  %10309 = vmatpush1.msra.mxu0 0.0
  %10310 = vmatprep.subr.mxu0 0.0
  %10311 = vmatpush1.msra.mxu0 %v10298
  %10312 = vmatprep.subr.mxu0 0.0
  %10313 = vmatpush1.msra.mxu0 %v10273
  %10314 = vmatprep.subr.mxu0 0.0
  %10315 = vmatpush1.msra.mxu0 %v10272
  %10316 = vmatprep.subr.mxu0 0.0
  %10317 = vmatpush1.msra.mxu0 %v10271
  %10318 = vmatprep.subr.mxu0 0.0
  %10319 = vmatpush1.msra.mxu0 %v10270
  %10320 = vmatprep.subr.mxu0 0.0
  %10321 = vmatpush1.msra.mxu0 %v10269
  %10322 = vmatprep.subr.mxu0 0.0
  %10323 = vmatpush1.msra.mxu0 %v10268
  %10324 = vmatprep.subr.mxu0 0.0
  %10325 = vmatpush1.msra.mxu0 %v10267
  %10326 = vmatprep.subr.mxu0 0.0
  %10327 = vmatpush1.msra.mxu0 %v10266
  %10328 = vmatprep.subr.mxu0 0.0
  %10329 = vmatpush1.msra.mxu0 %v10265
  %10330 = vmatprep.subr.mxu0 0.0
  %10331 = vmatpush1.msra.mxu0 %v10264
  %10332 = vmatprep.subr.mxu0 0.0
  %10333 = vmatpush2.msra.mxu0 0.0
  %10334 = vmatprep.subr.mxu0 0.0
  %10335 = vmatpush2.msra.mxu0 0.0
  %10336 = vmatprep.subr.mxu0 0.0
  %10337 = vmatpush2.msra.mxu0 0.0
  %10338 = vmatprep.subr.mxu0 0.0
  %10339 = vmatpush2.msra.mxu0 0.0
  %10340 = vmatprep.subr.mxu0 0.0
  %10341 = vmatpush2.msra.mxu0 0.0
  %10342 = vmatprep.subr.mxu0 0.0
  %10343 = vmatpush2.msra.mxu0 0.0
  %10344 = vmatprep.subr.mxu0 0.0
  %10345 = vmatpush2.msra.mxu0 0.0
  %10346 = vmatprep.subr.mxu0 0.0
  %10347 = vmatpush2.msra.mxu0 0.0
  %10348 = vmatprep.subr.mxu0 0.0
  %10349 = vmatpush2.msra.mxu0 0.0
  %10350 = vmatprep.subr.mxu0 0.0
  %10351 = vmatpush2.msra.mxu0 0.0
  %10352 = vmatprep.subr.mxu0 0.0
  %10353 = vmatpush2.msra.mxu0 0.0
  %10354 = vmatprep.subr.mxu0 0.0
  %10355 = vmatpush2.msra.mxu0 0.0
  %10356 = vmatprep.subr.mxu0 0.0
  %10357 = vmatpush2.msra.mxu0 0.0
  %10358 = vmatprep.subr.mxu0 0.0
  %10359 = vmatpush2.msra.mxu0 0.0
  %10360 = vmatprep.subr.mxu0 0.0
  %10361 = vmatpush2.msra.mxu0 0.0
  %10362 = vmatprep.subr.mxu0 0.0
  %10363 = vmatpush2.msra.mxu0 0.0
  %10364 = vmatprep.mubr.f32.mxu0 0.0
  %10365 = vmatmul.mubr.f32.gmra.mxu0 %v10291
  %v10366 = vpop.f32.mrf.mxu0
  %v10367 = vadd.f32 %v10282, %v10366
  %v10368 = vpop.f32.mrf.mxu0
  %10369 = vmatprep.mubr.f32.mxu0 0.0
  %10370 = vmatmul.mubr.f32.gmra.mxu0 %v10294
  %v10371 = vpop.f32.mrf.mxu0
  %v10372 = vadd.f32 %v10287, %v10371
  %v10373 = vpop.f32.mrf.mxu0
  %10374 = vdwg.mxu0
  %vm10375 = vcmask 31744
  %10376 = vst.msk [vmem:[%s9] sm:$0xff] %vm10375, %v10367
  %vm10377 = vcmask 25600
  %10378 = vst.msk [vmem:[%s9 + $0x8] sm:$0x3] %vm10377, %v10372
  // Predicated region
  $region38: #{net_forward.3} parent=0 // pred_check
    _
  $region39: #{net_forward.3} parent=0 // pred_check_branch
    %10380 = sbr.rel (0) target = $region41
  $region40: #{net_forward.3} parent=0 // pred_region
    _
  $region41: #{net_forward.3} parent=0 // pred_fallthru
    _
  // Predicated region
  $region42: #{net_forward.3} parent=0 // pred_check
    _
  $region43: #{net_forward.3} parent=0 // pred_check_branch
    %10382 = sbr.rel (0) target = $region45
  $region44: #{net_forward.3} parent=0 // pred_region
    _
  $region45: #{net_forward.3} parent=0 // pred_fallthru
    _

</llo_original>
